<compile_context>
chip_gen: v6e
topology: v6e:2x2x1
jax: 0.10.0
libtpu: 0.0.40
codegen_flags: <defaults>
</compile_context>

<pallas_src>
import functools

import jax
import jax.numpy as jnp
from jax import lax
from jax.experimental import pallas as pl
from jax.experimental.pallas import tpu as pltpu


# ----------------------------------------------------------------------------
# Stage 1: ConvTranspose3d(k=2, s=2, no bias) + InstanceNorm3d(affine) + LeakyReLU
# Per batch item: 8 per-tap matmuls (Cout, Cin) @ (Cin, D*H*W), fused norm.
# ----------------------------------------------------------------------------
def _tconv_in_lrelu_kernel(x_ref, w_ref, g_ref, b_ref, o_ref, *, eps, slope):
    x = x_ref[0]                                   # (Cin, S1)
    taps = w_ref.shape[0]                          # 8
    cout = w_ref.shape[1]
    s1 = x.shape[-1]
    n_el = taps * s1                               # elements per instance-norm group

    # pass 1: per-tap matmuls + per-channel sums
    ys = []
    total = jnp.zeros((cout, 1), jnp.float32)
    for t in range(taps):
        y_t = jnp.dot(w_ref[t], x, preferred_element_type=jnp.float32)  # (Cout, S1)
        ys.append(y_t)
        total = total + jnp.sum(y_t, axis=1, keepdims=True)
    mean = total / n_el

    # pass 2: centered sum of squares (two-pass biased variance, PyTorch IN)
    cents = []
    sq = jnp.zeros((cout, 1), jnp.float32)
    for t in range(taps):
        c = ys[t] - mean
        cents.append(c)
        sq = sq + jnp.sum(c * c, axis=1, keepdims=True)
    inv = lax.rsqrt(sq / n_el + eps)

    # pass 3: affine + LeakyReLU + lane-dense stores (tap-major output layout)
    g = g_ref[...]                                 # (Cout, 1)
    b = b_ref[...]
    for t in range(taps):
        o = g * (cents[t] * inv) + b
        o_ref[0, t] = jnp.where(o >= 0, o, slope * o).astype(o_ref.dtype)


# ----------------------------------------------------------------------------
# Stage 2: Conv3d(k=3, pad=1, bias) + InstanceNorm3d(affine) + LeakyReLU
#          + fused channel concat with `bridge`.
# Per batch item: 27 tap contributions = masked lane-shifted windows of the
# flattened activation, each a (Cout, Cin) @ (Cin, S2) matmul into a VMEM acc.
# ----------------------------------------------------------------------------
def _conv3_in_lrelu_concat_kernel(x_ref, br_ref, di_ref, hi_ref, wi_ref,
                                  w_ref, bias_ref, g_ref, b_ref, o_ref, *,
                                  d2, h2, w2, lane_pad, eps, slope):
    s2 = d2 * h2 * w2
    cout = w_ref.shape[1]
    cb = br_ref.shape[1]

    di = di_ref[...]                               # (1, S2) int32 depth index
    hi = hi_ref[...]                               # (1, S2) int32 height index
    wi = wi_ref[...]                               # (1, S2) int32 width index
    # boundary masks for the shifted-window (zero padding) trick, hoisted
    lo_hi = (
        {0: di >= 1, 2: di <= d2 - 2},
        {0: hi >= 1, 2: hi <= h2 - 2},
        {0: wi >= 1, 2: wi <= w2 - 2},
    )

    acc = jnp.zeros((cout, s2), jnp.float32)
    for kd in range(3):
        for kh in range(3):
            for kw in range(3):
                t = kd * 9 + kh * 3 + kw
                off = (kd - 1) * h2 * w2 + (kh - 1) * w2 + (kw - 1)
                win = x_ref[0, :, pl.ds(lane_pad + off, s2)]   # (Cin, S2)
                mask = None
                for ax, k in zip(lo_hi, (kd, kh, kw)):
                    if k in ax:
                        mask = ax[k] if mask is None else jnp.logical_and(mask, ax[k])
                if mask is not None:
                    win = jnp.where(mask, win, 0.0)
                acc = acc + jnp.dot(w_ref[t], win,
                                    preferred_element_type=jnp.float32)

    acc = acc + bias_ref[...]                      # (Cout, 1) broadcast over lanes

    # InstanceNorm (two-pass, biased variance) + affine + LeakyReLU
    mean = jnp.mean(acc, axis=1, keepdims=True)
    cent = acc - mean
    var = jnp.mean(cent * cent, axis=1, keepdims=True)
    y = g_ref[...] * (cent * lax.rsqrt(var + eps)) + b_ref[...]
    y = jnp.where(y >= 0, y, slope * y)

    # fused torch.cat([conv_out, bridge], dim=1)
    o_ref[0, pl.ds(0, cout)] = y.astype(o_ref.dtype)
    o_ref[0, pl.ds(cout, cb)] = br_ref[0].astype(o_ref.dtype)


# ----------------------------------------------------------------------------
# Forward pass wrapper
# ----------------------------------------------------------------------------
def up_convolutional_block_forward(x, bridge, params, eps=1e-5, slope=0.01):
    N, Cin, D, H, W = x.shape
    Cout = params["tconv_w"].shape[1]
    Cb = bridge.shape[1]
    D2, H2, W2 = 2 * D, 2 * H, 2 * W
    S1 = D * H * W
    S2 = D2 * H2 * W2

    # same shape checks as the torch module
    assert bridge.shape[2] == D2 and bridge.shape[3] == H2 and bridge.shape[4] == W2

    cparams = pltpu.CompilerParams(
        dimension_semantics=("parallel",),          # 2 TCs on v7x; neutral on v5e/v6e
        vmem_limit_bytes=64 * 1024 * 1024,
    )

    # ------------------ stage 1: tconv + IN + LeakyReLU -------------------
    x_flat = x.reshape(N, Cin, S1).astype(jnp.float32)
    # w_taps1[t, co, ci] = tconv_w[ci, co, p, q, r],  t = p*4 + q*2 + r
    w_taps1 = jnp.transpose(params["tconv_w"], (2, 3, 4, 1, 0)).reshape(8, Cout, Cin)
    g1 = params["in1_g"].reshape(Cout, 1)
    b1 = params["in1_b"].reshape(Cout, 1)

    y1 = pl.pallas_call(
        functools.partial(_tconv_in_lrelu_kernel, eps=eps, slope=slope),
        out_shape=jax.ShapeDtypeStruct((N, 8, Cout, S1), jnp.float32),
        grid=(N,),
        in_specs=[
            pl.BlockSpec((1, Cin, S1), lambda n: (n, 0, 0)),
            pl.BlockSpec((8, Cout, Cin), lambda n: (0, 0, 0)),
            pl.BlockSpec((Cout, 1), lambda n: (0, 0)),
            pl.BlockSpec((Cout, 1), lambda n: (0, 0)),
        ],
        out_specs=pl.BlockSpec((1, 8, Cout, S1), lambda n: (n, 0, 0, 0)),
        compiler_params=cparams,
    )(x_flat, w_taps1, g1, b1)

    # interleave taps into the upsampled spatial layout (single XLA pass)
    y = y1.reshape(N, 2, 2, 2, Cout, D, H, W)            # (n, p, q, r, co, d, h, w)
    y = jnp.transpose(y, (0, 4, 5, 1, 6, 2, 7, 3))       # (n, co, d, p, h, q, w, r)
    y = y.reshape(N, Cout, S2)

    # ------------------ stage 2: conv3x3x3 + IN + LeakyReLU + concat ------
    lane_pad = H2 * W2 + W2 + 1                          # max |flattened tap offset|
    Sp = S2 + 2 * lane_pad
    xpad = jnp.pad(y, ((0, 0), (0, 0), (lane_pad, lane_pad)))

    sidx = jnp.arange(S2, dtype=jnp.int32)
    di = (sidx // (H2 * W2)).reshape(1, S2)
    hi = ((sidx // W2) % H2).reshape(1, S2)
    wi = (sidx % W2).reshape(1, S2)

    # w_taps2[t, co, ci] = conv_w[co, ci, kd, kh, kw],  t = kd*9 + kh*3 + kw
    w_taps2 = jnp.transpose(params["conv_w"], (2, 3, 4, 0, 1)).reshape(27, Cout, Cout)
    bias2 = params["conv_b"].reshape(Cout, 1)
    g2 = params["in2_g"].reshape(Cout, 1)
    b2 = params["in2_b"].reshape(Cout, 1)
    bridge_flat = bridge.reshape(N, Cb, S2).astype(jnp.float32)

    out = pl.pallas_call(
        functools.partial(_conv3_in_lrelu_concat_kernel,
                          d2=D2, h2=H2, w2=W2, lane_pad=lane_pad,
                          eps=eps, slope=slope),
        out_shape=jax.ShapeDtypeStruct((N, Cout + Cb, S2), jnp.float32),
        grid=(N,),
        in_specs=[
            pl.BlockSpec((1, Cout, Sp), lambda n: (n, 0, 0)),
            pl.BlockSpec((1, Cb, S2), lambda n: (n, 0, 0)),
            pl.BlockSpec((1, S2), lambda n: (0, 0)),
            pl.BlockSpec((1, S2), lambda n: (0, 0)),
            pl.BlockSpec((1, S2), lambda n: (0, 0)),
            pl.BlockSpec((27, Cout, Cout), lambda n: (0, 0, 0)),
            pl.BlockSpec((Cout, 1), lambda n: (0, 0)),
            pl.BlockSpec((Cout, 1), lambda n: (0, 0)),
            pl.BlockSpec((Cout, 1), lambda n: (0, 0)),
        ],
        out_specs=pl.BlockSpec((1, Cout + Cb, S2), lambda n: (n, 0, 0)),
        compiler_params=cparams,
    )(xpad, bridge_flat, di, hi, wi, w_taps2, bias2, g2, b2)

    return out.reshape(N, Cout + Cb, D2, H2, W2)


# ----------------------------------------------------------------------------
# Pure-JAX reference (for the in-script correctness check)
# ----------------------------------------------------------------------------
def _ref_forward(x, bridge, params, eps=1e-5, slope=0.01):
    N, Cin, D, H, W = x.shape
    Cout = params["tconv_w"].shape[1]
    D2, H2, W2 = 2 * D, 2 * H, 2 * W

    # transposed conv k=2 s=2 (no bias)
    t = jnp.einsum("ncdhw,cokpq->ndhwokpq", x, params["tconv_w"])
    t = jnp.transpose(t, (0, 4, 1, 5, 2, 6, 3, 7)).reshape(N, Cout, D2, H2, W2)

    def inorm_lrelu(v, g, b):
        m = jnp.mean(v, axis=(2, 3, 4), keepdims=True)
        var = jnp.mean(jnp.square(v - m), axis=(2, 3, 4), keepdims=True)
        vh = (v - m) / jnp.sqrt(var + eps)
        o = g[None, :, None, None, None] * vh + b[None, :, None, None, None]
        return jnp.where(o >= 0, o, slope * o)

    t = inorm_lrelu(t, params["in1_g"], params["in1_b"])

    c = lax.conv_general_dilated(
        t, params["conv_w"], window_strides=(1, 1, 1), padding=[(1, 1)] * 3,
        dimension_numbers=("NCDHW", "OIDHW", "NCDHW"))
    c = c + params["conv_b"][None, :, None, None, None]
    c = inorm_lrelu(c, params["in2_g"], params["in2_b"])
    return jnp.concatenate([c, bridge], axis=1)


# ----------------------------------------------------------------------------
if __name__ == "__main__":
    key = jax.random.PRNGKey(0)
    kx, kb, k1, k2, k3, k4, k5, k6, k7 = jax.random.split(key, 9)

    N, Cin, Cout = 2, 8, 4
    D = H = W = 4
    Cbridge = 4

    x = jax.random.normal(kx, (N, Cin, D, H, W), jnp.float32)
    bridge = jax.random.normal(kb, (N, Cbridge, 2 * D, 2 * H, 2 * W), jnp.float32)

    params = {
        # ConvTranspose3d weight: (in, out, kD, kH, kW), no bias
        "tconv_w": 0.1 * jax.random.normal(k1, (Cin, Cout, 2, 2, 2), jnp.float32),
        "in1_g": 1.0 + 0.1 * jax.random.normal(k2, (Cout,), jnp.float32),
        "in1_b": 0.1 * jax.random.normal(k3, (Cout,), jnp.float32),
        # Conv3d weight: (out, in, 3, 3, 3) + bias
        "conv_w": 0.1 * jax.random.normal(k4, (Cout, Cout, 3, 3, 3), jnp.float32),
        "conv_b": 0.1 * jax.random.normal(k5, (Cout,), jnp.float32),
        "in2_g": 1.0 + 0.1 * jax.random.normal(k6, (Cout,), jnp.float32),
        "in2_b": 0.1 * jax.random.normal(k7, (Cout,), jnp.float32),
    }

    out = jax.jit(up_convolutional_block_forward)(x, bridge, params)
    out = jax.block_until_ready(out)

    assert out.shape == (N, Cout + Cbridge, 2 * D, 2 * H, 2 * W), out.shape

    ref = _ref_forward(x, bridge, params)
    if not jnp.allclose(out, ref, atol=2e-3, rtol=2e-3):
        raise AssertionError(
            f"mismatch vs reference, max abs diff {float(jnp.max(jnp.abs(out - ref)))}")

    print("KERNEL_OK")
</pallas_src>

<mosaic_0001>
module attributes {stable_mosaic.version = 11 : i64} {
  func.func @_tconv_in_lrelu_kernel(%arg0: i32, %arg1: memref<1x8x64xf32, #tpu.memory_space<vmem>>, %arg2: memref<8x4x8xf32, #tpu.memory_space<vmem>>, %arg3: memref<4x1xf32, #tpu.memory_space<vmem>>, %arg4: memref<4x1xf32, #tpu.memory_space<vmem>>, %arg5: memref<1x8x4x64xf32, #tpu.memory_space<vmem>>) attributes {dimension_semantics = [#tpu.dimension_semantics<parallel>], iteration_bounds = array<i64: 2>, scalar_prefetch = 0 : i64, scratch_operands = 0 : i64, tpu.core_type = #tpu.core_type<tc>, window_params = [{transform_indices = @transform_0, window_bounds = array<i64: 1, 8, 64>}, {pipeline_mode = #tpu.pipeline_mode<synchronous>, transform_indices = @transform_1, window_bounds = array<i64: 8, 4, 8>}, {pipeline_mode = #tpu.pipeline_mode<synchronous>, transform_indices = @transform_2, window_bounds = array<i64: 4, 1>}, {pipeline_mode = #tpu.pipeline_mode<synchronous>, transform_indices = @transform_3, window_bounds = array<i64: 4, 1>}, {transform_indices = @transform_4, window_bounds = array<i64: 1, 8, 4, 64>}]} {
    %c0 = arith.constant 0 : index
    %c0_0 = arith.constant 0 : index
    %c0_1 = arith.constant 0 : index
    %0 = vector.load %arg1[%c0, %c0_0, %c0_1] : memref<1x8x64xf32, #tpu.memory_space<vmem>>, vector<1x8x64xf32>
    %1 = vector.shape_cast %0 : vector<1x8x64xf32> to vector<8x64xf32>
    %cst = arith.constant 0.000000e+00 : f32
    %2 = vector.broadcast %cst : f32 to vector<4x1xf32>
    %c0_2 = arith.constant 0 : index
    %c0_3 = arith.constant 0 : index
    %c0_4 = arith.constant 0 : index
    %3 = vector.load %arg2[%c0_2, %c0_3, %c0_4] : memref<8x4x8xf32, #tpu.memory_space<vmem>>, vector<1x4x8xf32>
    %4 = vector.shape_cast %3 : vector<1x4x8xf32> to vector<4x8xf32>
    %cst_5 = arith.constant dense<0.000000e+00> : vector<4x64xf32>
    %5 = tpu.matmul %4, %1, %cst_5 {dimension_numbers = #tpu.dot_dimension_numbers<[1], [0], [0], [1], [0, 0, 1, 1], [], []>} : vector<4x8xf32>, vector<8x64xf32>, vector<4x64xf32> -> vector<4x64xf32>
    %cst_6 = arith.constant dense<0.000000e+00> : vector<4xf32>
    %6 = vector.multi_reduction <add>, %5, %cst_6 [1] : vector<4x64xf32> to vector<4xf32>
    %7 = vector.shape_cast %6 : vector<4xf32> to vector<4x1xf32>
    %8 = arith.addf %2, %7 : vector<4x1xf32>
    %c1 = arith.constant 1 : index
    %c0_7 = arith.constant 0 : index
    %c0_8 = arith.constant 0 : index
    %9 = vector.load %arg2[%c1, %c0_7, %c0_8] : memref<8x4x8xf32, #tpu.memory_space<vmem>>, vector<1x4x8xf32>
    %10 = vector.shape_cast %9 : vector<1x4x8xf32> to vector<4x8xf32>
    %cst_9 = arith.constant dense<0.000000e+00> : vector<4x64xf32>
    %11 = tpu.matmul %10, %1, %cst_9 {dimension_numbers = #tpu.dot_dimension_numbers<[1], [0], [0], [1], [0, 0, 1, 1], [], []>} : vector<4x8xf32>, vector<8x64xf32>, vector<4x64xf32> -> vector<4x64xf32>
    %cst_10 = arith.constant dense<0.000000e+00> : vector<4xf32>
    %12 = vector.multi_reduction <add>, %11, %cst_10 [1] : vector<4x64xf32> to vector<4xf32>
    %13 = vector.shape_cast %12 : vector<4xf32> to vector<4x1xf32>
    %14 = arith.addf %8, %13 : vector<4x1xf32>
    %c2 = arith.constant 2 : index
    %c0_11 = arith.constant 0 : index
    %c0_12 = arith.constant 0 : index
    %15 = vector.load %arg2[%c2, %c0_11, %c0_12] : memref<8x4x8xf32, #tpu.memory_space<vmem>>, vector<1x4x8xf32>
    %16 = vector.shape_cast %15 : vector<1x4x8xf32> to vector<4x8xf32>
    %cst_13 = arith.constant dense<0.000000e+00> : vector<4x64xf32>
    %17 = tpu.matmul %16, %1, %cst_13 {dimension_numbers = #tpu.dot_dimension_numbers<[1], [0], [0], [1], [0, 0, 1, 1], [], []>} : vector<4x8xf32>, vector<8x64xf32>, vector<4x64xf32> -> vector<4x64xf32>
    %cst_14 = arith.constant dense<0.000000e+00> : vector<4xf32>
    %18 = vector.multi_reduction <add>, %17, %cst_14 [1] : vector<4x64xf32> to vector<4xf32>
    %19 = vector.shape_cast %18 : vector<4xf32> to vector<4x1xf32>
    %20 = arith.addf %14, %19 : vector<4x1xf32>
    %c3 = arith.constant 3 : index
    %c0_15 = arith.constant 0 : index
    %c0_16 = arith.constant 0 : index
    %21 = vector.load %arg2[%c3, %c0_15, %c0_16] : memref<8x4x8xf32, #tpu.memory_space<vmem>>, vector<1x4x8xf32>
    %22 = vector.shape_cast %21 : vector<1x4x8xf32> to vector<4x8xf32>
    %cst_17 = arith.constant dense<0.000000e+00> : vector<4x64xf32>
    %23 = tpu.matmul %22, %1, %cst_17 {dimension_numbers = #tpu.dot_dimension_numbers<[1], [0], [0], [1], [0, 0, 1, 1], [], []>} : vector<4x8xf32>, vector<8x64xf32>, vector<4x64xf32> -> vector<4x64xf32>
    %cst_18 = arith.constant dense<0.000000e+00> : vector<4xf32>
    %24 = vector.multi_reduction <add>, %23, %cst_18 [1] : vector<4x64xf32> to vector<4xf32>
    %25 = vector.shape_cast %24 : vector<4xf32> to vector<4x1xf32>
    %26 = arith.addf %20, %25 : vector<4x1xf32>
    %c4 = arith.constant 4 : index
    %c0_19 = arith.constant 0 : index
    %c0_20 = arith.constant 0 : index
    %27 = vector.load %arg2[%c4, %c0_19, %c0_20] : memref<8x4x8xf32, #tpu.memory_space<vmem>>, vector<1x4x8xf32>
    %28 = vector.shape_cast %27 : vector<1x4x8xf32> to vector<4x8xf32>
    %cst_21 = arith.constant dense<0.000000e+00> : vector<4x64xf32>
    %29 = tpu.matmul %28, %1, %cst_21 {dimension_numbers = #tpu.dot_dimension_numbers<[1], [0], [0], [1], [0, 0, 1, 1], [], []>} : vector<4x8xf32>, vector<8x64xf32>, vector<4x64xf32> -> vector<4x64xf32>
    %cst_22 = arith.constant dense<0.000000e+00> : vector<4xf32>
    %30 = vector.multi_reduction <add>, %29, %cst_22 [1] : vector<4x64xf32> to vector<4xf32>
    %31 = vector.shape_cast %30 : vector<4xf32> to vector<4x1xf32>
    %32 = arith.addf %26, %31 : vector<4x1xf32>
    %c5 = arith.constant 5 : index
    %c0_23 = arith.constant 0 : index
    %c0_24 = arith.constant 0 : index
    %33 = vector.load %arg2[%c5, %c0_23, %c0_24] : memref<8x4x8xf32, #tpu.memory_space<vmem>>, vector<1x4x8xf32>
    %34 = vector.shape_cast %33 : vector<1x4x8xf32> to vector<4x8xf32>
    %cst_25 = arith.constant dense<0.000000e+00> : vector<4x64xf32>
    %35 = tpu.matmul %34, %1, %cst_25 {dimension_numbers = #tpu.dot_dimension_numbers<[1], [0], [0], [1], [0, 0, 1, 1], [], []>} : vector<4x8xf32>, vector<8x64xf32>, vector<4x64xf32> -> vector<4x64xf32>
    %cst_26 = arith.constant dense<0.000000e+00> : vector<4xf32>
    %36 = vector.multi_reduction <add>, %35, %cst_26 [1] : vector<4x64xf32> to vector<4xf32>
    %37 = vector.shape_cast %36 : vector<4xf32> to vector<4x1xf32>
    %38 = arith.addf %32, %37 : vector<4x1xf32>
    %c6 = arith.constant 6 : index
    %c0_27 = arith.constant 0 : index
    %c0_28 = arith.constant 0 : index
    %39 = vector.load %arg2[%c6, %c0_27, %c0_28] : memref<8x4x8xf32, #tpu.memory_space<vmem>>, vector<1x4x8xf32>
    %40 = vector.shape_cast %39 : vector<1x4x8xf32> to vector<4x8xf32>
    %cst_29 = arith.constant dense<0.000000e+00> : vector<4x64xf32>
    %41 = tpu.matmul %40, %1, %cst_29 {dimension_numbers = #tpu.dot_dimension_numbers<[1], [0], [0], [1], [0, 0, 1, 1], [], []>} : vector<4x8xf32>, vector<8x64xf32>, vector<4x64xf32> -> vector<4x64xf32>
    %cst_30 = arith.constant dense<0.000000e+00> : vector<4xf32>
    %42 = vector.multi_reduction <add>, %41, %cst_30 [1] : vector<4x64xf32> to vector<4xf32>
    %43 = vector.shape_cast %42 : vector<4xf32> to vector<4x1xf32>
    %44 = arith.addf %38, %43 : vector<4x1xf32>
    %c7 = arith.constant 7 : index
    %c0_31 = arith.constant 0 : index
    %c0_32 = arith.constant 0 : index
    %45 = vector.load %arg2[%c7, %c0_31, %c0_32] : memref<8x4x8xf32, #tpu.memory_space<vmem>>, vector<1x4x8xf32>
    %46 = vector.shape_cast %45 : vector<1x4x8xf32> to vector<4x8xf32>
    %cst_33 = arith.constant dense<0.000000e+00> : vector<4x64xf32>
    %47 = tpu.matmul %46, %1, %cst_33 {dimension_numbers = #tpu.dot_dimension_numbers<[1], [0], [0], [1], [0, 0, 1, 1], [], []>} : vector<4x8xf32>, vector<8x64xf32>, vector<4x64xf32> -> vector<4x64xf32>
    %cst_34 = arith.constant dense<0.000000e+00> : vector<4xf32>
    %48 = vector.multi_reduction <add>, %47, %cst_34 [1] : vector<4x64xf32> to vector<4xf32>
    %49 = vector.shape_cast %48 : vector<4xf32> to vector<4x1xf32>
    %50 = arith.addf %44, %49 : vector<4x1xf32>
    %cst_35 = arith.constant 5.120000e+02 : f32
    %51 = vector.broadcast %cst_35 : f32 to vector<4x1xf32>
    %52 = arith.divf %50, %51 : vector<4x1xf32>
    %cst_36 = arith.constant 0.000000e+00 : f32
    %53 = vector.broadcast %cst_36 : f32 to vector<4x1xf32>
    %54 = vector.broadcast %52 : vector<4x1xf32> to vector<4x64xf32>
    %55 = arith.subf %5, %54 : vector<4x64xf32>
    %56 = arith.mulf %55, %55 : vector<4x64xf32>
    %cst_37 = arith.constant dense<0.000000e+00> : vector<4xf32>
    %57 = vector.multi_reduction <add>, %56, %cst_37 [1] : vector<4x64xf32> to vector<4xf32>
    %58 = vector.shape_cast %57 : vector<4xf32> to vector<4x1xf32>
    %59 = arith.addf %53, %58 : vector<4x1xf32>
    %60 = vector.broadcast %52 : vector<4x1xf32> to vector<4x64xf32>
    %61 = arith.subf %11, %60 : vector<4x64xf32>
    %62 = arith.mulf %61, %61 : vector<4x64xf32>
    %cst_38 = arith.constant dense<0.000000e+00> : vector<4xf32>
    %63 = vector.multi_reduction <add>, %62, %cst_38 [1] : vector<4x64xf32> to vector<4xf32>
    %64 = vector.shape_cast %63 : vector<4xf32> to vector<4x1xf32>
    %65 = arith.addf %59, %64 : vector<4x1xf32>
    %66 = vector.broadcast %52 : vector<4x1xf32> to vector<4x64xf32>
    %67 = arith.subf %17, %66 : vector<4x64xf32>
    %68 = arith.mulf %67, %67 : vector<4x64xf32>
    %cst_39 = arith.constant dense<0.000000e+00> : vector<4xf32>
    %69 = vector.multi_reduction <add>, %68, %cst_39 [1] : vector<4x64xf32> to vector<4xf32>
    %70 = vector.shape_cast %69 : vector<4xf32> to vector<4x1xf32>
    %71 = arith.addf %65, %70 : vector<4x1xf32>
    %72 = vector.broadcast %52 : vector<4x1xf32> to vector<4x64xf32>
    %73 = arith.subf %23, %72 : vector<4x64xf32>
    %74 = arith.mulf %73, %73 : vector<4x64xf32>
    %cst_40 = arith.constant dense<0.000000e+00> : vector<4xf32>
    %75 = vector.multi_reduction <add>, %74, %cst_40 [1] : vector<4x64xf32> to vector<4xf32>
    %76 = vector.shape_cast %75 : vector<4xf32> to vector<4x1xf32>
    %77 = arith.addf %71, %76 : vector<4x1xf32>
    %78 = vector.broadcast %52 : vector<4x1xf32> to vector<4x64xf32>
    %79 = arith.subf %29, %78 : vector<4x64xf32>
    %80 = arith.mulf %79, %79 : vector<4x64xf32>
    %cst_41 = arith.constant dense<0.000000e+00> : vector<4xf32>
    %81 = vector.multi_reduction <add>, %80, %cst_41 [1] : vector<4x64xf32> to vector<4xf32>
    %82 = vector.shape_cast %81 : vector<4xf32> to vector<4x1xf32>
    %83 = arith.addf %77, %82 : vector<4x1xf32>
    %84 = vector.broadcast %52 : vector<4x1xf32> to vector<4x64xf32>
    %85 = arith.subf %35, %84 : vector<4x64xf32>
    %86 = arith.mulf %85, %85 : vector<4x64xf32>
    %cst_42 = arith.constant dense<0.000000e+00> : vector<4xf32>
    %87 = vector.multi_reduction <add>, %86, %cst_42 [1] : vector<4x64xf32> to vector<4xf32>
    %88 = vector.shape_cast %87 : vector<4xf32> to vector<4x1xf32>
    %89 = arith.addf %83, %88 : vector<4x1xf32>
    %90 = vector.broadcast %52 : vector<4x1xf32> to vector<4x64xf32>
    %91 = arith.subf %41, %90 : vector<4x64xf32>
    %92 = arith.mulf %91, %91 : vector<4x64xf32>
    %cst_43 = arith.constant dense<0.000000e+00> : vector<4xf32>
    %93 = vector.multi_reduction <add>, %92, %cst_43 [1] : vector<4x64xf32> to vector<4xf32>
    %94 = vector.shape_cast %93 : vector<4xf32> to vector<4x1xf32>
    %95 = arith.addf %89, %94 : vector<4x1xf32>
    %96 = vector.broadcast %52 : vector<4x1xf32> to vector<4x64xf32>
    %97 = arith.subf %47, %96 : vector<4x64xf32>
    %98 = arith.mulf %97, %97 : vector<4x64xf32>
    %cst_44 = arith.constant dense<0.000000e+00> : vector<4xf32>
    %99 = vector.multi_reduction <add>, %98, %cst_44 [1] : vector<4x64xf32> to vector<4xf32>
    %100 = vector.shape_cast %99 : vector<4xf32> to vector<4x1xf32>
    %101 = arith.addf %95, %100 : vector<4x1xf32>
    %cst_45 = arith.constant 5.120000e+02 : f32
    %102 = vector.broadcast %cst_45 : f32 to vector<4x1xf32>
    %103 = arith.divf %101, %102 : vector<4x1xf32>
    %cst_46 = arith.constant 9.99999974E-6 : f32
    %104 = vector.broadcast %cst_46 : f32 to vector<4x1xf32>
    %105 = arith.addf %103, %104 : vector<4x1xf32>
    %106 = math.rsqrt %105 : vector<4x1xf32>
    %c0_47 = arith.constant 0 : index
    %c0_48 = arith.constant 0 : index
    %107 = vector.load %arg3[%c0_47, %c0_48] : memref<4x1xf32, #tpu.memory_space<vmem>>, vector<4x1xf32>
    %c0_49 = arith.constant 0 : index
    %c0_50 = arith.constant 0 : index
    %108 = vector.load %arg4[%c0_49, %c0_50] : memref<4x1xf32, #tpu.memory_space<vmem>>, vector<4x1xf32>
    %109 = vector.broadcast %106 : vector<4x1xf32> to vector<4x64xf32>
    %110 = arith.mulf %55, %109 : vector<4x64xf32>
    %111 = vector.broadcast %107 : vector<4x1xf32> to vector<4x64xf32>
    %112 = arith.mulf %111, %110 : vector<4x64xf32>
    %113 = vector.broadcast %108 : vector<4x1xf32> to vector<4x64xf32>
    %114 = arith.addf %112, %113 : vector<4x64xf32>
    %cst_51 = arith.constant 0.000000e+00 : f32
    %115 = vector.broadcast %cst_51 : f32 to vector<4x64xf32>
    %116 = arith.cmpf oge, %114, %115 : vector<4x64xf32>
    %cst_52 = arith.constant 0.00999999977 : f32
    %117 = vector.broadcast %cst_52 : f32 to vector<4x64xf32>
    %118 = arith.mulf %117, %114 : vector<4x64xf32>
    %119 = arith.select %116, %114, %118 : vector<4x64xi1>, vector<4x64xf32>
    %c0_53 = arith.constant 0 : index
    %c0_54 = arith.constant 0 : index
    %c0_55 = arith.constant 0 : index
    %c0_56 = arith.constant 0 : index
    %120 = vector.load %arg5[%c0_53, %c0_54, %c0_55, %c0_56] : memref<1x8x4x64xf32, #tpu.memory_space<vmem>>, vector<1x1x4x64xf32>
    %121 = vector.shape_cast %120 : vector<1x1x4x64xf32> to vector<4x64xf32>
    %122 = vector.shape_cast %119 : vector<4x64xf32> to vector<1x1x4x64xf32>
    tpu.vector_store %arg5[%c0_53, %c0_54, %c0_55, %c0_56], %122 {strides = array<i32>} : memref<1x8x4x64xf32, #tpu.memory_space<vmem>>, vector<1x1x4x64xf32>,
    %123 = vector.broadcast %106 : vector<4x1xf32> to vector<4x64xf32>
    %124 = arith.mulf %61, %123 : vector<4x64xf32>
    %125 = vector.broadcast %107 : vector<4x1xf32> to vector<4x64xf32>
    %126 = arith.mulf %125, %124 : vector<4x64xf32>
    %127 = vector.broadcast %108 : vector<4x1xf32> to vector<4x64xf32>
    %128 = arith.addf %126, %127 : vector<4x64xf32>
    %cst_57 = arith.constant 0.000000e+00 : f32
    %129 = vector.broadcast %cst_57 : f32 to vector<4x64xf32>
    %130 = arith.cmpf oge, %128, %129 : vector<4x64xf32>
    %cst_58 = arith.constant 0.00999999977 : f32
    %131 = vector.broadcast %cst_58 : f32 to vector<4x64xf32>
    %132 = arith.mulf %131, %128 : vector<4x64xf32>
    %133 = arith.select %130, %128, %132 : vector<4x64xi1>, vector<4x64xf32>
    %c0_59 = arith.constant 0 : index
    %c1_60 = arith.constant 1 : index
    %c0_61 = arith.constant 0 : index
    %c0_62 = arith.constant 0 : index
    %134 = vector.load %arg5[%c0_59, %c1_60, %c0_61, %c0_62] : memref<1x8x4x64xf32, #tpu.memory_space<vmem>>, vector<1x1x4x64xf32>
    %135 = vector.shape_cast %134 : vector<1x1x4x64xf32> to vector<4x64xf32>
    %136 = vector.shape_cast %133 : vector<4x64xf32> to vector<1x1x4x64xf32>
    tpu.vector_store %arg5[%c0_59, %c1_60, %c0_61, %c0_62], %136 {strides = array<i32>} : memref<1x8x4x64xf32, #tpu.memory_space<vmem>>, vector<1x1x4x64xf32>,
    %137 = vector.broadcast %106 : vector<4x1xf32> to vector<4x64xf32>
    %138 = arith.mulf %67, %137 : vector<4x64xf32>
    %139 = vector.broadcast %107 : vector<4x1xf32> to vector<4x64xf32>
    %140 = arith.mulf %139, %138 : vector<4x64xf32>
    %141 = vector.broadcast %108 : vector<4x1xf32> to vector<4x64xf32>
    %142 = arith.addf %140, %141 : vector<4x64xf32>
    %cst_63 = arith.constant 0.000000e+00 : f32
    %143 = vector.broadcast %cst_63 : f32 to vector<4x64xf32>
    %144 = arith.cmpf oge, %142, %143 : vector<4x64xf32>
    %cst_64 = arith.constant 0.00999999977 : f32
    %145 = vector.broadcast %cst_64 : f32 to vector<4x64xf32>
    %146 = arith.mulf %145, %142 : vector<4x64xf32>
    %147 = arith.select %144, %142, %146 : vector<4x64xi1>, vector<4x64xf32>
    %c0_65 = arith.constant 0 : index
    %c2_66 = arith.constant 2 : index
    %c0_67 = arith.constant 0 : index
    %c0_68 = arith.constant 0 : index
    %148 = vector.load %arg5[%c0_65, %c2_66, %c0_67, %c0_68] : memref<1x8x4x64xf32, #tpu.memory_space<vmem>>, vector<1x1x4x64xf32>
    %149 = vector.shape_cast %148 : vector<1x1x4x64xf32> to vector<4x64xf32>
    %150 = vector.shape_cast %147 : vector<4x64xf32> to vector<1x1x4x64xf32>
    tpu.vector_store %arg5[%c0_65, %c2_66, %c0_67, %c0_68], %150 {strides = array<i32>} : memref<1x8x4x64xf32, #tpu.memory_space<vmem>>, vector<1x1x4x64xf32>,
    %151 = vector.broadcast %106 : vector<4x1xf32> to vector<4x64xf32>
    %152 = arith.mulf %73, %151 : vector<4x64xf32>
    %153 = vector.broadcast %107 : vector<4x1xf32> to vector<4x64xf32>
    %154 = arith.mulf %153, %152 : vector<4x64xf32>
    %155 = vector.broadcast %108 : vector<4x1xf32> to vector<4x64xf32>
    %156 = arith.addf %154, %155 : vector<4x64xf32>
    %cst_69 = arith.constant 0.000000e+00 : f32
    %157 = vector.broadcast %cst_69 : f32 to vector<4x64xf32>
    %158 = arith.cmpf oge, %156, %157 : vector<4x64xf32>
    %cst_70 = arith.constant 0.00999999977 : f32
    %159 = vector.broadcast %cst_70 : f32 to vector<4x64xf32>
    %160 = arith.mulf %159, %156 : vector<4x64xf32>
    %161 = arith.select %158, %156, %160 : vector<4x64xi1>, vector<4x64xf32>
    %c0_71 = arith.constant 0 : index
    %c3_72 = arith.constant 3 : index
    %c0_73 = arith.constant 0 : index
    %c0_74 = arith.constant 0 : index
    %162 = vector.load %arg5[%c0_71, %c3_72, %c0_73, %c0_74] : memref<1x8x4x64xf32, #tpu.memory_space<vmem>>, vector<1x1x4x64xf32>
    %163 = vector.shape_cast %162 : vector<1x1x4x64xf32> to vector<4x64xf32>
    %164 = vector.shape_cast %161 : vector<4x64xf32> to vector<1x1x4x64xf32>
    tpu.vector_store %arg5[%c0_71, %c3_72, %c0_73, %c0_74], %164 {strides = array<i32>} : memref<1x8x4x64xf32, #tpu.memory_space<vmem>>, vector<1x1x4x64xf32>,
    %165 = vector.broadcast %106 : vector<4x1xf32> to vector<4x64xf32>
    %166 = arith.mulf %79, %165 : vector<4x64xf32>
    %167 = vector.broadcast %107 : vector<4x1xf32> to vector<4x64xf32>
    %168 = arith.mulf %167, %166 : vector<4x64xf32>
    %169 = vector.broadcast %108 : vector<4x1xf32> to vector<4x64xf32>
    %170 = arith.addf %168, %169 : vector<4x64xf32>
    %cst_75 = arith.constant 0.000000e+00 : f32
    %171 = vector.broadcast %cst_75 : f32 to vector<4x64xf32>
    %172 = arith.cmpf oge, %170, %171 : vector<4x64xf32>
    %cst_76 = arith.constant 0.00999999977 : f32
    %173 = vector.broadcast %cst_76 : f32 to vector<4x64xf32>
    %174 = arith.mulf %173, %170 : vector<4x64xf32>
    %175 = arith.select %172, %170, %174 : vector<4x64xi1>, vector<4x64xf32>
    %c0_77 = arith.constant 0 : index
    %c4_78 = arith.constant 4 : index
    %c0_79 = arith.constant 0 : index
    %c0_80 = arith.constant 0 : index
    %176 = vector.load %arg5[%c0_77, %c4_78, %c0_79, %c0_80] : memref<1x8x4x64xf32, #tpu.memory_space<vmem>>, vector<1x1x4x64xf32>
    %177 = vector.shape_cast %176 : vector<1x1x4x64xf32> to vector<4x64xf32>
    %178 = vector.shape_cast %175 : vector<4x64xf32> to vector<1x1x4x64xf32>
    tpu.vector_store %arg5[%c0_77, %c4_78, %c0_79, %c0_80], %178 {strides = array<i32>} : memref<1x8x4x64xf32, #tpu.memory_space<vmem>>, vector<1x1x4x64xf32>,
    %179 = vector.broadcast %106 : vector<4x1xf32> to vector<4x64xf32>
    %180 = arith.mulf %85, %179 : vector<4x64xf32>
    %181 = vector.broadcast %107 : vector<4x1xf32> to vector<4x64xf32>
    %182 = arith.mulf %181, %180 : vector<4x64xf32>
    %183 = vector.broadcast %108 : vector<4x1xf32> to vector<4x64xf32>
    %184 = arith.addf %182, %183 : vector<4x64xf32>
    %cst_81 = arith.constant 0.000000e+00 : f32
    %185 = vector.broadcast %cst_81 : f32 to vector<4x64xf32>
    %186 = arith.cmpf oge, %184, %185 : vector<4x64xf32>
    %cst_82 = arith.constant 0.00999999977 : f32
    %187 = vector.broadcast %cst_82 : f32 to vector<4x64xf32>
    %188 = arith.mulf %187, %184 : vector<4x64xf32>
    %189 = arith.select %186, %184, %188 : vector<4x64xi1>, vector<4x64xf32>
    %c0_83 = arith.constant 0 : index
    %c5_84 = arith.constant 5 : index
    %c0_85 = arith.constant 0 : index
    %c0_86 = arith.constant 0 : index
    %190 = vector.load %arg5[%c0_83, %c5_84, %c0_85, %c0_86] : memref<1x8x4x64xf32, #tpu.memory_space<vmem>>, vector<1x1x4x64xf32>
    %191 = vector.shape_cast %190 : vector<1x1x4x64xf32> to vector<4x64xf32>
    %192 = vector.shape_cast %189 : vector<4x64xf32> to vector<1x1x4x64xf32>
    tpu.vector_store %arg5[%c0_83, %c5_84, %c0_85, %c0_86], %192 {strides = array<i32>} : memref<1x8x4x64xf32, #tpu.memory_space<vmem>>, vector<1x1x4x64xf32>,
    %193 = vector.broadcast %106 : vector<4x1xf32> to vector<4x64xf32>
    %194 = arith.mulf %91, %193 : vector<4x64xf32>
    %195 = vector.broadcast %107 : vector<4x1xf32> to vector<4x64xf32>
    %196 = arith.mulf %195, %194 : vector<4x64xf32>
    %197 = vector.broadcast %108 : vector<4x1xf32> to vector<4x64xf32>
    %198 = arith.addf %196, %197 : vector<4x64xf32>
    %cst_87 = arith.constant 0.000000e+00 : f32
    %199 = vector.broadcast %cst_87 : f32 to vector<4x64xf32>
    %200 = arith.cmpf oge, %198, %199 : vector<4x64xf32>
    %cst_88 = arith.constant 0.00999999977 : f32
    %201 = vector.broadcast %cst_88 : f32 to vector<4x64xf32>
    %202 = arith.mulf %201, %198 : vector<4x64xf32>
    %203 = arith.select %200, %198, %202 : vector<4x64xi1>, vector<4x64xf32>
    %c0_89 = arith.constant 0 : index
    %c6_90 = arith.constant 6 : index
    %c0_91 = arith.constant 0 : index
    %c0_92 = arith.constant 0 : index
    %204 = vector.load %arg5[%c0_89, %c6_90, %c0_91, %c0_92] : memref<1x8x4x64xf32, #tpu.memory_space<vmem>>, vector<1x1x4x64xf32>
    %205 = vector.shape_cast %204 : vector<1x1x4x64xf32> to vector<4x64xf32>
    %206 = vector.shape_cast %203 : vector<4x64xf32> to vector<1x1x4x64xf32>
    tpu.vector_store %arg5[%c0_89, %c6_90, %c0_91, %c0_92], %206 {strides = array<i32>} : memref<1x8x4x64xf32, #tpu.memory_space<vmem>>, vector<1x1x4x64xf32>,
    %207 = vector.broadcast %106 : vector<4x1xf32> to vector<4x64xf32>
    %208 = arith.mulf %97, %207 : vector<4x64xf32>
    %209 = vector.broadcast %107 : vector<4x1xf32> to vector<4x64xf32>
    %210 = arith.mulf %209, %208 : vector<4x64xf32>
    %211 = vector.broadcast %108 : vector<4x1xf32> to vector<4x64xf32>
    %212 = arith.addf %210, %211 : vector<4x64xf32>
    %cst_93 = arith.constant 0.000000e+00 : f32
    %213 = vector.broadcast %cst_93 : f32 to vector<4x64xf32>
    %214 = arith.cmpf oge, %212, %213 : vector<4x64xf32>
    %cst_94 = arith.constant 0.00999999977 : f32
    %215 = vector.broadcast %cst_94 : f32 to vector<4x64xf32>
    %216 = arith.mulf %215, %212 : vector<4x64xf32>
    %217 = arith.select %214, %212, %216 : vector<4x64xi1>, vector<4x64xf32>
    %c0_95 = arith.constant 0 : index
    %c7_96 = arith.constant 7 : index
    %c0_97 = arith.constant 0 : index
    %c0_98 = arith.constant 0 : index
    %218 = vector.load %arg5[%c0_95, %c7_96, %c0_97, %c0_98] : memref<1x8x4x64xf32, #tpu.memory_space<vmem>>, vector<1x1x4x64xf32>
    %219 = vector.shape_cast %218 : vector<1x1x4x64xf32> to vector<4x64xf32>
    %220 = vector.shape_cast %217 : vector<4x64xf32> to vector<1x1x4x64xf32>
    tpu.vector_store %arg5[%c0_95, %c7_96, %c0_97, %c0_98], %220 {strides = array<i32>} : memref<1x8x4x64xf32, #tpu.memory_space<vmem>>, vector<1x1x4x64xf32>,
    return
  }
  func.func @transform_0(%arg0: i32) -> (i32, i32, i32) {
    %c0_i32 = arith.constant 0 : i32
    %c0_i32_0 = arith.constant 0 : i32
    %c0_i32_1 = arith.constant 0 : i32
    return %arg0, %c0_i32, %c0_i32_0 : i32, i32, i32
  }
  func.func @transform_1(%arg0: i32) -> (i32, i32, i32) {
    %c0_i32 = arith.constant 0 : i32
    %c0_i32_0 = arith.constant 0 : i32
    %c0_i32_1 = arith.constant 0 : i32
    %c0_i32_2 = arith.constant 0 : i32
    return %c0_i32, %c0_i32_0, %c0_i32_1 : i32, i32, i32
  }
  func.func @transform_2(%arg0: i32) -> (i32, i32) {
    %c0_i32 = arith.constant 0 : i32
    %c0_i32_0 = arith.constant 0 : i32
    %c0_i32_1 = arith.constant 0 : i32
    return %c0_i32, %c0_i32_0 : i32, i32
  }
  func.func @transform_3(%arg0: i32) -> (i32, i32) {
    %c0_i32 = arith.constant 0 : i32
    %c0_i32_0 = arith.constant 0 : i32
    %c0_i32_1 = arith.constant 0 : i32
    return %c0_i32, %c0_i32_0 : i32, i32
  }
  func.func @transform_4(%arg0: i32) -> (i32, i32, i32, i32) {
    %c0_i32 = arith.constant 0 : i32
    %c0_i32_0 = arith.constant 0 : i32
    %c0_i32_1 = arith.constant 0 : i32
    %c0_i32_2 = arith.constant 0 : i32
    return %arg0, %c0_i32, %c0_i32_0, %c0_i32_1 : i32, i32, i32, i32
  }
}

module attributes {stable_mosaic.version = 11 : i64} {
  func.func @_conv3_in_lrelu_concat_kernel(%arg0: i32, %arg1: memref<1x4x658xf32, #tpu.memory_space<vmem>>, %arg2: memref<1x4x512xf32, #tpu.memory_space<vmem>>, %arg3: memref<1x512xi32, #tpu.memory_space<vmem>>, %arg4: memref<1x512xi32, #tpu.memory_space<vmem>>, %arg5: memref<1x512xi32, #tpu.memory_space<vmem>>, %arg6: memref<27x4x4xf32, #tpu.memory_space<vmem>>, %arg7: memref<4x1xf32, #tpu.memory_space<vmem>>, %arg8: memref<4x1xf32, #tpu.memory_space<vmem>>, %arg9: memref<4x1xf32, #tpu.memory_space<vmem>>, %arg10: memref<1x8x512xf32, #tpu.memory_space<vmem>>) attributes {dimension_semantics = [#tpu.dimension_semantics<parallel>], iteration_bounds = array<i64: 2>, scalar_prefetch = 0 : i64, scratch_operands = 0 : i64, tpu.core_type = #tpu.core_type<tc>, window_params = [{transform_indices = @transform_0, window_bounds = array<i64: 1, 4, 658>}, {transform_indices = @transform_1, window_bounds = array<i64: 1, 4, 512>}, {pipeline_mode = #tpu.pipeline_mode<synchronous>, transform_indices = @transform_2, window_bounds = array<i64: 1, 512>}, {pipeline_mode = #tpu.pipeline_mode<synchronous>, transform_indices = @transform_3, window_bounds = array<i64: 1, 512>}, {pipeline_mode = #tpu.pipeline_mode<synchronous>, transform_indices = @transform_4, window_bounds = array<i64: 1, 512>}, {pipeline_mode = #tpu.pipeline_mode<synchronous>, transform_indices = @transform_5, window_bounds = array<i64: 27, 4, 4>}, {pipeline_mode = #tpu.pipeline_mode<synchronous>, transform_indices = @transform_6, window_bounds = array<i64: 4, 1>}, {pipeline_mode = #tpu.pipeline_mode<synchronous>, transform_indices = @transform_7, window_bounds = array<i64: 4, 1>}, {pipeline_mode = #tpu.pipeline_mode<synchronous>, transform_indices = @transform_8, window_bounds = array<i64: 4, 1>}, {transform_indices = @transform_9, window_bounds = array<i64: 1, 8, 512>}]} {
    %c0 = arith.constant 0 : index
    %c0_0 = arith.constant 0 : index
    %0 = vector.load %arg3[%c0, %c0_0] : memref<1x512xi32, #tpu.memory_space<vmem>>, vector<1x512xi32>
    %c0_1 = arith.constant 0 : index
    %c0_2 = arith.constant 0 : index
    %1 = vector.load %arg4[%c0_1, %c0_2] : memref<1x512xi32, #tpu.memory_space<vmem>>, vector<1x512xi32>
    %c0_3 = arith.constant 0 : index
    %c0_4 = arith.constant 0 : index
    %2 = vector.load %arg5[%c0_3, %c0_4] : memref<1x512xi32, #tpu.memory_space<vmem>>, vector<1x512xi32>
    %c1_i32 = arith.constant 1 : i32
    %3 = vector.broadcast %c1_i32 : i32 to vector<1x512xi32>
    %4 = arith.cmpi sge, %0, %3 : vector<1x512xi32>
    %c6_i32 = arith.constant 6 : i32
    %5 = vector.broadcast %c6_i32 : i32 to vector<1x512xi32>
    %6 = arith.cmpi sle, %0, %5 : vector<1x512xi32>
    %c1_i32_5 = arith.constant 1 : i32
    %7 = vector.broadcast %c1_i32_5 : i32 to vector<1x512xi32>
    %8 = arith.cmpi sge, %1, %7 : vector<1x512xi32>
    %c6_i32_6 = arith.constant 6 : i32
    %9 = vector.broadcast %c6_i32_6 : i32 to vector<1x512xi32>
    %10 = arith.cmpi sle, %1, %9 : vector<1x512xi32>
    %c1_i32_7 = arith.constant 1 : i32
    %11 = vector.broadcast %c1_i32_7 : i32 to vector<1x512xi32>
    %12 = arith.cmpi sge, %2, %11 : vector<1x512xi32>
    %c6_i32_8 = arith.constant 6 : i32
    %13 = vector.broadcast %c6_i32_8 : i32 to vector<1x512xi32>
    %14 = arith.cmpi sle, %2, %13 : vector<1x512xi32>
    %cst = arith.constant 0.000000e+00 : f32
    %15 = vector.broadcast %cst : f32 to vector<4x512xf32>
    %c0_9 = arith.constant 0 : index
    %c0_10 = arith.constant 0 : index
    %c0_11 = arith.constant 0 : index
    %16 = vector.load %arg1[%c0_9, %c0_10, %c0_11] : memref<1x4x658xf32, #tpu.memory_space<vmem>>, vector<1x4x512xf32>
    %17 = vector.shape_cast %16 : vector<1x4x512xf32> to vector<4x512xf32>
    %18 = arith.andi %4, %8 : vector<1x512xi1>
    %19 = arith.andi %18, %12 : vector<1x512xi1>
    %cst_12 = arith.constant 0.000000e+00 : f32
    %20 = vector.shape_cast %19 : vector<1x512xi1> to vector<1x512xi1>
    %21 = vector.broadcast %20 : vector<1x512xi1> to vector<4x512xi1>
    %22 = vector.broadcast %cst_12 : f32 to vector<4x512xf32>
    %23 = arith.select %21, %17, %22 : vector<4x512xi1>, vector<4x512xf32>
    %c0_13 = arith.constant 0 : index
    %c0_14 = arith.constant 0 : index
    %c0_15 = arith.constant 0 : index
    %24 = vector.load %arg6[%c0_13, %c0_14, %c0_15] : memref<27x4x4xf32, #tpu.memory_space<vmem>>, vector<1x4x4xf32>
    %25 = vector.shape_cast %24 : vector<1x4x4xf32> to vector<4x4xf32>
    %cst_16 = arith.constant dense<0.000000e+00> : vector<4x512xf32>
    %26 = tpu.matmul %25, %23, %cst_16 {dimension_numbers = #tpu.dot_dimension_numbers<[1], [0], [0], [1], [0, 0, 1, 1], [], []>} : vector<4x4xf32>, vector<4x512xf32>, vector<4x512xf32> -> vector<4x512xf32>
    %27 = arith.addf %15, %26 : vector<4x512xf32>
    %c0_17 = arith.constant 0 : index
    %c0_18 = arith.constant 0 : index
    %c1 = arith.constant 1 : index
    %28 = vector.load %arg1[%c0_17, %c0_18, %c1] : memref<1x4x658xf32, #tpu.memory_space<vmem>>, vector<1x4x512xf32>
    %29 = vector.shape_cast %28 : vector<1x4x512xf32> to vector<4x512xf32>
    %30 = arith.andi %4, %8 : vector<1x512xi1>
    %cst_19 = arith.constant 0.000000e+00 : f32
    %31 = vector.shape_cast %30 : vector<1x512xi1> to vector<1x512xi1>
    %32 = vector.broadcast %31 : vector<1x512xi1> to vector<4x512xi1>
    %33 = vector.broadcast %cst_19 : f32 to vector<4x512xf32>
    %34 = arith.select %32, %29, %33 : vector<4x512xi1>, vector<4x512xf32>
    %c1_20 = arith.constant 1 : index
    %c0_21 = arith.constant 0 : index
    %c0_22 = arith.constant 0 : index
    %35 = vector.load %arg6[%c1_20, %c0_21, %c0_22] : memref<27x4x4xf32, #tpu.memory_space<vmem>>, vector<1x4x4xf32>
    %36 = vector.shape_cast %35 : vector<1x4x4xf32> to vector<4x4xf32>
    %cst_23 = arith.constant dense<0.000000e+00> : vector<4x512xf32>
    %37 = tpu.matmul %36, %34, %cst_23 {dimension_numbers = #tpu.dot_dimension_numbers<[1], [0], [0], [1], [0, 0, 1, 1], [], []>} : vector<4x4xf32>, vector<4x512xf32>, vector<4x512xf32> -> vector<4x512xf32>
    %38 = arith.addf %27, %37 : vector<4x512xf32>
    %c0_24 = arith.constant 0 : index
    %c0_25 = arith.constant 0 : index
    %c2 = arith.constant 2 : index
    %39 = vector.load %arg1[%c0_24, %c0_25, %c2] : memref<1x4x658xf32, #tpu.memory_space<vmem>>, vector<1x4x512xf32>
    %40 = vector.shape_cast %39 : vector<1x4x512xf32> to vector<4x512xf32>
    %41 = arith.andi %4, %8 : vector<1x512xi1>
    %42 = arith.andi %41, %14 : vector<1x512xi1>
    %cst_26 = arith.constant 0.000000e+00 : f32
    %43 = vector.shape_cast %42 : vector<1x512xi1> to vector<1x512xi1>
    %44 = vector.broadcast %43 : vector<1x512xi1> to vector<4x512xi1>
    %45 = vector.broadcast %cst_26 : f32 to vector<4x512xf32>
    %46 = arith.select %44, %40, %45 : vector<4x512xi1>, vector<4x512xf32>
    %c2_27 = arith.constant 2 : index
    %c0_28 = arith.constant 0 : index
    %c0_29 = arith.constant 0 : index
    %47 = vector.load %arg6[%c2_27, %c0_28, %c0_29] : memref<27x4x4xf32, #tpu.memory_space<vmem>>, vector<1x4x4xf32>
    %48 = vector.shape_cast %47 : vector<1x4x4xf32> to vector<4x4xf32>
    %cst_30 = arith.constant dense<0.000000e+00> : vector<4x512xf32>
    %49 = tpu.matmul %48, %46, %cst_30 {dimension_numbers = #tpu.dot_dimension_numbers<[1], [0], [0], [1], [0, 0, 1, 1], [], []>} : vector<4x4xf32>, vector<4x512xf32>, vector<4x512xf32> -> vector<4x512xf32>
    %50 = arith.addf %38, %49 : vector<4x512xf32>
    %c0_31 = arith.constant 0 : index
    %c0_32 = arith.constant 0 : index
    %c8 = arith.constant 8 : index
    %51 = vector.load %arg1[%c0_31, %c0_32, %c8] : memref<1x4x658xf32, #tpu.memory_space<vmem>>, vector<1x4x512xf32>
    %52 = vector.shape_cast %51 : vector<1x4x512xf32> to vector<4x512xf32>
    %53 = arith.andi %4, %12 : vector<1x512xi1>
    %cst_33 = arith.constant 0.000000e+00 : f32
    %54 = vector.shape_cast %53 : vector<1x512xi1> to vector<1x512xi1>
    %55 = vector.broadcast %54 : vector<1x512xi1> to vector<4x512xi1>
    %56 = vector.broadcast %cst_33 : f32 to vector<4x512xf32>
    %57 = arith.select %55, %52, %56 : vector<4x512xi1>, vector<4x512xf32>
    %c3 = arith.constant 3 : index
    %c0_34 = arith.constant 0 : index
    %c0_35 = arith.constant 0 : index
    %58 = vector.load %arg6[%c3, %c0_34, %c0_35] : memref<27x4x4xf32, #tpu.memory_space<vmem>>, vector<1x4x4xf32>
    %59 = vector.shape_cast %58 : vector<1x4x4xf32> to vector<4x4xf32>
    %cst_36 = arith.constant dense<0.000000e+00> : vector<4x512xf32>
    %60 = tpu.matmul %59, %57, %cst_36 {dimension_numbers = #tpu.dot_dimension_numbers<[1], [0], [0], [1], [0, 0, 1, 1], [], []>} : vector<4x4xf32>, vector<4x512xf32>, vector<4x512xf32> -> vector<4x512xf32>
    %61 = arith.addf %50, %60 : vector<4x512xf32>
    %c0_37 = arith.constant 0 : index
    %c0_38 = arith.constant 0 : index
    %c9 = arith.constant 9 : index
    %62 = vector.load %arg1[%c0_37, %c0_38, %c9] : memref<1x4x658xf32, #tpu.memory_space<vmem>>, vector<1x4x512xf32>
    %63 = vector.shape_cast %62 : vector<1x4x512xf32> to vector<4x512xf32>
    %cst_39 = arith.constant 0.000000e+00 : f32
    %64 = vector.shape_cast %4 : vector<1x512xi1> to vector<1x512xi1>
    %65 = vector.broadcast %64 : vector<1x512xi1> to vector<4x512xi1>
    %66 = vector.broadcast %cst_39 : f32 to vector<4x512xf32>
    %67 = arith.select %65, %63, %66 : vector<4x512xi1>, vector<4x512xf32>
    %c4 = arith.constant 4 : index
    %c0_40 = arith.constant 0 : index
    %c0_41 = arith.constant 0 : index
    %68 = vector.load %arg6[%c4, %c0_40, %c0_41] : memref<27x4x4xf32, #tpu.memory_space<vmem>>, vector<1x4x4xf32>
    %69 = vector.shape_cast %68 : vector<1x4x4xf32> to vector<4x4xf32>
    %cst_42 = arith.constant dense<0.000000e+00> : vector<4x512xf32>
    %70 = tpu.matmul %69, %67, %cst_42 {dimension_numbers = #tpu.dot_dimension_numbers<[1], [0], [0], [1], [0, 0, 1, 1], [], []>} : vector<4x4xf32>, vector<4x512xf32>, vector<4x512xf32> -> vector<4x512xf32>
    %71 = arith.addf %61, %70 : vector<4x512xf32>
    %c0_43 = arith.constant 0 : index
    %c0_44 = arith.constant 0 : index
    %c10 = arith.constant 10 : index
    %72 = vector.load %arg1[%c0_43, %c0_44, %c10] : memref<1x4x658xf32, #tpu.memory_space<vmem>>, vector<1x4x512xf32>
    %73 = vector.shape_cast %72 : vector<1x4x512xf32> to vector<4x512xf32>
    %74 = arith.andi %4, %14 : vector<1x512xi1>
    %cst_45 = arith.constant 0.000000e+00 : f32
    %75 = vector.shape_cast %74 : vector<1x512xi1> to vector<1x512xi1>
    %76 = vector.broadcast %75 : vector<1x512xi1> to vector<4x512xi1>
    %77 = vector.broadcast %cst_45 : f32 to vector<4x512xf32>
    %78 = arith.select %76, %73, %77 : vector<4x512xi1>, vector<4x512xf32>
    %c5 = arith.constant 5 : index
    %c0_46 = arith.constant 0 : index
    %c0_47 = arith.constant 0 : index
    %79 = vector.load %arg6[%c5, %c0_46, %c0_47] : memref<27x4x4xf32, #tpu.memory_space<vmem>>, vector<1x4x4xf32>
    %80 = vector.shape_cast %79 : vector<1x4x4xf32> to vector<4x4xf32>
    %cst_48 = arith.constant dense<0.000000e+00> : vector<4x512xf32>
    %81 = tpu.matmul %80, %78, %cst_48 {dimension_numbers = #tpu.dot_dimension_numbers<[1], [0], [0], [1], [0, 0, 1, 1], [], []>} : vector<4x4xf32>, vector<4x512xf32>, vector<4x512xf32> -> vector<4x512xf32>
    %82 = arith.addf %71, %81 : vector<4x512xf32>
    %c0_49 = arith.constant 0 : index
    %c0_50 = arith.constant 0 : index
    %c16 = arith.constant 16 : index
    %83 = vector.load %arg1[%c0_49, %c0_50, %c16] : memref<1x4x658xf32, #tpu.memory_space<vmem>>, vector<1x4x512xf32>
    %84 = vector.shape_cast %83 : vector<1x4x512xf32> to vector<4x512xf32>
    %85 = arith.andi %4, %10 : vector<1x512xi1>
    %86 = arith.andi %85, %12 : vector<1x512xi1>
    %cst_51 = arith.constant 0.000000e+00 : f32
    %87 = vector.shape_cast %86 : vector<1x512xi1> to vector<1x512xi1>
    %88 = vector.broadcast %87 : vector<1x512xi1> to vector<4x512xi1>
    %89 = vector.broadcast %cst_51 : f32 to vector<4x512xf32>
    %90 = arith.select %88, %84, %89 : vector<4x512xi1>, vector<4x512xf32>
    %c6 = arith.constant 6 : index
    %c0_52 = arith.constant 0 : index
    %c0_53 = arith.constant 0 : index
    %91 = vector.load %arg6[%c6, %c0_52, %c0_53] : memref<27x4x4xf32, #tpu.memory_space<vmem>>, vector<1x4x4xf32>
    %92 = vector.shape_cast %91 : vector<1x4x4xf32> to vector<4x4xf32>
    %cst_54 = arith.constant dense<0.000000e+00> : vector<4x512xf32>
    %93 = tpu.matmul %92, %90, %cst_54 {dimension_numbers = #tpu.dot_dimension_numbers<[1], [0], [0], [1], [0, 0, 1, 1], [], []>} : vector<4x4xf32>, vector<4x512xf32>, vector<4x512xf32> -> vector<4x512xf32>
    %94 = arith.addf %82, %93 : vector<4x512xf32>
    %c0_55 = arith.constant 0 : index
    %c0_56 = arith.constant 0 : index
    %c17 = arith.constant 17 : index
    %95 = vector.load %arg1[%c0_55, %c0_56, %c17] : memref<1x4x658xf32, #tpu.memory_space<vmem>>, vector<1x4x512xf32>
    %96 = vector.shape_cast %95 : vector<1x4x512xf32> to vector<4x512xf32>
    %97 = arith.andi %4, %10 : vector<1x512xi1>
    %cst_57 = arith.constant 0.000000e+00 : f32
    %98 = vector.shape_cast %97 : vector<1x512xi1> to vector<1x512xi1>
    %99 = vector.broadcast %98 : vector<1x512xi1> to vector<4x512xi1>
    %100 = vector.broadcast %cst_57 : f32 to vector<4x512xf32>
    %101 = arith.select %99, %96, %100 : vector<4x512xi1>, vector<4x512xf32>
    %c7 = arith.constant 7 : index
    %c0_58 = arith.constant 0 : index
    %c0_59 = arith.constant 0 : index
    %102 = vector.load %arg6[%c7, %c0_58, %c0_59] : memref<27x4x4xf32, #tpu.memory_space<vmem>>, vector<1x4x4xf32>
    %103 = vector.shape_cast %102 : vector<1x4x4xf32> to vector<4x4xf32>
    %cst_60 = arith.constant dense<0.000000e+00> : vector<4x512xf32>
    %104 = tpu.matmul %103, %101, %cst_60 {dimension_numbers = #tpu.dot_dimension_numbers<[1], [0], [0], [1], [0, 0, 1, 1], [], []>} : vector<4x4xf32>, vector<4x512xf32>, vector<4x512xf32> -> vector<4x512xf32>
    %105 = arith.addf %94, %104 : vector<4x512xf32>
    %c0_61 = arith.constant 0 : index
    %c0_62 = arith.constant 0 : index
    %c18 = arith.constant 18 : index
    %106 = vector.load %arg1[%c0_61, %c0_62, %c18] : memref<1x4x658xf32, #tpu.memory_space<vmem>>, vector<1x4x512xf32>
    %107 = vector.shape_cast %106 : vector<1x4x512xf32> to vector<4x512xf32>
    %108 = arith.andi %4, %10 : vector<1x512xi1>
    %109 = arith.andi %108, %14 : vector<1x512xi1>
    %cst_63 = arith.constant 0.000000e+00 : f32
    %110 = vector.shape_cast %109 : vector<1x512xi1> to vector<1x512xi1>
    %111 = vector.broadcast %110 : vector<1x512xi1> to vector<4x512xi1>
    %112 = vector.broadcast %cst_63 : f32 to vector<4x512xf32>
    %113 = arith.select %111, %107, %112 : vector<4x512xi1>, vector<4x512xf32>
    %c8_64 = arith.constant 8 : index
    %c0_65 = arith.constant 0 : index
    %c0_66 = arith.constant 0 : index
    %114 = vector.load %arg6[%c8_64, %c0_65, %c0_66] : memref<27x4x4xf32, #tpu.memory_space<vmem>>, vector<1x4x4xf32>
    %115 = vector.shape_cast %114 : vector<1x4x4xf32> to vector<4x4xf32>
    %cst_67 = arith.constant dense<0.000000e+00> : vector<4x512xf32>
    %116 = tpu.matmul %115, %113, %cst_67 {dimension_numbers = #tpu.dot_dimension_numbers<[1], [0], [0], [1], [0, 0, 1, 1], [], []>} : vector<4x4xf32>, vector<4x512xf32>, vector<4x512xf32> -> vector<4x512xf32>
    %117 = arith.addf %105, %116 : vector<4x512xf32>
    %c0_68 = arith.constant 0 : index
    %c0_69 = arith.constant 0 : index
    %c64 = arith.constant 64 : index
    %118 = vector.load %arg1[%c0_68, %c0_69, %c64] : memref<1x4x658xf32, #tpu.memory_space<vmem>>, vector<1x4x512xf32>
    %119 = vector.shape_cast %118 : vector<1x4x512xf32> to vector<4x512xf32>
    %120 = arith.andi %8, %12 : vector<1x512xi1>
    %cst_70 = arith.constant 0.000000e+00 : f32
    %121 = vector.shape_cast %120 : vector<1x512xi1> to vector<1x512xi1>
    %122 = vector.broadcast %121 : vector<1x512xi1> to vector<4x512xi1>
    %123 = vector.broadcast %cst_70 : f32 to vector<4x512xf32>
    %124 = arith.select %122, %119, %123 : vector<4x512xi1>, vector<4x512xf32>
    %c9_71 = arith.constant 9 : index
    %c0_72 = arith.constant 0 : index
    %c0_73 = arith.constant 0 : index
    %125 = vector.load %arg6[%c9_71, %c0_72, %c0_73] : memref<27x4x4xf32, #tpu.memory_space<vmem>>, vector<1x4x4xf32>
    %126 = vector.shape_cast %125 : vector<1x4x4xf32> to vector<4x4xf32>
    %cst_74 = arith.constant dense<0.000000e+00> : vector<4x512xf32>
    %127 = tpu.matmul %126, %124, %cst_74 {dimension_numbers = #tpu.dot_dimension_numbers<[1], [0], [0], [1], [0, 0, 1, 1], [], []>} : vector<4x4xf32>, vector<4x512xf32>, vector<4x512xf32> -> vector<4x512xf32>
    %128 = arith.addf %117, %127 : vector<4x512xf32>
    %c0_75 = arith.constant 0 : index
    %c0_76 = arith.constant 0 : index
    %c65 = arith.constant 65 : index
    %129 = vector.load %arg1[%c0_75, %c0_76, %c65] : memref<1x4x658xf32, #tpu.memory_space<vmem>>, vector<1x4x512xf32>
    %130 = vector.shape_cast %129 : vector<1x4x512xf32> to vector<4x512xf32>
    %cst_77 = arith.constant 0.000000e+00 : f32
    %131 = vector.shape_cast %8 : vector<1x512xi1> to vector<1x512xi1>
    %132 = vector.broadcast %131 : vector<1x512xi1> to vector<4x512xi1>
    %133 = vector.broadcast %cst_77 : f32 to vector<4x512xf32>
    %134 = arith.select %132, %130, %133 : vector<4x512xi1>, vector<4x512xf32>
    %c10_78 = arith.constant 10 : index
    %c0_79 = arith.constant 0 : index
    %c0_80 = arith.constant 0 : index
    %135 = vector.load %arg6[%c10_78, %c0_79, %c0_80] : memref<27x4x4xf32, #tpu.memory_space<vmem>>, vector<1x4x4xf32>
    %136 = vector.shape_cast %135 : vector<1x4x4xf32> to vector<4x4xf32>
    %cst_81 = arith.constant dense<0.000000e+00> : vector<4x512xf32>
    %137 = tpu.matmul %136, %134, %cst_81 {dimension_numbers = #tpu.dot_dimension_numbers<[1], [0], [0], [1], [0, 0, 1, 1], [], []>} : vector<4x4xf32>, vector<4x512xf32>, vector<4x512xf32> -> vector<4x512xf32>
    %138 = arith.addf %128, %137 : vector<4x512xf32>
    %c0_82 = arith.constant 0 : index
    %c0_83 = arith.constant 0 : index
    %c66 = arith.constant 66 : index
    %139 = vector.load %arg1[%c0_82, %c0_83, %c66] : memref<1x4x658xf32, #tpu.memory_space<vmem>>, vector<1x4x512xf32>
    %140 = vector.shape_cast %139 : vector<1x4x512xf32> to vector<4x512xf32>
    %141 = arith.andi %8, %14 : vector<1x512xi1>
    %cst_84 = arith.constant 0.000000e+00 : f32
    %142 = vector.shape_cast %141 : vector<1x512xi1> to vector<1x512xi1>
    %143 = vector.broadcast %142 : vector<1x512xi1> to vector<4x512xi1>
    %144 = vector.broadcast %cst_84 : f32 to vector<4x512xf32>
    %145 = arith.select %143, %140, %144 : vector<4x512xi1>, vector<4x512xf32>
    %c11 = arith.constant 11 : index
    %c0_85 = arith.constant 0 : index
    %c0_86 = arith.constant 0 : index
    %146 = vector.load %arg6[%c11, %c0_85, %c0_86] : memref<27x4x4xf32, #tpu.memory_space<vmem>>, vector<1x4x4xf32>
    %147 = vector.shape_cast %146 : vector<1x4x4xf32> to vector<4x4xf32>
    %cst_87 = arith.constant dense<0.000000e+00> : vector<4x512xf32>
    %148 = tpu.matmul %147, %145, %cst_87 {dimension_numbers = #tpu.dot_dimension_numbers<[1], [0], [0], [1], [0, 0, 1, 1], [], []>} : vector<4x4xf32>, vector<4x512xf32>, vector<4x512xf32> -> vector<4x512xf32>
    %149 = arith.addf %138, %148 : vector<4x512xf32>
    %c0_88 = arith.constant 0 : index
    %c0_89 = arith.constant 0 : index
    %c72 = arith.constant 72 : index
    %150 = vector.load %arg1[%c0_88, %c0_89, %c72] : memref<1x4x658xf32, #tpu.memory_space<vmem>>, vector<1x4x512xf32>
    %151 = vector.shape_cast %150 : vector<1x4x512xf32> to vector<4x512xf32>
    %cst_90 = arith.constant 0.000000e+00 : f32
    %152 = vector.shape_cast %12 : vector<1x512xi1> to vector<1x512xi1>
    %153 = vector.broadcast %152 : vector<1x512xi1> to vector<4x512xi1>
    %154 = vector.broadcast %cst_90 : f32 to vector<4x512xf32>
    %155 = arith.select %153, %151, %154 : vector<4x512xi1>, vector<4x512xf32>
    %c12 = arith.constant 12 : index
    %c0_91 = arith.constant 0 : index
    %c0_92 = arith.constant 0 : index
    %156 = vector.load %arg6[%c12, %c0_91, %c0_92] : memref<27x4x4xf32, #tpu.memory_space<vmem>>, vector<1x4x4xf32>
    %157 = vector.shape_cast %156 : vector<1x4x4xf32> to vector<4x4xf32>
    %cst_93 = arith.constant dense<0.000000e+00> : vector<4x512xf32>
    %158 = tpu.matmul %157, %155, %cst_93 {dimension_numbers = #tpu.dot_dimension_numbers<[1], [0], [0], [1], [0, 0, 1, 1], [], []>} : vector<4x4xf32>, vector<4x512xf32>, vector<4x512xf32> -> vector<4x512xf32>
    %159 = arith.addf %149, %158 : vector<4x512xf32>
    %c0_94 = arith.constant 0 : index
    %c0_95 = arith.constant 0 : index
    %c73 = arith.constant 73 : index
    %160 = vector.load %arg1[%c0_94, %c0_95, %c73] : memref<1x4x658xf32, #tpu.memory_space<vmem>>, vector<1x4x512xf32>
    %161 = vector.shape_cast %160 : vector<1x4x512xf32> to vector<4x512xf32>
    %c13 = arith.constant 13 : index
    %c0_96 = arith.constant 0 : index
    %c0_97 = arith.constant 0 : index
    %162 = vector.load %arg6[%c13, %c0_96, %c0_97] : memref<27x4x4xf32, #tpu.memory_space<vmem>>, vector<1x4x4xf32>
    %163 = vector.shape_cast %162 : vector<1x4x4xf32> to vector<4x4xf32>
    %cst_98 = arith.constant dense<0.000000e+00> : vector<4x512xf32>
    %164 = tpu.matmul %163, %161, %cst_98 {dimension_numbers = #tpu.dot_dimension_numbers<[1], [0], [0], [1], [0, 0, 1, 1], [], []>} : vector<4x4xf32>, vector<4x512xf32>, vector<4x512xf32> -> vector<4x512xf32>
    %165 = arith.addf %159, %164 : vector<4x512xf32>
    %c0_99 = arith.constant 0 : index
    %c0_100 = arith.constant 0 : index
    %c74 = arith.constant 74 : index
    %166 = vector.load %arg1[%c0_99, %c0_100, %c74] : memref<1x4x658xf32, #tpu.memory_space<vmem>>, vector<1x4x512xf32>
    %167 = vector.shape_cast %166 : vector<1x4x512xf32> to vector<4x512xf32>
    %cst_101 = arith.constant 0.000000e+00 : f32
    %168 = vector.shape_cast %14 : vector<1x512xi1> to vector<1x512xi1>
    %169 = vector.broadcast %168 : vector<1x512xi1> to vector<4x512xi1>
    %170 = vector.broadcast %cst_101 : f32 to vector<4x512xf32>
    %171 = arith.select %169, %167, %170 : vector<4x512xi1>, vector<4x512xf32>
    %c14 = arith.constant 14 : index
    %c0_102 = arith.constant 0 : index
    %c0_103 = arith.constant 0 : index
    %172 = vector.load %arg6[%c14, %c0_102, %c0_103] : memref<27x4x4xf32, #tpu.memory_space<vmem>>, vector<1x4x4xf32>
    %173 = vector.shape_cast %172 : vector<1x4x4xf32> to vector<4x4xf32>
    %cst_104 = arith.constant dense<0.000000e+00> : vector<4x512xf32>
    %174 = tpu.matmul %173, %171, %cst_104 {dimension_numbers = #tpu.dot_dimension_numbers<[1], [0], [0], [1], [0, 0, 1, 1], [], []>} : vector<4x4xf32>, vector<4x512xf32>, vector<4x512xf32> -> vector<4x512xf32>
    %175 = arith.addf %165, %174 : vector<4x512xf32>
    %c0_105 = arith.constant 0 : index
    %c0_106 = arith.constant 0 : index
    %c80 = arith.constant 80 : index
    %176 = vector.load %arg1[%c0_105, %c0_106, %c80] : memref<1x4x658xf32, #tpu.memory_space<vmem>>, vector<1x4x512xf32>
    %177 = vector.shape_cast %176 : vector<1x4x512xf32> to vector<4x512xf32>
    %178 = arith.andi %10, %12 : vector<1x512xi1>
    %cst_107 = arith.constant 0.000000e+00 : f32
    %179 = vector.shape_cast %178 : vector<1x512xi1> to vector<1x512xi1>
    %180 = vector.broadcast %179 : vector<1x512xi1> to vector<4x512xi1>
    %181 = vector.broadcast %cst_107 : f32 to vector<4x512xf32>
    %182 = arith.select %180, %177, %181 : vector<4x512xi1>, vector<4x512xf32>
    %c15 = arith.constant 15 : index
    %c0_108 = arith.constant 0 : index
    %c0_109 = arith.constant 0 : index
    %183 = vector.load %arg6[%c15, %c0_108, %c0_109] : memref<27x4x4xf32, #tpu.memory_space<vmem>>, vector<1x4x4xf32>
    %184 = vector.shape_cast %183 : vector<1x4x4xf32> to vector<4x4xf32>
    %cst_110 = arith.constant dense<0.000000e+00> : vector<4x512xf32>
    %185 = tpu.matmul %184, %182, %cst_110 {dimension_numbers = #tpu.dot_dimension_numbers<[1], [0], [0], [1], [0, 0, 1, 1], [], []>} : vector<4x4xf32>, vector<4x512xf32>, vector<4x512xf32> -> vector<4x512xf32>
    %186 = arith.addf %175, %185 : vector<4x512xf32>
    %c0_111 = arith.constant 0 : index
    %c0_112 = arith.constant 0 : index
    %c81 = arith.constant 81 : index
    %187 = vector.load %arg1[%c0_111, %c0_112, %c81] : memref<1x4x658xf32, #tpu.memory_space<vmem>>, vector<1x4x512xf32>
    %188 = vector.shape_cast %187 : vector<1x4x512xf32> to vector<4x512xf32>
    %cst_113 = arith.constant 0.000000e+00 : f32
    %189 = vector.shape_cast %10 : vector<1x512xi1> to vector<1x512xi1>
    %190 = vector.broadcast %189 : vector<1x512xi1> to vector<4x512xi1>
    %191 = vector.broadcast %cst_113 : f32 to vector<4x512xf32>
    %192 = arith.select %190, %188, %191 : vector<4x512xi1>, vector<4x512xf32>
    %c16_114 = arith.constant 16 : index
    %c0_115 = arith.constant 0 : index
    %c0_116 = arith.constant 0 : index
    %193 = vector.load %arg6[%c16_114, %c0_115, %c0_116] : memref<27x4x4xf32, #tpu.memory_space<vmem>>, vector<1x4x4xf32>
    %194 = vector.shape_cast %193 : vector<1x4x4xf32> to vector<4x4xf32>
    %cst_117 = arith.constant dense<0.000000e+00> : vector<4x512xf32>
    %195 = tpu.matmul %194, %192, %cst_117 {dimension_numbers = #tpu.dot_dimension_numbers<[1], [0], [0], [1], [0, 0, 1, 1], [], []>} : vector<4x4xf32>, vector<4x512xf32>, vector<4x512xf32> -> vector<4x512xf32>
    %196 = arith.addf %186, %195 : vector<4x512xf32>
    %c0_118 = arith.constant 0 : index
    %c0_119 = arith.constant 0 : index
    %c82 = arith.constant 82 : index
    %197 = vector.load %arg1[%c0_118, %c0_119, %c82] : memref<1x4x658xf32, #tpu.memory_space<vmem>>, vector<1x4x512xf32>
    %198 = vector.shape_cast %197 : vector<1x4x512xf32> to vector<4x512xf32>
    %199 = arith.andi %10, %14 : vector<1x512xi1>
    %cst_120 = arith.constant 0.000000e+00 : f32
    %200 = vector.shape_cast %199 : vector<1x512xi1> to vector<1x512xi1>
    %201 = vector.broadcast %200 : vector<1x512xi1> to vector<4x512xi1>
    %202 = vector.broadcast %cst_120 : f32 to vector<4x512xf32>
    %203 = arith.select %201, %198, %202 : vector<4x512xi1>, vector<4x512xf32>
    %c17_121 = arith.constant 17 : index
    %c0_122 = arith.constant 0 : index
    %c0_123 = arith.constant 0 : index
    %204 = vector.load %arg6[%c17_121, %c0_122, %c0_123] : memref<27x4x4xf32, #tpu.memory_space<vmem>>, vector<1x4x4xf32>
    %205 = vector.shape_cast %204 : vector<1x4x4xf32> to vector<4x4xf32>
    %cst_124 = arith.constant dense<0.000000e+00> : vector<4x512xf32>
    %206 = tpu.matmul %205, %203, %cst_124 {dimension_numbers = #tpu.dot_dimension_numbers<[1], [0], [0], [1], [0, 0, 1, 1], [], []>} : vector<4x4xf32>, vector<4x512xf32>, vector<4x512xf32> -> vector<4x512xf32>
    %207 = arith.addf %196, %206 : vector<4x512xf32>
    %c0_125 = arith.constant 0 : index
    %c0_126 = arith.constant 0 : index
    %c128 = arith.constant 128 : index
    %208 = vector.load %arg1[%c0_125, %c0_126, %c128] : memref<1x4x658xf32, #tpu.memory_space<vmem>>, vector<1x4x512xf32>
    %209 = vector.shape_cast %208 : vector<1x4x512xf32> to vector<4x512xf32>
    %210 = arith.andi %6, %8 : vector<1x512xi1>
    %211 = arith.andi %210, %12 : vector<1x512xi1>
    %cst_127 = arith.constant 0.000000e+00 : f32
    %212 = vector.shape_cast %211 : vector<1x512xi1> to vector<1x512xi1>
    %213 = vector.broadcast %212 : vector<1x512xi1> to vector<4x512xi1>
    %214 = vector.broadcast %cst_127 : f32 to vector<4x512xf32>
    %215 = arith.select %213, %209, %214 : vector<4x512xi1>, vector<4x512xf32>
    %c18_128 = arith.constant 18 : index
    %c0_129 = arith.constant 0 : index
    %c0_130 = arith.constant 0 : index
    %216 = vector.load %arg6[%c18_128, %c0_129, %c0_130] : memref<27x4x4xf32, #tpu.memory_space<vmem>>, vector<1x4x4xf32>
    %217 = vector.shape_cast %216 : vector<1x4x4xf32> to vector<4x4xf32>
    %cst_131 = arith.constant dense<0.000000e+00> : vector<4x512xf32>
    %218 = tpu.matmul %217, %215, %cst_131 {dimension_numbers = #tpu.dot_dimension_numbers<[1], [0], [0], [1], [0, 0, 1, 1], [], []>} : vector<4x4xf32>, vector<4x512xf32>, vector<4x512xf32> -> vector<4x512xf32>
    %219 = arith.addf %207, %218 : vector<4x512xf32>
    %c0_132 = arith.constant 0 : index
    %c0_133 = arith.constant 0 : index
    %c129 = arith.constant 129 : index
    %220 = vector.load %arg1[%c0_132, %c0_133, %c129] : memref<1x4x658xf32, #tpu.memory_space<vmem>>, vector<1x4x512xf32>
    %221 = vector.shape_cast %220 : vector<1x4x512xf32> to vector<4x512xf32>
    %222 = arith.andi %6, %8 : vector<1x512xi1>
    %cst_134 = arith.constant 0.000000e+00 : f32
    %223 = vector.shape_cast %222 : vector<1x512xi1> to vector<1x512xi1>
    %224 = vector.broadcast %223 : vector<1x512xi1> to vector<4x512xi1>
    %225 = vector.broadcast %cst_134 : f32 to vector<4x512xf32>
    %226 = arith.select %224, %221, %225 : vector<4x512xi1>, vector<4x512xf32>
    %c19 = arith.constant 19 : index
    %c0_135 = arith.constant 0 : index
    %c0_136 = arith.constant 0 : index
    %227 = vector.load %arg6[%c19, %c0_135, %c0_136] : memref<27x4x4xf32, #tpu.memory_space<vmem>>, vector<1x4x4xf32>
    %228 = vector.shape_cast %227 : vector<1x4x4xf32> to vector<4x4xf32>
    %cst_137 = arith.constant dense<0.000000e+00> : vector<4x512xf32>
    %229 = tpu.matmul %228, %226, %cst_137 {dimension_numbers = #tpu.dot_dimension_numbers<[1], [0], [0], [1], [0, 0, 1, 1], [], []>} : vector<4x4xf32>, vector<4x512xf32>, vector<4x512xf32> -> vector<4x512xf32>
    %230 = arith.addf %219, %229 : vector<4x512xf32>
    %c0_138 = arith.constant 0 : index
    %c0_139 = arith.constant 0 : index
    %c130 = arith.constant 130 : index
    %231 = vector.load %arg1[%c0_138, %c0_139, %c130] : memref<1x4x658xf32, #tpu.memory_space<vmem>>, vector<1x4x512xf32>
    %232 = vector.shape_cast %231 : vector<1x4x512xf32> to vector<4x512xf32>
    %233 = arith.andi %6, %8 : vector<1x512xi1>
    %234 = arith.andi %233, %14 : vector<1x512xi1>
    %cst_140 = arith.constant 0.000000e+00 : f32
    %235 = vector.shape_cast %234 : vector<1x512xi1> to vector<1x512xi1>
    %236 = vector.broadcast %235 : vector<1x512xi1> to vector<4x512xi1>
    %237 = vector.broadcast %cst_140 : f32 to vector<4x512xf32>
    %238 = arith.select %236, %232, %237 : vector<4x512xi1>, vector<4x512xf32>
    %c20 = arith.constant 20 : index
    %c0_141 = arith.constant 0 : index
    %c0_142 = arith.constant 0 : index
    %239 = vector.load %arg6[%c20, %c0_141, %c0_142] : memref<27x4x4xf32, #tpu.memory_space<vmem>>, vector<1x4x4xf32>
    %240 = vector.shape_cast %239 : vector<1x4x4xf32> to vector<4x4xf32>
    %cst_143 = arith.constant dense<0.000000e+00> : vector<4x512xf32>
    %241 = tpu.matmul %240, %238, %cst_143 {dimension_numbers = #tpu.dot_dimension_numbers<[1], [0], [0], [1], [0, 0, 1, 1], [], []>} : vector<4x4xf32>, vector<4x512xf32>, vector<4x512xf32> -> vector<4x512xf32>
    %242 = arith.addf %230, %241 : vector<4x512xf32>
    %c0_144 = arith.constant 0 : index
    %c0_145 = arith.constant 0 : index
    %c136 = arith.constant 136 : index
    %243 = vector.load %arg1[%c0_144, %c0_145, %c136] : memref<1x4x658xf32, #tpu.memory_space<vmem>>, vector<1x4x512xf32>
    %244 = vector.shape_cast %243 : vector<1x4x512xf32> to vector<4x512xf32>
    %245 = arith.andi %6, %12 : vector<1x512xi1>
    %cst_146 = arith.constant 0.000000e+00 : f32
    %246 = vector.shape_cast %245 : vector<1x512xi1> to vector<1x512xi1>
    %247 = vector.broadcast %246 : vector<1x512xi1> to vector<4x512xi1>
    %248 = vector.broadcast %cst_146 : f32 to vector<4x512xf32>
    %249 = arith.select %247, %244, %248 : vector<4x512xi1>, vector<4x512xf32>
    %c21 = arith.constant 21 : index
    %c0_147 = arith.constant 0 : index
    %c0_148 = arith.constant 0 : index
    %250 = vector.load %arg6[%c21, %c0_147, %c0_148] : memref<27x4x4xf32, #tpu.memory_space<vmem>>, vector<1x4x4xf32>
    %251 = vector.shape_cast %250 : vector<1x4x4xf32> to vector<4x4xf32>
    %cst_149 = arith.constant dense<0.000000e+00> : vector<4x512xf32>
    %252 = tpu.matmul %251, %249, %cst_149 {dimension_numbers = #tpu.dot_dimension_numbers<[1], [0], [0], [1], [0, 0, 1, 1], [], []>} : vector<4x4xf32>, vector<4x512xf32>, vector<4x512xf32> -> vector<4x512xf32>
    %253 = arith.addf %242, %252 : vector<4x512xf32>
    %c0_150 = arith.constant 0 : index
    %c0_151 = arith.constant 0 : index
    %c137 = arith.constant 137 : index
    %254 = vector.load %arg1[%c0_150, %c0_151, %c137] : memref<1x4x658xf32, #tpu.memory_space<vmem>>, vector<1x4x512xf32>
    %255 = vector.shape_cast %254 : vector<1x4x512xf32> to vector<4x512xf32>
    %cst_152 = arith.constant 0.000000e+00 : f32
    %256 = vector.shape_cast %6 : vector<1x512xi1> to vector<1x512xi1>
    %257 = vector.broadcast %256 : vector<1x512xi1> to vector<4x512xi1>
    %258 = vector.broadcast %cst_152 : f32 to vector<4x512xf32>
    %259 = arith.select %257, %255, %258 : vector<4x512xi1>, vector<4x512xf32>
    %c22 = arith.constant 22 : index
    %c0_153 = arith.constant 0 : index
    %c0_154 = arith.constant 0 : index
    %260 = vector.load %arg6[%c22, %c0_153, %c0_154] : memref<27x4x4xf32, #tpu.memory_space<vmem>>, vector<1x4x4xf32>
    %261 = vector.shape_cast %260 : vector<1x4x4xf32> to vector<4x4xf32>
    %cst_155 = arith.constant dense<0.000000e+00> : vector<4x512xf32>
    %262 = tpu.matmul %261, %259, %cst_155 {dimension_numbers = #tpu.dot_dimension_numbers<[1], [0], [0], [1], [0, 0, 1, 1], [], []>} : vector<4x4xf32>, vector<4x512xf32>, vector<4x512xf32> -> vector<4x512xf32>
    %263 = arith.addf %253, %262 : vector<4x512xf32>
    %c0_156 = arith.constant 0 : index
    %c0_157 = arith.constant 0 : index
    %c138 = arith.constant 138 : index
    %264 = vector.load %arg1[%c0_156, %c0_157, %c138] : memref<1x4x658xf32, #tpu.memory_space<vmem>>, vector<1x4x512xf32>
    %265 = vector.shape_cast %264 : vector<1x4x512xf32> to vector<4x512xf32>
    %266 = arith.andi %6, %14 : vector<1x512xi1>
    %cst_158 = arith.constant 0.000000e+00 : f32
    %267 = vector.shape_cast %266 : vector<1x512xi1> to vector<1x512xi1>
    %268 = vector.broadcast %267 : vector<1x512xi1> to vector<4x512xi1>
    %269 = vector.broadcast %cst_158 : f32 to vector<4x512xf32>
    %270 = arith.select %268, %265, %269 : vector<4x512xi1>, vector<4x512xf32>
    %c23 = arith.constant 23 : index
    %c0_159 = arith.constant 0 : index
    %c0_160 = arith.constant 0 : index
    %271 = vector.load %arg6[%c23, %c0_159, %c0_160] : memref<27x4x4xf32, #tpu.memory_space<vmem>>, vector<1x4x4xf32>
    %272 = vector.shape_cast %271 : vector<1x4x4xf32> to vector<4x4xf32>
    %cst_161 = arith.constant dense<0.000000e+00> : vector<4x512xf32>
    %273 = tpu.matmul %272, %270, %cst_161 {dimension_numbers = #tpu.dot_dimension_numbers<[1], [0], [0], [1], [0, 0, 1, 1], [], []>} : vector<4x4xf32>, vector<4x512xf32>, vector<4x512xf32> -> vector<4x512xf32>
    %274 = arith.addf %263, %273 : vector<4x512xf32>
    %c0_162 = arith.constant 0 : index
    %c0_163 = arith.constant 0 : index
    %c144 = arith.constant 144 : index
    %275 = vector.load %arg1[%c0_162, %c0_163, %c144] : memref<1x4x658xf32, #tpu.memory_space<vmem>>, vector<1x4x512xf32>
    %276 = vector.shape_cast %275 : vector<1x4x512xf32> to vector<4x512xf32>
    %277 = arith.andi %6, %10 : vector<1x512xi1>
    %278 = arith.andi %277, %12 : vector<1x512xi1>
    %cst_164 = arith.constant 0.000000e+00 : f32
    %279 = vector.shape_cast %278 : vector<1x512xi1> to vector<1x512xi1>
    %280 = vector.broadcast %279 : vector<1x512xi1> to vector<4x512xi1>
    %281 = vector.broadcast %cst_164 : f32 to vector<4x512xf32>
    %282 = arith.select %280, %276, %281 : vector<4x512xi1>, vector<4x512xf32>
    %c24 = arith.constant 24 : index
    %c0_165 = arith.constant 0 : index
    %c0_166 = arith.constant 0 : index
    %283 = vector.load %arg6[%c24, %c0_165, %c0_166] : memref<27x4x4xf32, #tpu.memory_space<vmem>>, vector<1x4x4xf32>
    %284 = vector.shape_cast %283 : vector<1x4x4xf32> to vector<4x4xf32>
    %cst_167 = arith.constant dense<0.000000e+00> : vector<4x512xf32>
    %285 = tpu.matmul %284, %282, %cst_167 {dimension_numbers = #tpu.dot_dimension_numbers<[1], [0], [0], [1], [0, 0, 1, 1], [], []>} : vector<4x4xf32>, vector<4x512xf32>, vector<4x512xf32> -> vector<4x512xf32>
    %286 = arith.addf %274, %285 : vector<4x512xf32>
    %c0_168 = arith.constant 0 : index
    %c0_169 = arith.constant 0 : index
    %c145 = arith.constant 145 : index
    %287 = vector.load %arg1[%c0_168, %c0_169, %c145] : memref<1x4x658xf32, #tpu.memory_space<vmem>>, vector<1x4x512xf32>
    %288 = vector.shape_cast %287 : vector<1x4x512xf32> to vector<4x512xf32>
    %289 = arith.andi %6, %10 : vector<1x512xi1>
    %cst_170 = arith.constant 0.000000e+00 : f32
    %290 = vector.shape_cast %289 : vector<1x512xi1> to vector<1x512xi1>
    %291 = vector.broadcast %290 : vector<1x512xi1> to vector<4x512xi1>
    %292 = vector.broadcast %cst_170 : f32 to vector<4x512xf32>
    %293 = arith.select %291, %288, %292 : vector<4x512xi1>, vector<4x512xf32>
    %c25 = arith.constant 25 : index
    %c0_171 = arith.constant 0 : index
    %c0_172 = arith.constant 0 : index
    %294 = vector.load %arg6[%c25, %c0_171, %c0_172] : memref<27x4x4xf32, #tpu.memory_space<vmem>>, vector<1x4x4xf32>
    %295 = vector.shape_cast %294 : vector<1x4x4xf32> to vector<4x4xf32>
    %cst_173 = arith.constant dense<0.000000e+00> : vector<4x512xf32>
    %296 = tpu.matmul %295, %293, %cst_173 {dimension_numbers = #tpu.dot_dimension_numbers<[1], [0], [0], [1], [0, 0, 1, 1], [], []>} : vector<4x4xf32>, vector<4x512xf32>, vector<4x512xf32> -> vector<4x512xf32>
    %297 = arith.addf %286, %296 : vector<4x512xf32>
    %c0_174 = arith.constant 0 : index
    %c0_175 = arith.constant 0 : index
    %c146 = arith.constant 146 : index
    %298 = vector.load %arg1[%c0_174, %c0_175, %c146] : memref<1x4x658xf32, #tpu.memory_space<vmem>>, vector<1x4x512xf32>
    %299 = vector.shape_cast %298 : vector<1x4x512xf32> to vector<4x512xf32>
    %300 = arith.andi %6, %10 : vector<1x512xi1>
    %301 = arith.andi %300, %14 : vector<1x512xi1>
    %cst_176 = arith.constant 0.000000e+00 : f32
    %302 = vector.shape_cast %301 : vector<1x512xi1> to vector<1x512xi1>
    %303 = vector.broadcast %302 : vector<1x512xi1> to vector<4x512xi1>
    %304 = vector.broadcast %cst_176 : f32 to vector<4x512xf32>
    %305 = arith.select %303, %299, %304 : vector<4x512xi1>, vector<4x512xf32>
    %c26 = arith.constant 26 : index
    %c0_177 = arith.constant 0 : index
    %c0_178 = arith.constant 0 : index
    %306 = vector.load %arg6[%c26, %c0_177, %c0_178] : memref<27x4x4xf32, #tpu.memory_space<vmem>>, vector<1x4x4xf32>
    %307 = vector.shape_cast %306 : vector<1x4x4xf32> to vector<4x4xf32>
    %cst_179 = arith.constant dense<0.000000e+00> : vector<4x512xf32>
    %308 = tpu.matmul %307, %305, %cst_179 {dimension_numbers = #tpu.dot_dimension_numbers<[1], [0], [0], [1], [0, 0, 1, 1], [], []>} : vector<4x4xf32>, vector<4x512xf32>, vector<4x512xf32> -> vector<4x512xf32>
    %309 = arith.addf %297, %308 : vector<4x512xf32>
    %c0_180 = arith.constant 0 : index
    %c0_181 = arith.constant 0 : index
    %310 = vector.load %arg7[%c0_180, %c0_181] : memref<4x1xf32, #tpu.memory_space<vmem>>, vector<4x1xf32>
    %311 = vector.broadcast %310 : vector<4x1xf32> to vector<4x512xf32>
    %312 = arith.addf %309, %311 : vector<4x512xf32>
    %cst_182 = arith.constant dense<0.000000e+00> : vector<4xf32>
    %313 = vector.multi_reduction <add>, %312, %cst_182 [1] : vector<4x512xf32> to vector<4xf32>
    %314 = vector.shape_cast %313 : vector<4xf32> to vector<4x1xf32>
    %cst_183 = arith.constant 5.120000e+02 : f32
    %315 = vector.broadcast %cst_183 : f32 to vector<4x1xf32>
    %316 = arith.divf %314, %315 : vector<4x1xf32>
    %317 = vector.broadcast %316 : vector<4x1xf32> to vector<4x512xf32>
    %318 = arith.subf %312, %317 : vector<4x512xf32>
    %319 = arith.mulf %318, %318 : vector<4x512xf32>
    %cst_184 = arith.constant dense<0.000000e+00> : vector<4xf32>
    %320 = vector.multi_reduction <add>, %319, %cst_184 [1] : vector<4x512xf32> to vector<4xf32>
    %321 = vector.shape_cast %320 : vector<4xf32> to vector<4x1xf32>
    %cst_185 = arith.constant 5.120000e+02 : f32
    %322 = vector.broadcast %cst_185 : f32 to vector<4x1xf32>
    %323 = arith.divf %321, %322 : vector<4x1xf32>
    %c0_186 = arith.constant 0 : index
    %c0_187 = arith.constant 0 : index
    %324 = vector.load %arg8[%c0_186, %c0_187] : memref<4x1xf32, #tpu.memory_space<vmem>>, vector<4x1xf32>
    %cst_188 = arith.constant 9.99999974E-6 : f32
    %325 = vector.broadcast %cst_188 : f32 to vector<4x1xf32>
    %326 = arith.addf %323, %325 : vector<4x1xf32>
    %327 = math.rsqrt %326 : vector<4x1xf32>
    %328 = vector.broadcast %327 : vector<4x1xf32> to vector<4x512xf32>
    %329 = arith.mulf %318, %328 : vector<4x512xf32>
    %330 = vector.broadcast %324 : vector<4x1xf32> to vector<4x512xf32>
    %331 = arith.mulf %330, %329 : vector<4x512xf32>
    %c0_189 = arith.constant 0 : index
    %c0_190 = arith.constant 0 : index
    %332 = vector.load %arg9[%c0_189, %c0_190] : memref<4x1xf32, #tpu.memory_space<vmem>>, vector<4x1xf32>
    %333 = vector.broadcast %332 : vector<4x1xf32> to vector<4x512xf32>
    %334 = arith.addf %331, %333 : vector<4x512xf32>
    %cst_191 = arith.constant 0.000000e+00 : f32
    %335 = vector.broadcast %cst_191 : f32 to vector<4x512xf32>
    %336 = arith.cmpf oge, %334, %335 : vector<4x512xf32>
    %cst_192 = arith.constant 0.00999999977 : f32
    %337 = vector.broadcast %cst_192 : f32 to vector<4x512xf32>
    %338 = arith.mulf %337, %334 : vector<4x512xf32>
    %339 = arith.select %336, %334, %338 : vector<4x512xi1>, vector<4x512xf32>
    %c0_193 = arith.constant 0 : index
    %c0_194 = arith.constant 0 : index
    %c0_195 = arith.constant 0 : index
    %340 = vector.load %arg10[%c0_193, %c0_194, %c0_195] : memref<1x8x512xf32, #tpu.memory_space<vmem>>, vector<1x4x512xf32>
    %341 = vector.shape_cast %340 : vector<1x4x512xf32> to vector<4x512xf32>
    %342 = vector.shape_cast %339 : vector<4x512xf32> to vector<1x4x512xf32>
    tpu.vector_store %arg10[%c0_193, %c0_194, %c0_195], %342 {strides = array<i32>} : memref<1x8x512xf32, #tpu.memory_space<vmem>>, vector<1x4x512xf32>,
    %c0_196 = arith.constant 0 : index
    %c0_197 = arith.constant 0 : index
    %c0_198 = arith.constant 0 : index
    %343 = vector.load %arg2[%c0_196, %c0_197, %c0_198] : memref<1x4x512xf32, #tpu.memory_space<vmem>>, vector<1x4x512xf32>
    %344 = vector.shape_cast %343 : vector<1x4x512xf32> to vector<4x512xf32>
    %c0_199 = arith.constant 0 : index
    %c4_200 = arith.constant 4 : index
    %c0_201 = arith.constant 0 : index
    %345 = vector.load %arg10[%c0_199, %c4_200, %c0_201] : memref<1x8x512xf32, #tpu.memory_space<vmem>>, vector<1x4x512xf32>
    %346 = vector.shape_cast %345 : vector<1x4x512xf32> to vector<4x512xf32>
    %347 = vector.shape_cast %344 : vector<4x512xf32> to vector<1x4x512xf32>
    tpu.vector_store %arg10[%c0_199, %c4_200, %c0_201], %347 {strides = array<i32>} : memref<1x8x512xf32, #tpu.memory_space<vmem>>, vector<1x4x512xf32>,
    return
  }
  func.func @transform_0(%arg0: i32) -> (i32, i32, i32) {
    %c0_i32 = arith.constant 0 : i32
    %c0_i32_0 = arith.constant 0 : i32
    %c0_i32_1 = arith.constant 0 : i32
    return %arg0, %c0_i32, %c0_i32_0 : i32, i32, i32
  }
  func.func @transform_1(%arg0: i32) -> (i32, i32, i32) {
    %c0_i32 = arith.constant 0 : i32
    %c0_i32_0 = arith.constant 0 : i32
    %c0_i32_1 = arith.constant 0 : i32
    return %arg0, %c0_i32, %c0_i32_0 : i32, i32, i32
  }
  func.func @transform_2(%arg0: i32) -> (i32, i32) {
    %c0_i32 = arith.constant 0 : i32
    %c0_i32_0 = arith.constant 0 : i32
    %c0_i32_1 = arith.constant 0 : i32
    return %c0_i32, %c0_i32_0 : i32, i32
  }
  func.func @transform_3(%arg0: i32) -> (i32, i32) {
    %c0_i32 = arith.constant 0 : i32
    %c0_i32_0 = arith.constant 0 : i32
    %c0_i32_1 = arith.constant 0 : i32
    return %c0_i32, %c0_i32_0 : i32, i32
  }
  func.func @transform_4(%arg0: i32) -> (i32, i32) {
    %c0_i32 = arith.constant 0 : i32
    %c0_i32_0 = arith.constant 0 : i32
    %c0_i32_1 = arith.constant 0 : i32
    return %c0_i32, %c0_i32_0 : i32, i32
  }
  func.func @transform_5(%arg0: i32) -> (i32, i32, i32) {
    %c0_i32 = arith.constant 0 : i32
    %c0_i32_0 = arith.constant 0 : i32
    %c0_i32_1 = arith.constant 0 : i32
    %c0_i32_2 = arith.constant 0 : i32
    return %c0_i32, %c0_i32_0, %c0_i32_1 : i32, i32, i32
  }
  func.func @transform_6(%arg0: i32) -> (i32, i32) {
    %c0_i32 = arith.constant 0 : i32
    %c0_i32_0 = arith.constant 0 : i32
    %c0_i32_1 = arith.constant 0 : i32
    return %c0_i32, %c0_i32_0 : i32, i32
  }
  func.func @transform_7(%arg0: i32) -> (i32, i32) {
    %c0_i32 = arith.constant 0 : i32
    %c0_i32_0 = arith.constant 0 : i32
    %c0_i32_1 = arith.constant 0 : i32
    return %c0_i32, %c0_i32_0 : i32, i32
  }
  func.func @transform_8(%arg0: i32) -> (i32, i32) {
    %c0_i32 = arith.constant 0 : i32
    %c0_i32_0 = arith.constant 0 : i32
    %c0_i32_1 = arith.constant 0 : i32
    return %c0_i32, %c0_i32_0 : i32, i32
  }
  func.func @transform_9(%arg0: i32) -> (i32, i32, i32) {
    %c0_i32 = arith.constant 0 : i32
    %c0_i32_0 = arith.constant 0 : i32
    %c0_i32_1 = arith.constant 0 : i32
    return %arg0, %c0_i32, %c0_i32_0 : i32, i32, i32
  }
}

</mosaic_0001>

<llo_original>
// kernel: up_convolutional_block_forward.2
$region0: #{up_convolutional_block_forward.2}
  #allocation0 [shape = 'u32[]', space=smem, size = 0x4, offset = 0x4, fixed_abs, tag = 'smem constant byte address 0x4 - core index']
  #allocation1 [shape = 'u32[144,128]{1,0:T(1,128)}', space=vmem, size = 0x12000, scoped, tag = 'internal scratch']
  %s0 = inlined_call_operand.vmem [shape: f32[2,8,64], index: 0, kind: input, shape index: {}]
  %s1 = inlined_call_operand.vmem [shape: f32[8,4,8], index: 1, kind: input, shape index: {}]
  %s2 = inlined_call_operand.vmem [shape: f32[4,1], index: 2, kind: input, shape index: {}]
  %s3 = inlined_call_operand.vmem [shape: f32[4,1], index: 3, kind: input, shape index: {}]
  %s4 = inlined_call_operand.vmem [shape: f32[2,8,4,64], index: 4, kind: output, shape index: {}]
  %s5 = sld [smem:[#allocation0]]
  $region49: #{up_convolutional_block_forward.2} parent=0
    _
  %s7 = ssub.s32 1, %s5
  %s8 = scalar_select 0, %s7, %s5
  loop: start=0, step=1, limit=4
  $region2: #{up_convolutional_block_forward.2} parent=0 // loop_pre_header
    _
  $region3: #{up_convolutional_block_forward.2} parent=0 // loop_header
    %s10 = sphi 0, %s14
    %p11 = scmp.ge.s32.totalorder %s10, 4
    %s20 = sphi 0, %s22
    %s23 = sphi 0, %s20
    %s24 = sphi 0, %s23
    %s40 = sphi 0, %s24
    %s44 = sphi 0, %s44
    %s46 = sphi 0, %s44
    %s47 = sphi 0, %s46
    %s61 = sphi 0, %s47
    %s65 = sphi 0, %s65
    %s67 = sphi 0, %s65
    %s68 = sphi 0, %s67
    %s82 = sphi 0, %s68
    %s86 = sphi 0, %s86
    %s88 = sphi 0, %s86
    %s89 = sphi 0, %s88
    %s103 = sphi 0, %s89
    %s109 = sphi 0, %s111
    %s112 = sphi 0, %s109
    %s113 = sphi 0, %s112
    %s129 = sphi 0, %s113
  $region4: #{up_convolutional_block_forward.2} parent=0 // loop_header_branch
    %13 = sbr.rel (%p11) target = $region8
  $region5: #{up_convolutional_block_forward.2} parent=0 // loop_body
    %s15 = ssub.s32 %s10, 1
    %s16 = ssub.s32 %s10, 2
    %s17 = sadd.s32 %s10, 1
    %s18 = ssub.s32 %s10, %s17
    %p19 = scmp.eq.s32.totalorder %s18, 0
    %s21 = sadd.s32 %s20, 1
    %s22 = scalar_select %p19, %s20, %s21
    %p25 = pneg %p19
    %p26 = scmp.eq.s32.totalorder %s10, 1
    %p27 = por %p25, %p26
    %p28 = scmp.ne.s32.totalorder %s20, %s23
    %p29 = scmp.eq.s32.totalorder %s10, 0
    %p30 = por %p28, %p29
    %p31 = scmp.ne.s32.totalorder %s20, %s23
    %p32 = scmp.eq.s32.totalorder %s15, 1
    %p33 = por %p31, %p32
    %p34 = scmp.ne.s32.totalorder %s23, %s24
    %p35 = scmp.eq.s32.totalorder %s15, 0
    %p36 = por %p34, %p35
    %p37 = scmp.ne.s32.totalorder %s23, %s24
    %p38 = scmp.eq.s32.totalorder %s16, 1
    %p39 = por %p37, %p38
    %p41 = scmp.ne.s32.totalorder %s24, %s40
    %p42 = scmp.eq.s32.totalorder %s16, 0
    %p43 = por %p41, %p42
    %s45 = sadd.s32 %s44, 1
    %p48 = scmp.eq.s32.totalorder %s10, 1
    %p49 = scmp.ne.s32.totalorder %s44, %s46
    %p50 = scmp.eq.s32.totalorder %s10, 0
    %p51 = por %p49, %p50
    %p52 = scmp.ne.s32.totalorder %s44, %s46
    %p53 = scmp.eq.s32.totalorder %s15, 1
    %p54 = por %p52, %p53
    %p55 = scmp.ne.s32.totalorder %s46, %s47
    %p56 = scmp.eq.s32.totalorder %s15, 0
    %p57 = por %p55, %p56
    %p58 = scmp.ne.s32.totalorder %s46, %s47
    %p59 = scmp.eq.s32.totalorder %s16, 1
    %p60 = por %p58, %p59
    %p62 = scmp.ne.s32.totalorder %s47, %s61
    %p63 = scmp.eq.s32.totalorder %s16, 0
    %p64 = por %p62, %p63
    %s66 = sadd.s32 %s65, 1
    %p69 = scmp.eq.s32.totalorder %s10, 1
    %p70 = scmp.ne.s32.totalorder %s65, %s67
    %p71 = scmp.eq.s32.totalorder %s10, 0
    %p72 = por %p70, %p71
    %p73 = scmp.ne.s32.totalorder %s65, %s67
    %p74 = scmp.eq.s32.totalorder %s15, 1
    %p75 = por %p73, %p74
    %p76 = scmp.ne.s32.totalorder %s67, %s68
    %p77 = scmp.eq.s32.totalorder %s15, 0
    %p78 = por %p76, %p77
    %p79 = scmp.ne.s32.totalorder %s67, %s68
    %p80 = scmp.eq.s32.totalorder %s16, 1
    %p81 = por %p79, %p80
    %p83 = scmp.ne.s32.totalorder %s68, %s82
    %p84 = scmp.eq.s32.totalorder %s16, 0
    %p85 = por %p83, %p84
    %s87 = sadd.s32 %s86, 1
    %p90 = scmp.eq.s32.totalorder %s10, 1
    %p91 = scmp.ne.s32.totalorder %s86, %s88
    %p92 = scmp.eq.s32.totalorder %s10, 0
    %p93 = por %p91, %p92
    %p94 = scmp.ne.s32.totalorder %s86, %s88
    %p95 = scmp.eq.s32.totalorder %s15, 1
    %p96 = por %p94, %p95
    %p97 = scmp.ne.s32.totalorder %s88, %s89
    %p98 = scmp.eq.s32.totalorder %s15, 0
    %p99 = por %p97, %p98
    %p100 = scmp.ne.s32.totalorder %s88, %s89
    %p101 = scmp.eq.s32.totalorder %s16, 1
    %p102 = por %p100, %p101
    %p104 = scmp.ne.s32.totalorder %s89, %s103
    %p105 = scmp.eq.s32.totalorder %s16, 0
    %p106 = por %p104, %p105
    %s107 = ssub.s32 %s10, %s17
    %p108 = scmp.eq.s32.totalorder %s107, 0
    %s110 = sadd.s32 %s109, 1
    %s111 = scalar_select %p108, %s109, %s110
    %p114 = pneg %p108
    %p115 = scmp.eq.s32.totalorder %s10, 1
    %p116 = por %p114, %p115
    %p117 = scmp.ne.s32.totalorder %s109, %s112
    %p118 = scmp.eq.s32.totalorder %s10, 0
    %p119 = por %p117, %p118
    %p120 = scmp.ne.s32.totalorder %s109, %s112
    %p121 = scmp.eq.s32.totalorder %s15, 1
    %p122 = por %p120, %p121
    %p123 = scmp.ne.s32.totalorder %s112, %s113
    %p124 = scmp.eq.s32.totalorder %s15, 0
    %p125 = por %p123, %p124
    %p126 = scmp.ne.s32.totalorder %s112, %s113
    %p127 = scmp.eq.s32.totalorder %s16, 1
    %p128 = por %p126, %p127
    %p130 = scmp.ne.s32.totalorder %s113, %s129
    %p131 = scmp.eq.s32.totalorder %s16, 0
    %p132 = por %p130, %p131
    %p133 = scmp.le.s32.totalorder 1, %s10
    %p134 = scmp.lt.s32.totalorder %s10, 3
    %p135 = pnand %p133, %p134
    %p136 = pneg %p135
    // Predicated region
    $region9: #{up_convolutional_block_forward.2} parent=5 // pred_check
      _
    $region10: #{up_convolutional_block_forward.2} parent=5 // pred_check_branch
      %138 = sbr.rel (%p135) target = $region12
    $region11: #{up_convolutional_block_forward.2} parent=5 // pred_region
      %s139 = ssub.s32 %s10, 1
      // Predicated region
      $region13: #{up_convolutional_block_forward.2} parent=11 // pred_check
        %p140 = pneg %p57
      $region14: #{up_convolutional_block_forward.2} parent=11 // pred_check_branch
        %142 = sbr.rel (%p140) target = $region16
      $region15: #{up_convolutional_block_forward.2} parent=11 // pred_region
        _
      $region16: #{up_convolutional_block_forward.2} parent=11 // pred_fallthru
        _
      // Predicated region
      $region17: #{up_convolutional_block_forward.2} parent=11 // pred_check
        %p143 = pneg %p78
      $region18: #{up_convolutional_block_forward.2} parent=11 // pred_check_branch
        %145 = sbr.rel (%p143) target = $region20
      $region19: #{up_convolutional_block_forward.2} parent=11 // pred_region
        _
      $region20: #{up_convolutional_block_forward.2} parent=11 // pred_fallthru
        _
      // Predicated region
      $region21: #{up_convolutional_block_forward.2} parent=11 // pred_check
        %p146 = pneg %p99
      $region22: #{up_convolutional_block_forward.2} parent=11 // pred_check_branch
        %148 = sbr.rel (%p146) target = $region24
      $region23: #{up_convolutional_block_forward.2} parent=11 // pred_region
        _
      $region24: #{up_convolutional_block_forward.2} parent=11 // pred_fallthru
        _
    $region12: #{up_convolutional_block_forward.2} parent=5 // pred_fallthru
      _
    %p149 = scmp.lt.s32.totalorder %s10, 2
    // Predicated region
    $region25: #{up_convolutional_block_forward.2} parent=5 // pred_check
      %p150 = pneg %p149
    $region26: #{up_convolutional_block_forward.2} parent=5 // pred_check_branch
      %152 = sbr.rel (%p150) target = $region28
    $region27: #{up_convolutional_block_forward.2} parent=5 // pred_region
      // Predicated region
      $region29: #{up_convolutional_block_forward.2} parent=27 // pred_check
        %p153 = pneg %p30
      $region30: #{up_convolutional_block_forward.2} parent=27 // pred_check_branch
        %155 = sbr.rel (%p153) target = $region32
      $region31: #{up_convolutional_block_forward.2} parent=27 // pred_region
        %p156 = scmp.lt.s32.totalorder %s10, 1
        %s157 = scalar_select %p156, %s10, 1
        %s158 = smul.addr %s157, 8
        %s159 = scalar_lea.vmem %s0, %s158
      $region32: #{up_convolutional_block_forward.2} parent=27 // pred_fallthru
        _
    $region28: #{up_convolutional_block_forward.2} parent=5 // pred_fallthru
      _
    %p160 = scmp.le.s32.totalorder 1, %s10
    %p161 = scmp.lt.s32.totalorder %s10, 3
    %p162 = pnand %p160, %p161
    %p163 = pneg %p162
    // Predicated region
    $region33: #{up_convolutional_block_forward.2} parent=5 // pred_check
      _
    $region34: #{up_convolutional_block_forward.2} parent=5 // pred_check_branch
      %165 = sbr.rel (%p162) target = $region36
    $region35: #{up_convolutional_block_forward.2} parent=5 // pred_region
      %s166 = ssub.s32 %s10, 1
      %p167 = scmp.lt.s32.totalorder %s15, 1
      %s168 = scalar_select %p167, %s15, 1
      %s169 = smul.addr %s168, 8
      %s170 = scalar_lea.vmem %s0, %s169
      %p171 = pneg %p36
      %p172 = pneg %p33
      %p173 = pneg %p57
      %p174 = pneg %p54
      %p175 = pneg %p78
      %p176 = pneg %p75
      %p177 = pneg %p99
      %p178 = pneg %p96
      %p179 = pneg %p125
      %p180 = pneg %p122
      %p181 = scmp.lt.s32.totalorder %s15, 1
      %s182 = scalar_select %p181, %s15, 1
      %s183 = smul.addr %s182, 8
      %s184 = smul.addr %s183, 4
      %s185 = scalar_lea.vmem %s4, %s184
      %p186 = scmp.lt.s32.totalorder %s15, 1
      %s187 = scalar_select %p186, %s15, 1
      %s188 = smul.addr %s187, 8
      %s189 = scalar_lea.vmem %s0, %s188
      %p190 = scmp.lt.s32.totalorder %s15, 1
      %s191 = scalar_select %p190, %s15, 1
      %s192 = smul.addr %s191, 8
      %s193 = smul.addr %s192, 4
      %s194 = scalar_lea.vmem %s4, %s193
      %v195 = vld [vmem:[%s189] sm:$0xff]
      %v196 = vld [vmem:[%s1] sm:$0xf]
      %vm197 = vcmask 64512
      %v199 = vsel %vm197, %v196, 0
      %201 = vmatprep.subr.mxu0 0.0
      %202 = vmatpush1.msra.mxu0 0.0
      %203 = vmatprep.subr.mxu0 0.0
      %204 = vmatpush1.msra.mxu0 0.0
      %205 = vmatprep.subr.mxu0 0.0
      %206 = vmatpush1.msra.mxu0 0.0
      %207 = vmatprep.subr.mxu0 0.0
      %208 = vmatpush1.msra.mxu0 0.0
      %209 = vmatprep.subr.mxu0 0.0
      %210 = vmatpush1.msra.mxu0 0.0
      %211 = vmatprep.subr.mxu0 0.0
      %212 = vmatpush1.msra.mxu0 0.0
      %213 = vmatprep.subr.mxu0 0.0
      %214 = vmatpush1.msra.mxu0 0.0
      %215 = vmatprep.subr.mxu0 0.0
      %216 = vmatpush1.msra.mxu0 0.0
      %217 = vmatprep.subr.mxu0 0.0
      %218 = vmatpush1.msra.mxu0 0.0
      %219 = vmatprep.subr.mxu0 0.0
      %220 = vmatpush1.msra.mxu0 0.0
      %221 = vmatprep.subr.mxu0 0.0
      %222 = vmatpush1.msra.mxu0 0.0
      %223 = vmatprep.subr.mxu0 0.0
      %224 = vmatpush1.msra.mxu0 0.0
      %225 = vmatprep.subr.mxu0 0.0
      %226 = vmatpush1.msra.mxu0 0.0
      %227 = vmatprep.subr.mxu0 0.0
      %228 = vmatpush1.msra.mxu0 0.0
      %229 = vmatprep.subr.mxu0 0.0
      %230 = vmatpush1.msra.mxu0 0.0
      %231 = vmatprep.subr.mxu0 0.0
      %232 = vmatpush1.msra.mxu0 %v195
      %233 = vmatprep.subr.mxu0 0.0
      %234 = vmatpush2.msra.mxu0 0.0
      %235 = vmatprep.subr.mxu0 0.0
      %236 = vmatpush2.msra.mxu0 0.0
      %237 = vmatprep.subr.mxu0 0.0
      %238 = vmatpush2.msra.mxu0 0.0
      %239 = vmatprep.subr.mxu0 0.0
      %240 = vmatpush2.msra.mxu0 0.0
      %241 = vmatprep.subr.mxu0 0.0
      %242 = vmatpush2.msra.mxu0 0.0
      %243 = vmatprep.subr.mxu0 0.0
      %244 = vmatpush2.msra.mxu0 0.0
      %245 = vmatprep.subr.mxu0 0.0
      %246 = vmatpush2.msra.mxu0 0.0
      %247 = vmatprep.subr.mxu0 0.0
      %248 = vmatpush2.msra.mxu0 0.0
      %249 = vmatprep.subr.mxu0 0.0
      %250 = vmatpush2.msra.mxu0 0.0
      %251 = vmatprep.subr.mxu0 0.0
      %252 = vmatpush2.msra.mxu0 0.0
      %253 = vmatprep.subr.mxu0 0.0
      %254 = vmatpush2.msra.mxu0 0.0
      %255 = vmatprep.subr.mxu0 0.0
      %256 = vmatpush2.msra.mxu0 0.0
      %257 = vmatprep.subr.mxu0 0.0
      %258 = vmatpush2.msra.mxu0 0.0
      %259 = vmatprep.subr.mxu0 0.0
      %260 = vmatpush2.msra.mxu0 0.0
      %261 = vmatprep.subr.mxu0 0.0
      %262 = vmatpush2.msra.mxu0 0.0
      %263 = vmatprep.subr.mxu0 0.0
      %264 = vmatpush2.msra.mxu0 0.0
      %265 = vmatprep.mubr.f32.mxu0 0.0
      %266 = vmatmul.mubr.f32.gmra.mxu0 %v199
      %v267 = vpop.f32.mrf.mxu0
      %v268 = vadd.f32 0.0, %v267
      %v269 = vpop.f32.mrf.mxu0
      %270 = vdwg.mxu0
      %vm271 = vcmask 519168
      %v272 = vsel %vm271, %v268, 0.0
      %273 = vadd.xlane.f32.xlu0 %v272
      %v274 = vpop.xlane.xlu0 %273
      %v275 = vadd.f32 %v274, 0.0
      %s276 = scalar_lea.vmem %s1, 4
      %v277 = vld [vmem:[%s276] sm:$0xf]
      %v279 = vsel %vm197, %v277, 0
      %281 = vmatprep.subr.mxu0 0.0
      %282 = vmatpush1.msra.mxu0 0.0
      %283 = vmatprep.subr.mxu0 0.0
      %284 = vmatpush1.msra.mxu0 0.0
      %285 = vmatprep.subr.mxu0 0.0
      %286 = vmatpush1.msra.mxu0 0.0
      %287 = vmatprep.subr.mxu0 0.0
      %288 = vmatpush1.msra.mxu0 0.0
      %289 = vmatprep.subr.mxu0 0.0
      %290 = vmatpush1.msra.mxu0 0.0
      %291 = vmatprep.subr.mxu0 0.0
      %292 = vmatpush1.msra.mxu0 0.0
      %293 = vmatprep.subr.mxu0 0.0
      %294 = vmatpush1.msra.mxu0 0.0
      %295 = vmatprep.subr.mxu0 0.0
      %296 = vmatpush1.msra.mxu0 0.0
      %297 = vmatprep.subr.mxu0 0.0
      %298 = vmatpush1.msra.mxu0 0.0
      %299 = vmatprep.subr.mxu0 0.0
      %300 = vmatpush1.msra.mxu0 0.0
      %301 = vmatprep.subr.mxu0 0.0
      %302 = vmatpush1.msra.mxu0 0.0
      %303 = vmatprep.subr.mxu0 0.0
      %304 = vmatpush1.msra.mxu0 0.0
      %305 = vmatprep.subr.mxu0 0.0
      %306 = vmatpush1.msra.mxu0 0.0
      %307 = vmatprep.subr.mxu0 0.0
      %308 = vmatpush1.msra.mxu0 0.0
      %309 = vmatprep.subr.mxu0 0.0
      %310 = vmatpush1.msra.mxu0 0.0
      %311 = vmatprep.subr.mxu0 0.0
      %312 = vmatpush1.msra.mxu0 %v195
      %313 = vmatprep.subr.mxu0 0.0
      %314 = vmatpush2.msra.mxu0 0.0
      %315 = vmatprep.subr.mxu0 0.0
      %316 = vmatpush2.msra.mxu0 0.0
      %317 = vmatprep.subr.mxu0 0.0
      %318 = vmatpush2.msra.mxu0 0.0
      %319 = vmatprep.subr.mxu0 0.0
      %320 = vmatpush2.msra.mxu0 0.0
      %321 = vmatprep.subr.mxu0 0.0
      %322 = vmatpush2.msra.mxu0 0.0
      %323 = vmatprep.subr.mxu0 0.0
      %324 = vmatpush2.msra.mxu0 0.0
      %325 = vmatprep.subr.mxu0 0.0
      %326 = vmatpush2.msra.mxu0 0.0
      %327 = vmatprep.subr.mxu0 0.0
      %328 = vmatpush2.msra.mxu0 0.0
      %329 = vmatprep.subr.mxu0 0.0
      %330 = vmatpush2.msra.mxu0 0.0
      %331 = vmatprep.subr.mxu0 0.0
      %332 = vmatpush2.msra.mxu0 0.0
      %333 = vmatprep.subr.mxu0 0.0
      %334 = vmatpush2.msra.mxu0 0.0
      %335 = vmatprep.subr.mxu0 0.0
      %336 = vmatpush2.msra.mxu0 0.0
      %337 = vmatprep.subr.mxu0 0.0
      %338 = vmatpush2.msra.mxu0 0.0
      %339 = vmatprep.subr.mxu0 0.0
      %340 = vmatpush2.msra.mxu0 0.0
      %341 = vmatprep.subr.mxu0 0.0
      %342 = vmatpush2.msra.mxu0 0.0
      %343 = vmatprep.subr.mxu0 0.0
      %344 = vmatpush2.msra.mxu0 0.0
      %345 = vmatprep.mubr.f32.mxu0 0.0
      %346 = vmatmul.mubr.f32.gmra.mxu0 %v279
      %v347 = vpop.f32.mrf.mxu0
      %v348 = vadd.f32 0.0, %v347
      %v349 = vpop.f32.mrf.mxu0
      %350 = vdwg.mxu0
      %v351 = vsel %vm271, %v348, 0.0
      %352 = vadd.xlane.f32.xlu0 %v351
      %v353 = vpop.xlane.xlu0 %352
      %v354 = vadd.f32 %v275, %v353
      %s355 = scalar_lea.vmem %s1, 8
      %v356 = vld [vmem:[%s355] sm:$0xf]
      %v358 = vsel %vm197, %v356, 0
      %360 = vmatprep.subr.mxu0 0.0
      %361 = vmatpush1.msra.mxu0 0.0
      %362 = vmatprep.subr.mxu0 0.0
      %363 = vmatpush1.msra.mxu0 0.0
      %364 = vmatprep.subr.mxu0 0.0
      %365 = vmatpush1.msra.mxu0 0.0
      %366 = vmatprep.subr.mxu0 0.0
      %367 = vmatpush1.msra.mxu0 0.0
      %368 = vmatprep.subr.mxu0 0.0
      %369 = vmatpush1.msra.mxu0 0.0
      %370 = vmatprep.subr.mxu0 0.0
      %371 = vmatpush1.msra.mxu0 0.0
      %372 = vmatprep.subr.mxu0 0.0
      %373 = vmatpush1.msra.mxu0 0.0
      %374 = vmatprep.subr.mxu0 0.0
      %375 = vmatpush1.msra.mxu0 0.0
      %376 = vmatprep.subr.mxu0 0.0
      %377 = vmatpush1.msra.mxu0 0.0
      %378 = vmatprep.subr.mxu0 0.0
      %379 = vmatpush1.msra.mxu0 0.0
      %380 = vmatprep.subr.mxu0 0.0
      %381 = vmatpush1.msra.mxu0 0.0
      %382 = vmatprep.subr.mxu0 0.0
      %383 = vmatpush1.msra.mxu0 0.0
      %384 = vmatprep.subr.mxu0 0.0
      %385 = vmatpush1.msra.mxu0 0.0
      %386 = vmatprep.subr.mxu0 0.0
      %387 = vmatpush1.msra.mxu0 0.0
      %388 = vmatprep.subr.mxu0 0.0
      %389 = vmatpush1.msra.mxu0 0.0
      %390 = vmatprep.subr.mxu0 0.0
      %391 = vmatpush1.msra.mxu0 %v195
      %392 = vmatprep.subr.mxu0 0.0
      %393 = vmatpush2.msra.mxu0 0.0
      %394 = vmatprep.subr.mxu0 0.0
      %395 = vmatpush2.msra.mxu0 0.0
      %396 = vmatprep.subr.mxu0 0.0
      %397 = vmatpush2.msra.mxu0 0.0
      %398 = vmatprep.subr.mxu0 0.0
      %399 = vmatpush2.msra.mxu0 0.0
      %400 = vmatprep.subr.mxu0 0.0
      %401 = vmatpush2.msra.mxu0 0.0
      %402 = vmatprep.subr.mxu0 0.0
      %403 = vmatpush2.msra.mxu0 0.0
      %404 = vmatprep.subr.mxu0 0.0
      %405 = vmatpush2.msra.mxu0 0.0
      %406 = vmatprep.subr.mxu0 0.0
      %407 = vmatpush2.msra.mxu0 0.0
      %408 = vmatprep.subr.mxu0 0.0
      %409 = vmatpush2.msra.mxu0 0.0
      %410 = vmatprep.subr.mxu0 0.0
      %411 = vmatpush2.msra.mxu0 0.0
      %412 = vmatprep.subr.mxu0 0.0
      %413 = vmatpush2.msra.mxu0 0.0
      %414 = vmatprep.subr.mxu0 0.0
      %415 = vmatpush2.msra.mxu0 0.0
      %416 = vmatprep.subr.mxu0 0.0
      %417 = vmatpush2.msra.mxu0 0.0
      %418 = vmatprep.subr.mxu0 0.0
      %419 = vmatpush2.msra.mxu0 0.0
      %420 = vmatprep.subr.mxu0 0.0
      %421 = vmatpush2.msra.mxu0 0.0
      %422 = vmatprep.subr.mxu0 0.0
      %423 = vmatpush2.msra.mxu0 0.0
      %424 = vmatprep.mubr.f32.mxu0 0.0
      %425 = vmatmul.mubr.f32.gmra.mxu0 %v358
      %v426 = vpop.f32.mrf.mxu0
      %v427 = vadd.f32 0.0, %v426
      %v428 = vpop.f32.mrf.mxu0
      %429 = vdwg.mxu0
      %v430 = vsel %vm271, %v427, 0.0
      %431 = vadd.xlane.f32.xlu0 %v430
      %v432 = vpop.xlane.xlu0 %431
      %v433 = vadd.f32 %v354, %v432
      %s434 = scalar_lea.vmem %s1, 12
      %v435 = vld [vmem:[%s434] sm:$0xf]
      %v437 = vsel %vm197, %v435, 0
      %439 = vmatprep.subr.mxu0 0.0
      %440 = vmatpush1.msra.mxu0 0.0
      %441 = vmatprep.subr.mxu0 0.0
      %442 = vmatpush1.msra.mxu0 0.0
      %443 = vmatprep.subr.mxu0 0.0
      %444 = vmatpush1.msra.mxu0 0.0
      %445 = vmatprep.subr.mxu0 0.0
      %446 = vmatpush1.msra.mxu0 0.0
      %447 = vmatprep.subr.mxu0 0.0
      %448 = vmatpush1.msra.mxu0 0.0
      %449 = vmatprep.subr.mxu0 0.0
      %450 = vmatpush1.msra.mxu0 0.0
      %451 = vmatprep.subr.mxu0 0.0
      %452 = vmatpush1.msra.mxu0 0.0
      %453 = vmatprep.subr.mxu0 0.0
      %454 = vmatpush1.msra.mxu0 0.0
      %455 = vmatprep.subr.mxu0 0.0
      %456 = vmatpush1.msra.mxu0 0.0
      %457 = vmatprep.subr.mxu0 0.0
      %458 = vmatpush1.msra.mxu0 0.0
      %459 = vmatprep.subr.mxu0 0.0
      %460 = vmatpush1.msra.mxu0 0.0
      %461 = vmatprep.subr.mxu0 0.0
      %462 = vmatpush1.msra.mxu0 0.0
      %463 = vmatprep.subr.mxu0 0.0
      %464 = vmatpush1.msra.mxu0 0.0
      %465 = vmatprep.subr.mxu0 0.0
      %466 = vmatpush1.msra.mxu0 0.0
      %467 = vmatprep.subr.mxu0 0.0
      %468 = vmatpush1.msra.mxu0 0.0
      %469 = vmatprep.subr.mxu0 0.0
      %470 = vmatpush1.msra.mxu0 %v195
      %471 = vmatprep.subr.mxu0 0.0
      %472 = vmatpush2.msra.mxu0 0.0
      %473 = vmatprep.subr.mxu0 0.0
      %474 = vmatpush2.msra.mxu0 0.0
      %475 = vmatprep.subr.mxu0 0.0
      %476 = vmatpush2.msra.mxu0 0.0
      %477 = vmatprep.subr.mxu0 0.0
      %478 = vmatpush2.msra.mxu0 0.0
      %479 = vmatprep.subr.mxu0 0.0
      %480 = vmatpush2.msra.mxu0 0.0
      %481 = vmatprep.subr.mxu0 0.0
      %482 = vmatpush2.msra.mxu0 0.0
      %483 = vmatprep.subr.mxu0 0.0
      %484 = vmatpush2.msra.mxu0 0.0
      %485 = vmatprep.subr.mxu0 0.0
      %486 = vmatpush2.msra.mxu0 0.0
      %487 = vmatprep.subr.mxu0 0.0
      %488 = vmatpush2.msra.mxu0 0.0
      %489 = vmatprep.subr.mxu0 0.0
      %490 = vmatpush2.msra.mxu0 0.0
      %491 = vmatprep.subr.mxu0 0.0
      %492 = vmatpush2.msra.mxu0 0.0
      %493 = vmatprep.subr.mxu0 0.0
      %494 = vmatpush2.msra.mxu0 0.0
      %495 = vmatprep.subr.mxu0 0.0
      %496 = vmatpush2.msra.mxu0 0.0
      %497 = vmatprep.subr.mxu0 0.0
      %498 = vmatpush2.msra.mxu0 0.0
      %499 = vmatprep.subr.mxu0 0.0
      %500 = vmatpush2.msra.mxu0 0.0
      %501 = vmatprep.subr.mxu0 0.0
      %502 = vmatpush2.msra.mxu0 0.0
      %503 = vmatprep.mubr.f32.mxu0 0.0
      %504 = vmatmul.mubr.f32.gmra.mxu0 %v437
      %v505 = vpop.f32.mrf.mxu0
      %v506 = vadd.f32 0.0, %v505
      %v507 = vpop.f32.mrf.mxu0
      %508 = vdwg.mxu0
      %v509 = vsel %vm271, %v506, 0.0
      %510 = vadd.xlane.f32.xlu0 %v509
      %v511 = vpop.xlane.xlu0 %510
      %v512 = vadd.f32 %v433, %v511
      %s513 = scalar_lea.vmem %s1, 16
      %v514 = vld [vmem:[%s513] sm:$0xf]
      %v516 = vsel %vm197, %v514, 0
      %518 = vmatprep.subr.mxu0 0.0
      %519 = vmatpush1.msra.mxu0 0.0
      %520 = vmatprep.subr.mxu0 0.0
      %521 = vmatpush1.msra.mxu0 0.0
      %522 = vmatprep.subr.mxu0 0.0
      %523 = vmatpush1.msra.mxu0 0.0
      %524 = vmatprep.subr.mxu0 0.0
      %525 = vmatpush1.msra.mxu0 0.0
      %526 = vmatprep.subr.mxu0 0.0
      %527 = vmatpush1.msra.mxu0 0.0
      %528 = vmatprep.subr.mxu0 0.0
      %529 = vmatpush1.msra.mxu0 0.0
      %530 = vmatprep.subr.mxu0 0.0
      %531 = vmatpush1.msra.mxu0 0.0
      %532 = vmatprep.subr.mxu0 0.0
      %533 = vmatpush1.msra.mxu0 0.0
      %534 = vmatprep.subr.mxu0 0.0
      %535 = vmatpush1.msra.mxu0 0.0
      %536 = vmatprep.subr.mxu0 0.0
      %537 = vmatpush1.msra.mxu0 0.0
      %538 = vmatprep.subr.mxu0 0.0
      %539 = vmatpush1.msra.mxu0 0.0
      %540 = vmatprep.subr.mxu0 0.0
      %541 = vmatpush1.msra.mxu0 0.0
      %542 = vmatprep.subr.mxu0 0.0
      %543 = vmatpush1.msra.mxu0 0.0
      %544 = vmatprep.subr.mxu0 0.0
      %545 = vmatpush1.msra.mxu0 0.0
      %546 = vmatprep.subr.mxu0 0.0
      %547 = vmatpush1.msra.mxu0 0.0
      %548 = vmatprep.subr.mxu0 0.0
      %549 = vmatpush1.msra.mxu0 %v195
      %550 = vmatprep.subr.mxu0 0.0
      %551 = vmatpush2.msra.mxu0 0.0
      %552 = vmatprep.subr.mxu0 0.0
      %553 = vmatpush2.msra.mxu0 0.0
      %554 = vmatprep.subr.mxu0 0.0
      %555 = vmatpush2.msra.mxu0 0.0
      %556 = vmatprep.subr.mxu0 0.0
      %557 = vmatpush2.msra.mxu0 0.0
      %558 = vmatprep.subr.mxu0 0.0
      %559 = vmatpush2.msra.mxu0 0.0
      %560 = vmatprep.subr.mxu0 0.0
      %561 = vmatpush2.msra.mxu0 0.0
      %562 = vmatprep.subr.mxu0 0.0
      %563 = vmatpush2.msra.mxu0 0.0
      %564 = vmatprep.subr.mxu0 0.0
      %565 = vmatpush2.msra.mxu0 0.0
      %566 = vmatprep.subr.mxu0 0.0
      %567 = vmatpush2.msra.mxu0 0.0
      %568 = vmatprep.subr.mxu0 0.0
      %569 = vmatpush2.msra.mxu0 0.0
      %570 = vmatprep.subr.mxu0 0.0
      %571 = vmatpush2.msra.mxu0 0.0
      %572 = vmatprep.subr.mxu0 0.0
      %573 = vmatpush2.msra.mxu0 0.0
      %574 = vmatprep.subr.mxu0 0.0
      %575 = vmatpush2.msra.mxu0 0.0
      %576 = vmatprep.subr.mxu0 0.0
      %577 = vmatpush2.msra.mxu0 0.0
      %578 = vmatprep.subr.mxu0 0.0
      %579 = vmatpush2.msra.mxu0 0.0
      %580 = vmatprep.subr.mxu0 0.0
      %581 = vmatpush2.msra.mxu0 0.0
      %582 = vmatprep.mubr.f32.mxu0 0.0
      %583 = vmatmul.mubr.f32.gmra.mxu0 %v516
      %v584 = vpop.f32.mrf.mxu0
      %v585 = vadd.f32 0.0, %v584
      %v586 = vpop.f32.mrf.mxu0
      %587 = vdwg.mxu0
      %v588 = vsel %vm271, %v585, 0.0
      %589 = vadd.xlane.f32.xlu0 %v588
      %v590 = vpop.xlane.xlu0 %589
      %v591 = vadd.f32 %v512, %v590
      %s592 = scalar_lea.vmem %s1, 20
      %v593 = vld [vmem:[%s592] sm:$0xf]
      %v595 = vsel %vm197, %v593, 0
      %597 = vmatprep.subr.mxu0 0.0
      %598 = vmatpush1.msra.mxu0 0.0
      %599 = vmatprep.subr.mxu0 0.0
      %600 = vmatpush1.msra.mxu0 0.0
      %601 = vmatprep.subr.mxu0 0.0
      %602 = vmatpush1.msra.mxu0 0.0
      %603 = vmatprep.subr.mxu0 0.0
      %604 = vmatpush1.msra.mxu0 0.0
      %605 = vmatprep.subr.mxu0 0.0
      %606 = vmatpush1.msra.mxu0 0.0
      %607 = vmatprep.subr.mxu0 0.0
      %608 = vmatpush1.msra.mxu0 0.0
      %609 = vmatprep.subr.mxu0 0.0
      %610 = vmatpush1.msra.mxu0 0.0
      %611 = vmatprep.subr.mxu0 0.0
      %612 = vmatpush1.msra.mxu0 0.0
      %613 = vmatprep.subr.mxu0 0.0
      %614 = vmatpush1.msra.mxu0 0.0
      %615 = vmatprep.subr.mxu0 0.0
      %616 = vmatpush1.msra.mxu0 0.0
      %617 = vmatprep.subr.mxu0 0.0
      %618 = vmatpush1.msra.mxu0 0.0
      %619 = vmatprep.subr.mxu0 0.0
      %620 = vmatpush1.msra.mxu0 0.0
      %621 = vmatprep.subr.mxu0 0.0
      %622 = vmatpush1.msra.mxu0 0.0
      %623 = vmatprep.subr.mxu0 0.0
      %624 = vmatpush1.msra.mxu0 0.0
      %625 = vmatprep.subr.mxu0 0.0
      %626 = vmatpush1.msra.mxu0 0.0
      %627 = vmatprep.subr.mxu0 0.0
      %628 = vmatpush1.msra.mxu0 %v195
      %629 = vmatprep.subr.mxu0 0.0
      %630 = vmatpush2.msra.mxu0 0.0
      %631 = vmatprep.subr.mxu0 0.0
      %632 = vmatpush2.msra.mxu0 0.0
      %633 = vmatprep.subr.mxu0 0.0
      %634 = vmatpush2.msra.mxu0 0.0
      %635 = vmatprep.subr.mxu0 0.0
      %636 = vmatpush2.msra.mxu0 0.0
      %637 = vmatprep.subr.mxu0 0.0
      %638 = vmatpush2.msra.mxu0 0.0
      %639 = vmatprep.subr.mxu0 0.0
      %640 = vmatpush2.msra.mxu0 0.0
      %641 = vmatprep.subr.mxu0 0.0
      %642 = vmatpush2.msra.mxu0 0.0
      %643 = vmatprep.subr.mxu0 0.0
      %644 = vmatpush2.msra.mxu0 0.0
      %645 = vmatprep.subr.mxu0 0.0
      %646 = vmatpush2.msra.mxu0 0.0
      %647 = vmatprep.subr.mxu0 0.0
      %648 = vmatpush2.msra.mxu0 0.0
      %649 = vmatprep.subr.mxu0 0.0
      %650 = vmatpush2.msra.mxu0 0.0
      %651 = vmatprep.subr.mxu0 0.0
      %652 = vmatpush2.msra.mxu0 0.0
      %653 = vmatprep.subr.mxu0 0.0
      %654 = vmatpush2.msra.mxu0 0.0
      %655 = vmatprep.subr.mxu0 0.0
      %656 = vmatpush2.msra.mxu0 0.0
      %657 = vmatprep.subr.mxu0 0.0
      %658 = vmatpush2.msra.mxu0 0.0
      %659 = vmatprep.subr.mxu0 0.0
      %660 = vmatpush2.msra.mxu0 0.0
      %661 = vmatprep.mubr.f32.mxu0 0.0
      %662 = vmatmul.mubr.f32.gmra.mxu0 %v595
      %v663 = vpop.f32.mrf.mxu0
      %v664 = vadd.f32 0.0, %v663
      %v665 = vpop.f32.mrf.mxu0
      %666 = vdwg.mxu0
      %v667 = vsel %vm271, %v664, 0.0
      %668 = vadd.xlane.f32.xlu0 %v667
      %v669 = vpop.xlane.xlu0 %668
      %v670 = vadd.f32 %v591, %v669
      %s671 = scalar_lea.vmem %s1, 24
      %v672 = vld [vmem:[%s671] sm:$0xf]
      %v674 = vsel %vm197, %v672, 0
      %676 = vmatprep.subr.mxu0 0.0
      %677 = vmatpush1.msra.mxu0 0.0
      %678 = vmatprep.subr.mxu0 0.0
      %679 = vmatpush1.msra.mxu0 0.0
      %680 = vmatprep.subr.mxu0 0.0
      %681 = vmatpush1.msra.mxu0 0.0
      %682 = vmatprep.subr.mxu0 0.0
      %683 = vmatpush1.msra.mxu0 0.0
      %684 = vmatprep.subr.mxu0 0.0
      %685 = vmatpush1.msra.mxu0 0.0
      %686 = vmatprep.subr.mxu0 0.0
      %687 = vmatpush1.msra.mxu0 0.0
      %688 = vmatprep.subr.mxu0 0.0
      %689 = vmatpush1.msra.mxu0 0.0
      %690 = vmatprep.subr.mxu0 0.0
      %691 = vmatpush1.msra.mxu0 0.0
      %692 = vmatprep.subr.mxu0 0.0
      %693 = vmatpush1.msra.mxu0 0.0
      %694 = vmatprep.subr.mxu0 0.0
      %695 = vmatpush1.msra.mxu0 0.0
      %696 = vmatprep.subr.mxu0 0.0
      %697 = vmatpush1.msra.mxu0 0.0
      %698 = vmatprep.subr.mxu0 0.0
      %699 = vmatpush1.msra.mxu0 0.0
      %700 = vmatprep.subr.mxu0 0.0
      %701 = vmatpush1.msra.mxu0 0.0
      %702 = vmatprep.subr.mxu0 0.0
      %703 = vmatpush1.msra.mxu0 0.0
      %704 = vmatprep.subr.mxu0 0.0
      %705 = vmatpush1.msra.mxu0 0.0
      %706 = vmatprep.subr.mxu0 0.0
      %707 = vmatpush1.msra.mxu0 %v195
      %708 = vmatprep.subr.mxu0 0.0
      %709 = vmatpush2.msra.mxu0 0.0
      %710 = vmatprep.subr.mxu0 0.0
      %711 = vmatpush2.msra.mxu0 0.0
      %712 = vmatprep.subr.mxu0 0.0
      %713 = vmatpush2.msra.mxu0 0.0
      %714 = vmatprep.subr.mxu0 0.0
      %715 = vmatpush2.msra.mxu0 0.0
      %716 = vmatprep.subr.mxu0 0.0
      %717 = vmatpush2.msra.mxu0 0.0
      %718 = vmatprep.subr.mxu0 0.0
      %719 = vmatpush2.msra.mxu0 0.0
      %720 = vmatprep.subr.mxu0 0.0
      %721 = vmatpush2.msra.mxu0 0.0
      %722 = vmatprep.subr.mxu0 0.0
      %723 = vmatpush2.msra.mxu0 0.0
      %724 = vmatprep.subr.mxu0 0.0
      %725 = vmatpush2.msra.mxu0 0.0
      %726 = vmatprep.subr.mxu0 0.0
      %727 = vmatpush2.msra.mxu0 0.0
      %728 = vmatprep.subr.mxu0 0.0
      %729 = vmatpush2.msra.mxu0 0.0
      %730 = vmatprep.subr.mxu0 0.0
      %731 = vmatpush2.msra.mxu0 0.0
      %732 = vmatprep.subr.mxu0 0.0
      %733 = vmatpush2.msra.mxu0 0.0
      %734 = vmatprep.subr.mxu0 0.0
      %735 = vmatpush2.msra.mxu0 0.0
      %736 = vmatprep.subr.mxu0 0.0
      %737 = vmatpush2.msra.mxu0 0.0
      %738 = vmatprep.subr.mxu0 0.0
      %739 = vmatpush2.msra.mxu0 0.0
      %740 = vmatprep.mubr.f32.mxu0 0.0
      %741 = vmatmul.mubr.f32.gmra.mxu0 %v674
      %v742 = vpop.f32.mrf.mxu0
      %v743 = vadd.f32 0.0, %v742
      %v744 = vpop.f32.mrf.mxu0
      %745 = vdwg.mxu0
      %v746 = vsel %vm271, %v743, 0.0
      %747 = vadd.xlane.f32.xlu0 %v746
      %v748 = vpop.xlane.xlu0 %747
      %v749 = vadd.f32 %v670, %v748
      %s750 = scalar_lea.vmem %s1, 28
      %v751 = vld [vmem:[%s750] sm:$0xf]
      %v753 = vsel %vm197, %v751, 0
      %755 = vmatprep.subr.mxu0 0.0
      %756 = vmatpush1.msra.mxu0 0.0
      %757 = vmatprep.subr.mxu0 0.0
      %758 = vmatpush1.msra.mxu0 0.0
      %759 = vmatprep.subr.mxu0 0.0
      %760 = vmatpush1.msra.mxu0 0.0
      %761 = vmatprep.subr.mxu0 0.0
      %762 = vmatpush1.msra.mxu0 0.0
      %763 = vmatprep.subr.mxu0 0.0
      %764 = vmatpush1.msra.mxu0 0.0
      %765 = vmatprep.subr.mxu0 0.0
      %766 = vmatpush1.msra.mxu0 0.0
      %767 = vmatprep.subr.mxu0 0.0
      %768 = vmatpush1.msra.mxu0 0.0
      %769 = vmatprep.subr.mxu0 0.0
      %770 = vmatpush1.msra.mxu0 0.0
      %771 = vmatprep.subr.mxu0 0.0
      %772 = vmatpush1.msra.mxu0 0.0
      %773 = vmatprep.subr.mxu0 0.0
      %774 = vmatpush1.msra.mxu0 0.0
      %775 = vmatprep.subr.mxu0 0.0
      %776 = vmatpush1.msra.mxu0 0.0
      %777 = vmatprep.subr.mxu0 0.0
      %778 = vmatpush1.msra.mxu0 0.0
      %779 = vmatprep.subr.mxu0 0.0
      %780 = vmatpush1.msra.mxu0 0.0
      %781 = vmatprep.subr.mxu0 0.0
      %782 = vmatpush1.msra.mxu0 0.0
      %783 = vmatprep.subr.mxu0 0.0
      %784 = vmatpush1.msra.mxu0 0.0
      %785 = vmatprep.subr.mxu0 0.0
      %786 = vmatpush1.msra.mxu0 %v195
      %787 = vmatprep.subr.mxu0 0.0
      %788 = vmatpush2.msra.mxu0 0.0
      %789 = vmatprep.subr.mxu0 0.0
      %790 = vmatpush2.msra.mxu0 0.0
      %791 = vmatprep.subr.mxu0 0.0
      %792 = vmatpush2.msra.mxu0 0.0
      %793 = vmatprep.subr.mxu0 0.0
      %794 = vmatpush2.msra.mxu0 0.0
      %795 = vmatprep.subr.mxu0 0.0
      %796 = vmatpush2.msra.mxu0 0.0
      %797 = vmatprep.subr.mxu0 0.0
      %798 = vmatpush2.msra.mxu0 0.0
      %799 = vmatprep.subr.mxu0 0.0
      %800 = vmatpush2.msra.mxu0 0.0
      %801 = vmatprep.subr.mxu0 0.0
      %802 = vmatpush2.msra.mxu0 0.0
      %803 = vmatprep.subr.mxu0 0.0
      %804 = vmatpush2.msra.mxu0 0.0
      %805 = vmatprep.subr.mxu0 0.0
      %806 = vmatpush2.msra.mxu0 0.0
      %807 = vmatprep.subr.mxu0 0.0
      %808 = vmatpush2.msra.mxu0 0.0
      %809 = vmatprep.subr.mxu0 0.0
      %810 = vmatpush2.msra.mxu0 0.0
      %811 = vmatprep.subr.mxu0 0.0
      %812 = vmatpush2.msra.mxu0 0.0
      %813 = vmatprep.subr.mxu0 0.0
      %814 = vmatpush2.msra.mxu0 0.0
      %815 = vmatprep.subr.mxu0 0.0
      %816 = vmatpush2.msra.mxu0 0.0
      %817 = vmatprep.subr.mxu0 0.0
      %818 = vmatpush2.msra.mxu0 0.0
      %819 = vmatprep.mubr.f32.mxu0 0.0
      %820 = vmatmul.mubr.f32.gmra.mxu0 %v753
      %v821 = vpop.f32.mrf.mxu0
      %v822 = vadd.f32 0.0, %v821
      %v823 = vpop.f32.mrf.mxu0
      %824 = vdwg.mxu0
      %v825 = vsel %vm271, %v822, 0.0
      %826 = vadd.xlane.f32.xlu0 %v825
      %v827 = vpop.xlane.xlu0 %826
      %v828 = vadd.f32 %v749, %v827
      %v829 = vrcp.pop 512.0
      %v830 = vmul.f32 %v828, %v829
      %v831 = vsub.f32 %v268, %v830
      %v832 = vmul.f32 %v831, %v831
      %v833 = vsel %vm271, %v832, 0.0
      %834 = vadd.xlane.f32.xlu0 %v833
      %v835 = vpop.xlane.xlu0 %834
      %v836 = vadd.f32 %v835, 0.0
      %v837 = vsub.f32 %v348, %v830
      %v838 = vmul.f32 %v837, %v837
      %v839 = vsel %vm271, %v838, 0.0
      %840 = vadd.xlane.f32.xlu0 %v839
      %v841 = vpop.xlane.xlu0 %840
      %v842 = vadd.f32 %v836, %v841
      %v843 = vsub.f32 %v427, %v830
      %v844 = vmul.f32 %v843, %v843
      %v845 = vsel %vm271, %v844, 0.0
      %846 = vadd.xlane.f32.xlu0 %v845
      %v847 = vpop.xlane.xlu0 %846
      %v848 = vadd.f32 %v842, %v847
      %v849 = vsub.f32 %v506, %v830
      %v850 = vmul.f32 %v849, %v849
      %v851 = vsel %vm271, %v850, 0.0
      %852 = vadd.xlane.f32.xlu0 %v851
      %v853 = vpop.xlane.xlu0 %852
      %v854 = vadd.f32 %v848, %v853
      %v855 = vsub.f32 %v585, %v830
      %v856 = vmul.f32 %v855, %v855
      %v857 = vsel %vm271, %v856, 0.0
      %858 = vadd.xlane.f32.xlu0 %v857
      %v859 = vpop.xlane.xlu0 %858
      %v860 = vadd.f32 %v854, %v859
      %v861 = vsub.f32 %v664, %v830
      %v862 = vmul.f32 %v861, %v861
      %v863 = vsel %vm271, %v862, 0.0
      %864 = vadd.xlane.f32.xlu0 %v863
      %v865 = vpop.xlane.xlu0 %864
      %v866 = vadd.f32 %v860, %v865
      %v867 = vsub.f32 %v743, %v830
      %v868 = vmul.f32 %v867, %v867
      %v869 = vsel %vm271, %v868, 0.0
      %870 = vadd.xlane.f32.xlu0 %v869
      %v871 = vpop.xlane.xlu0 %870
      %v872 = vadd.f32 %v866, %v871
      %v873 = vsub.f32 %v822, %v830
      %v874 = vmul.f32 %v873, %v873
      %v875 = vsel %vm271, %v874, 0.0
      %876 = vadd.xlane.f32.xlu0 %v875
      %v877 = vpop.xlane.xlu0 %876
      %v878 = vadd.f32 %v872, %v877
      %v879 = vmul.f32 %v878, %v829
      %v880 = vadd.f32 %v879, 1e-05
      %v881 = vrsqrt.pop %v880
      %v882 = vld [vmem:[%s2] sm:$0xf]
      %v883 = vld [vmem:[%s3] sm:$0xf]
      %v884 = vmul.f32 %v831, %v881
      %886 = vset.pattern.permute.xlu0 0
      %887 = vperm.xlu0 %886, %v882
      %v888 = vpop.permute.xlu0 %887
      %v890 = vmul.f32 %v888, %v884
      %892 = vset.pattern.permute.xlu0 0
      %893 = vperm.xlu0 %892, %v883
      %v894 = vpop.permute.xlu0 %893
      %v896 = vadd.f32 %v890, %v894
      %vm897 = vcmp.ge.f32.partialorder %v896, 0.0
      %v898 = vmul.f32 %v896, 0.01
      %v899 = vsel %vm897, %v896, %v898
      %900 = vst.msk [vmem:[%s194] sm:$0xf] %vm271, %v899
      %v901 = vmul.f32 %v837, %v881
      %v902 = vmul.f32 %v888, %v901
      %v903 = vadd.f32 %v902, %v894
      %vm904 = vcmp.ge.f32.partialorder %v903, 0.0
      %v905 = vmul.f32 %v903, 0.01
      %v906 = vsel %vm904, %v903, %v905
      %s907 = scalar_lea.vmem %s194, 4
      %908 = vst.msk [vmem:[%s907] sm:$0xf] %vm271, %v906
      %v909 = vmul.f32 %v843, %v881
      %v910 = vmul.f32 %v888, %v909
      %v911 = vadd.f32 %v910, %v894
      %vm912 = vcmp.ge.f32.partialorder %v911, 0.0
      %v913 = vmul.f32 %v911, 0.01
      %v914 = vsel %vm912, %v911, %v913
      %s915 = scalar_lea.vmem %s194, 8
      %916 = vst.msk [vmem:[%s915] sm:$0xf] %vm271, %v914
      %v917 = vmul.f32 %v849, %v881
      %v918 = vmul.f32 %v888, %v917
      %v919 = vadd.f32 %v918, %v894
      %vm920 = vcmp.ge.f32.partialorder %v919, 0.0
      %v921 = vmul.f32 %v919, 0.01
      %v922 = vsel %vm920, %v919, %v921
      %s923 = scalar_lea.vmem %s194, 12
      %924 = vst.msk [vmem:[%s923] sm:$0xf] %vm271, %v922
      %v925 = vmul.f32 %v855, %v881
      %v926 = vmul.f32 %v888, %v925
      %v927 = vadd.f32 %v926, %v894
      %vm928 = vcmp.ge.f32.partialorder %v927, 0.0
      %v929 = vmul.f32 %v927, 0.01
      %v930 = vsel %vm928, %v927, %v929
      %s931 = scalar_lea.vmem %s194, 16
      %932 = vst.msk [vmem:[%s931] sm:$0xf] %vm271, %v930
      %v933 = vmul.f32 %v861, %v881
      %v934 = vmul.f32 %v888, %v933
      %v935 = vadd.f32 %v934, %v894
      %vm936 = vcmp.ge.f32.partialorder %v935, 0.0
      %v937 = vmul.f32 %v935, 0.01
      %v938 = vsel %vm936, %v935, %v937
      %s939 = scalar_lea.vmem %s194, 20
      %940 = vst.msk [vmem:[%s939] sm:$0xf] %vm271, %v938
      %v941 = vmul.f32 %v867, %v881
      %v942 = vmul.f32 %v888, %v941
      %v943 = vadd.f32 %v942, %v894
      %vm944 = vcmp.ge.f32.partialorder %v943, 0.0
      %v945 = vmul.f32 %v943, 0.01
      %v946 = vsel %vm944, %v943, %v945
      %s947 = scalar_lea.vmem %s194, 24
      %948 = vst.msk [vmem:[%s947] sm:$0xf] %vm271, %v946
      %v949 = vmul.f32 %v873, %v881
      %v950 = vmul.f32 %v888, %v949
      %v951 = vadd.f32 %v950, %v894
      %vm952 = vcmp.ge.f32.partialorder %v951, 0.0
      %v953 = vmul.f32 %v951, 0.01
      %v954 = vsel %vm952, %v951, %v953
      %s955 = scalar_lea.vmem %s194, 28
      %956 = vst.msk [vmem:[%s955] sm:$0xf] %vm271, %v954
      %p957 = scmp.lt.s32.totalorder %s15, 1
      %s958 = scalar_select %p957, %s15, 1
      %s959 = smul.addr %s958, 8
      %s960 = smul.addr %s959, 4
      %s961 = scalar_lea.vmem %s4, %s960
      // Predicated region
      $region37: #{up_convolutional_block_forward.2} parent=35 // pred_check
        %p962 = pneg %p122
      $region38: #{up_convolutional_block_forward.2} parent=35 // pred_check_branch
        %964 = sbr.rel (%p962) target = $region40
      $region39: #{up_convolutional_block_forward.2} parent=35 // pred_region
        _
      $region40: #{up_convolutional_block_forward.2} parent=35 // pred_fallthru
        _
    $region36: #{up_convolutional_block_forward.2} parent=5 // pred_fallthru
      _
    %p965 = scmp.le.s32.totalorder 2, %s10
    // Predicated region
    $region41: #{up_convolutional_block_forward.2} parent=5 // pred_check
      %p966 = pneg %p965
    $region42: #{up_convolutional_block_forward.2} parent=5 // pred_check_branch
      %968 = sbr.rel (%p966) target = $region44
    $region43: #{up_convolutional_block_forward.2} parent=5 // pred_region
      %s969 = ssub.s32 %s10, 2
      // Predicated region
      $region45: #{up_convolutional_block_forward.2} parent=43 // pred_check
        %p970 = pneg %p128
      $region46: #{up_convolutional_block_forward.2} parent=43 // pred_check_branch
        %972 = sbr.rel (%p970) target = $region48
      $region47: #{up_convolutional_block_forward.2} parent=43 // pred_region
        %p973 = scmp.lt.s32.totalorder %s16, 1
        %s974 = scalar_select %p973, %s16, 1
        %s975 = smul.addr %s974, 8
        %s976 = smul.addr %s975, 4
        %s977 = scalar_lea.vmem %s4, %s976
      $region48: #{up_convolutional_block_forward.2} parent=43 // pred_fallthru
        _
    $region44: #{up_convolutional_block_forward.2} parent=5 // pred_fallthru
      _
  $region6: #{up_convolutional_block_forward.2} parent=0 // loop_footer
    %s14 = sadd.s32 1, %s10
  $region7: #{up_convolutional_block_forward.2} parent=0 // loop_footer_branch
    %9 = sbr.rel target = $region3
  $region8: #{up_convolutional_block_forward.2} parent=0 // loop_exit
    _

// kernel: up_convolutional_block_forward.3
$region0: #{up_convolutional_block_forward.3}
  #allocation0 [shape = 'u32[]', space=smem, size = 0x4, offset = 0x4, fixed_abs, tag = 'smem constant byte address 0x4 - core index']
  #allocation1 [shape = 'u32[144,128]{1,0:T(1,128)}', space=vmem, size = 0x12000, scoped, tag = 'internal scratch']
  %s0 = inlined_call_operand.vmem [shape: f32[2,4,658], index: 0, kind: input, shape index: {}]
  %s1 = inlined_call_operand.vmem [shape: f32[2,4,512], index: 1, kind: input, shape index: {}]
  %s2 = inlined_call_operand.vmem [shape: s32[1,512], index: 2, kind: input, shape index: {}]
  %s3 = inlined_call_operand.vmem [shape: s32[1,512], index: 3, kind: input, shape index: {}]
  %s4 = inlined_call_operand.vmem [shape: s32[1,512], index: 4, kind: input, shape index: {}]
  %s5 = inlined_call_operand.vmem [shape: f32[27,4,4], index: 5, kind: input, shape index: {}]
  %s6 = inlined_call_operand.vmem [shape: f32[4,1], index: 6, kind: input, shape index: {}]
  %s7 = inlined_call_operand.vmem [shape: f32[4,1], index: 7, kind: input, shape index: {}]
  %s8 = inlined_call_operand.vmem [shape: f32[4,1], index: 8, kind: input, shape index: {}]
  %s9 = inlined_call_operand.vmem [shape: f32[2,8,512], index: 9, kind: output, shape index: {}]
  %s10 = sld [smem:[#allocation0]]
  $region69: #{up_convolutional_block_forward.3} parent=0
    _
  %s12 = ssub.s32 1, %s10
  %s13 = scalar_select 0, %s12, %s10
  loop: start=0, step=1, limit=4
  $region2: #{up_convolutional_block_forward.3} parent=0 // loop_pre_header
    _
  $region3: #{up_convolutional_block_forward.3} parent=0 // loop_header
    %s15 = sphi 0, %s19
    %p16 = scmp.ge.s32.totalorder %s15, 4
    %s25 = sphi 0, %s27
    %s28 = sphi 0, %s25
    %s29 = sphi 0, %s28
    %s45 = sphi 0, %s29
    %s51 = sphi 0, %s53
    %s54 = sphi 0, %s51
    %s55 = sphi 0, %s54
    %s71 = sphi 0, %s55
    %s75 = sphi 0, %s75
    %s77 = sphi 0, %s75
    %s78 = sphi 0, %s77
    %s92 = sphi 0, %s78
    %s96 = sphi 0, %s96
    %s98 = sphi 0, %s96
    %s99 = sphi 0, %s98
    %s113 = sphi 0, %s99
    %s117 = sphi 0, %s117
    %s119 = sphi 0, %s117
    %s120 = sphi 0, %s119
    %s134 = sphi 0, %s120
    %s138 = sphi 0, %s138
    %s140 = sphi 0, %s138
    %s141 = sphi 0, %s140
    %s155 = sphi 0, %s141
    %s159 = sphi 0, %s159
    %s161 = sphi 0, %s159
    %s162 = sphi 0, %s161
    %s176 = sphi 0, %s162
    %s180 = sphi 0, %s180
    %s182 = sphi 0, %s180
    %s183 = sphi 0, %s182
    %s197 = sphi 0, %s183
    %s201 = sphi 0, %s201
    %s203 = sphi 0, %s201
    %s204 = sphi 0, %s203
    %s218 = sphi 0, %s204
    %s224 = sphi 0, %s226
    %s227 = sphi 0, %s224
    %s228 = sphi 0, %s227
    %s244 = sphi 0, %s228
  $region4: #{up_convolutional_block_forward.3} parent=0 // loop_header_branch
    %18 = sbr.rel (%p16) target = $region8
  $region5: #{up_convolutional_block_forward.3} parent=0 // loop_body
    %s20 = ssub.s32 %s15, 1
    %s21 = ssub.s32 %s15, 2
    %s22 = sadd.s32 %s15, 1
    %s23 = ssub.s32 %s15, %s22
    %p24 = scmp.eq.s32.totalorder %s23, 0
    %s26 = sadd.s32 %s25, 1
    %s27 = scalar_select %p24, %s25, %s26
    %p30 = pneg %p24
    %p31 = scmp.eq.s32.totalorder %s15, 1
    %p32 = por %p30, %p31
    %p33 = scmp.ne.s32.totalorder %s25, %s28
    %p34 = scmp.eq.s32.totalorder %s15, 0
    %p35 = por %p33, %p34
    %p36 = scmp.ne.s32.totalorder %s25, %s28
    %p37 = scmp.eq.s32.totalorder %s20, 1
    %p38 = por %p36, %p37
    %p39 = scmp.ne.s32.totalorder %s28, %s29
    %p40 = scmp.eq.s32.totalorder %s20, 0
    %p41 = por %p39, %p40
    %p42 = scmp.ne.s32.totalorder %s28, %s29
    %p43 = scmp.eq.s32.totalorder %s21, 1
    %p44 = por %p42, %p43
    %p46 = scmp.ne.s32.totalorder %s29, %s45
    %p47 = scmp.eq.s32.totalorder %s21, 0
    %p48 = por %p46, %p47
    %s49 = ssub.s32 %s15, %s22
    %p50 = scmp.eq.s32.totalorder %s49, 0
    %s52 = sadd.s32 %s51, 1
    %s53 = scalar_select %p50, %s51, %s52
    %p56 = pneg %p50
    %p57 = scmp.eq.s32.totalorder %s15, 1
    %p58 = por %p56, %p57
    %p59 = scmp.ne.s32.totalorder %s51, %s54
    %p60 = scmp.eq.s32.totalorder %s15, 0
    %p61 = por %p59, %p60
    %p62 = scmp.ne.s32.totalorder %s51, %s54
    %p63 = scmp.eq.s32.totalorder %s20, 1
    %p64 = por %p62, %p63
    %p65 = scmp.ne.s32.totalorder %s54, %s55
    %p66 = scmp.eq.s32.totalorder %s20, 0
    %p67 = por %p65, %p66
    %p68 = scmp.ne.s32.totalorder %s54, %s55
    %p69 = scmp.eq.s32.totalorder %s21, 1
    %p70 = por %p68, %p69
    %p72 = scmp.ne.s32.totalorder %s55, %s71
    %p73 = scmp.eq.s32.totalorder %s21, 0
    %p74 = por %p72, %p73
    %s76 = sadd.s32 %s75, 1
    %p79 = scmp.eq.s32.totalorder %s15, 1
    %p80 = scmp.ne.s32.totalorder %s75, %s77
    %p81 = scmp.eq.s32.totalorder %s15, 0
    %p82 = por %p80, %p81
    %p83 = scmp.ne.s32.totalorder %s75, %s77
    %p84 = scmp.eq.s32.totalorder %s20, 1
    %p85 = por %p83, %p84
    %p86 = scmp.ne.s32.totalorder %s77, %s78
    %p87 = scmp.eq.s32.totalorder %s20, 0
    %p88 = por %p86, %p87
    %p89 = scmp.ne.s32.totalorder %s77, %s78
    %p90 = scmp.eq.s32.totalorder %s21, 1
    %p91 = por %p89, %p90
    %p93 = scmp.ne.s32.totalorder %s78, %s92
    %p94 = scmp.eq.s32.totalorder %s21, 0
    %p95 = por %p93, %p94
    %s97 = sadd.s32 %s96, 1
    %p100 = scmp.eq.s32.totalorder %s15, 1
    %p101 = scmp.ne.s32.totalorder %s96, %s98
    %p102 = scmp.eq.s32.totalorder %s15, 0
    %p103 = por %p101, %p102
    %p104 = scmp.ne.s32.totalorder %s96, %s98
    %p105 = scmp.eq.s32.totalorder %s20, 1
    %p106 = por %p104, %p105
    %p107 = scmp.ne.s32.totalorder %s98, %s99
    %p108 = scmp.eq.s32.totalorder %s20, 0
    %p109 = por %p107, %p108
    %p110 = scmp.ne.s32.totalorder %s98, %s99
    %p111 = scmp.eq.s32.totalorder %s21, 1
    %p112 = por %p110, %p111
    %p114 = scmp.ne.s32.totalorder %s99, %s113
    %p115 = scmp.eq.s32.totalorder %s21, 0
    %p116 = por %p114, %p115
    %s118 = sadd.s32 %s117, 1
    %p121 = scmp.eq.s32.totalorder %s15, 1
    %p122 = scmp.ne.s32.totalorder %s117, %s119
    %p123 = scmp.eq.s32.totalorder %s15, 0
    %p124 = por %p122, %p123
    %p125 = scmp.ne.s32.totalorder %s117, %s119
    %p126 = scmp.eq.s32.totalorder %s20, 1
    %p127 = por %p125, %p126
    %p128 = scmp.ne.s32.totalorder %s119, %s120
    %p129 = scmp.eq.s32.totalorder %s20, 0
    %p130 = por %p128, %p129
    %p131 = scmp.ne.s32.totalorder %s119, %s120
    %p132 = scmp.eq.s32.totalorder %s21, 1
    %p133 = por %p131, %p132
    %p135 = scmp.ne.s32.totalorder %s120, %s134
    %p136 = scmp.eq.s32.totalorder %s21, 0
    %p137 = por %p135, %p136
    %s139 = sadd.s32 %s138, 1
    %p142 = scmp.eq.s32.totalorder %s15, 1
    %p143 = scmp.ne.s32.totalorder %s138, %s140
    %p144 = scmp.eq.s32.totalorder %s15, 0
    %p145 = por %p143, %p144
    %p146 = scmp.ne.s32.totalorder %s138, %s140
    %p147 = scmp.eq.s32.totalorder %s20, 1
    %p148 = por %p146, %p147
    %p149 = scmp.ne.s32.totalorder %s140, %s141
    %p150 = scmp.eq.s32.totalorder %s20, 0
    %p151 = por %p149, %p150
    %p152 = scmp.ne.s32.totalorder %s140, %s141
    %p153 = scmp.eq.s32.totalorder %s21, 1
    %p154 = por %p152, %p153
    %p156 = scmp.ne.s32.totalorder %s141, %s155
    %p157 = scmp.eq.s32.totalorder %s21, 0
    %p158 = por %p156, %p157
    %s160 = sadd.s32 %s159, 1
    %p163 = scmp.eq.s32.totalorder %s15, 1
    %p164 = scmp.ne.s32.totalorder %s159, %s161
    %p165 = scmp.eq.s32.totalorder %s15, 0
    %p166 = por %p164, %p165
    %p167 = scmp.ne.s32.totalorder %s159, %s161
    %p168 = scmp.eq.s32.totalorder %s20, 1
    %p169 = por %p167, %p168
    %p170 = scmp.ne.s32.totalorder %s161, %s162
    %p171 = scmp.eq.s32.totalorder %s20, 0
    %p172 = por %p170, %p171
    %p173 = scmp.ne.s32.totalorder %s161, %s162
    %p174 = scmp.eq.s32.totalorder %s21, 1
    %p175 = por %p173, %p174
    %p177 = scmp.ne.s32.totalorder %s162, %s176
    %p178 = scmp.eq.s32.totalorder %s21, 0
    %p179 = por %p177, %p178
    %s181 = sadd.s32 %s180, 1
    %p184 = scmp.eq.s32.totalorder %s15, 1
    %p185 = scmp.ne.s32.totalorder %s180, %s182
    %p186 = scmp.eq.s32.totalorder %s15, 0
    %p187 = por %p185, %p186
    %p188 = scmp.ne.s32.totalorder %s180, %s182
    %p189 = scmp.eq.s32.totalorder %s20, 1
    %p190 = por %p188, %p189
    %p191 = scmp.ne.s32.totalorder %s182, %s183
    %p192 = scmp.eq.s32.totalorder %s20, 0
    %p193 = por %p191, %p192
    %p194 = scmp.ne.s32.totalorder %s182, %s183
    %p195 = scmp.eq.s32.totalorder %s21, 1
    %p196 = por %p194, %p195
    %p198 = scmp.ne.s32.totalorder %s183, %s197
    %p199 = scmp.eq.s32.totalorder %s21, 0
    %p200 = por %p198, %p199
    %s202 = sadd.s32 %s201, 1
    %p205 = scmp.eq.s32.totalorder %s15, 1
    %p206 = scmp.ne.s32.totalorder %s201, %s203
    %p207 = scmp.eq.s32.totalorder %s15, 0
    %p208 = por %p206, %p207
    %p209 = scmp.ne.s32.totalorder %s201, %s203
    %p210 = scmp.eq.s32.totalorder %s20, 1
    %p211 = por %p209, %p210
    %p212 = scmp.ne.s32.totalorder %s203, %s204
    %p213 = scmp.eq.s32.totalorder %s20, 0
    %p214 = por %p212, %p213
    %p215 = scmp.ne.s32.totalorder %s203, %s204
    %p216 = scmp.eq.s32.totalorder %s21, 1
    %p217 = por %p215, %p216
    %p219 = scmp.ne.s32.totalorder %s204, %s218
    %p220 = scmp.eq.s32.totalorder %s21, 0
    %p221 = por %p219, %p220
    %s222 = ssub.s32 %s15, %s22
    %p223 = scmp.eq.s32.totalorder %s222, 0
    %s225 = sadd.s32 %s224, 1
    %s226 = scalar_select %p223, %s224, %s225
    %p229 = pneg %p223
    %p230 = scmp.eq.s32.totalorder %s15, 1
    %p231 = por %p229, %p230
    %p232 = scmp.ne.s32.totalorder %s224, %s227
    %p233 = scmp.eq.s32.totalorder %s15, 0
    %p234 = por %p232, %p233
    %p235 = scmp.ne.s32.totalorder %s224, %s227
    %p236 = scmp.eq.s32.totalorder %s20, 1
    %p237 = por %p235, %p236
    %p238 = scmp.ne.s32.totalorder %s227, %s228
    %p239 = scmp.eq.s32.totalorder %s20, 0
    %p240 = por %p238, %p239
    %p241 = scmp.ne.s32.totalorder %s227, %s228
    %p242 = scmp.eq.s32.totalorder %s21, 1
    %p243 = por %p241, %p242
    %p245 = scmp.ne.s32.totalorder %s228, %s244
    %p246 = scmp.eq.s32.totalorder %s21, 0
    %p247 = por %p245, %p246
    %p248 = scmp.le.s32.totalorder 1, %s15
    %p249 = scmp.lt.s32.totalorder %s15, 3
    %p250 = pnand %p248, %p249
    %p251 = pneg %p250
    // Predicated region
    $region9: #{up_convolutional_block_forward.3} parent=5 // pred_check
      _
    $region10: #{up_convolutional_block_forward.3} parent=5 // pred_check_branch
      %253 = sbr.rel (%p250) target = $region12
    $region11: #{up_convolutional_block_forward.3} parent=5 // pred_region
      %s254 = ssub.s32 %s15, 1
      // Predicated region
      $region13: #{up_convolutional_block_forward.3} parent=11 // pred_check
        %p255 = pneg %p88
      $region14: #{up_convolutional_block_forward.3} parent=11 // pred_check_branch
        %257 = sbr.rel (%p255) target = $region16
      $region15: #{up_convolutional_block_forward.3} parent=11 // pred_region
        _
      $region16: #{up_convolutional_block_forward.3} parent=11 // pred_fallthru
        _
      // Predicated region
      $region17: #{up_convolutional_block_forward.3} parent=11 // pred_check
        %p258 = pneg %p109
      $region18: #{up_convolutional_block_forward.3} parent=11 // pred_check_branch
        %260 = sbr.rel (%p258) target = $region20
      $region19: #{up_convolutional_block_forward.3} parent=11 // pred_region
        _
      $region20: #{up_convolutional_block_forward.3} parent=11 // pred_fallthru
        _
      // Predicated region
      $region21: #{up_convolutional_block_forward.3} parent=11 // pred_check
        %p261 = pneg %p130
      $region22: #{up_convolutional_block_forward.3} parent=11 // pred_check_branch
        %263 = sbr.rel (%p261) target = $region24
      $region23: #{up_convolutional_block_forward.3} parent=11 // pred_region
        _
      $region24: #{up_convolutional_block_forward.3} parent=11 // pred_fallthru
        _
      // Predicated region
      $region25: #{up_convolutional_block_forward.3} parent=11 // pred_check
        %p264 = pneg %p151
      $region26: #{up_convolutional_block_forward.3} parent=11 // pred_check_branch
        %266 = sbr.rel (%p264) target = $region28
      $region27: #{up_convolutional_block_forward.3} parent=11 // pred_region
        _
      $region28: #{up_convolutional_block_forward.3} parent=11 // pred_fallthru
        _
      // Predicated region
      $region29: #{up_convolutional_block_forward.3} parent=11 // pred_check
        %p267 = pneg %p172
      $region30: #{up_convolutional_block_forward.3} parent=11 // pred_check_branch
        %269 = sbr.rel (%p267) target = $region32
      $region31: #{up_convolutional_block_forward.3} parent=11 // pred_region
        _
      $region32: #{up_convolutional_block_forward.3} parent=11 // pred_fallthru
        _
      // Predicated region
      $region33: #{up_convolutional_block_forward.3} parent=11 // pred_check
        %p270 = pneg %p193
      $region34: #{up_convolutional_block_forward.3} parent=11 // pred_check_branch
        %272 = sbr.rel (%p270) target = $region36
      $region35: #{up_convolutional_block_forward.3} parent=11 // pred_region
        _
      $region36: #{up_convolutional_block_forward.3} parent=11 // pred_fallthru
        _
      // Predicated region
      $region37: #{up_convolutional_block_forward.3} parent=11 // pred_check
        %p273 = pneg %p214
      $region38: #{up_convolutional_block_forward.3} parent=11 // pred_check_branch
        %275 = sbr.rel (%p273) target = $region40
      $region39: #{up_convolutional_block_forward.3} parent=11 // pred_region
        _
      $region40: #{up_convolutional_block_forward.3} parent=11 // pred_fallthru
        _
    $region12: #{up_convolutional_block_forward.3} parent=5 // pred_fallthru
      _
    %p276 = scmp.lt.s32.totalorder %s15, 2
    // Predicated region
    $region41: #{up_convolutional_block_forward.3} parent=5 // pred_check
      %p277 = pneg %p276
    $region42: #{up_convolutional_block_forward.3} parent=5 // pred_check_branch
      %279 = sbr.rel (%p277) target = $region44
    $region43: #{up_convolutional_block_forward.3} parent=5 // pred_region
      // Predicated region
      $region45: #{up_convolutional_block_forward.3} parent=43 // pred_check
        %p280 = pneg %p35
      $region46: #{up_convolutional_block_forward.3} parent=43 // pred_check_branch
        %282 = sbr.rel (%p280) target = $region48
      $region47: #{up_convolutional_block_forward.3} parent=43 // pred_region
        %p283 = scmp.lt.s32.totalorder %s15, 1
        %s284 = scalar_select %p283, %s15, 1
        %s285 = smul.addr %s284, 6
        %s286 = smul.addr %s285, 4
        %s287 = scalar_lea.vmem %s0, %s286
      $region48: #{up_convolutional_block_forward.3} parent=43 // pred_fallthru
        _
      // Predicated region
      $region49: #{up_convolutional_block_forward.3} parent=43 // pred_check
        %p288 = pneg %p61
      $region50: #{up_convolutional_block_forward.3} parent=43 // pred_check_branch
        %290 = sbr.rel (%p288) target = $region52
      $region51: #{up_convolutional_block_forward.3} parent=43 // pred_region
        %p291 = scmp.lt.s32.totalorder %s15, 1
        %s292 = scalar_select %p291, %s15, 1
        %s293 = smul.addr %s292, 4
        %s294 = smul.addr %s293, 4
        %s295 = scalar_lea.vmem %s1, %s294
      $region52: #{up_convolutional_block_forward.3} parent=43 // pred_fallthru
        _
    $region44: #{up_convolutional_block_forward.3} parent=5 // pred_fallthru
      _
    %p296 = scmp.le.s32.totalorder 1, %s15
    %p297 = scmp.lt.s32.totalorder %s15, 3
    %p298 = pnand %p296, %p297
    %p299 = pneg %p298
    // Predicated region
    $region53: #{up_convolutional_block_forward.3} parent=5 // pred_check
      _
    $region54: #{up_convolutional_block_forward.3} parent=5 // pred_check_branch
      %301 = sbr.rel (%p298) target = $region56
    $region55: #{up_convolutional_block_forward.3} parent=5 // pred_region
      %s302 = ssub.s32 %s15, 1
      %p303 = scmp.lt.s32.totalorder %s20, 1
      %s304 = scalar_select %p303, %s20, 1
      %s305 = smul.addr %s304, 6
      %s306 = smul.addr %s305, 4
      %s307 = scalar_lea.vmem %s0, %s306
      %p308 = pneg %p41
      %p309 = pneg %p38
      %p310 = scmp.lt.s32.totalorder %s20, 1
      %s311 = scalar_select %p310, %s20, 1
      %s312 = smul.addr %s311, 4
      %s313 = smul.addr %s312, 4
      %s314 = scalar_lea.vmem %s1, %s313
      %p315 = pneg %p67
      %p316 = pneg %p64
      %p317 = pneg %p88
      %p318 = pneg %p85
      %p319 = pneg %p109
      %p320 = pneg %p106
      %p321 = pneg %p130
      %p322 = pneg %p127
      %p323 = pneg %p151
      %p324 = pneg %p148
      %p325 = pneg %p172
      %p326 = pneg %p169
      %p327 = pneg %p193
      %p328 = pneg %p190
      %p329 = pneg %p214
      %p330 = pneg %p211
      %p331 = pneg %p240
      %p332 = pneg %p237
      %p333 = scmp.lt.s32.totalorder %s20, 1
      %s334 = scalar_select %p333, %s20, 1
      %s335 = smul.addr %s334, 4
      %s336 = smul.addr %s335, 8
      %s337 = scalar_lea.vmem %s9, %s336
      %p338 = scmp.lt.s32.totalorder %s20, 1
      %s339 = scalar_select %p338, %s20, 1
      %s340 = smul.addr %s339, 6
      %s341 = smul.addr %s340, 4
      %s342 = scalar_lea.vmem %s0, %s341
      %p343 = scmp.lt.s32.totalorder %s20, 1
      %s344 = scalar_select %p343, %s20, 1
      %s345 = smul.addr %s344, 4
      %s346 = smul.addr %s345, 4
      %s347 = scalar_lea.vmem %s1, %s346
      %p348 = scmp.lt.s32.totalorder %s20, 1
      %s349 = scalar_select %p348, %s20, 1
      %s350 = smul.addr %s349, 4
      %s351 = smul.addr %s350, 8
      %s352 = scalar_lea.vmem %s9, %s351
      %v353 = vld [vmem:[%s2] sm:$0xf]
      %v354 = vld [vmem:[%s3] sm:$0xf]
      %v355 = vld [vmem:[%s4] sm:$0xf]
      %vm356 = vcmp.ge.s32.totalorder %v353, 1
      %vm357 = vcmp.le.s32.totalorder %v353, 6
      %vm358 = vcmp.ge.s32.totalorder %v354, 1
      %vm359 = vcmp.le.s32.totalorder %v354, 6
      %vm360 = vcmp.ge.s32.totalorder %v355, 1
      %vm361 = vcmp.le.s32.totalorder %v355, 6
      %v362 = vld [vmem:[%s342] sm:$0xff]
      %v363 = vld [vmem:[%s342 + $0x8] sm:$0xff]
      %vm364 = vmand %vm356, %vm358
      %vm365 = vmand %vm364, %vm360
      %v366 = vsel %vm365, 1, 0
      %v367 = vlaneseq
      %v368 = vshrl.u32 %v367, 7
      %v369 = vsub.s32 0, %v368
      %v370 = vrot.slane %v366, %v369
      %v371 = vlaneseq
      %v372 = vshrl.u32 %v371, 7
      %v373 = vsub.s32 1, %v372
      %v374 = vrot.slane %v366, %v373
      %v375 = vlaneseq
      %v376 = vshrl.u32 %v375, 7
      %v377 = vsub.s32 2, %v376
      %v378 = vrot.slane %v366, %v377
      %v379 = vlaneseq
      %v380 = vshrl.u32 %v379, 7
      %v381 = vsub.s32 3, %v380
      %v382 = vrot.slane %v366, %v381
      %vm383 = vcmp.eq.s32.totalorder %v370, 1
      %vm384 = vcmp.eq.s32.totalorder %v374, 1
      %vm385 = vcmp.eq.s32.totalorder %v378, 1
      %vm386 = vcmp.eq.s32.totalorder %v382, 1
      %v389 = vcombine.high %v362, %v362
      %v390 = vcombine.high %v363, %v363
      %v393 = vsel %vm383, %v362, 0.0
      %v394 = vsel %vm384, %v389, 0.0
      %v395 = vsel %vm385, %v363, 0.0
      %v396 = vsel %vm386, %v390, 0.0
      %v397 = vld [vmem:[%s5] sm:$0xf]
      %v398 = vld [vmem:[%s342 + $0x10] sm:$0xf]
      %v399 = vsel %vm364, 1, 0
      %v400 = vlaneseq
      %v401 = vshrl.u32 %v400, 7
      %v402 = vsub.s32 0, %v401
      %v403 = vrot.slane %v399, %v402
      %v404 = vlaneseq
      %v405 = vshrl.u32 %v404, 7
      %v406 = vsub.s32 1, %v405
      %v407 = vrot.slane %v399, %v406
      %v408 = vlaneseq
      %v409 = vshrl.u32 %v408, 7
      %v410 = vsub.s32 2, %v409
      %v411 = vrot.slane %v399, %v410
      %v412 = vlaneseq
      %v413 = vshrl.u32 %v412, 7
      %v414 = vsub.s32 3, %v413
      %v415 = vrot.slane %v399, %v414
      %vm416 = vcmp.eq.s32.totalorder %v403, 1
      %vm417 = vcmp.eq.s32.totalorder %v407, 1
      %vm418 = vcmp.eq.s32.totalorder %v411, 1
      %vm419 = vcmp.eq.s32.totalorder %v415, 1
      %421 = vrot.lane.b32.xlu0 %v362, 127
      %v422 = vpop.permute.xlu0 %421
      %423 = vrot.lane.b32.xlu0 %v389, 127
      %v424 = vpop.permute.xlu0 %423
      %425 = vrot.lane.b32.xlu0 %v363, 127
      %v426 = vpop.permute.xlu0 %425
      %427 = vrot.lane.b32.xlu0 %v390, 127
      %v428 = vpop.permute.xlu0 %427
      %429 = vrot.lane.b32.xlu0 %v398, 127
      %v430 = vpop.permute.xlu0 %429
      %vm431 = vcmask 1039360
      %v432 = vsel %vm431, %v422, %v424
      %v433 = vsel %vm431, %v424, %v426
      %v434 = vsel %vm431, %v426, %v428
      %v435 = vsel %vm431, %v428, %v430
      %v440 = vsel %vm416, %v432, 0.0
      %v441 = vsel %vm417, %v433, 0.0
      %v442 = vsel %vm418, %v434, 0.0
      %v443 = vsel %vm419, %v435, 0.0
      %s444 = scalar_lea.vmem %s5, 4
      %v445 = vld [vmem:[%s444] sm:$0xf]
      %vm446 = vcmask 31744
      %v448 = vsel %vm446, %v445, 0
      %vm450 = vcmask 1043456
      %v452 = vsel %vm450, %v440, 0
      %v455 = vsel %vm450, %v441, 0
      %v458 = vsel %vm450, %v442, 0
      %v461 = vsel %vm450, %v443, 0
      %463 = vmatprep.subr.mxu0 0.0
      %464 = vmatpush1.msra.mxu0 0.0
      %465 = vmatprep.subr.mxu0 0.0
      %466 = vmatpush1.msra.mxu0 0.0
      %467 = vmatprep.subr.mxu0 0.0
      %468 = vmatpush1.msra.mxu0 0.0
      %469 = vmatprep.subr.mxu0 0.0
      %470 = vmatpush1.msra.mxu0 0.0
      %471 = vmatprep.subr.mxu0 0.0
      %472 = vmatpush1.msra.mxu0 0.0
      %473 = vmatprep.subr.mxu0 0.0
      %474 = vmatpush1.msra.mxu0 0.0
      %475 = vmatprep.subr.mxu0 0.0
      %476 = vmatpush1.msra.mxu0 0.0
      %477 = vmatprep.subr.mxu0 0.0
      %478 = vmatpush1.msra.mxu0 0.0
      %479 = vmatprep.subr.mxu0 0.0
      %480 = vmatpush1.msra.mxu0 0.0
      %481 = vmatprep.subr.mxu0 0.0
      %482 = vmatpush1.msra.mxu0 0.0
      %483 = vmatprep.subr.mxu0 0.0
      %484 = vmatpush1.msra.mxu0 0.0
      %485 = vmatprep.subr.mxu0 0.0
      %486 = vmatpush1.msra.mxu0 0.0
      %487 = vmatprep.subr.mxu0 0.0
      %488 = vmatpush1.msra.mxu0 0.0
      %489 = vmatprep.subr.mxu0 0.0
      %490 = vmatpush1.msra.mxu0 0.0
      %491 = vmatprep.subr.mxu0 0.0
      %492 = vmatpush1.msra.mxu0 0.0
      %493 = vmatprep.subr.mxu0 %v455
      %494 = vmatpush1.msra.mxu0 %v452
      %495 = vmatprep.subr.mxu0 0.0
      %496 = vmatpush2.msra.mxu0 0.0
      %497 = vmatprep.subr.mxu0 0.0
      %498 = vmatpush2.msra.mxu0 0.0
      %499 = vmatprep.subr.mxu0 0.0
      %500 = vmatpush2.msra.mxu0 0.0
      %501 = vmatprep.subr.mxu0 0.0
      %502 = vmatpush2.msra.mxu0 0.0
      %503 = vmatprep.subr.mxu0 0.0
      %504 = vmatpush2.msra.mxu0 0.0
      %505 = vmatprep.subr.mxu0 0.0
      %506 = vmatpush2.msra.mxu0 0.0
      %507 = vmatprep.subr.mxu0 0.0
      %508 = vmatpush2.msra.mxu0 0.0
      %509 = vmatprep.subr.mxu0 0.0
      %510 = vmatpush2.msra.mxu0 0.0
      %511 = vmatprep.subr.mxu0 0.0
      %512 = vmatpush2.msra.mxu0 0.0
      %513 = vmatprep.subr.mxu0 0.0
      %514 = vmatpush2.msra.mxu0 0.0
      %515 = vmatprep.subr.mxu0 0.0
      %516 = vmatpush2.msra.mxu0 0.0
      %517 = vmatprep.subr.mxu0 0.0
      %518 = vmatpush2.msra.mxu0 0.0
      %519 = vmatprep.subr.mxu0 0.0
      %520 = vmatpush2.msra.mxu0 0.0
      %521 = vmatprep.subr.mxu0 0.0
      %522 = vmatpush2.msra.mxu0 0.0
      %523 = vmatprep.subr.mxu0 0.0
      %524 = vmatpush2.msra.mxu0 0.0
      %525 = vmatprep.subr.mxu0 0.0
      %526 = vmatpush2.msra.mxu0 0.0
      %527 = vmatprep.mubr.f32.mxu0 0.0
      %528 = vmatmul.mubr.f32.gmra.mxu0 %v448
      %v529 = vpop.f32.mrf.mxu0
      %v530 = vadd.f32 0.0, %v529
      %v531 = vpop.f32.mrf.mxu0
      %v532 = vadd.f32 0.0, %v531
      %533 = vdwg.mxu0
      %534 = vmatprep.subr.mxu0 0.0
      %535 = vmatpush1.msra.mxu0 0.0
      %536 = vmatprep.subr.mxu0 0.0
      %537 = vmatpush1.msra.mxu0 0.0
      %538 = vmatprep.subr.mxu0 0.0
      %539 = vmatpush1.msra.mxu0 0.0
      %540 = vmatprep.subr.mxu0 0.0
      %541 = vmatpush1.msra.mxu0 0.0
      %542 = vmatprep.subr.mxu0 0.0
      %543 = vmatpush1.msra.mxu0 0.0
      %544 = vmatprep.subr.mxu0 0.0
      %545 = vmatpush1.msra.mxu0 0.0
      %546 = vmatprep.subr.mxu0 0.0
      %547 = vmatpush1.msra.mxu0 0.0
      %548 = vmatprep.subr.mxu0 0.0
      %549 = vmatpush1.msra.mxu0 0.0
      %550 = vmatprep.subr.mxu0 0.0
      %551 = vmatpush1.msra.mxu0 0.0
      %552 = vmatprep.subr.mxu0 0.0
      %553 = vmatpush1.msra.mxu0 0.0
      %554 = vmatprep.subr.mxu0 0.0
      %555 = vmatpush1.msra.mxu0 0.0
      %556 = vmatprep.subr.mxu0 0.0
      %557 = vmatpush1.msra.mxu0 0.0
      %558 = vmatprep.subr.mxu0 0.0
      %559 = vmatpush1.msra.mxu0 0.0
      %560 = vmatprep.subr.mxu0 0.0
      %561 = vmatpush1.msra.mxu0 0.0
      %562 = vmatprep.subr.mxu0 0.0
      %563 = vmatpush1.msra.mxu0 0.0
      %564 = vmatprep.subr.mxu0 %v461
      %565 = vmatpush1.msra.mxu0 %v458
      %566 = vmatprep.subr.mxu0 0.0
      %567 = vmatpush2.msra.mxu0 0.0
      %568 = vmatprep.subr.mxu0 0.0
      %569 = vmatpush2.msra.mxu0 0.0
      %570 = vmatprep.subr.mxu0 0.0
      %571 = vmatpush2.msra.mxu0 0.0
      %572 = vmatprep.subr.mxu0 0.0
      %573 = vmatpush2.msra.mxu0 0.0
      %574 = vmatprep.subr.mxu0 0.0
      %575 = vmatpush2.msra.mxu0 0.0
      %576 = vmatprep.subr.mxu0 0.0
      %577 = vmatpush2.msra.mxu0 0.0
      %578 = vmatprep.subr.mxu0 0.0
      %579 = vmatpush2.msra.mxu0 0.0
      %580 = vmatprep.subr.mxu0 0.0
      %581 = vmatpush2.msra.mxu0 0.0
      %582 = vmatprep.subr.mxu0 0.0
      %583 = vmatpush2.msra.mxu0 0.0
      %584 = vmatprep.subr.mxu0 0.0
      %585 = vmatpush2.msra.mxu0 0.0
      %586 = vmatprep.subr.mxu0 0.0
      %587 = vmatpush2.msra.mxu0 0.0
      %588 = vmatprep.subr.mxu0 0.0
      %589 = vmatpush2.msra.mxu0 0.0
      %590 = vmatprep.subr.mxu0 0.0
      %591 = vmatpush2.msra.mxu0 0.0
      %592 = vmatprep.subr.mxu0 0.0
      %593 = vmatpush2.msra.mxu0 0.0
      %594 = vmatprep.subr.mxu0 0.0
      %595 = vmatpush2.msra.mxu0 0.0
      %596 = vmatprep.subr.mxu0 0.0
      %597 = vmatpush2.msra.mxu0 0.0
      %598 = vmatprep.mubr.f32.mxu0 0.0
      %599 = vmatmul.mubr.f32.gmra.mxu0 %v448
      %v600 = vpop.f32.mrf.mxu0
      %v601 = vadd.f32 0.0, %v600
      %v602 = vpop.f32.mrf.mxu0
      %v603 = vadd.f32 0.0, %v602
      %604 = vdwg.mxu0
      %v606 = vsel %vm446, %v397, 0
      %v609 = vsel %vm450, %v393, 0
      %v612 = vsel %vm450, %v394, 0
      %v615 = vsel %vm450, %v395, 0
      %v618 = vsel %vm450, %v396, 0
      %620 = vmatprep.subr.mxu0 0.0
      %621 = vmatpush1.msra.mxu0 0.0
      %622 = vmatprep.subr.mxu0 0.0
      %623 = vmatpush1.msra.mxu0 0.0
      %624 = vmatprep.subr.mxu0 0.0
      %625 = vmatpush1.msra.mxu0 0.0
      %626 = vmatprep.subr.mxu0 0.0
      %627 = vmatpush1.msra.mxu0 0.0
      %628 = vmatprep.subr.mxu0 0.0
      %629 = vmatpush1.msra.mxu0 0.0
      %630 = vmatprep.subr.mxu0 0.0
      %631 = vmatpush1.msra.mxu0 0.0
      %632 = vmatprep.subr.mxu0 0.0
      %633 = vmatpush1.msra.mxu0 0.0
      %634 = vmatprep.subr.mxu0 0.0
      %635 = vmatpush1.msra.mxu0 0.0
      %636 = vmatprep.subr.mxu0 0.0
      %637 = vmatpush1.msra.mxu0 0.0
      %638 = vmatprep.subr.mxu0 0.0
      %639 = vmatpush1.msra.mxu0 0.0
      %640 = vmatprep.subr.mxu0 0.0
      %641 = vmatpush1.msra.mxu0 0.0
      %642 = vmatprep.subr.mxu0 0.0
      %643 = vmatpush1.msra.mxu0 0.0
      %644 = vmatprep.subr.mxu0 0.0
      %645 = vmatpush1.msra.mxu0 0.0
      %646 = vmatprep.subr.mxu0 0.0
      %647 = vmatpush1.msra.mxu0 0.0
      %648 = vmatprep.subr.mxu0 0.0
      %649 = vmatpush1.msra.mxu0 0.0
      %650 = vmatprep.subr.mxu0 %v612
      %651 = vmatpush1.msra.mxu0 %v609
      %652 = vmatprep.subr.mxu0 0.0
      %653 = vmatpush2.msra.mxu0 0.0
      %654 = vmatprep.subr.mxu0 0.0
      %655 = vmatpush2.msra.mxu0 0.0
      %656 = vmatprep.subr.mxu0 0.0
      %657 = vmatpush2.msra.mxu0 0.0
      %658 = vmatprep.subr.mxu0 0.0
      %659 = vmatpush2.msra.mxu0 0.0
      %660 = vmatprep.subr.mxu0 0.0
      %661 = vmatpush2.msra.mxu0 0.0
      %662 = vmatprep.subr.mxu0 0.0
      %663 = vmatpush2.msra.mxu0 0.0
      %664 = vmatprep.subr.mxu0 0.0
      %665 = vmatpush2.msra.mxu0 0.0
      %666 = vmatprep.subr.mxu0 0.0
      %667 = vmatpush2.msra.mxu0 0.0
      %668 = vmatprep.subr.mxu0 0.0
      %669 = vmatpush2.msra.mxu0 0.0
      %670 = vmatprep.subr.mxu0 0.0
      %671 = vmatpush2.msra.mxu0 0.0
      %672 = vmatprep.subr.mxu0 0.0
      %673 = vmatpush2.msra.mxu0 0.0
      %674 = vmatprep.subr.mxu0 0.0
      %675 = vmatpush2.msra.mxu0 0.0
      %676 = vmatprep.subr.mxu0 0.0
      %677 = vmatpush2.msra.mxu0 0.0
      %678 = vmatprep.subr.mxu0 0.0
      %679 = vmatpush2.msra.mxu0 0.0
      %680 = vmatprep.subr.mxu0 0.0
      %681 = vmatpush2.msra.mxu0 0.0
      %682 = vmatprep.subr.mxu0 0.0
      %683 = vmatpush2.msra.mxu0 0.0
      %684 = vmatprep.mubr.f32.mxu0 0.0
      %685 = vmatmul.mubr.f32.gmra.mxu0 %v606
      %v686 = vpop.f32.mrf.mxu0
      %v687 = vadd.f32 %v530, %v686
      %v688 = vpop.f32.mrf.mxu0
      %v689 = vadd.f32 %v532, %v688
      %690 = vdwg.mxu0
      %691 = vmatprep.subr.mxu0 0.0
      %692 = vmatpush1.msra.mxu0 0.0
      %693 = vmatprep.subr.mxu0 0.0
      %694 = vmatpush1.msra.mxu0 0.0
      %695 = vmatprep.subr.mxu0 0.0
      %696 = vmatpush1.msra.mxu0 0.0
      %697 = vmatprep.subr.mxu0 0.0
      %698 = vmatpush1.msra.mxu0 0.0
      %699 = vmatprep.subr.mxu0 0.0
      %700 = vmatpush1.msra.mxu0 0.0
      %701 = vmatprep.subr.mxu0 0.0
      %702 = vmatpush1.msra.mxu0 0.0
      %703 = vmatprep.subr.mxu0 0.0
      %704 = vmatpush1.msra.mxu0 0.0
      %705 = vmatprep.subr.mxu0 0.0
      %706 = vmatpush1.msra.mxu0 0.0
      %707 = vmatprep.subr.mxu0 0.0
      %708 = vmatpush1.msra.mxu0 0.0
      %709 = vmatprep.subr.mxu0 0.0
      %710 = vmatpush1.msra.mxu0 0.0
      %711 = vmatprep.subr.mxu0 0.0
      %712 = vmatpush1.msra.mxu0 0.0
      %713 = vmatprep.subr.mxu0 0.0
      %714 = vmatpush1.msra.mxu0 0.0
      %715 = vmatprep.subr.mxu0 0.0
      %716 = vmatpush1.msra.mxu0 0.0
      %717 = vmatprep.subr.mxu0 0.0
      %718 = vmatpush1.msra.mxu0 0.0
      %719 = vmatprep.subr.mxu0 0.0
      %720 = vmatpush1.msra.mxu0 0.0
      %721 = vmatprep.subr.mxu0 %v618
      %722 = vmatpush1.msra.mxu0 %v615
      %723 = vmatprep.subr.mxu0 0.0
      %724 = vmatpush2.msra.mxu0 0.0
      %725 = vmatprep.subr.mxu0 0.0
      %726 = vmatpush2.msra.mxu0 0.0
      %727 = vmatprep.subr.mxu0 0.0
      %728 = vmatpush2.msra.mxu0 0.0
      %729 = vmatprep.subr.mxu0 0.0
      %730 = vmatpush2.msra.mxu0 0.0
      %731 = vmatprep.subr.mxu0 0.0
      %732 = vmatpush2.msra.mxu0 0.0
      %733 = vmatprep.subr.mxu0 0.0
      %734 = vmatpush2.msra.mxu0 0.0
      %735 = vmatprep.subr.mxu0 0.0
      %736 = vmatpush2.msra.mxu0 0.0
      %737 = vmatprep.subr.mxu0 0.0
      %738 = vmatpush2.msra.mxu0 0.0
      %739 = vmatprep.subr.mxu0 0.0
      %740 = vmatpush2.msra.mxu0 0.0
      %741 = vmatprep.subr.mxu0 0.0
      %742 = vmatpush2.msra.mxu0 0.0
      %743 = vmatprep.subr.mxu0 0.0
      %744 = vmatpush2.msra.mxu0 0.0
      %745 = vmatprep.subr.mxu0 0.0
      %746 = vmatpush2.msra.mxu0 0.0
      %747 = vmatprep.subr.mxu0 0.0
      %748 = vmatpush2.msra.mxu0 0.0
      %749 = vmatprep.subr.mxu0 0.0
      %750 = vmatpush2.msra.mxu0 0.0
      %751 = vmatprep.subr.mxu0 0.0
      %752 = vmatpush2.msra.mxu0 0.0
      %753 = vmatprep.subr.mxu0 0.0
      %754 = vmatpush2.msra.mxu0 0.0
      %755 = vmatprep.mubr.f32.mxu0 0.0
      %756 = vmatmul.mubr.f32.gmra.mxu0 %v606
      %v757 = vpop.f32.mrf.mxu0
      %v758 = vadd.f32 %v601, %v757
      %v759 = vpop.f32.mrf.mxu0
      %v760 = vadd.f32 %v603, %v759
      %761 = vdwg.mxu0
      %v762 = vld [vmem:[%s342] sm:$0xff]
      %v763 = vld [vmem:[%s342 + $0x8] sm:$0xff]
      %v764 = vld [vmem:[%s342 + $0x10] sm:$0xf]
      %vm765 = vmand %vm364, %vm361
      %v766 = vsel %vm765, 1, 0
      %v767 = vlaneseq
      %v768 = vshrl.u32 %v767, 7
      %v769 = vsub.s32 0, %v768
      %v770 = vrot.slane %v766, %v769
      %v771 = vlaneseq
      %v772 = vshrl.u32 %v771, 7
      %v773 = vsub.s32 1, %v772
      %v774 = vrot.slane %v766, %v773
      %v775 = vlaneseq
      %v776 = vshrl.u32 %v775, 7
      %v777 = vsub.s32 2, %v776
      %v778 = vrot.slane %v766, %v777
      %v779 = vlaneseq
      %v780 = vshrl.u32 %v779, 7
      %v781 = vsub.s32 3, %v780
      %v782 = vrot.slane %v766, %v781
      %vm783 = vcmp.eq.s32.totalorder %v770, 1
      %vm784 = vcmp.eq.s32.totalorder %v774, 1
      %vm785 = vcmp.eq.s32.totalorder %v778, 1
      %vm786 = vcmp.eq.s32.totalorder %v782, 1
      %v790 = vcombine.high %v762, %v762
      %v791 = vcombine.high %v763, %v763
      %792 = vrot.lane.b32.xlu0 %v762, 126
      %v793 = vpop.permute.xlu0 %792
      %794 = vrot.lane.b32.xlu0 %v790, 126
      %v795 = vpop.permute.xlu0 %794
      %796 = vrot.lane.b32.xlu0 %v763, 126
      %v797 = vpop.permute.xlu0 %796
      %798 = vrot.lane.b32.xlu0 %v791, 126
      %v799 = vpop.permute.xlu0 %798
      %800 = vrot.lane.b32.xlu0 %v764, 126
      %v801 = vpop.permute.xlu0 %800
      %vm802 = vcmask 1031168
      %v803 = vsel %vm802, %v793, %v795
      %v804 = vsel %vm802, %v795, %v797
      %v805 = vsel %vm802, %v797, %v799
      %v806 = vsel %vm802, %v799, %v801
      %v811 = vsel %vm783, %v803, 0.0
      %v812 = vsel %vm784, %v804, 0.0
      %v813 = vsel %vm785, %v805, 0.0
      %v814 = vsel %vm786, %v806, 0.0
      %s815 = scalar_lea.vmem %s5, 8
      %v816 = vld [vmem:[%s815] sm:$0xf]
      %v818 = vsel %vm446, %v816, 0
      %v821 = vsel %vm450, %v811, 0
      %v824 = vsel %vm450, %v812, 0
      %v827 = vsel %vm450, %v813, 0
      %v830 = vsel %vm450, %v814, 0
      %832 = vmatprep.subr.mxu0 0.0
      %833 = vmatpush1.msra.mxu0 0.0
      %834 = vmatprep.subr.mxu0 0.0
      %835 = vmatpush1.msra.mxu0 0.0
      %836 = vmatprep.subr.mxu0 0.0
      %837 = vmatpush1.msra.mxu0 0.0
      %838 = vmatprep.subr.mxu0 0.0
      %839 = vmatpush1.msra.mxu0 0.0
      %840 = vmatprep.subr.mxu0 0.0
      %841 = vmatpush1.msra.mxu0 0.0
      %842 = vmatprep.subr.mxu0 0.0
      %843 = vmatpush1.msra.mxu0 0.0
      %844 = vmatprep.subr.mxu0 0.0
      %845 = vmatpush1.msra.mxu0 0.0
      %846 = vmatprep.subr.mxu0 0.0
      %847 = vmatpush1.msra.mxu0 0.0
      %848 = vmatprep.subr.mxu0 0.0
      %849 = vmatpush1.msra.mxu0 0.0
      %850 = vmatprep.subr.mxu0 0.0
      %851 = vmatpush1.msra.mxu0 0.0
      %852 = vmatprep.subr.mxu0 0.0
      %853 = vmatpush1.msra.mxu0 0.0
      %854 = vmatprep.subr.mxu0 0.0
      %855 = vmatpush1.msra.mxu0 0.0
      %856 = vmatprep.subr.mxu0 0.0
      %857 = vmatpush1.msra.mxu0 0.0
      %858 = vmatprep.subr.mxu0 0.0
      %859 = vmatpush1.msra.mxu0 0.0
      %860 = vmatprep.subr.mxu0 0.0
      %861 = vmatpush1.msra.mxu0 0.0
      %862 = vmatprep.subr.mxu0 %v824
      %863 = vmatpush1.msra.mxu0 %v821
      %864 = vmatprep.subr.mxu0 0.0
      %865 = vmatpush2.msra.mxu0 0.0
      %866 = vmatprep.subr.mxu0 0.0
      %867 = vmatpush2.msra.mxu0 0.0
      %868 = vmatprep.subr.mxu0 0.0
      %869 = vmatpush2.msra.mxu0 0.0
      %870 = vmatprep.subr.mxu0 0.0
      %871 = vmatpush2.msra.mxu0 0.0
      %872 = vmatprep.subr.mxu0 0.0
      %873 = vmatpush2.msra.mxu0 0.0
      %874 = vmatprep.subr.mxu0 0.0
      %875 = vmatpush2.msra.mxu0 0.0
      %876 = vmatprep.subr.mxu0 0.0
      %877 = vmatpush2.msra.mxu0 0.0
      %878 = vmatprep.subr.mxu0 0.0
      %879 = vmatpush2.msra.mxu0 0.0
      %880 = vmatprep.subr.mxu0 0.0
      %881 = vmatpush2.msra.mxu0 0.0
      %882 = vmatprep.subr.mxu0 0.0
      %883 = vmatpush2.msra.mxu0 0.0
      %884 = vmatprep.subr.mxu0 0.0
      %885 = vmatpush2.msra.mxu0 0.0
      %886 = vmatprep.subr.mxu0 0.0
      %887 = vmatpush2.msra.mxu0 0.0
      %888 = vmatprep.subr.mxu0 0.0
      %889 = vmatpush2.msra.mxu0 0.0
      %890 = vmatprep.subr.mxu0 0.0
      %891 = vmatpush2.msra.mxu0 0.0
      %892 = vmatprep.subr.mxu0 0.0
      %893 = vmatpush2.msra.mxu0 0.0
      %894 = vmatprep.subr.mxu0 0.0
      %895 = vmatpush2.msra.mxu0 0.0
      %896 = vmatprep.mubr.f32.mxu0 0.0
      %897 = vmatmul.mubr.f32.gmra.mxu0 %v818
      %v898 = vpop.f32.mrf.mxu0
      %v899 = vadd.f32 0.0, %v898
      %v900 = vpop.f32.mrf.mxu0
      %v901 = vadd.f32 0.0, %v900
      %902 = vdwg.mxu0
      %903 = vmatprep.subr.mxu0 0.0
      %904 = vmatpush1.msra.mxu0 0.0
      %905 = vmatprep.subr.mxu0 0.0
      %906 = vmatpush1.msra.mxu0 0.0
      %907 = vmatprep.subr.mxu0 0.0
      %908 = vmatpush1.msra.mxu0 0.0
      %909 = vmatprep.subr.mxu0 0.0
      %910 = vmatpush1.msra.mxu0 0.0
      %911 = vmatprep.subr.mxu0 0.0
      %912 = vmatpush1.msra.mxu0 0.0
      %913 = vmatprep.subr.mxu0 0.0
      %914 = vmatpush1.msra.mxu0 0.0
      %915 = vmatprep.subr.mxu0 0.0
      %916 = vmatpush1.msra.mxu0 0.0
      %917 = vmatprep.subr.mxu0 0.0
      %918 = vmatpush1.msra.mxu0 0.0
      %919 = vmatprep.subr.mxu0 0.0
      %920 = vmatpush1.msra.mxu0 0.0
      %921 = vmatprep.subr.mxu0 0.0
      %922 = vmatpush1.msra.mxu0 0.0
      %923 = vmatprep.subr.mxu0 0.0
      %924 = vmatpush1.msra.mxu0 0.0
      %925 = vmatprep.subr.mxu0 0.0
      %926 = vmatpush1.msra.mxu0 0.0
      %927 = vmatprep.subr.mxu0 0.0
      %928 = vmatpush1.msra.mxu0 0.0
      %929 = vmatprep.subr.mxu0 0.0
      %930 = vmatpush1.msra.mxu0 0.0
      %931 = vmatprep.subr.mxu0 0.0
      %932 = vmatpush1.msra.mxu0 0.0
      %933 = vmatprep.subr.mxu0 %v830
      %934 = vmatpush1.msra.mxu0 %v827
      %935 = vmatprep.subr.mxu0 0.0
      %936 = vmatpush2.msra.mxu0 0.0
      %937 = vmatprep.subr.mxu0 0.0
      %938 = vmatpush2.msra.mxu0 0.0
      %939 = vmatprep.subr.mxu0 0.0
      %940 = vmatpush2.msra.mxu0 0.0
      %941 = vmatprep.subr.mxu0 0.0
      %942 = vmatpush2.msra.mxu0 0.0
      %943 = vmatprep.subr.mxu0 0.0
      %944 = vmatpush2.msra.mxu0 0.0
      %945 = vmatprep.subr.mxu0 0.0
      %946 = vmatpush2.msra.mxu0 0.0
      %947 = vmatprep.subr.mxu0 0.0
      %948 = vmatpush2.msra.mxu0 0.0
      %949 = vmatprep.subr.mxu0 0.0
      %950 = vmatpush2.msra.mxu0 0.0
      %951 = vmatprep.subr.mxu0 0.0
      %952 = vmatpush2.msra.mxu0 0.0
      %953 = vmatprep.subr.mxu0 0.0
      %954 = vmatpush2.msra.mxu0 0.0
      %955 = vmatprep.subr.mxu0 0.0
      %956 = vmatpush2.msra.mxu0 0.0
      %957 = vmatprep.subr.mxu0 0.0
      %958 = vmatpush2.msra.mxu0 0.0
      %959 = vmatprep.subr.mxu0 0.0
      %960 = vmatpush2.msra.mxu0 0.0
      %961 = vmatprep.subr.mxu0 0.0
      %962 = vmatpush2.msra.mxu0 0.0
      %963 = vmatprep.subr.mxu0 0.0
      %964 = vmatpush2.msra.mxu0 0.0
      %965 = vmatprep.subr.mxu0 0.0
      %966 = vmatpush2.msra.mxu0 0.0
      %967 = vmatprep.mubr.f32.mxu0 0.0
      %968 = vmatmul.mubr.f32.gmra.mxu0 %v818
      %v969 = vpop.f32.mrf.mxu0
      %v970 = vadd.f32 0.0, %v969
      %v971 = vpop.f32.mrf.mxu0
      %v972 = vadd.f32 0.0, %v971
      %973 = vdwg.mxu0
      %v974 = vadd.f32 %v687, %v899
      %v975 = vadd.f32 %v689, %v901
      %v976 = vadd.f32 %v758, %v970
      %v977 = vadd.f32 %v760, %v972
      %v978 = vld [vmem:[%s342] sm:$0xff]
      %v979 = vld [vmem:[%s342 + $0x8] sm:$0xff]
      %v980 = vld [vmem:[%s342 + $0x10] sm:$0xf]
      %vm981 = vmand %vm356, %vm360
      %v982 = vsel %vm981, 1, 0
      %v983 = vlaneseq
      %v984 = vshrl.u32 %v983, 7
      %v985 = vsub.s32 0, %v984
      %v986 = vrot.slane %v982, %v985
      %v987 = vlaneseq
      %v988 = vshrl.u32 %v987, 7
      %v989 = vsub.s32 1, %v988
      %v990 = vrot.slane %v982, %v989
      %v991 = vlaneseq
      %v992 = vshrl.u32 %v991, 7
      %v993 = vsub.s32 2, %v992
      %v994 = vrot.slane %v982, %v993
      %v995 = vlaneseq
      %v996 = vshrl.u32 %v995, 7
      %v997 = vsub.s32 3, %v996
      %v998 = vrot.slane %v982, %v997
      %vm999 = vcmp.eq.s32.totalorder %v986, 1
      %vm1000 = vcmp.eq.s32.totalorder %v990, 1
      %vm1001 = vcmp.eq.s32.totalorder %v994, 1
      %vm1002 = vcmp.eq.s32.totalorder %v998, 1
      %v1006 = vcombine.high %v978, %v978
      %v1007 = vcombine.high %v979, %v979
      %1008 = vrot.lane.b32.xlu0 %v978, 120
      %v1009 = vpop.permute.xlu0 %1008
      %1010 = vrot.lane.b32.xlu0 %v1006, 120
      %v1011 = vpop.permute.xlu0 %1010
      %1012 = vrot.lane.b32.xlu0 %v979, 120
      %v1013 = vpop.permute.xlu0 %1012
      %1014 = vrot.lane.b32.xlu0 %v1007, 120
      %v1015 = vpop.permute.xlu0 %1014
      %1016 = vrot.lane.b32.xlu0 %v980, 120
      %v1017 = vpop.permute.xlu0 %1016
      %vm1018 = vcmask 982016
      %v1019 = vsel %vm1018, %v1009, %v1011
      %v1020 = vsel %vm1018, %v1011, %v1013
      %v1021 = vsel %vm1018, %v1013, %v1015
      %v1022 = vsel %vm1018, %v1015, %v1017
      %v1027 = vsel %vm999, %v1019, 0.0
      %v1028 = vsel %vm1000, %v1020, 0.0
      %v1029 = vsel %vm1001, %v1021, 0.0
      %v1030 = vsel %vm1002, %v1022, 0.0
      %s1031 = scalar_lea.vmem %s5, 12
      %v1032 = vld [vmem:[%s1031] sm:$0xf]
      %v1034 = vsel %vm446, %v1032, 0
      %v1037 = vsel %vm450, %v1027, 0
      %v1040 = vsel %vm450, %v1028, 0
      %v1043 = vsel %vm450, %v1029, 0
      %v1046 = vsel %vm450, %v1030, 0
      %1048 = vmatprep.subr.mxu0 0.0
      %1049 = vmatpush1.msra.mxu0 0.0
      %1050 = vmatprep.subr.mxu0 0.0
      %1051 = vmatpush1.msra.mxu0 0.0
      %1052 = vmatprep.subr.mxu0 0.0
      %1053 = vmatpush1.msra.mxu0 0.0
      %1054 = vmatprep.subr.mxu0 0.0
      %1055 = vmatpush1.msra.mxu0 0.0
      %1056 = vmatprep.subr.mxu0 0.0
      %1057 = vmatpush1.msra.mxu0 0.0
      %1058 = vmatprep.subr.mxu0 0.0
      %1059 = vmatpush1.msra.mxu0 0.0
      %1060 = vmatprep.subr.mxu0 0.0
      %1061 = vmatpush1.msra.mxu0 0.0
      %1062 = vmatprep.subr.mxu0 0.0
      %1063 = vmatpush1.msra.mxu0 0.0
      %1064 = vmatprep.subr.mxu0 0.0
      %1065 = vmatpush1.msra.mxu0 0.0
      %1066 = vmatprep.subr.mxu0 0.0
      %1067 = vmatpush1.msra.mxu0 0.0
      %1068 = vmatprep.subr.mxu0 0.0
      %1069 = vmatpush1.msra.mxu0 0.0
      %1070 = vmatprep.subr.mxu0 0.0
      %1071 = vmatpush1.msra.mxu0 0.0
      %1072 = vmatprep.subr.mxu0 0.0
      %1073 = vmatpush1.msra.mxu0 0.0
      %1074 = vmatprep.subr.mxu0 0.0
      %1075 = vmatpush1.msra.mxu0 0.0
      %1076 = vmatprep.subr.mxu0 0.0
      %1077 = vmatpush1.msra.mxu0 0.0
      %1078 = vmatprep.subr.mxu0 %v1040
      %1079 = vmatpush1.msra.mxu0 %v1037
      %1080 = vmatprep.subr.mxu0 0.0
      %1081 = vmatpush2.msra.mxu0 0.0
      %1082 = vmatprep.subr.mxu0 0.0
      %1083 = vmatpush2.msra.mxu0 0.0
      %1084 = vmatprep.subr.mxu0 0.0
      %1085 = vmatpush2.msra.mxu0 0.0
      %1086 = vmatprep.subr.mxu0 0.0
      %1087 = vmatpush2.msra.mxu0 0.0
      %1088 = vmatprep.subr.mxu0 0.0
      %1089 = vmatpush2.msra.mxu0 0.0
      %1090 = vmatprep.subr.mxu0 0.0
      %1091 = vmatpush2.msra.mxu0 0.0
      %1092 = vmatprep.subr.mxu0 0.0
      %1093 = vmatpush2.msra.mxu0 0.0
      %1094 = vmatprep.subr.mxu0 0.0
      %1095 = vmatpush2.msra.mxu0 0.0
      %1096 = vmatprep.subr.mxu0 0.0
      %1097 = vmatpush2.msra.mxu0 0.0
      %1098 = vmatprep.subr.mxu0 0.0
      %1099 = vmatpush2.msra.mxu0 0.0
      %1100 = vmatprep.subr.mxu0 0.0
      %1101 = vmatpush2.msra.mxu0 0.0
      %1102 = vmatprep.subr.mxu0 0.0
      %1103 = vmatpush2.msra.mxu0 0.0
      %1104 = vmatprep.subr.mxu0 0.0
      %1105 = vmatpush2.msra.mxu0 0.0
      %1106 = vmatprep.subr.mxu0 0.0
      %1107 = vmatpush2.msra.mxu0 0.0
      %1108 = vmatprep.subr.mxu0 0.0
      %1109 = vmatpush2.msra.mxu0 0.0
      %1110 = vmatprep.subr.mxu0 0.0
      %1111 = vmatpush2.msra.mxu0 0.0
      %1112 = vmatprep.mubr.f32.mxu0 0.0
      %1113 = vmatmul.mubr.f32.gmra.mxu0 %v1034
      %v1114 = vpop.f32.mrf.mxu0
      %v1115 = vadd.f32 0.0, %v1114
      %v1116 = vpop.f32.mrf.mxu0
      %v1117 = vadd.f32 0.0, %v1116
      %1118 = vdwg.mxu0
      %1119 = vmatprep.subr.mxu0 0.0
      %1120 = vmatpush1.msra.mxu0 0.0
      %1121 = vmatprep.subr.mxu0 0.0
      %1122 = vmatpush1.msra.mxu0 0.0
      %1123 = vmatprep.subr.mxu0 0.0
      %1124 = vmatpush1.msra.mxu0 0.0
      %1125 = vmatprep.subr.mxu0 0.0
      %1126 = vmatpush1.msra.mxu0 0.0
      %1127 = vmatprep.subr.mxu0 0.0
      %1128 = vmatpush1.msra.mxu0 0.0
      %1129 = vmatprep.subr.mxu0 0.0
      %1130 = vmatpush1.msra.mxu0 0.0
      %1131 = vmatprep.subr.mxu0 0.0
      %1132 = vmatpush1.msra.mxu0 0.0
      %1133 = vmatprep.subr.mxu0 0.0
      %1134 = vmatpush1.msra.mxu0 0.0
      %1135 = vmatprep.subr.mxu0 0.0
      %1136 = vmatpush1.msra.mxu0 0.0
      %1137 = vmatprep.subr.mxu0 0.0
      %1138 = vmatpush1.msra.mxu0 0.0
      %1139 = vmatprep.subr.mxu0 0.0
      %1140 = vmatpush1.msra.mxu0 0.0
      %1141 = vmatprep.subr.mxu0 0.0
      %1142 = vmatpush1.msra.mxu0 0.0
      %1143 = vmatprep.subr.mxu0 0.0
      %1144 = vmatpush1.msra.mxu0 0.0
      %1145 = vmatprep.subr.mxu0 0.0
      %1146 = vmatpush1.msra.mxu0 0.0
      %1147 = vmatprep.subr.mxu0 0.0
      %1148 = vmatpush1.msra.mxu0 0.0
      %1149 = vmatprep.subr.mxu0 %v1046
      %1150 = vmatpush1.msra.mxu0 %v1043
      %1151 = vmatprep.subr.mxu0 0.0
      %1152 = vmatpush2.msra.mxu0 0.0
      %1153 = vmatprep.subr.mxu0 0.0
      %1154 = vmatpush2.msra.mxu0 0.0
      %1155 = vmatprep.subr.mxu0 0.0
      %1156 = vmatpush2.msra.mxu0 0.0
      %1157 = vmatprep.subr.mxu0 0.0
      %1158 = vmatpush2.msra.mxu0 0.0
      %1159 = vmatprep.subr.mxu0 0.0
      %1160 = vmatpush2.msra.mxu0 0.0
      %1161 = vmatprep.subr.mxu0 0.0
      %1162 = vmatpush2.msra.mxu0 0.0
      %1163 = vmatprep.subr.mxu0 0.0
      %1164 = vmatpush2.msra.mxu0 0.0
      %1165 = vmatprep.subr.mxu0 0.0
      %1166 = vmatpush2.msra.mxu0 0.0
      %1167 = vmatprep.subr.mxu0 0.0
      %1168 = vmatpush2.msra.mxu0 0.0
      %1169 = vmatprep.subr.mxu0 0.0
      %1170 = vmatpush2.msra.mxu0 0.0
      %1171 = vmatprep.subr.mxu0 0.0
      %1172 = vmatpush2.msra.mxu0 0.0
      %1173 = vmatprep.subr.mxu0 0.0
      %1174 = vmatpush2.msra.mxu0 0.0
      %1175 = vmatprep.subr.mxu0 0.0
      %1176 = vmatpush2.msra.mxu0 0.0
      %1177 = vmatprep.subr.mxu0 0.0
      %1178 = vmatpush2.msra.mxu0 0.0
      %1179 = vmatprep.subr.mxu0 0.0
      %1180 = vmatpush2.msra.mxu0 0.0
      %1181 = vmatprep.subr.mxu0 0.0
      %1182 = vmatpush2.msra.mxu0 0.0
      %1183 = vmatprep.mubr.f32.mxu0 0.0
      %1184 = vmatmul.mubr.f32.gmra.mxu0 %v1034
      %v1185 = vpop.f32.mrf.mxu0
      %v1186 = vadd.f32 0.0, %v1185
      %v1187 = vpop.f32.mrf.mxu0
      %v1188 = vadd.f32 0.0, %v1187
      %1189 = vdwg.mxu0
      %v1190 = vadd.f32 %v974, %v1115
      %v1191 = vadd.f32 %v975, %v1117
      %v1192 = vadd.f32 %v976, %v1186
      %v1193 = vadd.f32 %v977, %v1188
      %v1194 = vld [vmem:[%s342] sm:$0xff]
      %v1195 = vld [vmem:[%s342 + $0x8] sm:$0xff]
      %v1196 = vld [vmem:[%s342 + $0x10] sm:$0xf]
      %v1197 = vsel %vm356, 1, 0
      %v1198 = vlaneseq
      %v1199 = vshrl.u32 %v1198, 7
      %v1200 = vsub.s32 0, %v1199
      %v1201 = vrot.slane %v1197, %v1200
      %v1202 = vlaneseq
      %v1203 = vshrl.u32 %v1202, 7
      %v1204 = vsub.s32 1, %v1203
      %v1205 = vrot.slane %v1197, %v1204
      %v1206 = vlaneseq
      %v1207 = vshrl.u32 %v1206, 7
      %v1208 = vsub.s32 2, %v1207
      %v1209 = vrot.slane %v1197, %v1208
      %v1210 = vlaneseq
      %v1211 = vshrl.u32 %v1210, 7
      %v1212 = vsub.s32 3, %v1211
      %v1213 = vrot.slane %v1197, %v1212
      %vm1214 = vcmp.eq.s32.totalorder %v1201, 1
      %vm1215 = vcmp.eq.s32.totalorder %v1205, 1
      %vm1216 = vcmp.eq.s32.totalorder %v1209, 1
      %vm1217 = vcmp.eq.s32.totalorder %v1213, 1
      %v1221 = vcombine.high %v1194, %v1194
      %v1222 = vcombine.high %v1195, %v1195
      %1223 = vrot.lane.b32.xlu0 %v1194, 119
      %v1224 = vpop.permute.xlu0 %1223
      %1225 = vrot.lane.b32.xlu0 %v1221, 119
      %v1226 = vpop.permute.xlu0 %1225
      %1227 = vrot.lane.b32.xlu0 %v1195, 119
      %v1228 = vpop.permute.xlu0 %1227
      %1229 = vrot.lane.b32.xlu0 %v1222, 119
      %v1230 = vpop.permute.xlu0 %1229
      %1231 = vrot.lane.b32.xlu0 %v1196, 119
      %v1232 = vpop.permute.xlu0 %1231
      %vm1233 = vcmask 973824
      %v1234 = vsel %vm1233, %v1224, %v1226
      %v1235 = vsel %vm1233, %v1226, %v1228
      %v1236 = vsel %vm1233, %v1228, %v1230
      %v1237 = vsel %vm1233, %v1230, %v1232
      %v1242 = vsel %vm1214, %v1234, 0.0
      %v1243 = vsel %vm1215, %v1235, 0.0
      %v1244 = vsel %vm1216, %v1236, 0.0
      %v1245 = vsel %vm1217, %v1237, 0.0
      %s1246 = scalar_lea.vmem %s5, 16
      %v1247 = vld [vmem:[%s1246] sm:$0xf]
      %v1249 = vsel %vm446, %v1247, 0
      %v1252 = vsel %vm450, %v1242, 0
      %v1255 = vsel %vm450, %v1243, 0
      %v1258 = vsel %vm450, %v1244, 0
      %v1261 = vsel %vm450, %v1245, 0
      %1263 = vmatprep.subr.mxu0 0.0
      %1264 = vmatpush1.msra.mxu0 0.0
      %1265 = vmatprep.subr.mxu0 0.0
      %1266 = vmatpush1.msra.mxu0 0.0
      %1267 = vmatprep.subr.mxu0 0.0
      %1268 = vmatpush1.msra.mxu0 0.0
      %1269 = vmatprep.subr.mxu0 0.0
      %1270 = vmatpush1.msra.mxu0 0.0
      %1271 = vmatprep.subr.mxu0 0.0
      %1272 = vmatpush1.msra.mxu0 0.0
      %1273 = vmatprep.subr.mxu0 0.0
      %1274 = vmatpush1.msra.mxu0 0.0
      %1275 = vmatprep.subr.mxu0 0.0
      %1276 = vmatpush1.msra.mxu0 0.0
      %1277 = vmatprep.subr.mxu0 0.0
      %1278 = vmatpush1.msra.mxu0 0.0
      %1279 = vmatprep.subr.mxu0 0.0
      %1280 = vmatpush1.msra.mxu0 0.0
      %1281 = vmatprep.subr.mxu0 0.0
      %1282 = vmatpush1.msra.mxu0 0.0
      %1283 = vmatprep.subr.mxu0 0.0
      %1284 = vmatpush1.msra.mxu0 0.0
      %1285 = vmatprep.subr.mxu0 0.0
      %1286 = vmatpush1.msra.mxu0 0.0
      %1287 = vmatprep.subr.mxu0 0.0
      %1288 = vmatpush1.msra.mxu0 0.0
      %1289 = vmatprep.subr.mxu0 0.0
      %1290 = vmatpush1.msra.mxu0 0.0
      %1291 = vmatprep.subr.mxu0 0.0
      %1292 = vmatpush1.msra.mxu0 0.0
      %1293 = vmatprep.subr.mxu0 %v1255
      %1294 = vmatpush1.msra.mxu0 %v1252
      %1295 = vmatprep.subr.mxu0 0.0
      %1296 = vmatpush2.msra.mxu0 0.0
      %1297 = vmatprep.subr.mxu0 0.0
      %1298 = vmatpush2.msra.mxu0 0.0
      %1299 = vmatprep.subr.mxu0 0.0
      %1300 = vmatpush2.msra.mxu0 0.0
      %1301 = vmatprep.subr.mxu0 0.0
      %1302 = vmatpush2.msra.mxu0 0.0
      %1303 = vmatprep.subr.mxu0 0.0
      %1304 = vmatpush2.msra.mxu0 0.0
      %1305 = vmatprep.subr.mxu0 0.0
      %1306 = vmatpush2.msra.mxu0 0.0
      %1307 = vmatprep.subr.mxu0 0.0
      %1308 = vmatpush2.msra.mxu0 0.0
      %1309 = vmatprep.subr.mxu0 0.0
      %1310 = vmatpush2.msra.mxu0 0.0
      %1311 = vmatprep.subr.mxu0 0.0
      %1312 = vmatpush2.msra.mxu0 0.0
      %1313 = vmatprep.subr.mxu0 0.0
      %1314 = vmatpush2.msra.mxu0 0.0
      %1315 = vmatprep.subr.mxu0 0.0
      %1316 = vmatpush2.msra.mxu0 0.0
      %1317 = vmatprep.subr.mxu0 0.0
      %1318 = vmatpush2.msra.mxu0 0.0
      %1319 = vmatprep.subr.mxu0 0.0
      %1320 = vmatpush2.msra.mxu0 0.0
      %1321 = vmatprep.subr.mxu0 0.0
      %1322 = vmatpush2.msra.mxu0 0.0
      %1323 = vmatprep.subr.mxu0 0.0
      %1324 = vmatpush2.msra.mxu0 0.0
      %1325 = vmatprep.subr.mxu0 0.0
      %1326 = vmatpush2.msra.mxu0 0.0
      %1327 = vmatprep.mubr.f32.mxu0 0.0
      %1328 = vmatmul.mubr.f32.gmra.mxu0 %v1249
      %v1329 = vpop.f32.mrf.mxu0
      %v1330 = vadd.f32 0.0, %v1329
      %v1331 = vpop.f32.mrf.mxu0
      %v1332 = vadd.f32 0.0, %v1331
      %1333 = vdwg.mxu0
      %1334 = vmatprep.subr.mxu0 0.0
      %1335 = vmatpush1.msra.mxu0 0.0
      %1336 = vmatprep.subr.mxu0 0.0
      %1337 = vmatpush1.msra.mxu0 0.0
      %1338 = vmatprep.subr.mxu0 0.0
      %1339 = vmatpush1.msra.mxu0 0.0
      %1340 = vmatprep.subr.mxu0 0.0
      %1341 = vmatpush1.msra.mxu0 0.0
      %1342 = vmatprep.subr.mxu0 0.0
      %1343 = vmatpush1.msra.mxu0 0.0
      %1344 = vmatprep.subr.mxu0 0.0
      %1345 = vmatpush1.msra.mxu0 0.0
      %1346 = vmatprep.subr.mxu0 0.0
      %1347 = vmatpush1.msra.mxu0 0.0
      %1348 = vmatprep.subr.mxu0 0.0
      %1349 = vmatpush1.msra.mxu0 0.0
      %1350 = vmatprep.subr.mxu0 0.0
      %1351 = vmatpush1.msra.mxu0 0.0
      %1352 = vmatprep.subr.mxu0 0.0
      %1353 = vmatpush1.msra.mxu0 0.0
      %1354 = vmatprep.subr.mxu0 0.0
      %1355 = vmatpush1.msra.mxu0 0.0
      %1356 = vmatprep.subr.mxu0 0.0
      %1357 = vmatpush1.msra.mxu0 0.0
      %1358 = vmatprep.subr.mxu0 0.0
      %1359 = vmatpush1.msra.mxu0 0.0
      %1360 = vmatprep.subr.mxu0 0.0
      %1361 = vmatpush1.msra.mxu0 0.0
      %1362 = vmatprep.subr.mxu0 0.0
      %1363 = vmatpush1.msra.mxu0 0.0
      %1364 = vmatprep.subr.mxu0 %v1261
      %1365 = vmatpush1.msra.mxu0 %v1258
      %1366 = vmatprep.subr.mxu0 0.0
      %1367 = vmatpush2.msra.mxu0 0.0
      %1368 = vmatprep.subr.mxu0 0.0
      %1369 = vmatpush2.msra.mxu0 0.0
      %1370 = vmatprep.subr.mxu0 0.0
      %1371 = vmatpush2.msra.mxu0 0.0
      %1372 = vmatprep.subr.mxu0 0.0
      %1373 = vmatpush2.msra.mxu0 0.0
      %1374 = vmatprep.subr.mxu0 0.0
      %1375 = vmatpush2.msra.mxu0 0.0
      %1376 = vmatprep.subr.mxu0 0.0
      %1377 = vmatpush2.msra.mxu0 0.0
      %1378 = vmatprep.subr.mxu0 0.0
      %1379 = vmatpush2.msra.mxu0 0.0
      %1380 = vmatprep.subr.mxu0 0.0
      %1381 = vmatpush2.msra.mxu0 0.0
      %1382 = vmatprep.subr.mxu0 0.0
      %1383 = vmatpush2.msra.mxu0 0.0
      %1384 = vmatprep.subr.mxu0 0.0
      %1385 = vmatpush2.msra.mxu0 0.0
      %1386 = vmatprep.subr.mxu0 0.0
      %1387 = vmatpush2.msra.mxu0 0.0
      %1388 = vmatprep.subr.mxu0 0.0
      %1389 = vmatpush2.msra.mxu0 0.0
      %1390 = vmatprep.subr.mxu0 0.0
      %1391 = vmatpush2.msra.mxu0 0.0
      %1392 = vmatprep.subr.mxu0 0.0
      %1393 = vmatpush2.msra.mxu0 0.0
      %1394 = vmatprep.subr.mxu0 0.0
      %1395 = vmatpush2.msra.mxu0 0.0
      %1396 = vmatprep.subr.mxu0 0.0
      %1397 = vmatpush2.msra.mxu0 0.0
      %1398 = vmatprep.mubr.f32.mxu0 0.0
      %1399 = vmatmul.mubr.f32.gmra.mxu0 %v1249
      %v1400 = vpop.f32.mrf.mxu0
      %v1401 = vadd.f32 0.0, %v1400
      %v1402 = vpop.f32.mrf.mxu0
      %v1403 = vadd.f32 0.0, %v1402
      %1404 = vdwg.mxu0
      %v1405 = vadd.f32 %v1190, %v1330
      %v1406 = vadd.f32 %v1191, %v1332
      %v1407 = vadd.f32 %v1192, %v1401
      %v1408 = vadd.f32 %v1193, %v1403
      %v1409 = vld [vmem:[%s342] sm:$0xff]
      %v1410 = vld [vmem:[%s342 + $0x8] sm:$0xff]
      %v1411 = vld [vmem:[%s342 + $0x10] sm:$0xf]
      %vm1412 = vmand %vm356, %vm361
      %v1413 = vsel %vm1412, 1, 0
      %v1414 = vlaneseq
      %v1415 = vshrl.u32 %v1414, 7
      %v1416 = vsub.s32 0, %v1415
      %v1417 = vrot.slane %v1413, %v1416
      %v1418 = vlaneseq
      %v1419 = vshrl.u32 %v1418, 7
      %v1420 = vsub.s32 1, %v1419
      %v1421 = vrot.slane %v1413, %v1420
      %v1422 = vlaneseq
      %v1423 = vshrl.u32 %v1422, 7
      %v1424 = vsub.s32 2, %v1423
      %v1425 = vrot.slane %v1413, %v1424
      %v1426 = vlaneseq
      %v1427 = vshrl.u32 %v1426, 7
      %v1428 = vsub.s32 3, %v1427
      %v1429 = vrot.slane %v1413, %v1428
      %vm1430 = vcmp.eq.s32.totalorder %v1417, 1
      %vm1431 = vcmp.eq.s32.totalorder %v1421, 1
      %vm1432 = vcmp.eq.s32.totalorder %v1425, 1
      %vm1433 = vcmp.eq.s32.totalorder %v1429, 1
      %v1437 = vcombine.high %v1409, %v1409
      %v1438 = vcombine.high %v1410, %v1410
      %1439 = vrot.lane.b32.xlu0 %v1409, 118
      %v1440 = vpop.permute.xlu0 %1439
      %1441 = vrot.lane.b32.xlu0 %v1437, 118
      %v1442 = vpop.permute.xlu0 %1441
      %1443 = vrot.lane.b32.xlu0 %v1410, 118
      %v1444 = vpop.permute.xlu0 %1443
      %1445 = vrot.lane.b32.xlu0 %v1438, 118
      %v1446 = vpop.permute.xlu0 %1445
      %1447 = vrot.lane.b32.xlu0 %v1411, 118
      %v1448 = vpop.permute.xlu0 %1447
      %vm1449 = vcmask 965632
      %v1450 = vsel %vm1449, %v1440, %v1442
      %v1451 = vsel %vm1449, %v1442, %v1444
      %v1452 = vsel %vm1449, %v1444, %v1446
      %v1453 = vsel %vm1449, %v1446, %v1448
      %v1458 = vsel %vm1430, %v1450, 0.0
      %v1459 = vsel %vm1431, %v1451, 0.0
      %v1460 = vsel %vm1432, %v1452, 0.0
      %v1461 = vsel %vm1433, %v1453, 0.0
      %s1462 = scalar_lea.vmem %s5, 20
      %v1463 = vld [vmem:[%s1462] sm:$0xf]
      %v1465 = vsel %vm446, %v1463, 0
      %v1468 = vsel %vm450, %v1458, 0
      %v1471 = vsel %vm450, %v1459, 0
      %v1474 = vsel %vm450, %v1460, 0
      %v1477 = vsel %vm450, %v1461, 0
      %1479 = vmatprep.subr.mxu0 0.0
      %1480 = vmatpush1.msra.mxu0 0.0
      %1481 = vmatprep.subr.mxu0 0.0
      %1482 = vmatpush1.msra.mxu0 0.0
      %1483 = vmatprep.subr.mxu0 0.0
      %1484 = vmatpush1.msra.mxu0 0.0
      %1485 = vmatprep.subr.mxu0 0.0
      %1486 = vmatpush1.msra.mxu0 0.0
      %1487 = vmatprep.subr.mxu0 0.0
      %1488 = vmatpush1.msra.mxu0 0.0
      %1489 = vmatprep.subr.mxu0 0.0
      %1490 = vmatpush1.msra.mxu0 0.0
      %1491 = vmatprep.subr.mxu0 0.0
      %1492 = vmatpush1.msra.mxu0 0.0
      %1493 = vmatprep.subr.mxu0 0.0
      %1494 = vmatpush1.msra.mxu0 0.0
      %1495 = vmatprep.subr.mxu0 0.0
      %1496 = vmatpush1.msra.mxu0 0.0
      %1497 = vmatprep.subr.mxu0 0.0
      %1498 = vmatpush1.msra.mxu0 0.0
      %1499 = vmatprep.subr.mxu0 0.0
      %1500 = vmatpush1.msra.mxu0 0.0
      %1501 = vmatprep.subr.mxu0 0.0
      %1502 = vmatpush1.msra.mxu0 0.0
      %1503 = vmatprep.subr.mxu0 0.0
      %1504 = vmatpush1.msra.mxu0 0.0
      %1505 = vmatprep.subr.mxu0 0.0
      %1506 = vmatpush1.msra.mxu0 0.0
      %1507 = vmatprep.subr.mxu0 0.0
      %1508 = vmatpush1.msra.mxu0 0.0
      %1509 = vmatprep.subr.mxu0 %v1471
      %1510 = vmatpush1.msra.mxu0 %v1468
      %1511 = vmatprep.subr.mxu0 0.0
      %1512 = vmatpush2.msra.mxu0 0.0
      %1513 = vmatprep.subr.mxu0 0.0
      %1514 = vmatpush2.msra.mxu0 0.0
      %1515 = vmatprep.subr.mxu0 0.0
      %1516 = vmatpush2.msra.mxu0 0.0
      %1517 = vmatprep.subr.mxu0 0.0
      %1518 = vmatpush2.msra.mxu0 0.0
      %1519 = vmatprep.subr.mxu0 0.0
      %1520 = vmatpush2.msra.mxu0 0.0
      %1521 = vmatprep.subr.mxu0 0.0
      %1522 = vmatpush2.msra.mxu0 0.0
      %1523 = vmatprep.subr.mxu0 0.0
      %1524 = vmatpush2.msra.mxu0 0.0
      %1525 = vmatprep.subr.mxu0 0.0
      %1526 = vmatpush2.msra.mxu0 0.0
      %1527 = vmatprep.subr.mxu0 0.0
      %1528 = vmatpush2.msra.mxu0 0.0
      %1529 = vmatprep.subr.mxu0 0.0
      %1530 = vmatpush2.msra.mxu0 0.0
      %1531 = vmatprep.subr.mxu0 0.0
      %1532 = vmatpush2.msra.mxu0 0.0
      %1533 = vmatprep.subr.mxu0 0.0
      %1534 = vmatpush2.msra.mxu0 0.0
      %1535 = vmatprep.subr.mxu0 0.0
      %1536 = vmatpush2.msra.mxu0 0.0
      %1537 = vmatprep.subr.mxu0 0.0
      %1538 = vmatpush2.msra.mxu0 0.0
      %1539 = vmatprep.subr.mxu0 0.0
      %1540 = vmatpush2.msra.mxu0 0.0
      %1541 = vmatprep.subr.mxu0 0.0
      %1542 = vmatpush2.msra.mxu0 0.0
      %1543 = vmatprep.mubr.f32.mxu0 0.0
      %1544 = vmatmul.mubr.f32.gmra.mxu0 %v1465
      %v1545 = vpop.f32.mrf.mxu0
      %v1546 = vadd.f32 0.0, %v1545
      %v1547 = vpop.f32.mrf.mxu0
      %v1548 = vadd.f32 0.0, %v1547
      %1549 = vdwg.mxu0
      %1550 = vmatprep.subr.mxu0 0.0
      %1551 = vmatpush1.msra.mxu0 0.0
      %1552 = vmatprep.subr.mxu0 0.0
      %1553 = vmatpush1.msra.mxu0 0.0
      %1554 = vmatprep.subr.mxu0 0.0
      %1555 = vmatpush1.msra.mxu0 0.0
      %1556 = vmatprep.subr.mxu0 0.0
      %1557 = vmatpush1.msra.mxu0 0.0
      %1558 = vmatprep.subr.mxu0 0.0
      %1559 = vmatpush1.msra.mxu0 0.0
      %1560 = vmatprep.subr.mxu0 0.0
      %1561 = vmatpush1.msra.mxu0 0.0
      %1562 = vmatprep.subr.mxu0 0.0
      %1563 = vmatpush1.msra.mxu0 0.0
      %1564 = vmatprep.subr.mxu0 0.0
      %1565 = vmatpush1.msra.mxu0 0.0
      %1566 = vmatprep.subr.mxu0 0.0
      %1567 = vmatpush1.msra.mxu0 0.0
      %1568 = vmatprep.subr.mxu0 0.0
      %1569 = vmatpush1.msra.mxu0 0.0
      %1570 = vmatprep.subr.mxu0 0.0
      %1571 = vmatpush1.msra.mxu0 0.0
      %1572 = vmatprep.subr.mxu0 0.0
      %1573 = vmatpush1.msra.mxu0 0.0
      %1574 = vmatprep.subr.mxu0 0.0
      %1575 = vmatpush1.msra.mxu0 0.0
      %1576 = vmatprep.subr.mxu0 0.0
      %1577 = vmatpush1.msra.mxu0 0.0
      %1578 = vmatprep.subr.mxu0 0.0
      %1579 = vmatpush1.msra.mxu0 0.0
      %1580 = vmatprep.subr.mxu0 %v1477
      %1581 = vmatpush1.msra.mxu0 %v1474
      %1582 = vmatprep.subr.mxu0 0.0
      %1583 = vmatpush2.msra.mxu0 0.0
      %1584 = vmatprep.subr.mxu0 0.0
      %1585 = vmatpush2.msra.mxu0 0.0
      %1586 = vmatprep.subr.mxu0 0.0
      %1587 = vmatpush2.msra.mxu0 0.0
      %1588 = vmatprep.subr.mxu0 0.0
      %1589 = vmatpush2.msra.mxu0 0.0
      %1590 = vmatprep.subr.mxu0 0.0
      %1591 = vmatpush2.msra.mxu0 0.0
      %1592 = vmatprep.subr.mxu0 0.0
      %1593 = vmatpush2.msra.mxu0 0.0
      %1594 = vmatprep.subr.mxu0 0.0
      %1595 = vmatpush2.msra.mxu0 0.0
      %1596 = vmatprep.subr.mxu0 0.0
      %1597 = vmatpush2.msra.mxu0 0.0
      %1598 = vmatprep.subr.mxu0 0.0
      %1599 = vmatpush2.msra.mxu0 0.0
      %1600 = vmatprep.subr.mxu0 0.0
      %1601 = vmatpush2.msra.mxu0 0.0
      %1602 = vmatprep.subr.mxu0 0.0
      %1603 = vmatpush2.msra.mxu0 0.0
      %1604 = vmatprep.subr.mxu0 0.0
      %1605 = vmatpush2.msra.mxu0 0.0
      %1606 = vmatprep.subr.mxu0 0.0
      %1607 = vmatpush2.msra.mxu0 0.0
      %1608 = vmatprep.subr.mxu0 0.0
      %1609 = vmatpush2.msra.mxu0 0.0
      %1610 = vmatprep.subr.mxu0 0.0
      %1611 = vmatpush2.msra.mxu0 0.0
      %1612 = vmatprep.subr.mxu0 0.0
      %1613 = vmatpush2.msra.mxu0 0.0
      %1614 = vmatprep.mubr.f32.mxu0 0.0
      %1615 = vmatmul.mubr.f32.gmra.mxu0 %v1465
      %v1616 = vpop.f32.mrf.mxu0
      %v1617 = vadd.f32 0.0, %v1616
      %v1618 = vpop.f32.mrf.mxu0
      %v1619 = vadd.f32 0.0, %v1618
      %1620 = vdwg.mxu0
      %v1621 = vadd.f32 %v1405, %v1546
      %v1622 = vadd.f32 %v1406, %v1548
      %v1623 = vadd.f32 %v1407, %v1617
      %v1624 = vadd.f32 %v1408, %v1619
      %v1625 = vld [vmem:[%s342] sm:$0xff]
      %v1626 = vld [vmem:[%s342 + $0x8] sm:$0xff]
      %v1627 = vld [vmem:[%s342 + $0x10] sm:$0xf]
      %vm1628 = vmand %vm356, %vm359
      %vm1629 = vmand %vm1628, %vm360
      %v1630 = vsel %vm1629, 1, 0
      %v1631 = vlaneseq
      %v1632 = vshrl.u32 %v1631, 7
      %v1633 = vsub.s32 0, %v1632
      %v1634 = vrot.slane %v1630, %v1633
      %v1635 = vlaneseq
      %v1636 = vshrl.u32 %v1635, 7
      %v1637 = vsub.s32 1, %v1636
      %v1638 = vrot.slane %v1630, %v1637
      %v1639 = vlaneseq
      %v1640 = vshrl.u32 %v1639, 7
      %v1641 = vsub.s32 2, %v1640
      %v1642 = vrot.slane %v1630, %v1641
      %v1643 = vlaneseq
      %v1644 = vshrl.u32 %v1643, 7
      %v1645 = vsub.s32 3, %v1644
      %v1646 = vrot.slane %v1630, %v1645
      %vm1647 = vcmp.eq.s32.totalorder %v1634, 1
      %vm1648 = vcmp.eq.s32.totalorder %v1638, 1
      %vm1649 = vcmp.eq.s32.totalorder %v1642, 1
      %vm1650 = vcmp.eq.s32.totalorder %v1646, 1
      %v1654 = vcombine.high %v1625, %v1625
      %v1655 = vcombine.high %v1626, %v1626
      %1656 = vrot.lane.b32.xlu0 %v1625, 112
      %v1657 = vpop.permute.xlu0 %1656
      %1658 = vrot.lane.b32.xlu0 %v1654, 112
      %v1659 = vpop.permute.xlu0 %1658
      %1660 = vrot.lane.b32.xlu0 %v1626, 112
      %v1661 = vpop.permute.xlu0 %1660
      %1662 = vrot.lane.b32.xlu0 %v1655, 112
      %v1663 = vpop.permute.xlu0 %1662
      %1664 = vrot.lane.b32.xlu0 %v1627, 112
      %v1665 = vpop.permute.xlu0 %1664
      %vm1666 = vcmask 916480
      %v1667 = vsel %vm1666, %v1657, %v1659
      %v1668 = vsel %vm1666, %v1659, %v1661
      %v1669 = vsel %vm1666, %v1661, %v1663
      %v1670 = vsel %vm1666, %v1663, %v1665
      %v1675 = vsel %vm1647, %v1667, 0.0
      %v1676 = vsel %vm1648, %v1668, 0.0
      %v1677 = vsel %vm1649, %v1669, 0.0
      %v1678 = vsel %vm1650, %v1670, 0.0
      %s1679 = scalar_lea.vmem %s5, 24
      %v1680 = vld [vmem:[%s1679] sm:$0xf]
      %v1682 = vsel %vm446, %v1680, 0
      %v1685 = vsel %vm450, %v1675, 0
      %v1688 = vsel %vm450, %v1676, 0
      %v1691 = vsel %vm450, %v1677, 0
      %v1694 = vsel %vm450, %v1678, 0
      %1696 = vmatprep.subr.mxu0 0.0
      %1697 = vmatpush1.msra.mxu0 0.0
      %1698 = vmatprep.subr.mxu0 0.0
      %1699 = vmatpush1.msra.mxu0 0.0
      %1700 = vmatprep.subr.mxu0 0.0
      %1701 = vmatpush1.msra.mxu0 0.0
      %1702 = vmatprep.subr.mxu0 0.0
      %1703 = vmatpush1.msra.mxu0 0.0
      %1704 = vmatprep.subr.mxu0 0.0
      %1705 = vmatpush1.msra.mxu0 0.0
      %1706 = vmatprep.subr.mxu0 0.0
      %1707 = vmatpush1.msra.mxu0 0.0
      %1708 = vmatprep.subr.mxu0 0.0
      %1709 = vmatpush1.msra.mxu0 0.0
      %1710 = vmatprep.subr.mxu0 0.0
      %1711 = vmatpush1.msra.mxu0 0.0
      %1712 = vmatprep.subr.mxu0 0.0
      %1713 = vmatpush1.msra.mxu0 0.0
      %1714 = vmatprep.subr.mxu0 0.0
      %1715 = vmatpush1.msra.mxu0 0.0
      %1716 = vmatprep.subr.mxu0 0.0
      %1717 = vmatpush1.msra.mxu0 0.0
      %1718 = vmatprep.subr.mxu0 0.0
      %1719 = vmatpush1.msra.mxu0 0.0
      %1720 = vmatprep.subr.mxu0 0.0
      %1721 = vmatpush1.msra.mxu0 0.0
      %1722 = vmatprep.subr.mxu0 0.0
      %1723 = vmatpush1.msra.mxu0 0.0
      %1724 = vmatprep.subr.mxu0 0.0
      %1725 = vmatpush1.msra.mxu0 0.0
      %1726 = vmatprep.subr.mxu0 %v1688
      %1727 = vmatpush1.msra.mxu0 %v1685
      %1728 = vmatprep.subr.mxu0 0.0
      %1729 = vmatpush2.msra.mxu0 0.0
      %1730 = vmatprep.subr.mxu0 0.0
      %1731 = vmatpush2.msra.mxu0 0.0
      %1732 = vmatprep.subr.mxu0 0.0
      %1733 = vmatpush2.msra.mxu0 0.0
      %1734 = vmatprep.subr.mxu0 0.0
      %1735 = vmatpush2.msra.mxu0 0.0
      %1736 = vmatprep.subr.mxu0 0.0
      %1737 = vmatpush2.msra.mxu0 0.0
      %1738 = vmatprep.subr.mxu0 0.0
      %1739 = vmatpush2.msra.mxu0 0.0
      %1740 = vmatprep.subr.mxu0 0.0
      %1741 = vmatpush2.msra.mxu0 0.0
      %1742 = vmatprep.subr.mxu0 0.0
      %1743 = vmatpush2.msra.mxu0 0.0
      %1744 = vmatprep.subr.mxu0 0.0
      %1745 = vmatpush2.msra.mxu0 0.0
      %1746 = vmatprep.subr.mxu0 0.0
      %1747 = vmatpush2.msra.mxu0 0.0
      %1748 = vmatprep.subr.mxu0 0.0
      %1749 = vmatpush2.msra.mxu0 0.0
      %1750 = vmatprep.subr.mxu0 0.0
      %1751 = vmatpush2.msra.mxu0 0.0
      %1752 = vmatprep.subr.mxu0 0.0
      %1753 = vmatpush2.msra.mxu0 0.0
      %1754 = vmatprep.subr.mxu0 0.0
      %1755 = vmatpush2.msra.mxu0 0.0
      %1756 = vmatprep.subr.mxu0 0.0
      %1757 = vmatpush2.msra.mxu0 0.0
      %1758 = vmatprep.subr.mxu0 0.0
      %1759 = vmatpush2.msra.mxu0 0.0
      %1760 = vmatprep.mubr.f32.mxu0 0.0
      %1761 = vmatmul.mubr.f32.gmra.mxu0 %v1682
      %v1762 = vpop.f32.mrf.mxu0
      %v1763 = vadd.f32 0.0, %v1762
      %v1764 = vpop.f32.mrf.mxu0
      %v1765 = vadd.f32 0.0, %v1764
      %1766 = vdwg.mxu0
      %1767 = vmatprep.subr.mxu0 0.0
      %1768 = vmatpush1.msra.mxu0 0.0
      %1769 = vmatprep.subr.mxu0 0.0
      %1770 = vmatpush1.msra.mxu0 0.0
      %1771 = vmatprep.subr.mxu0 0.0
      %1772 = vmatpush1.msra.mxu0 0.0
      %1773 = vmatprep.subr.mxu0 0.0
      %1774 = vmatpush1.msra.mxu0 0.0
      %1775 = vmatprep.subr.mxu0 0.0
      %1776 = vmatpush1.msra.mxu0 0.0
      %1777 = vmatprep.subr.mxu0 0.0
      %1778 = vmatpush1.msra.mxu0 0.0
      %1779 = vmatprep.subr.mxu0 0.0
      %1780 = vmatpush1.msra.mxu0 0.0
      %1781 = vmatprep.subr.mxu0 0.0
      %1782 = vmatpush1.msra.mxu0 0.0
      %1783 = vmatprep.subr.mxu0 0.0
      %1784 = vmatpush1.msra.mxu0 0.0
      %1785 = vmatprep.subr.mxu0 0.0
      %1786 = vmatpush1.msra.mxu0 0.0
      %1787 = vmatprep.subr.mxu0 0.0
      %1788 = vmatpush1.msra.mxu0 0.0
      %1789 = vmatprep.subr.mxu0 0.0
      %1790 = vmatpush1.msra.mxu0 0.0
      %1791 = vmatprep.subr.mxu0 0.0
      %1792 = vmatpush1.msra.mxu0 0.0
      %1793 = vmatprep.subr.mxu0 0.0
      %1794 = vmatpush1.msra.mxu0 0.0
      %1795 = vmatprep.subr.mxu0 0.0
      %1796 = vmatpush1.msra.mxu0 0.0
      %1797 = vmatprep.subr.mxu0 %v1694
      %1798 = vmatpush1.msra.mxu0 %v1691
      %1799 = vmatprep.subr.mxu0 0.0
      %1800 = vmatpush2.msra.mxu0 0.0
      %1801 = vmatprep.subr.mxu0 0.0
      %1802 = vmatpush2.msra.mxu0 0.0
      %1803 = vmatprep.subr.mxu0 0.0
      %1804 = vmatpush2.msra.mxu0 0.0
      %1805 = vmatprep.subr.mxu0 0.0
      %1806 = vmatpush2.msra.mxu0 0.0
      %1807 = vmatprep.subr.mxu0 0.0
      %1808 = vmatpush2.msra.mxu0 0.0
      %1809 = vmatprep.subr.mxu0 0.0
      %1810 = vmatpush2.msra.mxu0 0.0
      %1811 = vmatprep.subr.mxu0 0.0
      %1812 = vmatpush2.msra.mxu0 0.0
      %1813 = vmatprep.subr.mxu0 0.0
      %1814 = vmatpush2.msra.mxu0 0.0
      %1815 = vmatprep.subr.mxu0 0.0
      %1816 = vmatpush2.msra.mxu0 0.0
      %1817 = vmatprep.subr.mxu0 0.0
      %1818 = vmatpush2.msra.mxu0 0.0
      %1819 = vmatprep.subr.mxu0 0.0
      %1820 = vmatpush2.msra.mxu0 0.0
      %1821 = vmatprep.subr.mxu0 0.0
      %1822 = vmatpush2.msra.mxu0 0.0
      %1823 = vmatprep.subr.mxu0 0.0
      %1824 = vmatpush2.msra.mxu0 0.0
      %1825 = vmatprep.subr.mxu0 0.0
      %1826 = vmatpush2.msra.mxu0 0.0
      %1827 = vmatprep.subr.mxu0 0.0
      %1828 = vmatpush2.msra.mxu0 0.0
      %1829 = vmatprep.subr.mxu0 0.0
      %1830 = vmatpush2.msra.mxu0 0.0
      %1831 = vmatprep.mubr.f32.mxu0 0.0
      %1832 = vmatmul.mubr.f32.gmra.mxu0 %v1682
      %v1833 = vpop.f32.mrf.mxu0
      %v1834 = vadd.f32 0.0, %v1833
      %v1835 = vpop.f32.mrf.mxu0
      %v1836 = vadd.f32 0.0, %v1835
      %1837 = vdwg.mxu0
      %v1838 = vadd.f32 %v1621, %v1763
      %v1839 = vadd.f32 %v1622, %v1765
      %v1840 = vadd.f32 %v1623, %v1834
      %v1841 = vadd.f32 %v1624, %v1836
      %v1842 = vld [vmem:[%s342] sm:$0xff]
      %v1843 = vld [vmem:[%s342 + $0x8] sm:$0xff]
      %v1844 = vld [vmem:[%s342 + $0x10] sm:$0xf]
      %v1845 = vsel %vm1628, 1, 0
      %v1846 = vlaneseq
      %v1847 = vshrl.u32 %v1846, 7
      %v1848 = vsub.s32 0, %v1847
      %v1849 = vrot.slane %v1845, %v1848
      %v1850 = vlaneseq
      %v1851 = vshrl.u32 %v1850, 7
      %v1852 = vsub.s32 1, %v1851
      %v1853 = vrot.slane %v1845, %v1852
      %v1854 = vlaneseq
      %v1855 = vshrl.u32 %v1854, 7
      %v1856 = vsub.s32 2, %v1855
      %v1857 = vrot.slane %v1845, %v1856
      %v1858 = vlaneseq
      %v1859 = vshrl.u32 %v1858, 7
      %v1860 = vsub.s32 3, %v1859
      %v1861 = vrot.slane %v1845, %v1860
      %vm1862 = vcmp.eq.s32.totalorder %v1849, 1
      %vm1863 = vcmp.eq.s32.totalorder %v1853, 1
      %vm1864 = vcmp.eq.s32.totalorder %v1857, 1
      %vm1865 = vcmp.eq.s32.totalorder %v1861, 1
      %v1869 = vcombine.high %v1842, %v1842
      %v1870 = vcombine.high %v1843, %v1843
      %1871 = vrot.lane.b32.xlu0 %v1842, 111
      %v1872 = vpop.permute.xlu0 %1871
      %1873 = vrot.lane.b32.xlu0 %v1869, 111
      %v1874 = vpop.permute.xlu0 %1873
      %1875 = vrot.lane.b32.xlu0 %v1843, 111
      %v1876 = vpop.permute.xlu0 %1875
      %1877 = vrot.lane.b32.xlu0 %v1870, 111
      %v1878 = vpop.permute.xlu0 %1877
      %1879 = vrot.lane.b32.xlu0 %v1844, 111
      %v1880 = vpop.permute.xlu0 %1879
      %vm1881 = vcmask 908288
      %v1882 = vsel %vm1881, %v1872, %v1874
      %v1883 = vsel %vm1881, %v1874, %v1876
      %v1884 = vsel %vm1881, %v1876, %v1878
      %v1885 = vsel %vm1881, %v1878, %v1880
      %v1890 = vsel %vm1862, %v1882, 0.0
      %v1891 = vsel %vm1863, %v1883, 0.0
      %v1892 = vsel %vm1864, %v1884, 0.0
      %v1893 = vsel %vm1865, %v1885, 0.0
      %s1894 = scalar_lea.vmem %s5, 28
      %v1895 = vld [vmem:[%s1894] sm:$0xf]
      %v1897 = vsel %vm446, %v1895, 0
      %v1900 = vsel %vm450, %v1890, 0
      %v1903 = vsel %vm450, %v1891, 0
      %v1906 = vsel %vm450, %v1892, 0
      %v1909 = vsel %vm450, %v1893, 0
      %1911 = vmatprep.subr.mxu0 0.0
      %1912 = vmatpush1.msra.mxu0 0.0
      %1913 = vmatprep.subr.mxu0 0.0
      %1914 = vmatpush1.msra.mxu0 0.0
      %1915 = vmatprep.subr.mxu0 0.0
      %1916 = vmatpush1.msra.mxu0 0.0
      %1917 = vmatprep.subr.mxu0 0.0
      %1918 = vmatpush1.msra.mxu0 0.0
      %1919 = vmatprep.subr.mxu0 0.0
      %1920 = vmatpush1.msra.mxu0 0.0
      %1921 = vmatprep.subr.mxu0 0.0
      %1922 = vmatpush1.msra.mxu0 0.0
      %1923 = vmatprep.subr.mxu0 0.0
      %1924 = vmatpush1.msra.mxu0 0.0
      %1925 = vmatprep.subr.mxu0 0.0
      %1926 = vmatpush1.msra.mxu0 0.0
      %1927 = vmatprep.subr.mxu0 0.0
      %1928 = vmatpush1.msra.mxu0 0.0
      %1929 = vmatprep.subr.mxu0 0.0
      %1930 = vmatpush1.msra.mxu0 0.0
      %1931 = vmatprep.subr.mxu0 0.0
      %1932 = vmatpush1.msra.mxu0 0.0
      %1933 = vmatprep.subr.mxu0 0.0
      %1934 = vmatpush1.msra.mxu0 0.0
      %1935 = vmatprep.subr.mxu0 0.0
      %1936 = vmatpush1.msra.mxu0 0.0
      %1937 = vmatprep.subr.mxu0 0.0
      %1938 = vmatpush1.msra.mxu0 0.0
      %1939 = vmatprep.subr.mxu0 0.0
      %1940 = vmatpush1.msra.mxu0 0.0
      %1941 = vmatprep.subr.mxu0 %v1903
      %1942 = vmatpush1.msra.mxu0 %v1900
      %1943 = vmatprep.subr.mxu0 0.0
      %1944 = vmatpush2.msra.mxu0 0.0
      %1945 = vmatprep.subr.mxu0 0.0
      %1946 = vmatpush2.msra.mxu0 0.0
      %1947 = vmatprep.subr.mxu0 0.0
      %1948 = vmatpush2.msra.mxu0 0.0
      %1949 = vmatprep.subr.mxu0 0.0
      %1950 = vmatpush2.msra.mxu0 0.0
      %1951 = vmatprep.subr.mxu0 0.0
      %1952 = vmatpush2.msra.mxu0 0.0
      %1953 = vmatprep.subr.mxu0 0.0
      %1954 = vmatpush2.msra.mxu0 0.0
      %1955 = vmatprep.subr.mxu0 0.0
      %1956 = vmatpush2.msra.mxu0 0.0
      %1957 = vmatprep.subr.mxu0 0.0
      %1958 = vmatpush2.msra.mxu0 0.0
      %1959 = vmatprep.subr.mxu0 0.0
      %1960 = vmatpush2.msra.mxu0 0.0
      %1961 = vmatprep.subr.mxu0 0.0
      %1962 = vmatpush2.msra.mxu0 0.0
      %1963 = vmatprep.subr.mxu0 0.0
      %1964 = vmatpush2.msra.mxu0 0.0
      %1965 = vmatprep.subr.mxu0 0.0
      %1966 = vmatpush2.msra.mxu0 0.0
      %1967 = vmatprep.subr.mxu0 0.0
      %1968 = vmatpush2.msra.mxu0 0.0
      %1969 = vmatprep.subr.mxu0 0.0
      %1970 = vmatpush2.msra.mxu0 0.0
      %1971 = vmatprep.subr.mxu0 0.0
      %1972 = vmatpush2.msra.mxu0 0.0
      %1973 = vmatprep.subr.mxu0 0.0
      %1974 = vmatpush2.msra.mxu0 0.0
      %1975 = vmatprep.mubr.f32.mxu0 0.0
      %1976 = vmatmul.mubr.f32.gmra.mxu0 %v1897
      %v1977 = vpop.f32.mrf.mxu0
      %v1978 = vadd.f32 0.0, %v1977
      %v1979 = vpop.f32.mrf.mxu0
      %v1980 = vadd.f32 0.0, %v1979
      %1981 = vdwg.mxu0
      %1982 = vmatprep.subr.mxu0 0.0
      %1983 = vmatpush1.msra.mxu0 0.0
      %1984 = vmatprep.subr.mxu0 0.0
      %1985 = vmatpush1.msra.mxu0 0.0
      %1986 = vmatprep.subr.mxu0 0.0
      %1987 = vmatpush1.msra.mxu0 0.0
      %1988 = vmatprep.subr.mxu0 0.0
      %1989 = vmatpush1.msra.mxu0 0.0
      %1990 = vmatprep.subr.mxu0 0.0
      %1991 = vmatpush1.msra.mxu0 0.0
      %1992 = vmatprep.subr.mxu0 0.0
      %1993 = vmatpush1.msra.mxu0 0.0
      %1994 = vmatprep.subr.mxu0 0.0
      %1995 = vmatpush1.msra.mxu0 0.0
      %1996 = vmatprep.subr.mxu0 0.0
      %1997 = vmatpush1.msra.mxu0 0.0
      %1998 = vmatprep.subr.mxu0 0.0
      %1999 = vmatpush1.msra.mxu0 0.0
      %2000 = vmatprep.subr.mxu0 0.0
      %2001 = vmatpush1.msra.mxu0 0.0
      %2002 = vmatprep.subr.mxu0 0.0
      %2003 = vmatpush1.msra.mxu0 0.0
      %2004 = vmatprep.subr.mxu0 0.0
      %2005 = vmatpush1.msra.mxu0 0.0
      %2006 = vmatprep.subr.mxu0 0.0
      %2007 = vmatpush1.msra.mxu0 0.0
      %2008 = vmatprep.subr.mxu0 0.0
      %2009 = vmatpush1.msra.mxu0 0.0
      %2010 = vmatprep.subr.mxu0 0.0
      %2011 = vmatpush1.msra.mxu0 0.0
      %2012 = vmatprep.subr.mxu0 %v1909
      %2013 = vmatpush1.msra.mxu0 %v1906
      %2014 = vmatprep.subr.mxu0 0.0
      %2015 = vmatpush2.msra.mxu0 0.0
      %2016 = vmatprep.subr.mxu0 0.0
      %2017 = vmatpush2.msra.mxu0 0.0
      %2018 = vmatprep.subr.mxu0 0.0
      %2019 = vmatpush2.msra.mxu0 0.0
      %2020 = vmatprep.subr.mxu0 0.0
      %2021 = vmatpush2.msra.mxu0 0.0
      %2022 = vmatprep.subr.mxu0 0.0
      %2023 = vmatpush2.msra.mxu0 0.0
      %2024 = vmatprep.subr.mxu0 0.0
      %2025 = vmatpush2.msra.mxu0 0.0
      %2026 = vmatprep.subr.mxu0 0.0
      %2027 = vmatpush2.msra.mxu0 0.0
      %2028 = vmatprep.subr.mxu0 0.0
      %2029 = vmatpush2.msra.mxu0 0.0
      %2030 = vmatprep.subr.mxu0 0.0
      %2031 = vmatpush2.msra.mxu0 0.0
      %2032 = vmatprep.subr.mxu0 0.0
      %2033 = vmatpush2.msra.mxu0 0.0
      %2034 = vmatprep.subr.mxu0 0.0
      %2035 = vmatpush2.msra.mxu0 0.0
      %2036 = vmatprep.subr.mxu0 0.0
      %2037 = vmatpush2.msra.mxu0 0.0
      %2038 = vmatprep.subr.mxu0 0.0
      %2039 = vmatpush2.msra.mxu0 0.0
      %2040 = vmatprep.subr.mxu0 0.0
      %2041 = vmatpush2.msra.mxu0 0.0
      %2042 = vmatprep.subr.mxu0 0.0
      %2043 = vmatpush2.msra.mxu0 0.0
      %2044 = vmatprep.subr.mxu0 0.0
      %2045 = vmatpush2.msra.mxu0 0.0
      %2046 = vmatprep.mubr.f32.mxu0 0.0
      %2047 = vmatmul.mubr.f32.gmra.mxu0 %v1897
      %v2048 = vpop.f32.mrf.mxu0
      %v2049 = vadd.f32 0.0, %v2048
      %v2050 = vpop.f32.mrf.mxu0
      %v2051 = vadd.f32 0.0, %v2050
      %2052 = vdwg.mxu0
      %v2053 = vadd.f32 %v1838, %v1978
      %v2054 = vadd.f32 %v1839, %v1980
      %v2055 = vadd.f32 %v1840, %v2049
      %v2056 = vadd.f32 %v1841, %v2051
      %v2057 = vld [vmem:[%s342] sm:$0xff]
      %v2058 = vld [vmem:[%s342 + $0x8] sm:$0xff]
      %v2059 = vld [vmem:[%s342 + $0x10] sm:$0xf]
      %vm2060 = vmand %vm1628, %vm361
      %v2061 = vsel %vm2060, 1, 0
      %v2062 = vlaneseq
      %v2063 = vshrl.u32 %v2062, 7
      %v2064 = vsub.s32 0, %v2063
      %v2065 = vrot.slane %v2061, %v2064
      %v2066 = vlaneseq
      %v2067 = vshrl.u32 %v2066, 7
      %v2068 = vsub.s32 1, %v2067
      %v2069 = vrot.slane %v2061, %v2068
      %v2070 = vlaneseq
      %v2071 = vshrl.u32 %v2070, 7
      %v2072 = vsub.s32 2, %v2071
      %v2073 = vrot.slane %v2061, %v2072
      %v2074 = vlaneseq
      %v2075 = vshrl.u32 %v2074, 7
      %v2076 = vsub.s32 3, %v2075
      %v2077 = vrot.slane %v2061, %v2076
      %vm2078 = vcmp.eq.s32.totalorder %v2065, 1
      %vm2079 = vcmp.eq.s32.totalorder %v2069, 1
      %vm2080 = vcmp.eq.s32.totalorder %v2073, 1
      %vm2081 = vcmp.eq.s32.totalorder %v2077, 1
      %v2085 = vcombine.high %v2057, %v2057
      %v2086 = vcombine.high %v2058, %v2058
      %2087 = vrot.lane.b32.xlu0 %v2057, 110
      %v2088 = vpop.permute.xlu0 %2087
      %2089 = vrot.lane.b32.xlu0 %v2085, 110
      %v2090 = vpop.permute.xlu0 %2089
      %2091 = vrot.lane.b32.xlu0 %v2058, 110
      %v2092 = vpop.permute.xlu0 %2091
      %2093 = vrot.lane.b32.xlu0 %v2086, 110
      %v2094 = vpop.permute.xlu0 %2093
      %2095 = vrot.lane.b32.xlu0 %v2059, 110
      %v2096 = vpop.permute.xlu0 %2095
      %vm2097 = vcmask 900096
      %v2098 = vsel %vm2097, %v2088, %v2090
      %v2099 = vsel %vm2097, %v2090, %v2092
      %v2100 = vsel %vm2097, %v2092, %v2094
      %v2101 = vsel %vm2097, %v2094, %v2096
      %v2106 = vsel %vm2078, %v2098, 0.0
      %v2107 = vsel %vm2079, %v2099, 0.0
      %v2108 = vsel %vm2080, %v2100, 0.0
      %v2109 = vsel %vm2081, %v2101, 0.0
      %s2110 = scalar_lea.vmem %s5, 32
      %v2111 = vld [vmem:[%s2110] sm:$0xf]
      %v2113 = vsel %vm446, %v2111, 0
      %v2116 = vsel %vm450, %v2106, 0
      %v2119 = vsel %vm450, %v2107, 0
      %v2122 = vsel %vm450, %v2108, 0
      %v2125 = vsel %vm450, %v2109, 0
      %2127 = vmatprep.subr.mxu0 0.0
      %2128 = vmatpush1.msra.mxu0 0.0
      %2129 = vmatprep.subr.mxu0 0.0
      %2130 = vmatpush1.msra.mxu0 0.0
      %2131 = vmatprep.subr.mxu0 0.0
      %2132 = vmatpush1.msra.mxu0 0.0
      %2133 = vmatprep.subr.mxu0 0.0
      %2134 = vmatpush1.msra.mxu0 0.0
      %2135 = vmatprep.subr.mxu0 0.0
      %2136 = vmatpush1.msra.mxu0 0.0
      %2137 = vmatprep.subr.mxu0 0.0
      %2138 = vmatpush1.msra.mxu0 0.0
      %2139 = vmatprep.subr.mxu0 0.0
      %2140 = vmatpush1.msra.mxu0 0.0
      %2141 = vmatprep.subr.mxu0 0.0
      %2142 = vmatpush1.msra.mxu0 0.0
      %2143 = vmatprep.subr.mxu0 0.0
      %2144 = vmatpush1.msra.mxu0 0.0
      %2145 = vmatprep.subr.mxu0 0.0
      %2146 = vmatpush1.msra.mxu0 0.0
      %2147 = vmatprep.subr.mxu0 0.0
      %2148 = vmatpush1.msra.mxu0 0.0
      %2149 = vmatprep.subr.mxu0 0.0
      %2150 = vmatpush1.msra.mxu0 0.0
      %2151 = vmatprep.subr.mxu0 0.0
      %2152 = vmatpush1.msra.mxu0 0.0
      %2153 = vmatprep.subr.mxu0 0.0
      %2154 = vmatpush1.msra.mxu0 0.0
      %2155 = vmatprep.subr.mxu0 0.0
      %2156 = vmatpush1.msra.mxu0 0.0
      %2157 = vmatprep.subr.mxu0 %v2119
      %2158 = vmatpush1.msra.mxu0 %v2116
      %2159 = vmatprep.subr.mxu0 0.0
      %2160 = vmatpush2.msra.mxu0 0.0
      %2161 = vmatprep.subr.mxu0 0.0
      %2162 = vmatpush2.msra.mxu0 0.0
      %2163 = vmatprep.subr.mxu0 0.0
      %2164 = vmatpush2.msra.mxu0 0.0
      %2165 = vmatprep.subr.mxu0 0.0
      %2166 = vmatpush2.msra.mxu0 0.0
      %2167 = vmatprep.subr.mxu0 0.0
      %2168 = vmatpush2.msra.mxu0 0.0
      %2169 = vmatprep.subr.mxu0 0.0
      %2170 = vmatpush2.msra.mxu0 0.0
      %2171 = vmatprep.subr.mxu0 0.0
      %2172 = vmatpush2.msra.mxu0 0.0
      %2173 = vmatprep.subr.mxu0 0.0
      %2174 = vmatpush2.msra.mxu0 0.0
      %2175 = vmatprep.subr.mxu0 0.0
      %2176 = vmatpush2.msra.mxu0 0.0
      %2177 = vmatprep.subr.mxu0 0.0
      %2178 = vmatpush2.msra.mxu0 0.0
      %2179 = vmatprep.subr.mxu0 0.0
      %2180 = vmatpush2.msra.mxu0 0.0
      %2181 = vmatprep.subr.mxu0 0.0
      %2182 = vmatpush2.msra.mxu0 0.0
      %2183 = vmatprep.subr.mxu0 0.0
      %2184 = vmatpush2.msra.mxu0 0.0
      %2185 = vmatprep.subr.mxu0 0.0
      %2186 = vmatpush2.msra.mxu0 0.0
      %2187 = vmatprep.subr.mxu0 0.0
      %2188 = vmatpush2.msra.mxu0 0.0
      %2189 = vmatprep.subr.mxu0 0.0
      %2190 = vmatpush2.msra.mxu0 0.0
      %2191 = vmatprep.mubr.f32.mxu0 0.0
      %2192 = vmatmul.mubr.f32.gmra.mxu0 %v2113
      %v2193 = vpop.f32.mrf.mxu0
      %v2194 = vadd.f32 0.0, %v2193
      %v2195 = vpop.f32.mrf.mxu0
      %v2196 = vadd.f32 0.0, %v2195
      %2197 = vdwg.mxu0
      %2198 = vmatprep.subr.mxu0 0.0
      %2199 = vmatpush1.msra.mxu0 0.0
      %2200 = vmatprep.subr.mxu0 0.0
      %2201 = vmatpush1.msra.mxu0 0.0
      %2202 = vmatprep.subr.mxu0 0.0
      %2203 = vmatpush1.msra.mxu0 0.0
      %2204 = vmatprep.subr.mxu0 0.0
      %2205 = vmatpush1.msra.mxu0 0.0
      %2206 = vmatprep.subr.mxu0 0.0
      %2207 = vmatpush1.msra.mxu0 0.0
      %2208 = vmatprep.subr.mxu0 0.0
      %2209 = vmatpush1.msra.mxu0 0.0
      %2210 = vmatprep.subr.mxu0 0.0
      %2211 = vmatpush1.msra.mxu0 0.0
      %2212 = vmatprep.subr.mxu0 0.0
      %2213 = vmatpush1.msra.mxu0 0.0
      %2214 = vmatprep.subr.mxu0 0.0
      %2215 = vmatpush1.msra.mxu0 0.0
      %2216 = vmatprep.subr.mxu0 0.0
      %2217 = vmatpush1.msra.mxu0 0.0
      %2218 = vmatprep.subr.mxu0 0.0
      %2219 = vmatpush1.msra.mxu0 0.0
      %2220 = vmatprep.subr.mxu0 0.0
      %2221 = vmatpush1.msra.mxu0 0.0
      %2222 = vmatprep.subr.mxu0 0.0
      %2223 = vmatpush1.msra.mxu0 0.0
      %2224 = vmatprep.subr.mxu0 0.0
      %2225 = vmatpush1.msra.mxu0 0.0
      %2226 = vmatprep.subr.mxu0 0.0
      %2227 = vmatpush1.msra.mxu0 0.0
      %2228 = vmatprep.subr.mxu0 %v2125
      %2229 = vmatpush1.msra.mxu0 %v2122
      %2230 = vmatprep.subr.mxu0 0.0
      %2231 = vmatpush2.msra.mxu0 0.0
      %2232 = vmatprep.subr.mxu0 0.0
      %2233 = vmatpush2.msra.mxu0 0.0
      %2234 = vmatprep.subr.mxu0 0.0
      %2235 = vmatpush2.msra.mxu0 0.0
      %2236 = vmatprep.subr.mxu0 0.0
      %2237 = vmatpush2.msra.mxu0 0.0
      %2238 = vmatprep.subr.mxu0 0.0
      %2239 = vmatpush2.msra.mxu0 0.0
      %2240 = vmatprep.subr.mxu0 0.0
      %2241 = vmatpush2.msra.mxu0 0.0
      %2242 = vmatprep.subr.mxu0 0.0
      %2243 = vmatpush2.msra.mxu0 0.0
      %2244 = vmatprep.subr.mxu0 0.0
      %2245 = vmatpush2.msra.mxu0 0.0
      %2246 = vmatprep.subr.mxu0 0.0
      %2247 = vmatpush2.msra.mxu0 0.0
      %2248 = vmatprep.subr.mxu0 0.0
      %2249 = vmatpush2.msra.mxu0 0.0
      %2250 = vmatprep.subr.mxu0 0.0
      %2251 = vmatpush2.msra.mxu0 0.0
      %2252 = vmatprep.subr.mxu0 0.0
      %2253 = vmatpush2.msra.mxu0 0.0
      %2254 = vmatprep.subr.mxu0 0.0
      %2255 = vmatpush2.msra.mxu0 0.0
      %2256 = vmatprep.subr.mxu0 0.0
      %2257 = vmatpush2.msra.mxu0 0.0
      %2258 = vmatprep.subr.mxu0 0.0
      %2259 = vmatpush2.msra.mxu0 0.0
      %2260 = vmatprep.subr.mxu0 0.0
      %2261 = vmatpush2.msra.mxu0 0.0
      %2262 = vmatprep.mubr.f32.mxu0 0.0
      %2263 = vmatmul.mubr.f32.gmra.mxu0 %v2113
      %v2264 = vpop.f32.mrf.mxu0
      %v2265 = vadd.f32 0.0, %v2264
      %v2266 = vpop.f32.mrf.mxu0
      %v2267 = vadd.f32 0.0, %v2266
      %2268 = vdwg.mxu0
      %v2269 = vadd.f32 %v2053, %v2194
      %v2270 = vadd.f32 %v2054, %v2196
      %v2271 = vadd.f32 %v2055, %v2265
      %v2272 = vadd.f32 %v2056, %v2267
      %v2273 = vld [vmem:[%s342] sm:$0xff]
      %v2274 = vld [vmem:[%s342 + $0x8] sm:$0xff]
      %v2275 = vld [vmem:[%s342 + $0x10] sm:$0xf]
      %vm2276 = vmand %vm358, %vm360
      %v2277 = vsel %vm2276, 1, 0
      %v2278 = vlaneseq
      %v2279 = vshrl.u32 %v2278, 7
      %v2280 = vsub.s32 0, %v2279
      %v2281 = vrot.slane %v2277, %v2280
      %v2282 = vlaneseq
      %v2283 = vshrl.u32 %v2282, 7
      %v2284 = vsub.s32 1, %v2283
      %v2285 = vrot.slane %v2277, %v2284
      %v2286 = vlaneseq
      %v2287 = vshrl.u32 %v2286, 7
      %v2288 = vsub.s32 2, %v2287
      %v2289 = vrot.slane %v2277, %v2288
      %v2290 = vlaneseq
      %v2291 = vshrl.u32 %v2290, 7
      %v2292 = vsub.s32 3, %v2291
      %v2293 = vrot.slane %v2277, %v2292
      %vm2294 = vcmp.eq.s32.totalorder %v2281, 1
      %vm2295 = vcmp.eq.s32.totalorder %v2285, 1
      %vm2296 = vcmp.eq.s32.totalorder %v2289, 1
      %vm2297 = vcmp.eq.s32.totalorder %v2293, 1
      %v2301 = vcombine.high %v2273, %v2273
      %v2302 = vcombine.high %v2274, %v2274
      %2303 = vrot.lane.b32.xlu0 %v2273, 64
      %v2304 = vpop.permute.xlu0 %2303
      %2305 = vrot.lane.b32.xlu0 %v2301, 64
      %v2306 = vpop.permute.xlu0 %2305
      %2307 = vrot.lane.b32.xlu0 %v2274, 64
      %v2308 = vpop.permute.xlu0 %2307
      %2309 = vrot.lane.b32.xlu0 %v2302, 64
      %v2310 = vpop.permute.xlu0 %2309
      %2311 = vrot.lane.b32.xlu0 %v2275, 64
      %v2312 = vpop.permute.xlu0 %2311
      %vm2313 = vcmask 523264
      %v2314 = vsel %vm2313, %v2304, %v2306
      %v2315 = vsel %vm2313, %v2306, %v2308
      %v2316 = vsel %vm2313, %v2308, %v2310
      %v2317 = vsel %vm2313, %v2310, %v2312
      %v2322 = vsel %vm2294, %v2314, 0.0
      %v2323 = vsel %vm2295, %v2315, 0.0
      %v2324 = vsel %vm2296, %v2316, 0.0
      %v2325 = vsel %vm2297, %v2317, 0.0
      %s2326 = scalar_lea.vmem %s5, 36
      %v2327 = vld [vmem:[%s2326] sm:$0xf]
      %v2329 = vsel %vm446, %v2327, 0
      %v2332 = vsel %vm450, %v2322, 0
      %v2335 = vsel %vm450, %v2323, 0
      %v2338 = vsel %vm450, %v2324, 0
      %v2341 = vsel %vm450, %v2325, 0
      %2343 = vmatprep.subr.mxu0 0.0
      %2344 = vmatpush1.msra.mxu0 0.0
      %2345 = vmatprep.subr.mxu0 0.0
      %2346 = vmatpush1.msra.mxu0 0.0
      %2347 = vmatprep.subr.mxu0 0.0
      %2348 = vmatpush1.msra.mxu0 0.0
      %2349 = vmatprep.subr.mxu0 0.0
      %2350 = vmatpush1.msra.mxu0 0.0
      %2351 = vmatprep.subr.mxu0 0.0
      %2352 = vmatpush1.msra.mxu0 0.0
      %2353 = vmatprep.subr.mxu0 0.0
      %2354 = vmatpush1.msra.mxu0 0.0
      %2355 = vmatprep.subr.mxu0 0.0
      %2356 = vmatpush1.msra.mxu0 0.0
      %2357 = vmatprep.subr.mxu0 0.0
      %2358 = vmatpush1.msra.mxu0 0.0
      %2359 = vmatprep.subr.mxu0 0.0
      %2360 = vmatpush1.msra.mxu0 0.0
      %2361 = vmatprep.subr.mxu0 0.0
      %2362 = vmatpush1.msra.mxu0 0.0
      %2363 = vmatprep.subr.mxu0 0.0
      %2364 = vmatpush1.msra.mxu0 0.0
      %2365 = vmatprep.subr.mxu0 0.0
      %2366 = vmatpush1.msra.mxu0 0.0
      %2367 = vmatprep.subr.mxu0 0.0
      %2368 = vmatpush1.msra.mxu0 0.0
      %2369 = vmatprep.subr.mxu0 0.0
      %2370 = vmatpush1.msra.mxu0 0.0
      %2371 = vmatprep.subr.mxu0 0.0
      %2372 = vmatpush1.msra.mxu0 0.0
      %2373 = vmatprep.subr.mxu0 %v2335
      %2374 = vmatpush1.msra.mxu0 %v2332
      %2375 = vmatprep.subr.mxu0 0.0
      %2376 = vmatpush2.msra.mxu0 0.0
      %2377 = vmatprep.subr.mxu0 0.0
      %2378 = vmatpush2.msra.mxu0 0.0
      %2379 = vmatprep.subr.mxu0 0.0
      %2380 = vmatpush2.msra.mxu0 0.0
      %2381 = vmatprep.subr.mxu0 0.0
      %2382 = vmatpush2.msra.mxu0 0.0
      %2383 = vmatprep.subr.mxu0 0.0
      %2384 = vmatpush2.msra.mxu0 0.0
      %2385 = vmatprep.subr.mxu0 0.0
      %2386 = vmatpush2.msra.mxu0 0.0
      %2387 = vmatprep.subr.mxu0 0.0
      %2388 = vmatpush2.msra.mxu0 0.0
      %2389 = vmatprep.subr.mxu0 0.0
      %2390 = vmatpush2.msra.mxu0 0.0
      %2391 = vmatprep.subr.mxu0 0.0
      %2392 = vmatpush2.msra.mxu0 0.0
      %2393 = vmatprep.subr.mxu0 0.0
      %2394 = vmatpush2.msra.mxu0 0.0
      %2395 = vmatprep.subr.mxu0 0.0
      %2396 = vmatpush2.msra.mxu0 0.0
      %2397 = vmatprep.subr.mxu0 0.0
      %2398 = vmatpush2.msra.mxu0 0.0
      %2399 = vmatprep.subr.mxu0 0.0
      %2400 = vmatpush2.msra.mxu0 0.0
      %2401 = vmatprep.subr.mxu0 0.0
      %2402 = vmatpush2.msra.mxu0 0.0
      %2403 = vmatprep.subr.mxu0 0.0
      %2404 = vmatpush2.msra.mxu0 0.0
      %2405 = vmatprep.subr.mxu0 0.0
      %2406 = vmatpush2.msra.mxu0 0.0
      %2407 = vmatprep.mubr.f32.mxu0 0.0
      %2408 = vmatmul.mubr.f32.gmra.mxu0 %v2329
      %v2409 = vpop.f32.mrf.mxu0
      %v2410 = vadd.f32 0.0, %v2409
      %v2411 = vpop.f32.mrf.mxu0
      %v2412 = vadd.f32 0.0, %v2411
      %2413 = vdwg.mxu0
      %2414 = vmatprep.subr.mxu0 0.0
      %2415 = vmatpush1.msra.mxu0 0.0
      %2416 = vmatprep.subr.mxu0 0.0
      %2417 = vmatpush1.msra.mxu0 0.0
      %2418 = vmatprep.subr.mxu0 0.0
      %2419 = vmatpush1.msra.mxu0 0.0
      %2420 = vmatprep.subr.mxu0 0.0
      %2421 = vmatpush1.msra.mxu0 0.0
      %2422 = vmatprep.subr.mxu0 0.0
      %2423 = vmatpush1.msra.mxu0 0.0
      %2424 = vmatprep.subr.mxu0 0.0
      %2425 = vmatpush1.msra.mxu0 0.0
      %2426 = vmatprep.subr.mxu0 0.0
      %2427 = vmatpush1.msra.mxu0 0.0
      %2428 = vmatprep.subr.mxu0 0.0
      %2429 = vmatpush1.msra.mxu0 0.0
      %2430 = vmatprep.subr.mxu0 0.0
      %2431 = vmatpush1.msra.mxu0 0.0
      %2432 = vmatprep.subr.mxu0 0.0
      %2433 = vmatpush1.msra.mxu0 0.0
      %2434 = vmatprep.subr.mxu0 0.0
      %2435 = vmatpush1.msra.mxu0 0.0
      %2436 = vmatprep.subr.mxu0 0.0
      %2437 = vmatpush1.msra.mxu0 0.0
      %2438 = vmatprep.subr.mxu0 0.0
      %2439 = vmatpush1.msra.mxu0 0.0
      %2440 = vmatprep.subr.mxu0 0.0
      %2441 = vmatpush1.msra.mxu0 0.0
      %2442 = vmatprep.subr.mxu0 0.0
      %2443 = vmatpush1.msra.mxu0 0.0
      %2444 = vmatprep.subr.mxu0 %v2341
      %2445 = vmatpush1.msra.mxu0 %v2338
      %2446 = vmatprep.subr.mxu0 0.0
      %2447 = vmatpush2.msra.mxu0 0.0
      %2448 = vmatprep.subr.mxu0 0.0
      %2449 = vmatpush2.msra.mxu0 0.0
      %2450 = vmatprep.subr.mxu0 0.0
      %2451 = vmatpush2.msra.mxu0 0.0
      %2452 = vmatprep.subr.mxu0 0.0
      %2453 = vmatpush2.msra.mxu0 0.0
      %2454 = vmatprep.subr.mxu0 0.0
      %2455 = vmatpush2.msra.mxu0 0.0
      %2456 = vmatprep.subr.mxu0 0.0
      %2457 = vmatpush2.msra.mxu0 0.0
      %2458 = vmatprep.subr.mxu0 0.0
      %2459 = vmatpush2.msra.mxu0 0.0
      %2460 = vmatprep.subr.mxu0 0.0
      %2461 = vmatpush2.msra.mxu0 0.0
      %2462 = vmatprep.subr.mxu0 0.0
      %2463 = vmatpush2.msra.mxu0 0.0
      %2464 = vmatprep.subr.mxu0 0.0
      %2465 = vmatpush2.msra.mxu0 0.0
      %2466 = vmatprep.subr.mxu0 0.0
      %2467 = vmatpush2.msra.mxu0 0.0
      %2468 = vmatprep.subr.mxu0 0.0
      %2469 = vmatpush2.msra.mxu0 0.0
      %2470 = vmatprep.subr.mxu0 0.0
      %2471 = vmatpush2.msra.mxu0 0.0
      %2472 = vmatprep.subr.mxu0 0.0
      %2473 = vmatpush2.msra.mxu0 0.0
      %2474 = vmatprep.subr.mxu0 0.0
      %2475 = vmatpush2.msra.mxu0 0.0
      %2476 = vmatprep.subr.mxu0 0.0
      %2477 = vmatpush2.msra.mxu0 0.0
      %2478 = vmatprep.mubr.f32.mxu0 0.0
      %2479 = vmatmul.mubr.f32.gmra.mxu0 %v2329
      %v2480 = vpop.f32.mrf.mxu0
      %v2481 = vadd.f32 0.0, %v2480
      %v2482 = vpop.f32.mrf.mxu0
      %v2483 = vadd.f32 0.0, %v2482
      %2484 = vdwg.mxu0
      %v2485 = vadd.f32 %v2269, %v2410
      %v2486 = vadd.f32 %v2270, %v2412
      %v2487 = vadd.f32 %v2271, %v2481
      %v2488 = vadd.f32 %v2272, %v2483
      %v2489 = vld [vmem:[%s342] sm:$0xff]
      %v2490 = vld [vmem:[%s342 + $0x8] sm:$0xff]
      %v2491 = vld [vmem:[%s342 + $0x10] sm:$0xf]
      %v2492 = vsel %vm358, 1, 0
      %v2493 = vlaneseq
      %v2494 = vshrl.u32 %v2493, 7
      %v2495 = vsub.s32 0, %v2494
      %v2496 = vrot.slane %v2492, %v2495
      %v2497 = vlaneseq
      %v2498 = vshrl.u32 %v2497, 7
      %v2499 = vsub.s32 1, %v2498
      %v2500 = vrot.slane %v2492, %v2499
      %v2501 = vlaneseq
      %v2502 = vshrl.u32 %v2501, 7
      %v2503 = vsub.s32 2, %v2502
      %v2504 = vrot.slane %v2492, %v2503
      %v2505 = vlaneseq
      %v2506 = vshrl.u32 %v2505, 7
      %v2507 = vsub.s32 3, %v2506
      %v2508 = vrot.slane %v2492, %v2507
      %vm2509 = vcmp.eq.s32.totalorder %v2496, 1
      %vm2510 = vcmp.eq.s32.totalorder %v2500, 1
      %vm2511 = vcmp.eq.s32.totalorder %v2504, 1
      %vm2512 = vcmp.eq.s32.totalorder %v2508, 1
      %v2516 = vcombine.high %v2489, %v2489
      %v2517 = vcombine.high %v2490, %v2490
      %2518 = vrot.lane.b32.xlu0 %v2489, 63
      %v2519 = vpop.permute.xlu0 %2518
      %2520 = vrot.lane.b32.xlu0 %v2516, 63
      %v2521 = vpop.permute.xlu0 %2520
      %2522 = vrot.lane.b32.xlu0 %v2490, 63
      %v2523 = vpop.permute.xlu0 %2522
      %2524 = vrot.lane.b32.xlu0 %v2517, 63
      %v2525 = vpop.permute.xlu0 %2524
      %2526 = vrot.lane.b32.xlu0 %v2491, 63
      %v2527 = vpop.permute.xlu0 %2526
      %vm2528 = vcmask 515072
      %v2529 = vsel %vm2528, %v2519, %v2521
      %v2530 = vsel %vm2528, %v2521, %v2523
      %v2531 = vsel %vm2528, %v2523, %v2525
      %v2532 = vsel %vm2528, %v2525, %v2527
      %v2537 = vsel %vm2509, %v2529, 0.0
      %v2538 = vsel %vm2510, %v2530, 0.0
      %v2539 = vsel %vm2511, %v2531, 0.0
      %v2540 = vsel %vm2512, %v2532, 0.0
      %s2541 = scalar_lea.vmem %s5, 40
      %v2542 = vld [vmem:[%s2541] sm:$0xf]
      %v2544 = vsel %vm446, %v2542, 0
      %v2547 = vsel %vm450, %v2537, 0
      %v2550 = vsel %vm450, %v2538, 0
      %v2553 = vsel %vm450, %v2539, 0
      %v2556 = vsel %vm450, %v2540, 0
      %2558 = vmatprep.subr.mxu0 0.0
      %2559 = vmatpush1.msra.mxu0 0.0
      %2560 = vmatprep.subr.mxu0 0.0
      %2561 = vmatpush1.msra.mxu0 0.0
      %2562 = vmatprep.subr.mxu0 0.0
      %2563 = vmatpush1.msra.mxu0 0.0
      %2564 = vmatprep.subr.mxu0 0.0
      %2565 = vmatpush1.msra.mxu0 0.0
      %2566 = vmatprep.subr.mxu0 0.0
      %2567 = vmatpush1.msra.mxu0 0.0
      %2568 = vmatprep.subr.mxu0 0.0
      %2569 = vmatpush1.msra.mxu0 0.0
      %2570 = vmatprep.subr.mxu0 0.0
      %2571 = vmatpush1.msra.mxu0 0.0
      %2572 = vmatprep.subr.mxu0 0.0
      %2573 = vmatpush1.msra.mxu0 0.0
      %2574 = vmatprep.subr.mxu0 0.0
      %2575 = vmatpush1.msra.mxu0 0.0
      %2576 = vmatprep.subr.mxu0 0.0
      %2577 = vmatpush1.msra.mxu0 0.0
      %2578 = vmatprep.subr.mxu0 0.0
      %2579 = vmatpush1.msra.mxu0 0.0
      %2580 = vmatprep.subr.mxu0 0.0
      %2581 = vmatpush1.msra.mxu0 0.0
      %2582 = vmatprep.subr.mxu0 0.0
      %2583 = vmatpush1.msra.mxu0 0.0
      %2584 = vmatprep.subr.mxu0 0.0
      %2585 = vmatpush1.msra.mxu0 0.0
      %2586 = vmatprep.subr.mxu0 0.0
      %2587 = vmatpush1.msra.mxu0 0.0
      %2588 = vmatprep.subr.mxu0 %v2550
      %2589 = vmatpush1.msra.mxu0 %v2547
      %2590 = vmatprep.subr.mxu0 0.0
      %2591 = vmatpush2.msra.mxu0 0.0
      %2592 = vmatprep.subr.mxu0 0.0
      %2593 = vmatpush2.msra.mxu0 0.0
      %2594 = vmatprep.subr.mxu0 0.0
      %2595 = vmatpush2.msra.mxu0 0.0
      %2596 = vmatprep.subr.mxu0 0.0
      %2597 = vmatpush2.msra.mxu0 0.0
      %2598 = vmatprep.subr.mxu0 0.0
      %2599 = vmatpush2.msra.mxu0 0.0
      %2600 = vmatprep.subr.mxu0 0.0
      %2601 = vmatpush2.msra.mxu0 0.0
      %2602 = vmatprep.subr.mxu0 0.0
      %2603 = vmatpush2.msra.mxu0 0.0
      %2604 = vmatprep.subr.mxu0 0.0
      %2605 = vmatpush2.msra.mxu0 0.0
      %2606 = vmatprep.subr.mxu0 0.0
      %2607 = vmatpush2.msra.mxu0 0.0
      %2608 = vmatprep.subr.mxu0 0.0
      %2609 = vmatpush2.msra.mxu0 0.0
      %2610 = vmatprep.subr.mxu0 0.0
      %2611 = vmatpush2.msra.mxu0 0.0
      %2612 = vmatprep.subr.mxu0 0.0
      %2613 = vmatpush2.msra.mxu0 0.0
      %2614 = vmatprep.subr.mxu0 0.0
      %2615 = vmatpush2.msra.mxu0 0.0
      %2616 = vmatprep.subr.mxu0 0.0
      %2617 = vmatpush2.msra.mxu0 0.0
      %2618 = vmatprep.subr.mxu0 0.0
      %2619 = vmatpush2.msra.mxu0 0.0
      %2620 = vmatprep.subr.mxu0 0.0
      %2621 = vmatpush2.msra.mxu0 0.0
      %2622 = vmatprep.mubr.f32.mxu0 0.0
      %2623 = vmatmul.mubr.f32.gmra.mxu0 %v2544
      %v2624 = vpop.f32.mrf.mxu0
      %v2625 = vadd.f32 0.0, %v2624
      %v2626 = vpop.f32.mrf.mxu0
      %v2627 = vadd.f32 0.0, %v2626
      %2628 = vdwg.mxu0
      %2629 = vmatprep.subr.mxu0 0.0
      %2630 = vmatpush1.msra.mxu0 0.0
      %2631 = vmatprep.subr.mxu0 0.0
      %2632 = vmatpush1.msra.mxu0 0.0
      %2633 = vmatprep.subr.mxu0 0.0
      %2634 = vmatpush1.msra.mxu0 0.0
      %2635 = vmatprep.subr.mxu0 0.0
      %2636 = vmatpush1.msra.mxu0 0.0
      %2637 = vmatprep.subr.mxu0 0.0
      %2638 = vmatpush1.msra.mxu0 0.0
      %2639 = vmatprep.subr.mxu0 0.0
      %2640 = vmatpush1.msra.mxu0 0.0
      %2641 = vmatprep.subr.mxu0 0.0
      %2642 = vmatpush1.msra.mxu0 0.0
      %2643 = vmatprep.subr.mxu0 0.0
      %2644 = vmatpush1.msra.mxu0 0.0
      %2645 = vmatprep.subr.mxu0 0.0
      %2646 = vmatpush1.msra.mxu0 0.0
      %2647 = vmatprep.subr.mxu0 0.0
      %2648 = vmatpush1.msra.mxu0 0.0
      %2649 = vmatprep.subr.mxu0 0.0
      %2650 = vmatpush1.msra.mxu0 0.0
      %2651 = vmatprep.subr.mxu0 0.0
      %2652 = vmatpush1.msra.mxu0 0.0
      %2653 = vmatprep.subr.mxu0 0.0
      %2654 = vmatpush1.msra.mxu0 0.0
      %2655 = vmatprep.subr.mxu0 0.0
      %2656 = vmatpush1.msra.mxu0 0.0
      %2657 = vmatprep.subr.mxu0 0.0
      %2658 = vmatpush1.msra.mxu0 0.0
      %2659 = vmatprep.subr.mxu0 %v2556
      %2660 = vmatpush1.msra.mxu0 %v2553
      %2661 = vmatprep.subr.mxu0 0.0
      %2662 = vmatpush2.msra.mxu0 0.0
      %2663 = vmatprep.subr.mxu0 0.0
      %2664 = vmatpush2.msra.mxu0 0.0
      %2665 = vmatprep.subr.mxu0 0.0
      %2666 = vmatpush2.msra.mxu0 0.0
      %2667 = vmatprep.subr.mxu0 0.0
      %2668 = vmatpush2.msra.mxu0 0.0
      %2669 = vmatprep.subr.mxu0 0.0
      %2670 = vmatpush2.msra.mxu0 0.0
      %2671 = vmatprep.subr.mxu0 0.0
      %2672 = vmatpush2.msra.mxu0 0.0
      %2673 = vmatprep.subr.mxu0 0.0
      %2674 = vmatpush2.msra.mxu0 0.0
      %2675 = vmatprep.subr.mxu0 0.0
      %2676 = vmatpush2.msra.mxu0 0.0
      %2677 = vmatprep.subr.mxu0 0.0
      %2678 = vmatpush2.msra.mxu0 0.0
      %2679 = vmatprep.subr.mxu0 0.0
      %2680 = vmatpush2.msra.mxu0 0.0
      %2681 = vmatprep.subr.mxu0 0.0
      %2682 = vmatpush2.msra.mxu0 0.0
      %2683 = vmatprep.subr.mxu0 0.0
      %2684 = vmatpush2.msra.mxu0 0.0
      %2685 = vmatprep.subr.mxu0 0.0
      %2686 = vmatpush2.msra.mxu0 0.0
      %2687 = vmatprep.subr.mxu0 0.0
      %2688 = vmatpush2.msra.mxu0 0.0
      %2689 = vmatprep.subr.mxu0 0.0
      %2690 = vmatpush2.msra.mxu0 0.0
      %2691 = vmatprep.subr.mxu0 0.0
      %2692 = vmatpush2.msra.mxu0 0.0
      %2693 = vmatprep.mubr.f32.mxu0 0.0
      %2694 = vmatmul.mubr.f32.gmra.mxu0 %v2544
      %v2695 = vpop.f32.mrf.mxu0
      %v2696 = vadd.f32 0.0, %v2695
      %v2697 = vpop.f32.mrf.mxu0
      %v2698 = vadd.f32 0.0, %v2697
      %2699 = vdwg.mxu0
      %v2700 = vadd.f32 %v2485, %v2625
      %v2701 = vadd.f32 %v2486, %v2627
      %v2702 = vadd.f32 %v2487, %v2696
      %v2703 = vadd.f32 %v2488, %v2698
      %v2704 = vld [vmem:[%s342] sm:$0xff]
      %v2705 = vld [vmem:[%s342 + $0x8] sm:$0xff]
      %v2706 = vld [vmem:[%s342 + $0x10] sm:$0xf]
      %vm2707 = vmand %vm358, %vm361
      %v2708 = vsel %vm2707, 1, 0
      %v2709 = vlaneseq
      %v2710 = vshrl.u32 %v2709, 7
      %v2711 = vsub.s32 0, %v2710
      %v2712 = vrot.slane %v2708, %v2711
      %v2713 = vlaneseq
      %v2714 = vshrl.u32 %v2713, 7
      %v2715 = vsub.s32 1, %v2714
      %v2716 = vrot.slane %v2708, %v2715
      %v2717 = vlaneseq
      %v2718 = vshrl.u32 %v2717, 7
      %v2719 = vsub.s32 2, %v2718
      %v2720 = vrot.slane %v2708, %v2719
      %v2721 = vlaneseq
      %v2722 = vshrl.u32 %v2721, 7
      %v2723 = vsub.s32 3, %v2722
      %v2724 = vrot.slane %v2708, %v2723
      %vm2725 = vcmp.eq.s32.totalorder %v2712, 1
      %vm2726 = vcmp.eq.s32.totalorder %v2716, 1
      %vm2727 = vcmp.eq.s32.totalorder %v2720, 1
      %vm2728 = vcmp.eq.s32.totalorder %v2724, 1
      %v2732 = vcombine.high %v2704, %v2704
      %v2733 = vcombine.high %v2705, %v2705
      %2734 = vrot.lane.b32.xlu0 %v2704, 62
      %v2735 = vpop.permute.xlu0 %2734
      %2736 = vrot.lane.b32.xlu0 %v2732, 62
      %v2737 = vpop.permute.xlu0 %2736
      %2738 = vrot.lane.b32.xlu0 %v2705, 62
      %v2739 = vpop.permute.xlu0 %2738
      %2740 = vrot.lane.b32.xlu0 %v2733, 62
      %v2741 = vpop.permute.xlu0 %2740
      %2742 = vrot.lane.b32.xlu0 %v2706, 62
      %v2743 = vpop.permute.xlu0 %2742
      %vm2744 = vcmask 506880
      %v2745 = vsel %vm2744, %v2735, %v2737
      %v2746 = vsel %vm2744, %v2737, %v2739
      %v2747 = vsel %vm2744, %v2739, %v2741
      %v2748 = vsel %vm2744, %v2741, %v2743
      %v2753 = vsel %vm2725, %v2745, 0.0
      %v2754 = vsel %vm2726, %v2746, 0.0
      %v2755 = vsel %vm2727, %v2747, 0.0
      %v2756 = vsel %vm2728, %v2748, 0.0
      %s2757 = scalar_lea.vmem %s5, 44
      %v2758 = vld [vmem:[%s2757] sm:$0xf]
      %v2760 = vsel %vm446, %v2758, 0
      %v2763 = vsel %vm450, %v2753, 0
      %v2766 = vsel %vm450, %v2754, 0
      %v2769 = vsel %vm450, %v2755, 0
      %v2772 = vsel %vm450, %v2756, 0
      %2774 = vmatprep.subr.mxu0 0.0
      %2775 = vmatpush1.msra.mxu0 0.0
      %2776 = vmatprep.subr.mxu0 0.0
      %2777 = vmatpush1.msra.mxu0 0.0
      %2778 = vmatprep.subr.mxu0 0.0
      %2779 = vmatpush1.msra.mxu0 0.0
      %2780 = vmatprep.subr.mxu0 0.0
      %2781 = vmatpush1.msra.mxu0 0.0
      %2782 = vmatprep.subr.mxu0 0.0
      %2783 = vmatpush1.msra.mxu0 0.0
      %2784 = vmatprep.subr.mxu0 0.0
      %2785 = vmatpush1.msra.mxu0 0.0
      %2786 = vmatprep.subr.mxu0 0.0
      %2787 = vmatpush1.msra.mxu0 0.0
      %2788 = vmatprep.subr.mxu0 0.0
      %2789 = vmatpush1.msra.mxu0 0.0
      %2790 = vmatprep.subr.mxu0 0.0
      %2791 = vmatpush1.msra.mxu0 0.0
      %2792 = vmatprep.subr.mxu0 0.0
      %2793 = vmatpush1.msra.mxu0 0.0
      %2794 = vmatprep.subr.mxu0 0.0
      %2795 = vmatpush1.msra.mxu0 0.0
      %2796 = vmatprep.subr.mxu0 0.0
      %2797 = vmatpush1.msra.mxu0 0.0
      %2798 = vmatprep.subr.mxu0 0.0
      %2799 = vmatpush1.msra.mxu0 0.0
      %2800 = vmatprep.subr.mxu0 0.0
      %2801 = vmatpush1.msra.mxu0 0.0
      %2802 = vmatprep.subr.mxu0 0.0
      %2803 = vmatpush1.msra.mxu0 0.0
      %2804 = vmatprep.subr.mxu0 %v2766
      %2805 = vmatpush1.msra.mxu0 %v2763
      %2806 = vmatprep.subr.mxu0 0.0
      %2807 = vmatpush2.msra.mxu0 0.0
      %2808 = vmatprep.subr.mxu0 0.0
      %2809 = vmatpush2.msra.mxu0 0.0
      %2810 = vmatprep.subr.mxu0 0.0
      %2811 = vmatpush2.msra.mxu0 0.0
      %2812 = vmatprep.subr.mxu0 0.0
      %2813 = vmatpush2.msra.mxu0 0.0
      %2814 = vmatprep.subr.mxu0 0.0
      %2815 = vmatpush2.msra.mxu0 0.0
      %2816 = vmatprep.subr.mxu0 0.0
      %2817 = vmatpush2.msra.mxu0 0.0
      %2818 = vmatprep.subr.mxu0 0.0
      %2819 = vmatpush2.msra.mxu0 0.0
      %2820 = vmatprep.subr.mxu0 0.0
      %2821 = vmatpush2.msra.mxu0 0.0
      %2822 = vmatprep.subr.mxu0 0.0
      %2823 = vmatpush2.msra.mxu0 0.0
      %2824 = vmatprep.subr.mxu0 0.0
      %2825 = vmatpush2.msra.mxu0 0.0
      %2826 = vmatprep.subr.mxu0 0.0
      %2827 = vmatpush2.msra.mxu0 0.0
      %2828 = vmatprep.subr.mxu0 0.0
      %2829 = vmatpush2.msra.mxu0 0.0
      %2830 = vmatprep.subr.mxu0 0.0
      %2831 = vmatpush2.msra.mxu0 0.0
      %2832 = vmatprep.subr.mxu0 0.0
      %2833 = vmatpush2.msra.mxu0 0.0
      %2834 = vmatprep.subr.mxu0 0.0
      %2835 = vmatpush2.msra.mxu0 0.0
      %2836 = vmatprep.subr.mxu0 0.0
      %2837 = vmatpush2.msra.mxu0 0.0
      %2838 = vmatprep.mubr.f32.mxu0 0.0
      %2839 = vmatmul.mubr.f32.gmra.mxu0 %v2760
      %v2840 = vpop.f32.mrf.mxu0
      %v2841 = vadd.f32 0.0, %v2840
      %v2842 = vpop.f32.mrf.mxu0
      %v2843 = vadd.f32 0.0, %v2842
      %2844 = vdwg.mxu0
      %2845 = vmatprep.subr.mxu0 0.0
      %2846 = vmatpush1.msra.mxu0 0.0
      %2847 = vmatprep.subr.mxu0 0.0
      %2848 = vmatpush1.msra.mxu0 0.0
      %2849 = vmatprep.subr.mxu0 0.0
      %2850 = vmatpush1.msra.mxu0 0.0
      %2851 = vmatprep.subr.mxu0 0.0
      %2852 = vmatpush1.msra.mxu0 0.0
      %2853 = vmatprep.subr.mxu0 0.0
      %2854 = vmatpush1.msra.mxu0 0.0
      %2855 = vmatprep.subr.mxu0 0.0
      %2856 = vmatpush1.msra.mxu0 0.0
      %2857 = vmatprep.subr.mxu0 0.0
      %2858 = vmatpush1.msra.mxu0 0.0
      %2859 = vmatprep.subr.mxu0 0.0
      %2860 = vmatpush1.msra.mxu0 0.0
      %2861 = vmatprep.subr.mxu0 0.0
      %2862 = vmatpush1.msra.mxu0 0.0
      %2863 = vmatprep.subr.mxu0 0.0
      %2864 = vmatpush1.msra.mxu0 0.0
      %2865 = vmatprep.subr.mxu0 0.0
      %2866 = vmatpush1.msra.mxu0 0.0
      %2867 = vmatprep.subr.mxu0 0.0
      %2868 = vmatpush1.msra.mxu0 0.0
      %2869 = vmatprep.subr.mxu0 0.0
      %2870 = vmatpush1.msra.mxu0 0.0
      %2871 = vmatprep.subr.mxu0 0.0
      %2872 = vmatpush1.msra.mxu0 0.0
      %2873 = vmatprep.subr.mxu0 0.0
      %2874 = vmatpush1.msra.mxu0 0.0
      %2875 = vmatprep.subr.mxu0 %v2772
      %2876 = vmatpush1.msra.mxu0 %v2769
      %2877 = vmatprep.subr.mxu0 0.0
      %2878 = vmatpush2.msra.mxu0 0.0
      %2879 = vmatprep.subr.mxu0 0.0
      %2880 = vmatpush2.msra.mxu0 0.0
      %2881 = vmatprep.subr.mxu0 0.0
      %2882 = vmatpush2.msra.mxu0 0.0
      %2883 = vmatprep.subr.mxu0 0.0
      %2884 = vmatpush2.msra.mxu0 0.0
      %2885 = vmatprep.subr.mxu0 0.0
      %2886 = vmatpush2.msra.mxu0 0.0
      %2887 = vmatprep.subr.mxu0 0.0
      %2888 = vmatpush2.msra.mxu0 0.0
      %2889 = vmatprep.subr.mxu0 0.0
      %2890 = vmatpush2.msra.mxu0 0.0
      %2891 = vmatprep.subr.mxu0 0.0
      %2892 = vmatpush2.msra.mxu0 0.0
      %2893 = vmatprep.subr.mxu0 0.0
      %2894 = vmatpush2.msra.mxu0 0.0
      %2895 = vmatprep.subr.mxu0 0.0
      %2896 = vmatpush2.msra.mxu0 0.0
      %2897 = vmatprep.subr.mxu0 0.0
      %2898 = vmatpush2.msra.mxu0 0.0
      %2899 = vmatprep.subr.mxu0 0.0
      %2900 = vmatpush2.msra.mxu0 0.0
      %2901 = vmatprep.subr.mxu0 0.0
      %2902 = vmatpush2.msra.mxu0 0.0
      %2903 = vmatprep.subr.mxu0 0.0
      %2904 = vmatpush2.msra.mxu0 0.0
      %2905 = vmatprep.subr.mxu0 0.0
      %2906 = vmatpush2.msra.mxu0 0.0
      %2907 = vmatprep.subr.mxu0 0.0
      %2908 = vmatpush2.msra.mxu0 0.0
      %2909 = vmatprep.mubr.f32.mxu0 0.0
      %2910 = vmatmul.mubr.f32.gmra.mxu0 %v2760
      %v2911 = vpop.f32.mrf.mxu0
      %v2912 = vadd.f32 0.0, %v2911
      %v2913 = vpop.f32.mrf.mxu0
      %v2914 = vadd.f32 0.0, %v2913
      %2915 = vdwg.mxu0
      %v2916 = vadd.f32 %v2700, %v2841
      %v2917 = vadd.f32 %v2701, %v2843
      %v2918 = vadd.f32 %v2702, %v2912
      %v2919 = vadd.f32 %v2703, %v2914
      %v2920 = vld [vmem:[%s342] sm:$0xff]
      %v2921 = vld [vmem:[%s342 + $0x8] sm:$0xff]
      %v2922 = vld [vmem:[%s342 + $0x10] sm:$0xf]
      %v2923 = vsel %vm360, 1, 0
      %v2924 = vlaneseq
      %v2925 = vshrl.u32 %v2924, 7
      %v2926 = vsub.s32 0, %v2925
      %v2927 = vrot.slane %v2923, %v2926
      %v2928 = vlaneseq
      %v2929 = vshrl.u32 %v2928, 7
      %v2930 = vsub.s32 1, %v2929
      %v2931 = vrot.slane %v2923, %v2930
      %v2932 = vlaneseq
      %v2933 = vshrl.u32 %v2932, 7
      %v2934 = vsub.s32 2, %v2933
      %v2935 = vrot.slane %v2923, %v2934
      %v2936 = vlaneseq
      %v2937 = vshrl.u32 %v2936, 7
      %v2938 = vsub.s32 3, %v2937
      %v2939 = vrot.slane %v2923, %v2938
      %vm2940 = vcmp.eq.s32.totalorder %v2927, 1
      %vm2941 = vcmp.eq.s32.totalorder %v2931, 1
      %vm2942 = vcmp.eq.s32.totalorder %v2935, 1
      %vm2943 = vcmp.eq.s32.totalorder %v2939, 1
      %v2947 = vcombine.high %v2920, %v2920
      %v2948 = vcombine.high %v2921, %v2921
      %2949 = vrot.lane.b32.xlu0 %v2920, 56
      %v2950 = vpop.permute.xlu0 %2949
      %2951 = vrot.lane.b32.xlu0 %v2947, 56
      %v2952 = vpop.permute.xlu0 %2951
      %2953 = vrot.lane.b32.xlu0 %v2921, 56
      %v2954 = vpop.permute.xlu0 %2953
      %2955 = vrot.lane.b32.xlu0 %v2948, 56
      %v2956 = vpop.permute.xlu0 %2955
      %2957 = vrot.lane.b32.xlu0 %v2922, 56
      %v2958 = vpop.permute.xlu0 %2957
      %vm2959 = vcmask 457728
      %v2960 = vsel %vm2959, %v2950, %v2952
      %v2961 = vsel %vm2959, %v2952, %v2954
      %v2962 = vsel %vm2959, %v2954, %v2956
      %v2963 = vsel %vm2959, %v2956, %v2958
      %v2968 = vsel %vm2940, %v2960, 0.0
      %v2969 = vsel %vm2941, %v2961, 0.0
      %v2970 = vsel %vm2942, %v2962, 0.0
      %v2971 = vsel %vm2943, %v2963, 0.0
      %s2972 = scalar_lea.vmem %s5, 48
      %v2973 = vld [vmem:[%s2972] sm:$0xf]
      %v2975 = vsel %vm446, %v2973, 0
      %v2978 = vsel %vm450, %v2968, 0
      %v2981 = vsel %vm450, %v2969, 0
      %v2984 = vsel %vm450, %v2970, 0
      %v2987 = vsel %vm450, %v2971, 0
      %2989 = vmatprep.subr.mxu0 0.0
      %2990 = vmatpush1.msra.mxu0 0.0
      %2991 = vmatprep.subr.mxu0 0.0
      %2992 = vmatpush1.msra.mxu0 0.0
      %2993 = vmatprep.subr.mxu0 0.0
      %2994 = vmatpush1.msra.mxu0 0.0
      %2995 = vmatprep.subr.mxu0 0.0
      %2996 = vmatpush1.msra.mxu0 0.0
      %2997 = vmatprep.subr.mxu0 0.0
      %2998 = vmatpush1.msra.mxu0 0.0
      %2999 = vmatprep.subr.mxu0 0.0
      %3000 = vmatpush1.msra.mxu0 0.0
      %3001 = vmatprep.subr.mxu0 0.0
      %3002 = vmatpush1.msra.mxu0 0.0
      %3003 = vmatprep.subr.mxu0 0.0
      %3004 = vmatpush1.msra.mxu0 0.0
      %3005 = vmatprep.subr.mxu0 0.0
      %3006 = vmatpush1.msra.mxu0 0.0
      %3007 = vmatprep.subr.mxu0 0.0
      %3008 = vmatpush1.msra.mxu0 0.0
      %3009 = vmatprep.subr.mxu0 0.0
      %3010 = vmatpush1.msra.mxu0 0.0
      %3011 = vmatprep.subr.mxu0 0.0
      %3012 = vmatpush1.msra.mxu0 0.0
      %3013 = vmatprep.subr.mxu0 0.0
      %3014 = vmatpush1.msra.mxu0 0.0
      %3015 = vmatprep.subr.mxu0 0.0
      %3016 = vmatpush1.msra.mxu0 0.0
      %3017 = vmatprep.subr.mxu0 0.0
      %3018 = vmatpush1.msra.mxu0 0.0
      %3019 = vmatprep.subr.mxu0 %v2981
      %3020 = vmatpush1.msra.mxu0 %v2978
      %3021 = vmatprep.subr.mxu0 0.0
      %3022 = vmatpush2.msra.mxu0 0.0
      %3023 = vmatprep.subr.mxu0 0.0
      %3024 = vmatpush2.msra.mxu0 0.0
      %3025 = vmatprep.subr.mxu0 0.0
      %3026 = vmatpush2.msra.mxu0 0.0
      %3027 = vmatprep.subr.mxu0 0.0
      %3028 = vmatpush2.msra.mxu0 0.0
      %3029 = vmatprep.subr.mxu0 0.0
      %3030 = vmatpush2.msra.mxu0 0.0
      %3031 = vmatprep.subr.mxu0 0.0
      %3032 = vmatpush2.msra.mxu0 0.0
      %3033 = vmatprep.subr.mxu0 0.0
      %3034 = vmatpush2.msra.mxu0 0.0
      %3035 = vmatprep.subr.mxu0 0.0
      %3036 = vmatpush2.msra.mxu0 0.0
      %3037 = vmatprep.subr.mxu0 0.0
      %3038 = vmatpush2.msra.mxu0 0.0
      %3039 = vmatprep.subr.mxu0 0.0
      %3040 = vmatpush2.msra.mxu0 0.0
      %3041 = vmatprep.subr.mxu0 0.0
      %3042 = vmatpush2.msra.mxu0 0.0
      %3043 = vmatprep.subr.mxu0 0.0
      %3044 = vmatpush2.msra.mxu0 0.0
      %3045 = vmatprep.subr.mxu0 0.0
      %3046 = vmatpush2.msra.mxu0 0.0
      %3047 = vmatprep.subr.mxu0 0.0
      %3048 = vmatpush2.msra.mxu0 0.0
      %3049 = vmatprep.subr.mxu0 0.0
      %3050 = vmatpush2.msra.mxu0 0.0
      %3051 = vmatprep.subr.mxu0 0.0
      %3052 = vmatpush2.msra.mxu0 0.0
      %3053 = vmatprep.mubr.f32.mxu0 0.0
      %3054 = vmatmul.mubr.f32.gmra.mxu0 %v2975
      %v3055 = vpop.f32.mrf.mxu0
      %v3056 = vadd.f32 0.0, %v3055
      %v3057 = vpop.f32.mrf.mxu0
      %v3058 = vadd.f32 0.0, %v3057
      %3059 = vdwg.mxu0
      %3060 = vmatprep.subr.mxu0 0.0
      %3061 = vmatpush1.msra.mxu0 0.0
      %3062 = vmatprep.subr.mxu0 0.0
      %3063 = vmatpush1.msra.mxu0 0.0
      %3064 = vmatprep.subr.mxu0 0.0
      %3065 = vmatpush1.msra.mxu0 0.0
      %3066 = vmatprep.subr.mxu0 0.0
      %3067 = vmatpush1.msra.mxu0 0.0
      %3068 = vmatprep.subr.mxu0 0.0
      %3069 = vmatpush1.msra.mxu0 0.0
      %3070 = vmatprep.subr.mxu0 0.0
      %3071 = vmatpush1.msra.mxu0 0.0
      %3072 = vmatprep.subr.mxu0 0.0
      %3073 = vmatpush1.msra.mxu0 0.0
      %3074 = vmatprep.subr.mxu0 0.0
      %3075 = vmatpush1.msra.mxu0 0.0
      %3076 = vmatprep.subr.mxu0 0.0
      %3077 = vmatpush1.msra.mxu0 0.0
      %3078 = vmatprep.subr.mxu0 0.0
      %3079 = vmatpush1.msra.mxu0 0.0
      %3080 = vmatprep.subr.mxu0 0.0
      %3081 = vmatpush1.msra.mxu0 0.0
      %3082 = vmatprep.subr.mxu0 0.0
      %3083 = vmatpush1.msra.mxu0 0.0
      %3084 = vmatprep.subr.mxu0 0.0
      %3085 = vmatpush1.msra.mxu0 0.0
      %3086 = vmatprep.subr.mxu0 0.0
      %3087 = vmatpush1.msra.mxu0 0.0
      %3088 = vmatprep.subr.mxu0 0.0
      %3089 = vmatpush1.msra.mxu0 0.0
      %3090 = vmatprep.subr.mxu0 %v2987
      %3091 = vmatpush1.msra.mxu0 %v2984
      %3092 = vmatprep.subr.mxu0 0.0
      %3093 = vmatpush2.msra.mxu0 0.0
      %3094 = vmatprep.subr.mxu0 0.0
      %3095 = vmatpush2.msra.mxu0 0.0
      %3096 = vmatprep.subr.mxu0 0.0
      %3097 = vmatpush2.msra.mxu0 0.0
      %3098 = vmatprep.subr.mxu0 0.0
      %3099 = vmatpush2.msra.mxu0 0.0
      %3100 = vmatprep.subr.mxu0 0.0
      %3101 = vmatpush2.msra.mxu0 0.0
      %3102 = vmatprep.subr.mxu0 0.0
      %3103 = vmatpush2.msra.mxu0 0.0
      %3104 = vmatprep.subr.mxu0 0.0
      %3105 = vmatpush2.msra.mxu0 0.0
      %3106 = vmatprep.subr.mxu0 0.0
      %3107 = vmatpush2.msra.mxu0 0.0
      %3108 = vmatprep.subr.mxu0 0.0
      %3109 = vmatpush2.msra.mxu0 0.0
      %3110 = vmatprep.subr.mxu0 0.0
      %3111 = vmatpush2.msra.mxu0 0.0
      %3112 = vmatprep.subr.mxu0 0.0
      %3113 = vmatpush2.msra.mxu0 0.0
      %3114 = vmatprep.subr.mxu0 0.0
      %3115 = vmatpush2.msra.mxu0 0.0
      %3116 = vmatprep.subr.mxu0 0.0
      %3117 = vmatpush2.msra.mxu0 0.0
      %3118 = vmatprep.subr.mxu0 0.0
      %3119 = vmatpush2.msra.mxu0 0.0
      %3120 = vmatprep.subr.mxu0 0.0
      %3121 = vmatpush2.msra.mxu0 0.0
      %3122 = vmatprep.subr.mxu0 0.0
      %3123 = vmatpush2.msra.mxu0 0.0
      %3124 = vmatprep.mubr.f32.mxu0 0.0
      %3125 = vmatmul.mubr.f32.gmra.mxu0 %v2975
      %v3126 = vpop.f32.mrf.mxu0
      %v3127 = vadd.f32 0.0, %v3126
      %v3128 = vpop.f32.mrf.mxu0
      %v3129 = vadd.f32 0.0, %v3128
      %3130 = vdwg.mxu0
      %v3131 = vadd.f32 %v2916, %v3056
      %v3132 = vadd.f32 %v2917, %v3058
      %v3133 = vadd.f32 %v2918, %v3127
      %v3134 = vadd.f32 %v2919, %v3129
      %v3135 = vld [vmem:[%s342] sm:$0xff]
      %v3136 = vld [vmem:[%s342 + $0x8] sm:$0xff]
      %v3137 = vld [vmem:[%s342 + $0x10] sm:$0xf]
      %s3138 = scalar_lea.vmem %s5, 52
      %v3139 = vld [vmem:[%s3138] sm:$0xf]
      %v3143 = vcombine.high %v3135, %v3135
      %v3144 = vcombine.high %v3136, %v3136
      %3145 = vrot.lane.b32.xlu0 %v3135, 55
      %v3146 = vpop.permute.xlu0 %3145
      %3147 = vrot.lane.b32.xlu0 %v3143, 55
      %v3148 = vpop.permute.xlu0 %3147
      %3149 = vrot.lane.b32.xlu0 %v3136, 55
      %v3150 = vpop.permute.xlu0 %3149
      %3151 = vrot.lane.b32.xlu0 %v3144, 55
      %v3152 = vpop.permute.xlu0 %3151
      %3153 = vrot.lane.b32.xlu0 %v3137, 55
      %v3154 = vpop.permute.xlu0 %3153
      %vm3155 = vcmask 449536
      %v3156 = vsel %vm3155, %v3146, %v3148
      %v3157 = vsel %vm3155, %v3148, %v3150
      %v3158 = vsel %vm3155, %v3150, %v3152
      %v3159 = vsel %vm3155, %v3152, %v3154
      %v3161 = vsel %vm446, %v3139, 0
      %v3163 = vsel %vm450, %v3156, 0
      %v3165 = vsel %vm450, %v3157, 0
      %v3167 = vsel %vm450, %v3158, 0
      %v3169 = vsel %vm450, %v3159, 0
      %3171 = vmatprep.subr.mxu0 0.0
      %3172 = vmatpush1.msra.mxu0 0.0
      %3173 = vmatprep.subr.mxu0 0.0
      %3174 = vmatpush1.msra.mxu0 0.0
      %3175 = vmatprep.subr.mxu0 0.0
      %3176 = vmatpush1.msra.mxu0 0.0
      %3177 = vmatprep.subr.mxu0 0.0
      %3178 = vmatpush1.msra.mxu0 0.0
      %3179 = vmatprep.subr.mxu0 0.0
      %3180 = vmatpush1.msra.mxu0 0.0
      %3181 = vmatprep.subr.mxu0 0.0
      %3182 = vmatpush1.msra.mxu0 0.0
      %3183 = vmatprep.subr.mxu0 0.0
      %3184 = vmatpush1.msra.mxu0 0.0
      %3185 = vmatprep.subr.mxu0 0.0
      %3186 = vmatpush1.msra.mxu0 0.0
      %3187 = vmatprep.subr.mxu0 0.0
      %3188 = vmatpush1.msra.mxu0 0.0
      %3189 = vmatprep.subr.mxu0 0.0
      %3190 = vmatpush1.msra.mxu0 0.0
      %3191 = vmatprep.subr.mxu0 0.0
      %3192 = vmatpush1.msra.mxu0 0.0
      %3193 = vmatprep.subr.mxu0 0.0
      %3194 = vmatpush1.msra.mxu0 0.0
      %3195 = vmatprep.subr.mxu0 0.0
      %3196 = vmatpush1.msra.mxu0 0.0
      %3197 = vmatprep.subr.mxu0 0.0
      %3198 = vmatpush1.msra.mxu0 0.0
      %3199 = vmatprep.subr.mxu0 0.0
      %3200 = vmatpush1.msra.mxu0 0.0
      %3201 = vmatprep.subr.mxu0 %v3165
      %3202 = vmatpush1.msra.mxu0 %v3163
      %3203 = vmatprep.subr.mxu0 0.0
      %3204 = vmatpush2.msra.mxu0 0.0
      %3205 = vmatprep.subr.mxu0 0.0
      %3206 = vmatpush2.msra.mxu0 0.0
      %3207 = vmatprep.subr.mxu0 0.0
      %3208 = vmatpush2.msra.mxu0 0.0
      %3209 = vmatprep.subr.mxu0 0.0
      %3210 = vmatpush2.msra.mxu0 0.0
      %3211 = vmatprep.subr.mxu0 0.0
      %3212 = vmatpush2.msra.mxu0 0.0
      %3213 = vmatprep.subr.mxu0 0.0
      %3214 = vmatpush2.msra.mxu0 0.0
      %3215 = vmatprep.subr.mxu0 0.0
      %3216 = vmatpush2.msra.mxu0 0.0
      %3217 = vmatprep.subr.mxu0 0.0
      %3218 = vmatpush2.msra.mxu0 0.0
      %3219 = vmatprep.subr.mxu0 0.0
      %3220 = vmatpush2.msra.mxu0 0.0
      %3221 = vmatprep.subr.mxu0 0.0
      %3222 = vmatpush2.msra.mxu0 0.0
      %3223 = vmatprep.subr.mxu0 0.0
      %3224 = vmatpush2.msra.mxu0 0.0
      %3225 = vmatprep.subr.mxu0 0.0
      %3226 = vmatpush2.msra.mxu0 0.0
      %3227 = vmatprep.subr.mxu0 0.0
      %3228 = vmatpush2.msra.mxu0 0.0
      %3229 = vmatprep.subr.mxu0 0.0
      %3230 = vmatpush2.msra.mxu0 0.0
      %3231 = vmatprep.subr.mxu0 0.0
      %3232 = vmatpush2.msra.mxu0 0.0
      %3233 = vmatprep.subr.mxu0 0.0
      %3234 = vmatpush2.msra.mxu0 0.0
      %3235 = vmatprep.mubr.f32.mxu0 0.0
      %3236 = vmatmul.mubr.f32.gmra.mxu0 %v3161
      %v3237 = vpop.f32.mrf.mxu0
      %v3238 = vadd.f32 0.0, %v3237
      %v3239 = vpop.f32.mrf.mxu0
      %v3240 = vadd.f32 0.0, %v3239
      %3241 = vdwg.mxu0
      %3242 = vmatprep.subr.mxu0 0.0
      %3243 = vmatpush1.msra.mxu0 0.0
      %3244 = vmatprep.subr.mxu0 0.0
      %3245 = vmatpush1.msra.mxu0 0.0
      %3246 = vmatprep.subr.mxu0 0.0
      %3247 = vmatpush1.msra.mxu0 0.0
      %3248 = vmatprep.subr.mxu0 0.0
      %3249 = vmatpush1.msra.mxu0 0.0
      %3250 = vmatprep.subr.mxu0 0.0
      %3251 = vmatpush1.msra.mxu0 0.0
      %3252 = vmatprep.subr.mxu0 0.0
      %3253 = vmatpush1.msra.mxu0 0.0
      %3254 = vmatprep.subr.mxu0 0.0
      %3255 = vmatpush1.msra.mxu0 0.0
      %3256 = vmatprep.subr.mxu0 0.0
      %3257 = vmatpush1.msra.mxu0 0.0
      %3258 = vmatprep.subr.mxu0 0.0
      %3259 = vmatpush1.msra.mxu0 0.0
      %3260 = vmatprep.subr.mxu0 0.0
      %3261 = vmatpush1.msra.mxu0 0.0
      %3262 = vmatprep.subr.mxu0 0.0
      %3263 = vmatpush1.msra.mxu0 0.0
      %3264 = vmatprep.subr.mxu0 0.0
      %3265 = vmatpush1.msra.mxu0 0.0
      %3266 = vmatprep.subr.mxu0 0.0
      %3267 = vmatpush1.msra.mxu0 0.0
      %3268 = vmatprep.subr.mxu0 0.0
      %3269 = vmatpush1.msra.mxu0 0.0
      %3270 = vmatprep.subr.mxu0 0.0
      %3271 = vmatpush1.msra.mxu0 0.0
      %3272 = vmatprep.subr.mxu0 %v3169
      %3273 = vmatpush1.msra.mxu0 %v3167
      %3274 = vmatprep.subr.mxu0 0.0
      %3275 = vmatpush2.msra.mxu0 0.0
      %3276 = vmatprep.subr.mxu0 0.0
      %3277 = vmatpush2.msra.mxu0 0.0
      %3278 = vmatprep.subr.mxu0 0.0
      %3279 = vmatpush2.msra.mxu0 0.0
      %3280 = vmatprep.subr.mxu0 0.0
      %3281 = vmatpush2.msra.mxu0 0.0
      %3282 = vmatprep.subr.mxu0 0.0
      %3283 = vmatpush2.msra.mxu0 0.0
      %3284 = vmatprep.subr.mxu0 0.0
      %3285 = vmatpush2.msra.mxu0 0.0
      %3286 = vmatprep.subr.mxu0 0.0
      %3287 = vmatpush2.msra.mxu0 0.0
      %3288 = vmatprep.subr.mxu0 0.0
      %3289 = vmatpush2.msra.mxu0 0.0
      %3290 = vmatprep.subr.mxu0 0.0
      %3291 = vmatpush2.msra.mxu0 0.0
      %3292 = vmatprep.subr.mxu0 0.0
      %3293 = vmatpush2.msra.mxu0 0.0
      %3294 = vmatprep.subr.mxu0 0.0
      %3295 = vmatpush2.msra.mxu0 0.0
      %3296 = vmatprep.subr.mxu0 0.0
      %3297 = vmatpush2.msra.mxu0 0.0
      %3298 = vmatprep.subr.mxu0 0.0
      %3299 = vmatpush2.msra.mxu0 0.0
      %3300 = vmatprep.subr.mxu0 0.0
      %3301 = vmatpush2.msra.mxu0 0.0
      %3302 = vmatprep.subr.mxu0 0.0
      %3303 = vmatpush2.msra.mxu0 0.0
      %3304 = vmatprep.subr.mxu0 0.0
      %3305 = vmatpush2.msra.mxu0 0.0
      %3306 = vmatprep.mubr.f32.mxu0 0.0
      %3307 = vmatmul.mubr.f32.gmra.mxu0 %v3161
      %v3308 = vpop.f32.mrf.mxu0
      %v3309 = vadd.f32 0.0, %v3308
      %v3310 = vpop.f32.mrf.mxu0
      %v3311 = vadd.f32 0.0, %v3310
      %3312 = vdwg.mxu0
      %v3313 = vadd.f32 %v3131, %v3238
      %v3314 = vadd.f32 %v3132, %v3240
      %v3315 = vadd.f32 %v3133, %v3309
      %v3316 = vadd.f32 %v3134, %v3311
      %v3317 = vld [vmem:[%s342] sm:$0xff]
      %v3318 = vld [vmem:[%s342 + $0x8] sm:$0xff]
      %v3319 = vld [vmem:[%s342 + $0x10] sm:$0xf]
      %v3320 = vsel %vm361, 1, 0
      %v3321 = vlaneseq
      %v3322 = vshrl.u32 %v3321, 7
      %v3323 = vsub.s32 0, %v3322
      %v3324 = vrot.slane %v3320, %v3323
      %v3325 = vlaneseq
      %v3326 = vshrl.u32 %v3325, 7
      %v3327 = vsub.s32 1, %v3326
      %v3328 = vrot.slane %v3320, %v3327
      %v3329 = vlaneseq
      %v3330 = vshrl.u32 %v3329, 7
      %v3331 = vsub.s32 2, %v3330
      %v3332 = vrot.slane %v3320, %v3331
      %v3333 = vlaneseq
      %v3334 = vshrl.u32 %v3333, 7
      %v3335 = vsub.s32 3, %v3334
      %v3336 = vrot.slane %v3320, %v3335
      %vm3337 = vcmp.eq.s32.totalorder %v3324, 1
      %vm3338 = vcmp.eq.s32.totalorder %v3328, 1
      %vm3339 = vcmp.eq.s32.totalorder %v3332, 1
      %vm3340 = vcmp.eq.s32.totalorder %v3336, 1
      %v3344 = vcombine.high %v3317, %v3317
      %v3345 = vcombine.high %v3318, %v3318
      %3346 = vrot.lane.b32.xlu0 %v3317, 54
      %v3347 = vpop.permute.xlu0 %3346
      %3348 = vrot.lane.b32.xlu0 %v3344, 54
      %v3349 = vpop.permute.xlu0 %3348
      %3350 = vrot.lane.b32.xlu0 %v3318, 54
      %v3351 = vpop.permute.xlu0 %3350
      %3352 = vrot.lane.b32.xlu0 %v3345, 54
      %v3353 = vpop.permute.xlu0 %3352
      %3354 = vrot.lane.b32.xlu0 %v3319, 54
      %v3355 = vpop.permute.xlu0 %3354
      %vm3356 = vcmask 441344
      %v3357 = vsel %vm3356, %v3347, %v3349
      %v3358 = vsel %vm3356, %v3349, %v3351
      %v3359 = vsel %vm3356, %v3351, %v3353
      %v3360 = vsel %vm3356, %v3353, %v3355
      %v3365 = vsel %vm3337, %v3357, 0.0
      %v3366 = vsel %vm3338, %v3358, 0.0
      %v3367 = vsel %vm3339, %v3359, 0.0
      %v3368 = vsel %vm3340, %v3360, 0.0
      %s3369 = scalar_lea.vmem %s5, 56
      %v3370 = vld [vmem:[%s3369] sm:$0xf]
      %v3372 = vsel %vm446, %v3370, 0
      %v3375 = vsel %vm450, %v3365, 0
      %v3378 = vsel %vm450, %v3366, 0
      %v3381 = vsel %vm450, %v3367, 0
      %v3384 = vsel %vm450, %v3368, 0
      %3386 = vmatprep.subr.mxu0 0.0
      %3387 = vmatpush1.msra.mxu0 0.0
      %3388 = vmatprep.subr.mxu0 0.0
      %3389 = vmatpush1.msra.mxu0 0.0
      %3390 = vmatprep.subr.mxu0 0.0
      %3391 = vmatpush1.msra.mxu0 0.0
      %3392 = vmatprep.subr.mxu0 0.0
      %3393 = vmatpush1.msra.mxu0 0.0
      %3394 = vmatprep.subr.mxu0 0.0
      %3395 = vmatpush1.msra.mxu0 0.0
      %3396 = vmatprep.subr.mxu0 0.0
      %3397 = vmatpush1.msra.mxu0 0.0
      %3398 = vmatprep.subr.mxu0 0.0
      %3399 = vmatpush1.msra.mxu0 0.0
      %3400 = vmatprep.subr.mxu0 0.0
      %3401 = vmatpush1.msra.mxu0 0.0
      %3402 = vmatprep.subr.mxu0 0.0
      %3403 = vmatpush1.msra.mxu0 0.0
      %3404 = vmatprep.subr.mxu0 0.0
      %3405 = vmatpush1.msra.mxu0 0.0
      %3406 = vmatprep.subr.mxu0 0.0
      %3407 = vmatpush1.msra.mxu0 0.0
      %3408 = vmatprep.subr.mxu0 0.0
      %3409 = vmatpush1.msra.mxu0 0.0
      %3410 = vmatprep.subr.mxu0 0.0
      %3411 = vmatpush1.msra.mxu0 0.0
      %3412 = vmatprep.subr.mxu0 0.0
      %3413 = vmatpush1.msra.mxu0 0.0
      %3414 = vmatprep.subr.mxu0 0.0
      %3415 = vmatpush1.msra.mxu0 0.0
      %3416 = vmatprep.subr.mxu0 %v3378
      %3417 = vmatpush1.msra.mxu0 %v3375
      %3418 = vmatprep.subr.mxu0 0.0
      %3419 = vmatpush2.msra.mxu0 0.0
      %3420 = vmatprep.subr.mxu0 0.0
      %3421 = vmatpush2.msra.mxu0 0.0
      %3422 = vmatprep.subr.mxu0 0.0
      %3423 = vmatpush2.msra.mxu0 0.0
      %3424 = vmatprep.subr.mxu0 0.0
      %3425 = vmatpush2.msra.mxu0 0.0
      %3426 = vmatprep.subr.mxu0 0.0
      %3427 = vmatpush2.msra.mxu0 0.0
      %3428 = vmatprep.subr.mxu0 0.0
      %3429 = vmatpush2.msra.mxu0 0.0
      %3430 = vmatprep.subr.mxu0 0.0
      %3431 = vmatpush2.msra.mxu0 0.0
      %3432 = vmatprep.subr.mxu0 0.0
      %3433 = vmatpush2.msra.mxu0 0.0
      %3434 = vmatprep.subr.mxu0 0.0
      %3435 = vmatpush2.msra.mxu0 0.0
      %3436 = vmatprep.subr.mxu0 0.0
      %3437 = vmatpush2.msra.mxu0 0.0
      %3438 = vmatprep.subr.mxu0 0.0
      %3439 = vmatpush2.msra.mxu0 0.0
      %3440 = vmatprep.subr.mxu0 0.0
      %3441 = vmatpush2.msra.mxu0 0.0
      %3442 = vmatprep.subr.mxu0 0.0
      %3443 = vmatpush2.msra.mxu0 0.0
      %3444 = vmatprep.subr.mxu0 0.0
      %3445 = vmatpush2.msra.mxu0 0.0
      %3446 = vmatprep.subr.mxu0 0.0
      %3447 = vmatpush2.msra.mxu0 0.0
      %3448 = vmatprep.subr.mxu0 0.0
      %3449 = vmatpush2.msra.mxu0 0.0
      %3450 = vmatprep.mubr.f32.mxu0 0.0
      %3451 = vmatmul.mubr.f32.gmra.mxu0 %v3372
      %v3452 = vpop.f32.mrf.mxu0
      %v3453 = vadd.f32 0.0, %v3452
      %v3454 = vpop.f32.mrf.mxu0
      %v3455 = vadd.f32 0.0, %v3454
      %3456 = vdwg.mxu0
      %3457 = vmatprep.subr.mxu0 0.0
      %3458 = vmatpush1.msra.mxu0 0.0
      %3459 = vmatprep.subr.mxu0 0.0
      %3460 = vmatpush1.msra.mxu0 0.0
      %3461 = vmatprep.subr.mxu0 0.0
      %3462 = vmatpush1.msra.mxu0 0.0
      %3463 = vmatprep.subr.mxu0 0.0
      %3464 = vmatpush1.msra.mxu0 0.0
      %3465 = vmatprep.subr.mxu0 0.0
      %3466 = vmatpush1.msra.mxu0 0.0
      %3467 = vmatprep.subr.mxu0 0.0
      %3468 = vmatpush1.msra.mxu0 0.0
      %3469 = vmatprep.subr.mxu0 0.0
      %3470 = vmatpush1.msra.mxu0 0.0
      %3471 = vmatprep.subr.mxu0 0.0
      %3472 = vmatpush1.msra.mxu0 0.0
      %3473 = vmatprep.subr.mxu0 0.0
      %3474 = vmatpush1.msra.mxu0 0.0
      %3475 = vmatprep.subr.mxu0 0.0
      %3476 = vmatpush1.msra.mxu0 0.0
      %3477 = vmatprep.subr.mxu0 0.0
      %3478 = vmatpush1.msra.mxu0 0.0
      %3479 = vmatprep.subr.mxu0 0.0
      %3480 = vmatpush1.msra.mxu0 0.0
      %3481 = vmatprep.subr.mxu0 0.0
      %3482 = vmatpush1.msra.mxu0 0.0
      %3483 = vmatprep.subr.mxu0 0.0
      %3484 = vmatpush1.msra.mxu0 0.0
      %3485 = vmatprep.subr.mxu0 0.0
      %3486 = vmatpush1.msra.mxu0 0.0
      %3487 = vmatprep.subr.mxu0 %v3384
      %3488 = vmatpush1.msra.mxu0 %v3381
      %3489 = vmatprep.subr.mxu0 0.0
      %3490 = vmatpush2.msra.mxu0 0.0
      %3491 = vmatprep.subr.mxu0 0.0
      %3492 = vmatpush2.msra.mxu0 0.0
      %3493 = vmatprep.subr.mxu0 0.0
      %3494 = vmatpush2.msra.mxu0 0.0
      %3495 = vmatprep.subr.mxu0 0.0
      %3496 = vmatpush2.msra.mxu0 0.0
      %3497 = vmatprep.subr.mxu0 0.0
      %3498 = vmatpush2.msra.mxu0 0.0
      %3499 = vmatprep.subr.mxu0 0.0
      %3500 = vmatpush2.msra.mxu0 0.0
      %3501 = vmatprep.subr.mxu0 0.0
      %3502 = vmatpush2.msra.mxu0 0.0
      %3503 = vmatprep.subr.mxu0 0.0
      %3504 = vmatpush2.msra.mxu0 0.0
      %3505 = vmatprep.subr.mxu0 0.0
      %3506 = vmatpush2.msra.mxu0 0.0
      %3507 = vmatprep.subr.mxu0 0.0
      %3508 = vmatpush2.msra.mxu0 0.0
      %3509 = vmatprep.subr.mxu0 0.0
      %3510 = vmatpush2.msra.mxu0 0.0
      %3511 = vmatprep.subr.mxu0 0.0
      %3512 = vmatpush2.msra.mxu0 0.0
      %3513 = vmatprep.subr.mxu0 0.0
      %3514 = vmatpush2.msra.mxu0 0.0
      %3515 = vmatprep.subr.mxu0 0.0
      %3516 = vmatpush2.msra.mxu0 0.0
      %3517 = vmatprep.subr.mxu0 0.0
      %3518 = vmatpush2.msra.mxu0 0.0
      %3519 = vmatprep.subr.mxu0 0.0
      %3520 = vmatpush2.msra.mxu0 0.0
      %3521 = vmatprep.mubr.f32.mxu0 0.0
      %3522 = vmatmul.mubr.f32.gmra.mxu0 %v3372
      %v3523 = vpop.f32.mrf.mxu0
      %v3524 = vadd.f32 0.0, %v3523
      %v3525 = vpop.f32.mrf.mxu0
      %v3526 = vadd.f32 0.0, %v3525
      %3527 = vdwg.mxu0
      %v3528 = vadd.f32 %v3313, %v3453
      %v3529 = vadd.f32 %v3314, %v3455
      %v3530 = vadd.f32 %v3315, %v3524
      %v3531 = vadd.f32 %v3316, %v3526
      %v3532 = vld [vmem:[%s342] sm:$0xff]
      %v3533 = vld [vmem:[%s342 + $0x8] sm:$0xff]
      %v3534 = vld [vmem:[%s342 + $0x10] sm:$0xf]
      %vm3535 = vmand %vm359, %vm360
      %v3536 = vsel %vm3535, 1, 0
      %v3537 = vlaneseq
      %v3538 = vshrl.u32 %v3537, 7
      %v3539 = vsub.s32 0, %v3538
      %v3540 = vrot.slane %v3536, %v3539
      %v3541 = vlaneseq
      %v3542 = vshrl.u32 %v3541, 7
      %v3543 = vsub.s32 1, %v3542
      %v3544 = vrot.slane %v3536, %v3543
      %v3545 = vlaneseq
      %v3546 = vshrl.u32 %v3545, 7
      %v3547 = vsub.s32 2, %v3546
      %v3548 = vrot.slane %v3536, %v3547
      %v3549 = vlaneseq
      %v3550 = vshrl.u32 %v3549, 7
      %v3551 = vsub.s32 3, %v3550
      %v3552 = vrot.slane %v3536, %v3551
      %vm3553 = vcmp.eq.s32.totalorder %v3540, 1
      %vm3554 = vcmp.eq.s32.totalorder %v3544, 1
      %vm3555 = vcmp.eq.s32.totalorder %v3548, 1
      %vm3556 = vcmp.eq.s32.totalorder %v3552, 1
      %v3560 = vcombine.high %v3532, %v3532
      %v3561 = vcombine.high %v3533, %v3533
      %3562 = vrot.lane.b32.xlu0 %v3532, 48
      %v3563 = vpop.permute.xlu0 %3562
      %3564 = vrot.lane.b32.xlu0 %v3560, 48
      %v3565 = vpop.permute.xlu0 %3564
      %3566 = vrot.lane.b32.xlu0 %v3533, 48
      %v3567 = vpop.permute.xlu0 %3566
      %3568 = vrot.lane.b32.xlu0 %v3561, 48
      %v3569 = vpop.permute.xlu0 %3568
      %3570 = vrot.lane.b32.xlu0 %v3534, 48
      %v3571 = vpop.permute.xlu0 %3570
      %vm3572 = vcmask 392192
      %v3573 = vsel %vm3572, %v3563, %v3565
      %v3574 = vsel %vm3572, %v3565, %v3567
      %v3575 = vsel %vm3572, %v3567, %v3569
      %v3576 = vsel %vm3572, %v3569, %v3571
      %v3581 = vsel %vm3553, %v3573, 0.0
      %v3582 = vsel %vm3554, %v3574, 0.0
      %v3583 = vsel %vm3555, %v3575, 0.0
      %v3584 = vsel %vm3556, %v3576, 0.0
      %s3585 = scalar_lea.vmem %s5, 60
      %v3586 = vld [vmem:[%s3585] sm:$0xf]
      %v3588 = vsel %vm446, %v3586, 0
      %v3591 = vsel %vm450, %v3581, 0
      %v3594 = vsel %vm450, %v3582, 0
      %v3597 = vsel %vm450, %v3583, 0
      %v3600 = vsel %vm450, %v3584, 0
      %3602 = vmatprep.subr.mxu0 0.0
      %3603 = vmatpush1.msra.mxu0 0.0
      %3604 = vmatprep.subr.mxu0 0.0
      %3605 = vmatpush1.msra.mxu0 0.0
      %3606 = vmatprep.subr.mxu0 0.0
      %3607 = vmatpush1.msra.mxu0 0.0
      %3608 = vmatprep.subr.mxu0 0.0
      %3609 = vmatpush1.msra.mxu0 0.0
      %3610 = vmatprep.subr.mxu0 0.0
      %3611 = vmatpush1.msra.mxu0 0.0
      %3612 = vmatprep.subr.mxu0 0.0
      %3613 = vmatpush1.msra.mxu0 0.0
      %3614 = vmatprep.subr.mxu0 0.0
      %3615 = vmatpush1.msra.mxu0 0.0
      %3616 = vmatprep.subr.mxu0 0.0
      %3617 = vmatpush1.msra.mxu0 0.0
      %3618 = vmatprep.subr.mxu0 0.0
      %3619 = vmatpush1.msra.mxu0 0.0
      %3620 = vmatprep.subr.mxu0 0.0
      %3621 = vmatpush1.msra.mxu0 0.0
      %3622 = vmatprep.subr.mxu0 0.0
      %3623 = vmatpush1.msra.mxu0 0.0
      %3624 = vmatprep.subr.mxu0 0.0
      %3625 = vmatpush1.msra.mxu0 0.0
      %3626 = vmatprep.subr.mxu0 0.0
      %3627 = vmatpush1.msra.mxu0 0.0
      %3628 = vmatprep.subr.mxu0 0.0
      %3629 = vmatpush1.msra.mxu0 0.0
      %3630 = vmatprep.subr.mxu0 0.0
      %3631 = vmatpush1.msra.mxu0 0.0
      %3632 = vmatprep.subr.mxu0 %v3594
      %3633 = vmatpush1.msra.mxu0 %v3591
      %3634 = vmatprep.subr.mxu0 0.0
      %3635 = vmatpush2.msra.mxu0 0.0
      %3636 = vmatprep.subr.mxu0 0.0
      %3637 = vmatpush2.msra.mxu0 0.0
      %3638 = vmatprep.subr.mxu0 0.0
      %3639 = vmatpush2.msra.mxu0 0.0
      %3640 = vmatprep.subr.mxu0 0.0
      %3641 = vmatpush2.msra.mxu0 0.0
      %3642 = vmatprep.subr.mxu0 0.0
      %3643 = vmatpush2.msra.mxu0 0.0
      %3644 = vmatprep.subr.mxu0 0.0
      %3645 = vmatpush2.msra.mxu0 0.0
      %3646 = vmatprep.subr.mxu0 0.0
      %3647 = vmatpush2.msra.mxu0 0.0
      %3648 = vmatprep.subr.mxu0 0.0
      %3649 = vmatpush2.msra.mxu0 0.0
      %3650 = vmatprep.subr.mxu0 0.0
      %3651 = vmatpush2.msra.mxu0 0.0
      %3652 = vmatprep.subr.mxu0 0.0
      %3653 = vmatpush2.msra.mxu0 0.0
      %3654 = vmatprep.subr.mxu0 0.0
      %3655 = vmatpush2.msra.mxu0 0.0
      %3656 = vmatprep.subr.mxu0 0.0
      %3657 = vmatpush2.msra.mxu0 0.0
      %3658 = vmatprep.subr.mxu0 0.0
      %3659 = vmatpush2.msra.mxu0 0.0
      %3660 = vmatprep.subr.mxu0 0.0
      %3661 = vmatpush2.msra.mxu0 0.0
      %3662 = vmatprep.subr.mxu0 0.0
      %3663 = vmatpush2.msra.mxu0 0.0
      %3664 = vmatprep.subr.mxu0 0.0
      %3665 = vmatpush2.msra.mxu0 0.0
      %3666 = vmatprep.mubr.f32.mxu0 0.0
      %3667 = vmatmul.mubr.f32.gmra.mxu0 %v3588
      %v3668 = vpop.f32.mrf.mxu0
      %v3669 = vadd.f32 0.0, %v3668
      %v3670 = vpop.f32.mrf.mxu0
      %v3671 = vadd.f32 0.0, %v3670
      %3672 = vdwg.mxu0
      %3673 = vmatprep.subr.mxu0 0.0
      %3674 = vmatpush1.msra.mxu0 0.0
      %3675 = vmatprep.subr.mxu0 0.0
      %3676 = vmatpush1.msra.mxu0 0.0
      %3677 = vmatprep.subr.mxu0 0.0
      %3678 = vmatpush1.msra.mxu0 0.0
      %3679 = vmatprep.subr.mxu0 0.0
      %3680 = vmatpush1.msra.mxu0 0.0
      %3681 = vmatprep.subr.mxu0 0.0
      %3682 = vmatpush1.msra.mxu0 0.0
      %3683 = vmatprep.subr.mxu0 0.0
      %3684 = vmatpush1.msra.mxu0 0.0
      %3685 = vmatprep.subr.mxu0 0.0
      %3686 = vmatpush1.msra.mxu0 0.0
      %3687 = vmatprep.subr.mxu0 0.0
      %3688 = vmatpush1.msra.mxu0 0.0
      %3689 = vmatprep.subr.mxu0 0.0
      %3690 = vmatpush1.msra.mxu0 0.0
      %3691 = vmatprep.subr.mxu0 0.0
      %3692 = vmatpush1.msra.mxu0 0.0
      %3693 = vmatprep.subr.mxu0 0.0
      %3694 = vmatpush1.msra.mxu0 0.0
      %3695 = vmatprep.subr.mxu0 0.0
      %3696 = vmatpush1.msra.mxu0 0.0
      %3697 = vmatprep.subr.mxu0 0.0
      %3698 = vmatpush1.msra.mxu0 0.0
      %3699 = vmatprep.subr.mxu0 0.0
      %3700 = vmatpush1.msra.mxu0 0.0
      %3701 = vmatprep.subr.mxu0 0.0
      %3702 = vmatpush1.msra.mxu0 0.0
      %3703 = vmatprep.subr.mxu0 %v3600
      %3704 = vmatpush1.msra.mxu0 %v3597
      %3705 = vmatprep.subr.mxu0 0.0
      %3706 = vmatpush2.msra.mxu0 0.0
      %3707 = vmatprep.subr.mxu0 0.0
      %3708 = vmatpush2.msra.mxu0 0.0
      %3709 = vmatprep.subr.mxu0 0.0
      %3710 = vmatpush2.msra.mxu0 0.0
      %3711 = vmatprep.subr.mxu0 0.0
      %3712 = vmatpush2.msra.mxu0 0.0
      %3713 = vmatprep.subr.mxu0 0.0
      %3714 = vmatpush2.msra.mxu0 0.0
      %3715 = vmatprep.subr.mxu0 0.0
      %3716 = vmatpush2.msra.mxu0 0.0
      %3717 = vmatprep.subr.mxu0 0.0
      %3718 = vmatpush2.msra.mxu0 0.0
      %3719 = vmatprep.subr.mxu0 0.0
      %3720 = vmatpush2.msra.mxu0 0.0
      %3721 = vmatprep.subr.mxu0 0.0
      %3722 = vmatpush2.msra.mxu0 0.0
      %3723 = vmatprep.subr.mxu0 0.0
      %3724 = vmatpush2.msra.mxu0 0.0
      %3725 = vmatprep.subr.mxu0 0.0
      %3726 = vmatpush2.msra.mxu0 0.0
      %3727 = vmatprep.subr.mxu0 0.0
      %3728 = vmatpush2.msra.mxu0 0.0
      %3729 = vmatprep.subr.mxu0 0.0
      %3730 = vmatpush2.msra.mxu0 0.0
      %3731 = vmatprep.subr.mxu0 0.0
      %3732 = vmatpush2.msra.mxu0 0.0
      %3733 = vmatprep.subr.mxu0 0.0
      %3734 = vmatpush2.msra.mxu0 0.0
      %3735 = vmatprep.subr.mxu0 0.0
      %3736 = vmatpush2.msra.mxu0 0.0
      %3737 = vmatprep.mubr.f32.mxu0 0.0
      %3738 = vmatmul.mubr.f32.gmra.mxu0 %v3588
      %v3739 = vpop.f32.mrf.mxu0
      %v3740 = vadd.f32 0.0, %v3739
      %v3741 = vpop.f32.mrf.mxu0
      %v3742 = vadd.f32 0.0, %v3741
      %3743 = vdwg.mxu0
      %v3744 = vadd.f32 %v3528, %v3669
      %v3745 = vadd.f32 %v3529, %v3671
      %v3746 = vadd.f32 %v3530, %v3740
      %v3747 = vadd.f32 %v3531, %v3742
      %v3748 = vld [vmem:[%s342] sm:$0xff]
      %v3749 = vld [vmem:[%s342 + $0x8] sm:$0xff]
      %v3750 = vld [vmem:[%s342 + $0x10] sm:$0xf]
      %v3751 = vsel %vm359, 1, 0
      %v3752 = vlaneseq
      %v3753 = vshrl.u32 %v3752, 7
      %v3754 = vsub.s32 0, %v3753
      %v3755 = vrot.slane %v3751, %v3754
      %v3756 = vlaneseq
      %v3757 = vshrl.u32 %v3756, 7
      %v3758 = vsub.s32 1, %v3757
      %v3759 = vrot.slane %v3751, %v3758
      %v3760 = vlaneseq
      %v3761 = vshrl.u32 %v3760, 7
      %v3762 = vsub.s32 2, %v3761
      %v3763 = vrot.slane %v3751, %v3762
      %v3764 = vlaneseq
      %v3765 = vshrl.u32 %v3764, 7
      %v3766 = vsub.s32 3, %v3765
      %v3767 = vrot.slane %v3751, %v3766
      %vm3768 = vcmp.eq.s32.totalorder %v3755, 1
      %vm3769 = vcmp.eq.s32.totalorder %v3759, 1
      %vm3770 = vcmp.eq.s32.totalorder %v3763, 1
      %vm3771 = vcmp.eq.s32.totalorder %v3767, 1
      %v3775 = vcombine.high %v3748, %v3748
      %v3776 = vcombine.high %v3749, %v3749
      %3777 = vrot.lane.b32.xlu0 %v3748, 47
      %v3778 = vpop.permute.xlu0 %3777
      %3779 = vrot.lane.b32.xlu0 %v3775, 47
      %v3780 = vpop.permute.xlu0 %3779
      %3781 = vrot.lane.b32.xlu0 %v3749, 47
      %v3782 = vpop.permute.xlu0 %3781
      %3783 = vrot.lane.b32.xlu0 %v3776, 47
      %v3784 = vpop.permute.xlu0 %3783
      %3785 = vrot.lane.b32.xlu0 %v3750, 47
      %v3786 = vpop.permute.xlu0 %3785
      %vm3787 = vcmask 384000
      %v3788 = vsel %vm3787, %v3778, %v3780
      %v3789 = vsel %vm3787, %v3780, %v3782
      %v3790 = vsel %vm3787, %v3782, %v3784
      %v3791 = vsel %vm3787, %v3784, %v3786
      %v3796 = vsel %vm3768, %v3788, 0.0
      %v3797 = vsel %vm3769, %v3789, 0.0
      %v3798 = vsel %vm3770, %v3790, 0.0
      %v3799 = vsel %vm3771, %v3791, 0.0
      %s3800 = scalar_lea.vmem %s5, 64
      %v3801 = vld [vmem:[%s3800] sm:$0xf]
      %v3803 = vsel %vm446, %v3801, 0
      %v3806 = vsel %vm450, %v3796, 0
      %v3809 = vsel %vm450, %v3797, 0
      %v3812 = vsel %vm450, %v3798, 0
      %v3815 = vsel %vm450, %v3799, 0
      %3817 = vmatprep.subr.mxu0 0.0
      %3818 = vmatpush1.msra.mxu0 0.0
      %3819 = vmatprep.subr.mxu0 0.0
      %3820 = vmatpush1.msra.mxu0 0.0
      %3821 = vmatprep.subr.mxu0 0.0
      %3822 = vmatpush1.msra.mxu0 0.0
      %3823 = vmatprep.subr.mxu0 0.0
      %3824 = vmatpush1.msra.mxu0 0.0
      %3825 = vmatprep.subr.mxu0 0.0
      %3826 = vmatpush1.msra.mxu0 0.0
      %3827 = vmatprep.subr.mxu0 0.0
      %3828 = vmatpush1.msra.mxu0 0.0
      %3829 = vmatprep.subr.mxu0 0.0
      %3830 = vmatpush1.msra.mxu0 0.0
      %3831 = vmatprep.subr.mxu0 0.0
      %3832 = vmatpush1.msra.mxu0 0.0
      %3833 = vmatprep.subr.mxu0 0.0
      %3834 = vmatpush1.msra.mxu0 0.0
      %3835 = vmatprep.subr.mxu0 0.0
      %3836 = vmatpush1.msra.mxu0 0.0
      %3837 = vmatprep.subr.mxu0 0.0
      %3838 = vmatpush1.msra.mxu0 0.0
      %3839 = vmatprep.subr.mxu0 0.0
      %3840 = vmatpush1.msra.mxu0 0.0
      %3841 = vmatprep.subr.mxu0 0.0
      %3842 = vmatpush1.msra.mxu0 0.0
      %3843 = vmatprep.subr.mxu0 0.0
      %3844 = vmatpush1.msra.mxu0 0.0
      %3845 = vmatprep.subr.mxu0 0.0
      %3846 = vmatpush1.msra.mxu0 0.0
      %3847 = vmatprep.subr.mxu0 %v3809
      %3848 = vmatpush1.msra.mxu0 %v3806
      %3849 = vmatprep.subr.mxu0 0.0
      %3850 = vmatpush2.msra.mxu0 0.0
      %3851 = vmatprep.subr.mxu0 0.0
      %3852 = vmatpush2.msra.mxu0 0.0
      %3853 = vmatprep.subr.mxu0 0.0
      %3854 = vmatpush2.msra.mxu0 0.0
      %3855 = vmatprep.subr.mxu0 0.0
      %3856 = vmatpush2.msra.mxu0 0.0
      %3857 = vmatprep.subr.mxu0 0.0
      %3858 = vmatpush2.msra.mxu0 0.0
      %3859 = vmatprep.subr.mxu0 0.0
      %3860 = vmatpush2.msra.mxu0 0.0
      %3861 = vmatprep.subr.mxu0 0.0
      %3862 = vmatpush2.msra.mxu0 0.0
      %3863 = vmatprep.subr.mxu0 0.0
      %3864 = vmatpush2.msra.mxu0 0.0
      %3865 = vmatprep.subr.mxu0 0.0
      %3866 = vmatpush2.msra.mxu0 0.0
      %3867 = vmatprep.subr.mxu0 0.0
      %3868 = vmatpush2.msra.mxu0 0.0
      %3869 = vmatprep.subr.mxu0 0.0
      %3870 = vmatpush2.msra.mxu0 0.0
      %3871 = vmatprep.subr.mxu0 0.0
      %3872 = vmatpush2.msra.mxu0 0.0
      %3873 = vmatprep.subr.mxu0 0.0
      %3874 = vmatpush2.msra.mxu0 0.0
      %3875 = vmatprep.subr.mxu0 0.0
      %3876 = vmatpush2.msra.mxu0 0.0
      %3877 = vmatprep.subr.mxu0 0.0
      %3878 = vmatpush2.msra.mxu0 0.0
      %3879 = vmatprep.subr.mxu0 0.0
      %3880 = vmatpush2.msra.mxu0 0.0
      %3881 = vmatprep.mubr.f32.mxu0 0.0
      %3882 = vmatmul.mubr.f32.gmra.mxu0 %v3803
      %v3883 = vpop.f32.mrf.mxu0
      %v3884 = vadd.f32 0.0, %v3883
      %v3885 = vpop.f32.mrf.mxu0
      %v3886 = vadd.f32 0.0, %v3885
      %3887 = vdwg.mxu0
      %3888 = vmatprep.subr.mxu0 0.0
      %3889 = vmatpush1.msra.mxu0 0.0
      %3890 = vmatprep.subr.mxu0 0.0
      %3891 = vmatpush1.msra.mxu0 0.0
      %3892 = vmatprep.subr.mxu0 0.0
      %3893 = vmatpush1.msra.mxu0 0.0
      %3894 = vmatprep.subr.mxu0 0.0
      %3895 = vmatpush1.msra.mxu0 0.0
      %3896 = vmatprep.subr.mxu0 0.0
      %3897 = vmatpush1.msra.mxu0 0.0
      %3898 = vmatprep.subr.mxu0 0.0
      %3899 = vmatpush1.msra.mxu0 0.0
      %3900 = vmatprep.subr.mxu0 0.0
      %3901 = vmatpush1.msra.mxu0 0.0
      %3902 = vmatprep.subr.mxu0 0.0
      %3903 = vmatpush1.msra.mxu0 0.0
      %3904 = vmatprep.subr.mxu0 0.0
      %3905 = vmatpush1.msra.mxu0 0.0
      %3906 = vmatprep.subr.mxu0 0.0
      %3907 = vmatpush1.msra.mxu0 0.0
      %3908 = vmatprep.subr.mxu0 0.0
      %3909 = vmatpush1.msra.mxu0 0.0
      %3910 = vmatprep.subr.mxu0 0.0
      %3911 = vmatpush1.msra.mxu0 0.0
      %3912 = vmatprep.subr.mxu0 0.0
      %3913 = vmatpush1.msra.mxu0 0.0
      %3914 = vmatprep.subr.mxu0 0.0
      %3915 = vmatpush1.msra.mxu0 0.0
      %3916 = vmatprep.subr.mxu0 0.0
      %3917 = vmatpush1.msra.mxu0 0.0
      %3918 = vmatprep.subr.mxu0 %v3815
      %3919 = vmatpush1.msra.mxu0 %v3812
      %3920 = vmatprep.subr.mxu0 0.0
      %3921 = vmatpush2.msra.mxu0 0.0
      %3922 = vmatprep.subr.mxu0 0.0
      %3923 = vmatpush2.msra.mxu0 0.0
      %3924 = vmatprep.subr.mxu0 0.0
      %3925 = vmatpush2.msra.mxu0 0.0
      %3926 = vmatprep.subr.mxu0 0.0
      %3927 = vmatpush2.msra.mxu0 0.0
      %3928 = vmatprep.subr.mxu0 0.0
      %3929 = vmatpush2.msra.mxu0 0.0
      %3930 = vmatprep.subr.mxu0 0.0
      %3931 = vmatpush2.msra.mxu0 0.0
      %3932 = vmatprep.subr.mxu0 0.0
      %3933 = vmatpush2.msra.mxu0 0.0
      %3934 = vmatprep.subr.mxu0 0.0
      %3935 = vmatpush2.msra.mxu0 0.0
      %3936 = vmatprep.subr.mxu0 0.0
      %3937 = vmatpush2.msra.mxu0 0.0
      %3938 = vmatprep.subr.mxu0 0.0
      %3939 = vmatpush2.msra.mxu0 0.0
      %3940 = vmatprep.subr.mxu0 0.0
      %3941 = vmatpush2.msra.mxu0 0.0
      %3942 = vmatprep.subr.mxu0 0.0
      %3943 = vmatpush2.msra.mxu0 0.0
      %3944 = vmatprep.subr.mxu0 0.0
      %3945 = vmatpush2.msra.mxu0 0.0
      %3946 = vmatprep.subr.mxu0 0.0
      %3947 = vmatpush2.msra.mxu0 0.0
      %3948 = vmatprep.subr.mxu0 0.0
      %3949 = vmatpush2.msra.mxu0 0.0
      %3950 = vmatprep.subr.mxu0 0.0
      %3951 = vmatpush2.msra.mxu0 0.0
      %3952 = vmatprep.mubr.f32.mxu0 0.0
      %3953 = vmatmul.mubr.f32.gmra.mxu0 %v3803
      %v3954 = vpop.f32.mrf.mxu0
      %v3955 = vadd.f32 0.0, %v3954
      %v3956 = vpop.f32.mrf.mxu0
      %v3957 = vadd.f32 0.0, %v3956
      %3958 = vdwg.mxu0
      %v3959 = vadd.f32 %v3744, %v3884
      %v3960 = vadd.f32 %v3745, %v3886
      %v3961 = vadd.f32 %v3746, %v3955
      %v3962 = vadd.f32 %v3747, %v3957
      %v3963 = vld [vmem:[%s342] sm:$0xff]
      %v3964 = vld [vmem:[%s342 + $0x8] sm:$0xff]
      %v3965 = vld [vmem:[%s342 + $0x10] sm:$0xf]
      %vm3966 = vmand %vm359, %vm361
      %v3967 = vsel %vm3966, 1, 0
      %v3968 = vlaneseq
      %v3969 = vshrl.u32 %v3968, 7
      %v3970 = vsub.s32 0, %v3969
      %v3971 = vrot.slane %v3967, %v3970
      %v3972 = vlaneseq
      %v3973 = vshrl.u32 %v3972, 7
      %v3974 = vsub.s32 1, %v3973
      %v3975 = vrot.slane %v3967, %v3974
      %v3976 = vlaneseq
      %v3977 = vshrl.u32 %v3976, 7
      %v3978 = vsub.s32 2, %v3977
      %v3979 = vrot.slane %v3967, %v3978
      %v3980 = vlaneseq
      %v3981 = vshrl.u32 %v3980, 7
      %v3982 = vsub.s32 3, %v3981
      %v3983 = vrot.slane %v3967, %v3982
      %vm3984 = vcmp.eq.s32.totalorder %v3971, 1
      %vm3985 = vcmp.eq.s32.totalorder %v3975, 1
      %vm3986 = vcmp.eq.s32.totalorder %v3979, 1
      %vm3987 = vcmp.eq.s32.totalorder %v3983, 1
      %v3991 = vcombine.high %v3963, %v3963
      %v3992 = vcombine.high %v3964, %v3964
      %3993 = vrot.lane.b32.xlu0 %v3963, 46
      %v3994 = vpop.permute.xlu0 %3993
      %3995 = vrot.lane.b32.xlu0 %v3991, 46
      %v3996 = vpop.permute.xlu0 %3995
      %3997 = vrot.lane.b32.xlu0 %v3964, 46
      %v3998 = vpop.permute.xlu0 %3997
      %3999 = vrot.lane.b32.xlu0 %v3992, 46
      %v4000 = vpop.permute.xlu0 %3999
      %4001 = vrot.lane.b32.xlu0 %v3965, 46
      %v4002 = vpop.permute.xlu0 %4001
      %vm4003 = vcmask 375808
      %v4004 = vsel %vm4003, %v3994, %v3996
      %v4005 = vsel %vm4003, %v3996, %v3998
      %v4006 = vsel %vm4003, %v3998, %v4000
      %v4007 = vsel %vm4003, %v4000, %v4002
      %v4012 = vsel %vm3984, %v4004, 0.0
      %v4013 = vsel %vm3985, %v4005, 0.0
      %v4014 = vsel %vm3986, %v4006, 0.0
      %v4015 = vsel %vm3987, %v4007, 0.0
      %s4016 = scalar_lea.vmem %s5, 68
      %v4017 = vld [vmem:[%s4016] sm:$0xf]
      %v4019 = vsel %vm446, %v4017, 0
      %v4022 = vsel %vm450, %v4012, 0
      %v4025 = vsel %vm450, %v4013, 0
      %v4028 = vsel %vm450, %v4014, 0
      %v4031 = vsel %vm450, %v4015, 0
      %4033 = vmatprep.subr.mxu0 0.0
      %4034 = vmatpush1.msra.mxu0 0.0
      %4035 = vmatprep.subr.mxu0 0.0
      %4036 = vmatpush1.msra.mxu0 0.0
      %4037 = vmatprep.subr.mxu0 0.0
      %4038 = vmatpush1.msra.mxu0 0.0
      %4039 = vmatprep.subr.mxu0 0.0
      %4040 = vmatpush1.msra.mxu0 0.0
      %4041 = vmatprep.subr.mxu0 0.0
      %4042 = vmatpush1.msra.mxu0 0.0
      %4043 = vmatprep.subr.mxu0 0.0
      %4044 = vmatpush1.msra.mxu0 0.0
      %4045 = vmatprep.subr.mxu0 0.0
      %4046 = vmatpush1.msra.mxu0 0.0
      %4047 = vmatprep.subr.mxu0 0.0
      %4048 = vmatpush1.msra.mxu0 0.0
      %4049 = vmatprep.subr.mxu0 0.0
      %4050 = vmatpush1.msra.mxu0 0.0
      %4051 = vmatprep.subr.mxu0 0.0
      %4052 = vmatpush1.msra.mxu0 0.0
      %4053 = vmatprep.subr.mxu0 0.0
      %4054 = vmatpush1.msra.mxu0 0.0
      %4055 = vmatprep.subr.mxu0 0.0
      %4056 = vmatpush1.msra.mxu0 0.0
      %4057 = vmatprep.subr.mxu0 0.0
      %4058 = vmatpush1.msra.mxu0 0.0
      %4059 = vmatprep.subr.mxu0 0.0
      %4060 = vmatpush1.msra.mxu0 0.0
      %4061 = vmatprep.subr.mxu0 0.0
      %4062 = vmatpush1.msra.mxu0 0.0
      %4063 = vmatprep.subr.mxu0 %v4025
      %4064 = vmatpush1.msra.mxu0 %v4022
      %4065 = vmatprep.subr.mxu0 0.0
      %4066 = vmatpush2.msra.mxu0 0.0
      %4067 = vmatprep.subr.mxu0 0.0
      %4068 = vmatpush2.msra.mxu0 0.0
      %4069 = vmatprep.subr.mxu0 0.0
      %4070 = vmatpush2.msra.mxu0 0.0
      %4071 = vmatprep.subr.mxu0 0.0
      %4072 = vmatpush2.msra.mxu0 0.0
      %4073 = vmatprep.subr.mxu0 0.0
      %4074 = vmatpush2.msra.mxu0 0.0
      %4075 = vmatprep.subr.mxu0 0.0
      %4076 = vmatpush2.msra.mxu0 0.0
      %4077 = vmatprep.subr.mxu0 0.0
      %4078 = vmatpush2.msra.mxu0 0.0
      %4079 = vmatprep.subr.mxu0 0.0
      %4080 = vmatpush2.msra.mxu0 0.0
      %4081 = vmatprep.subr.mxu0 0.0
      %4082 = vmatpush2.msra.mxu0 0.0
      %4083 = vmatprep.subr.mxu0 0.0
      %4084 = vmatpush2.msra.mxu0 0.0
      %4085 = vmatprep.subr.mxu0 0.0
      %4086 = vmatpush2.msra.mxu0 0.0
      %4087 = vmatprep.subr.mxu0 0.0
      %4088 = vmatpush2.msra.mxu0 0.0
      %4089 = vmatprep.subr.mxu0 0.0
      %4090 = vmatpush2.msra.mxu0 0.0
      %4091 = vmatprep.subr.mxu0 0.0
      %4092 = vmatpush2.msra.mxu0 0.0
      %4093 = vmatprep.subr.mxu0 0.0
      %4094 = vmatpush2.msra.mxu0 0.0
      %4095 = vmatprep.subr.mxu0 0.0
      %4096 = vmatpush2.msra.mxu0 0.0
      %4097 = vmatprep.mubr.f32.mxu0 0.0
      %4098 = vmatmul.mubr.f32.gmra.mxu0 %v4019
      %v4099 = vpop.f32.mrf.mxu0
      %v4100 = vadd.f32 0.0, %v4099
      %v4101 = vpop.f32.mrf.mxu0
      %v4102 = vadd.f32 0.0, %v4101
      %4103 = vdwg.mxu0
      %4104 = vmatprep.subr.mxu0 0.0
      %4105 = vmatpush1.msra.mxu0 0.0
      %4106 = vmatprep.subr.mxu0 0.0
      %4107 = vmatpush1.msra.mxu0 0.0
      %4108 = vmatprep.subr.mxu0 0.0
      %4109 = vmatpush1.msra.mxu0 0.0
      %4110 = vmatprep.subr.mxu0 0.0
      %4111 = vmatpush1.msra.mxu0 0.0
      %4112 = vmatprep.subr.mxu0 0.0
      %4113 = vmatpush1.msra.mxu0 0.0
      %4114 = vmatprep.subr.mxu0 0.0
      %4115 = vmatpush1.msra.mxu0 0.0
      %4116 = vmatprep.subr.mxu0 0.0
      %4117 = vmatpush1.msra.mxu0 0.0
      %4118 = vmatprep.subr.mxu0 0.0
      %4119 = vmatpush1.msra.mxu0 0.0
      %4120 = vmatprep.subr.mxu0 0.0
      %4121 = vmatpush1.msra.mxu0 0.0
      %4122 = vmatprep.subr.mxu0 0.0
      %4123 = vmatpush1.msra.mxu0 0.0
      %4124 = vmatprep.subr.mxu0 0.0
      %4125 = vmatpush1.msra.mxu0 0.0
      %4126 = vmatprep.subr.mxu0 0.0
      %4127 = vmatpush1.msra.mxu0 0.0
      %4128 = vmatprep.subr.mxu0 0.0
      %4129 = vmatpush1.msra.mxu0 0.0
      %4130 = vmatprep.subr.mxu0 0.0
      %4131 = vmatpush1.msra.mxu0 0.0
      %4132 = vmatprep.subr.mxu0 0.0
      %4133 = vmatpush1.msra.mxu0 0.0
      %4134 = vmatprep.subr.mxu0 %v4031
      %4135 = vmatpush1.msra.mxu0 %v4028
      %4136 = vmatprep.subr.mxu0 0.0
      %4137 = vmatpush2.msra.mxu0 0.0
      %4138 = vmatprep.subr.mxu0 0.0
      %4139 = vmatpush2.msra.mxu0 0.0
      %4140 = vmatprep.subr.mxu0 0.0
      %4141 = vmatpush2.msra.mxu0 0.0
      %4142 = vmatprep.subr.mxu0 0.0
      %4143 = vmatpush2.msra.mxu0 0.0
      %4144 = vmatprep.subr.mxu0 0.0
      %4145 = vmatpush2.msra.mxu0 0.0
      %4146 = vmatprep.subr.mxu0 0.0
      %4147 = vmatpush2.msra.mxu0 0.0
      %4148 = vmatprep.subr.mxu0 0.0
      %4149 = vmatpush2.msra.mxu0 0.0
      %4150 = vmatprep.subr.mxu0 0.0
      %4151 = vmatpush2.msra.mxu0 0.0
      %4152 = vmatprep.subr.mxu0 0.0
      %4153 = vmatpush2.msra.mxu0 0.0
      %4154 = vmatprep.subr.mxu0 0.0
      %4155 = vmatpush2.msra.mxu0 0.0
      %4156 = vmatprep.subr.mxu0 0.0
      %4157 = vmatpush2.msra.mxu0 0.0
      %4158 = vmatprep.subr.mxu0 0.0
      %4159 = vmatpush2.msra.mxu0 0.0
      %4160 = vmatprep.subr.mxu0 0.0
      %4161 = vmatpush2.msra.mxu0 0.0
      %4162 = vmatprep.subr.mxu0 0.0
      %4163 = vmatpush2.msra.mxu0 0.0
      %4164 = vmatprep.subr.mxu0 0.0
      %4165 = vmatpush2.msra.mxu0 0.0
      %4166 = vmatprep.subr.mxu0 0.0
      %4167 = vmatpush2.msra.mxu0 0.0
      %4168 = vmatprep.mubr.f32.mxu0 0.0
      %4169 = vmatmul.mubr.f32.gmra.mxu0 %v4019
      %v4170 = vpop.f32.mrf.mxu0
      %v4171 = vadd.f32 0.0, %v4170
      %v4172 = vpop.f32.mrf.mxu0
      %v4173 = vadd.f32 0.0, %v4172
      %4174 = vdwg.mxu0
      %v4175 = vadd.f32 %v3959, %v4100
      %v4176 = vadd.f32 %v3960, %v4102
      %v4177 = vadd.f32 %v3961, %v4171
      %v4178 = vadd.f32 %v3962, %v4173
      %v4179 = vld [vmem:[%s342 + $0x4] sm:$0xff]
      %v4180 = vld [vmem:[%s342 + $0xc] sm:$0xff]
      %vm4181 = vmand %vm357, %vm358
      %vm4182 = vmand %vm4181, %vm360
      %v4183 = vsel %vm4182, 1, 0
      %v4184 = vlaneseq
      %v4185 = vshrl.u32 %v4184, 7
      %v4186 = vsub.s32 0, %v4185
      %v4187 = vrot.slane %v4183, %v4186
      %v4188 = vlaneseq
      %v4189 = vshrl.u32 %v4188, 7
      %v4190 = vsub.s32 1, %v4189
      %v4191 = vrot.slane %v4183, %v4190
      %v4192 = vlaneseq
      %v4193 = vshrl.u32 %v4192, 7
      %v4194 = vsub.s32 2, %v4193
      %v4195 = vrot.slane %v4183, %v4194
      %v4196 = vlaneseq
      %v4197 = vshrl.u32 %v4196, 7
      %v4198 = vsub.s32 3, %v4197
      %v4199 = vrot.slane %v4183, %v4198
      %vm4200 = vcmp.eq.s32.totalorder %v4187, 1
      %vm4201 = vcmp.eq.s32.totalorder %v4191, 1
      %vm4202 = vcmp.eq.s32.totalorder %v4195, 1
      %vm4203 = vcmp.eq.s32.totalorder %v4199, 1
      %v4206 = vcombine.high %v4179, %v4179
      %v4207 = vcombine.high %v4180, %v4180
      %v4210 = vsel %vm4200, %v4179, 0.0
      %v4211 = vsel %vm4201, %v4206, 0.0
      %v4212 = vsel %vm4202, %v4180, 0.0
      %v4213 = vsel %vm4203, %v4207, 0.0
      %s4214 = scalar_lea.vmem %s5, 72
      %v4215 = vld [vmem:[%s4214] sm:$0xf]
      %v4217 = vsel %vm446, %v4215, 0
      %v4220 = vsel %vm450, %v4210, 0
      %v4223 = vsel %vm450, %v4211, 0
      %v4226 = vsel %vm450, %v4212, 0
      %v4229 = vsel %vm450, %v4213, 0
      %4231 = vmatprep.subr.mxu0 0.0
      %4232 = vmatpush1.msra.mxu0 0.0
      %4233 = vmatprep.subr.mxu0 0.0
      %4234 = vmatpush1.msra.mxu0 0.0
      %4235 = vmatprep.subr.mxu0 0.0
      %4236 = vmatpush1.msra.mxu0 0.0
      %4237 = vmatprep.subr.mxu0 0.0
      %4238 = vmatpush1.msra.mxu0 0.0
      %4239 = vmatprep.subr.mxu0 0.0
      %4240 = vmatpush1.msra.mxu0 0.0
      %4241 = vmatprep.subr.mxu0 0.0
      %4242 = vmatpush1.msra.mxu0 0.0
      %4243 = vmatprep.subr.mxu0 0.0
      %4244 = vmatpush1.msra.mxu0 0.0
      %4245 = vmatprep.subr.mxu0 0.0
      %4246 = vmatpush1.msra.mxu0 0.0
      %4247 = vmatprep.subr.mxu0 0.0
      %4248 = vmatpush1.msra.mxu0 0.0
      %4249 = vmatprep.subr.mxu0 0.0
      %4250 = vmatpush1.msra.mxu0 0.0
      %4251 = vmatprep.subr.mxu0 0.0
      %4252 = vmatpush1.msra.mxu0 0.0
      %4253 = vmatprep.subr.mxu0 0.0
      %4254 = vmatpush1.msra.mxu0 0.0
      %4255 = vmatprep.subr.mxu0 0.0
      %4256 = vmatpush1.msra.mxu0 0.0
      %4257 = vmatprep.subr.mxu0 0.0
      %4258 = vmatpush1.msra.mxu0 0.0
      %4259 = vmatprep.subr.mxu0 0.0
      %4260 = vmatpush1.msra.mxu0 0.0
      %4261 = vmatprep.subr.mxu0 %v4223
      %4262 = vmatpush1.msra.mxu0 %v4220
      %4263 = vmatprep.subr.mxu0 0.0
      %4264 = vmatpush2.msra.mxu0 0.0
      %4265 = vmatprep.subr.mxu0 0.0
      %4266 = vmatpush2.msra.mxu0 0.0
      %4267 = vmatprep.subr.mxu0 0.0
      %4268 = vmatpush2.msra.mxu0 0.0
      %4269 = vmatprep.subr.mxu0 0.0
      %4270 = vmatpush2.msra.mxu0 0.0
      %4271 = vmatprep.subr.mxu0 0.0
      %4272 = vmatpush2.msra.mxu0 0.0
      %4273 = vmatprep.subr.mxu0 0.0
      %4274 = vmatpush2.msra.mxu0 0.0
      %4275 = vmatprep.subr.mxu0 0.0
      %4276 = vmatpush2.msra.mxu0 0.0
      %4277 = vmatprep.subr.mxu0 0.0
      %4278 = vmatpush2.msra.mxu0 0.0
      %4279 = vmatprep.subr.mxu0 0.0
      %4280 = vmatpush2.msra.mxu0 0.0
      %4281 = vmatprep.subr.mxu0 0.0
      %4282 = vmatpush2.msra.mxu0 0.0
      %4283 = vmatprep.subr.mxu0 0.0
      %4284 = vmatpush2.msra.mxu0 0.0
      %4285 = vmatprep.subr.mxu0 0.0
      %4286 = vmatpush2.msra.mxu0 0.0
      %4287 = vmatprep.subr.mxu0 0.0
      %4288 = vmatpush2.msra.mxu0 0.0
      %4289 = vmatprep.subr.mxu0 0.0
      %4290 = vmatpush2.msra.mxu0 0.0
      %4291 = vmatprep.subr.mxu0 0.0
      %4292 = vmatpush2.msra.mxu0 0.0
      %4293 = vmatprep.subr.mxu0 0.0
      %4294 = vmatpush2.msra.mxu0 0.0
      %4295 = vmatprep.mubr.f32.mxu0 0.0
      %4296 = vmatmul.mubr.f32.gmra.mxu0 %v4217
      %v4297 = vpop.f32.mrf.mxu0
      %v4298 = vadd.f32 0.0, %v4297
      %v4299 = vpop.f32.mrf.mxu0
      %v4300 = vadd.f32 0.0, %v4299
      %4301 = vdwg.mxu0
      %4302 = vmatprep.subr.mxu0 0.0
      %4303 = vmatpush1.msra.mxu0 0.0
      %4304 = vmatprep.subr.mxu0 0.0
      %4305 = vmatpush1.msra.mxu0 0.0
      %4306 = vmatprep.subr.mxu0 0.0
      %4307 = vmatpush1.msra.mxu0 0.0
      %4308 = vmatprep.subr.mxu0 0.0
      %4309 = vmatpush1.msra.mxu0 0.0
      %4310 = vmatprep.subr.mxu0 0.0
      %4311 = vmatpush1.msra.mxu0 0.0
      %4312 = vmatprep.subr.mxu0 0.0
      %4313 = vmatpush1.msra.mxu0 0.0
      %4314 = vmatprep.subr.mxu0 0.0
      %4315 = vmatpush1.msra.mxu0 0.0
      %4316 = vmatprep.subr.mxu0 0.0
      %4317 = vmatpush1.msra.mxu0 0.0
      %4318 = vmatprep.subr.mxu0 0.0
      %4319 = vmatpush1.msra.mxu0 0.0
      %4320 = vmatprep.subr.mxu0 0.0
      %4321 = vmatpush1.msra.mxu0 0.0
      %4322 = vmatprep.subr.mxu0 0.0
      %4323 = vmatpush1.msra.mxu0 0.0
      %4324 = vmatprep.subr.mxu0 0.0
      %4325 = vmatpush1.msra.mxu0 0.0
      %4326 = vmatprep.subr.mxu0 0.0
      %4327 = vmatpush1.msra.mxu0 0.0
      %4328 = vmatprep.subr.mxu0 0.0
      %4329 = vmatpush1.msra.mxu0 0.0
      %4330 = vmatprep.subr.mxu0 0.0
      %4331 = vmatpush1.msra.mxu0 0.0
      %4332 = vmatprep.subr.mxu0 %v4229
      %4333 = vmatpush1.msra.mxu0 %v4226
      %4334 = vmatprep.subr.mxu0 0.0
      %4335 = vmatpush2.msra.mxu0 0.0
      %4336 = vmatprep.subr.mxu0 0.0
      %4337 = vmatpush2.msra.mxu0 0.0
      %4338 = vmatprep.subr.mxu0 0.0
      %4339 = vmatpush2.msra.mxu0 0.0
      %4340 = vmatprep.subr.mxu0 0.0
      %4341 = vmatpush2.msra.mxu0 0.0
      %4342 = vmatprep.subr.mxu0 0.0
      %4343 = vmatpush2.msra.mxu0 0.0
      %4344 = vmatprep.subr.mxu0 0.0
      %4345 = vmatpush2.msra.mxu0 0.0
      %4346 = vmatprep.subr.mxu0 0.0
      %4347 = vmatpush2.msra.mxu0 0.0
      %4348 = vmatprep.subr.mxu0 0.0
      %4349 = vmatpush2.msra.mxu0 0.0
      %4350 = vmatprep.subr.mxu0 0.0
      %4351 = vmatpush2.msra.mxu0 0.0
      %4352 = vmatprep.subr.mxu0 0.0
      %4353 = vmatpush2.msra.mxu0 0.0
      %4354 = vmatprep.subr.mxu0 0.0
      %4355 = vmatpush2.msra.mxu0 0.0
      %4356 = vmatprep.subr.mxu0 0.0
      %4357 = vmatpush2.msra.mxu0 0.0
      %4358 = vmatprep.subr.mxu0 0.0
      %4359 = vmatpush2.msra.mxu0 0.0
      %4360 = vmatprep.subr.mxu0 0.0
      %4361 = vmatpush2.msra.mxu0 0.0
      %4362 = vmatprep.subr.mxu0 0.0
      %4363 = vmatpush2.msra.mxu0 0.0
      %4364 = vmatprep.subr.mxu0 0.0
      %4365 = vmatpush2.msra.mxu0 0.0
      %4366 = vmatprep.mubr.f32.mxu0 0.0
      %4367 = vmatmul.mubr.f32.gmra.mxu0 %v4217
      %v4368 = vpop.f32.mrf.mxu0
      %v4369 = vadd.f32 0.0, %v4368
      %v4370 = vpop.f32.mrf.mxu0
      %v4371 = vadd.f32 0.0, %v4370
      %4372 = vdwg.mxu0
      %v4373 = vadd.f32 %v4175, %v4298
      %v4374 = vadd.f32 %v4176, %v4300
      %v4375 = vadd.f32 %v4177, %v4369
      %v4376 = vadd.f32 %v4178, %v4371
      %v4377 = vld [vmem:[%s342 + $0x4] sm:$0xff]
      %v4378 = vld [vmem:[%s342 + $0xc] sm:$0xff]
      %v4379 = vld [vmem:[%s342 + $0x14] sm:$0xf]
      %v4380 = vsel %vm4181, 1, 0
      %v4381 = vlaneseq
      %v4382 = vshrl.u32 %v4381, 7
      %v4383 = vsub.s32 0, %v4382
      %v4384 = vrot.slane %v4380, %v4383
      %v4385 = vlaneseq
      %v4386 = vshrl.u32 %v4385, 7
      %v4387 = vsub.s32 1, %v4386
      %v4388 = vrot.slane %v4380, %v4387
      %v4389 = vlaneseq
      %v4390 = vshrl.u32 %v4389, 7
      %v4391 = vsub.s32 2, %v4390
      %v4392 = vrot.slane %v4380, %v4391
      %v4393 = vlaneseq
      %v4394 = vshrl.u32 %v4393, 7
      %v4395 = vsub.s32 3, %v4394
      %v4396 = vrot.slane %v4380, %v4395
      %vm4397 = vcmp.eq.s32.totalorder %v4384, 1
      %vm4398 = vcmp.eq.s32.totalorder %v4388, 1
      %vm4399 = vcmp.eq.s32.totalorder %v4392, 1
      %vm4400 = vcmp.eq.s32.totalorder %v4396, 1
      %v4404 = vcombine.high %v4377, %v4377
      %v4405 = vcombine.high %v4378, %v4378
      %4406 = vrot.lane.b32.xlu0 %v4377, 127
      %v4407 = vpop.permute.xlu0 %4406
      %4408 = vrot.lane.b32.xlu0 %v4404, 127
      %v4409 = vpop.permute.xlu0 %4408
      %4410 = vrot.lane.b32.xlu0 %v4378, 127
      %v4411 = vpop.permute.xlu0 %4410
      %4412 = vrot.lane.b32.xlu0 %v4405, 127
      %v4413 = vpop.permute.xlu0 %4412
      %4414 = vrot.lane.b32.xlu0 %v4379, 127
      %v4415 = vpop.permute.xlu0 %4414
      %v4416 = vsel %vm431, %v4407, %v4409
      %v4417 = vsel %vm431, %v4409, %v4411
      %v4418 = vsel %vm431, %v4411, %v4413
      %v4419 = vsel %vm431, %v4413, %v4415
      %v4424 = vsel %vm4397, %v4416, 0.0
      %v4425 = vsel %vm4398, %v4417, 0.0
      %v4426 = vsel %vm4399, %v4418, 0.0
      %v4427 = vsel %vm4400, %v4419, 0.0
      %s4428 = scalar_lea.vmem %s5, 76
      %v4429 = vld [vmem:[%s4428] sm:$0xf]
      %v4431 = vsel %vm446, %v4429, 0
      %v4434 = vsel %vm450, %v4424, 0
      %v4437 = vsel %vm450, %v4425, 0
      %v4440 = vsel %vm450, %v4426, 0
      %v4443 = vsel %vm450, %v4427, 0
      %4445 = vmatprep.subr.mxu0 0.0
      %4446 = vmatpush1.msra.mxu0 0.0
      %4447 = vmatprep.subr.mxu0 0.0
      %4448 = vmatpush1.msra.mxu0 0.0
      %4449 = vmatprep.subr.mxu0 0.0
      %4450 = vmatpush1.msra.mxu0 0.0
      %4451 = vmatprep.subr.mxu0 0.0
      %4452 = vmatpush1.msra.mxu0 0.0
      %4453 = vmatprep.subr.mxu0 0.0
      %4454 = vmatpush1.msra.mxu0 0.0
      %4455 = vmatprep.subr.mxu0 0.0
      %4456 = vmatpush1.msra.mxu0 0.0
      %4457 = vmatprep.subr.mxu0 0.0
      %4458 = vmatpush1.msra.mxu0 0.0
      %4459 = vmatprep.subr.mxu0 0.0
      %4460 = vmatpush1.msra.mxu0 0.0
      %4461 = vmatprep.subr.mxu0 0.0
      %4462 = vmatpush1.msra.mxu0 0.0
      %4463 = vmatprep.subr.mxu0 0.0
      %4464 = vmatpush1.msra.mxu0 0.0
      %4465 = vmatprep.subr.mxu0 0.0
      %4466 = vmatpush1.msra.mxu0 0.0
      %4467 = vmatprep.subr.mxu0 0.0
      %4468 = vmatpush1.msra.mxu0 0.0
      %4469 = vmatprep.subr.mxu0 0.0
      %4470 = vmatpush1.msra.mxu0 0.0
      %4471 = vmatprep.subr.mxu0 0.0
      %4472 = vmatpush1.msra.mxu0 0.0
      %4473 = vmatprep.subr.mxu0 0.0
      %4474 = vmatpush1.msra.mxu0 0.0
      %4475 = vmatprep.subr.mxu0 %v4437
      %4476 = vmatpush1.msra.mxu0 %v4434
      %4477 = vmatprep.subr.mxu0 0.0
      %4478 = vmatpush2.msra.mxu0 0.0
      %4479 = vmatprep.subr.mxu0 0.0
      %4480 = vmatpush2.msra.mxu0 0.0
      %4481 = vmatprep.subr.mxu0 0.0
      %4482 = vmatpush2.msra.mxu0 0.0
      %4483 = vmatprep.subr.mxu0 0.0
      %4484 = vmatpush2.msra.mxu0 0.0
      %4485 = vmatprep.subr.mxu0 0.0
      %4486 = vmatpush2.msra.mxu0 0.0
      %4487 = vmatprep.subr.mxu0 0.0
      %4488 = vmatpush2.msra.mxu0 0.0
      %4489 = vmatprep.subr.mxu0 0.0
      %4490 = vmatpush2.msra.mxu0 0.0
      %4491 = vmatprep.subr.mxu0 0.0
      %4492 = vmatpush2.msra.mxu0 0.0
      %4493 = vmatprep.subr.mxu0 0.0
      %4494 = vmatpush2.msra.mxu0 0.0
      %4495 = vmatprep.subr.mxu0 0.0
      %4496 = vmatpush2.msra.mxu0 0.0
      %4497 = vmatprep.subr.mxu0 0.0
      %4498 = vmatpush2.msra.mxu0 0.0
      %4499 = vmatprep.subr.mxu0 0.0
      %4500 = vmatpush2.msra.mxu0 0.0
      %4501 = vmatprep.subr.mxu0 0.0
      %4502 = vmatpush2.msra.mxu0 0.0
      %4503 = vmatprep.subr.mxu0 0.0
      %4504 = vmatpush2.msra.mxu0 0.0
      %4505 = vmatprep.subr.mxu0 0.0
      %4506 = vmatpush2.msra.mxu0 0.0
      %4507 = vmatprep.subr.mxu0 0.0
      %4508 = vmatpush2.msra.mxu0 0.0
      %4509 = vmatprep.mubr.f32.mxu0 0.0
      %4510 = vmatmul.mubr.f32.gmra.mxu0 %v4431
      %v4511 = vpop.f32.mrf.mxu0
      %v4512 = vadd.f32 0.0, %v4511
      %v4513 = vpop.f32.mrf.mxu0
      %v4514 = vadd.f32 0.0, %v4513
      %4515 = vdwg.mxu0
      %4516 = vmatprep.subr.mxu0 0.0
      %4517 = vmatpush1.msra.mxu0 0.0
      %4518 = vmatprep.subr.mxu0 0.0
      %4519 = vmatpush1.msra.mxu0 0.0
      %4520 = vmatprep.subr.mxu0 0.0
      %4521 = vmatpush1.msra.mxu0 0.0
      %4522 = vmatprep.subr.mxu0 0.0
      %4523 = vmatpush1.msra.mxu0 0.0
      %4524 = vmatprep.subr.mxu0 0.0
      %4525 = vmatpush1.msra.mxu0 0.0
      %4526 = vmatprep.subr.mxu0 0.0
      %4527 = vmatpush1.msra.mxu0 0.0
      %4528 = vmatprep.subr.mxu0 0.0
      %4529 = vmatpush1.msra.mxu0 0.0
      %4530 = vmatprep.subr.mxu0 0.0
      %4531 = vmatpush1.msra.mxu0 0.0
      %4532 = vmatprep.subr.mxu0 0.0
      %4533 = vmatpush1.msra.mxu0 0.0
      %4534 = vmatprep.subr.mxu0 0.0
      %4535 = vmatpush1.msra.mxu0 0.0
      %4536 = vmatprep.subr.mxu0 0.0
      %4537 = vmatpush1.msra.mxu0 0.0
      %4538 = vmatprep.subr.mxu0 0.0
      %4539 = vmatpush1.msra.mxu0 0.0
      %4540 = vmatprep.subr.mxu0 0.0
      %4541 = vmatpush1.msra.mxu0 0.0
      %4542 = vmatprep.subr.mxu0 0.0
      %4543 = vmatpush1.msra.mxu0 0.0
      %4544 = vmatprep.subr.mxu0 0.0
      %4545 = vmatpush1.msra.mxu0 0.0
      %4546 = vmatprep.subr.mxu0 %v4443
      %4547 = vmatpush1.msra.mxu0 %v4440
      %4548 = vmatprep.subr.mxu0 0.0
      %4549 = vmatpush2.msra.mxu0 0.0
      %4550 = vmatprep.subr.mxu0 0.0
      %4551 = vmatpush2.msra.mxu0 0.0
      %4552 = vmatprep.subr.mxu0 0.0
      %4553 = vmatpush2.msra.mxu0 0.0
      %4554 = vmatprep.subr.mxu0 0.0
      %4555 = vmatpush2.msra.mxu0 0.0
      %4556 = vmatprep.subr.mxu0 0.0
      %4557 = vmatpush2.msra.mxu0 0.0
      %4558 = vmatprep.subr.mxu0 0.0
      %4559 = vmatpush2.msra.mxu0 0.0
      %4560 = vmatprep.subr.mxu0 0.0
      %4561 = vmatpush2.msra.mxu0 0.0
      %4562 = vmatprep.subr.mxu0 0.0
      %4563 = vmatpush2.msra.mxu0 0.0
      %4564 = vmatprep.subr.mxu0 0.0
      %4565 = vmatpush2.msra.mxu0 0.0
      %4566 = vmatprep.subr.mxu0 0.0
      %4567 = vmatpush2.msra.mxu0 0.0
      %4568 = vmatprep.subr.mxu0 0.0
      %4569 = vmatpush2.msra.mxu0 0.0
      %4570 = vmatprep.subr.mxu0 0.0
      %4571 = vmatpush2.msra.mxu0 0.0
      %4572 = vmatprep.subr.mxu0 0.0
      %4573 = vmatpush2.msra.mxu0 0.0
      %4574 = vmatprep.subr.mxu0 0.0
      %4575 = vmatpush2.msra.mxu0 0.0
      %4576 = vmatprep.subr.mxu0 0.0
      %4577 = vmatpush2.msra.mxu0 0.0
      %4578 = vmatprep.subr.mxu0 0.0
      %4579 = vmatpush2.msra.mxu0 0.0
      %4580 = vmatprep.mubr.f32.mxu0 0.0
      %4581 = vmatmul.mubr.f32.gmra.mxu0 %v4431
      %v4582 = vpop.f32.mrf.mxu0
      %v4583 = vadd.f32 0.0, %v4582
      %v4584 = vpop.f32.mrf.mxu0
      %v4585 = vadd.f32 0.0, %v4584
      %4586 = vdwg.mxu0
      %v4587 = vadd.f32 %v4373, %v4512
      %v4588 = vadd.f32 %v4374, %v4514
      %v4589 = vadd.f32 %v4375, %v4583
      %v4590 = vadd.f32 %v4376, %v4585
      %v4591 = vld [vmem:[%s342 + $0x4] sm:$0xff]
      %v4592 = vld [vmem:[%s342 + $0xc] sm:$0xff]
      %v4593 = vld [vmem:[%s342 + $0x14] sm:$0xf]
      %vm4594 = vmand %vm4181, %vm361
      %v4595 = vsel %vm4594, 1, 0
      %v4596 = vlaneseq
      %v4597 = vshrl.u32 %v4596, 7
      %v4598 = vsub.s32 0, %v4597
      %v4599 = vrot.slane %v4595, %v4598
      %v4600 = vlaneseq
      %v4601 = vshrl.u32 %v4600, 7
      %v4602 = vsub.s32 1, %v4601
      %v4603 = vrot.slane %v4595, %v4602
      %v4604 = vlaneseq
      %v4605 = vshrl.u32 %v4604, 7
      %v4606 = vsub.s32 2, %v4605
      %v4607 = vrot.slane %v4595, %v4606
      %v4608 = vlaneseq
      %v4609 = vshrl.u32 %v4608, 7
      %v4610 = vsub.s32 3, %v4609
      %v4611 = vrot.slane %v4595, %v4610
      %vm4612 = vcmp.eq.s32.totalorder %v4599, 1
      %vm4613 = vcmp.eq.s32.totalorder %v4603, 1
      %vm4614 = vcmp.eq.s32.totalorder %v4607, 1
      %vm4615 = vcmp.eq.s32.totalorder %v4611, 1
      %v4619 = vcombine.high %v4591, %v4591
      %v4620 = vcombine.high %v4592, %v4592
      %4621 = vrot.lane.b32.xlu0 %v4591, 126
      %v4622 = vpop.permute.xlu0 %4621
      %4623 = vrot.lane.b32.xlu0 %v4619, 126
      %v4624 = vpop.permute.xlu0 %4623
      %4625 = vrot.lane.b32.xlu0 %v4592, 126
      %v4626 = vpop.permute.xlu0 %4625
      %4627 = vrot.lane.b32.xlu0 %v4620, 126
      %v4628 = vpop.permute.xlu0 %4627
      %4629 = vrot.lane.b32.xlu0 %v4593, 126
      %v4630 = vpop.permute.xlu0 %4629
      %v4631 = vsel %vm802, %v4622, %v4624
      %v4632 = vsel %vm802, %v4624, %v4626
      %v4633 = vsel %vm802, %v4626, %v4628
      %v4634 = vsel %vm802, %v4628, %v4630
      %v4639 = vsel %vm4612, %v4631, 0.0
      %v4640 = vsel %vm4613, %v4632, 0.0
      %v4641 = vsel %vm4614, %v4633, 0.0
      %v4642 = vsel %vm4615, %v4634, 0.0
      %s4643 = scalar_lea.vmem %s5, 80
      %v4644 = vld [vmem:[%s4643] sm:$0xf]
      %v4646 = vsel %vm446, %v4644, 0
      %v4649 = vsel %vm450, %v4639, 0
      %v4652 = vsel %vm450, %v4640, 0
      %v4655 = vsel %vm450, %v4641, 0
      %v4658 = vsel %vm450, %v4642, 0
      %4660 = vmatprep.subr.mxu0 0.0
      %4661 = vmatpush1.msra.mxu0 0.0
      %4662 = vmatprep.subr.mxu0 0.0
      %4663 = vmatpush1.msra.mxu0 0.0
      %4664 = vmatprep.subr.mxu0 0.0
      %4665 = vmatpush1.msra.mxu0 0.0
      %4666 = vmatprep.subr.mxu0 0.0
      %4667 = vmatpush1.msra.mxu0 0.0
      %4668 = vmatprep.subr.mxu0 0.0
      %4669 = vmatpush1.msra.mxu0 0.0
      %4670 = vmatprep.subr.mxu0 0.0
      %4671 = vmatpush1.msra.mxu0 0.0
      %4672 = vmatprep.subr.mxu0 0.0
      %4673 = vmatpush1.msra.mxu0 0.0
      %4674 = vmatprep.subr.mxu0 0.0
      %4675 = vmatpush1.msra.mxu0 0.0
      %4676 = vmatprep.subr.mxu0 0.0
      %4677 = vmatpush1.msra.mxu0 0.0
      %4678 = vmatprep.subr.mxu0 0.0
      %4679 = vmatpush1.msra.mxu0 0.0
      %4680 = vmatprep.subr.mxu0 0.0
      %4681 = vmatpush1.msra.mxu0 0.0
      %4682 = vmatprep.subr.mxu0 0.0
      %4683 = vmatpush1.msra.mxu0 0.0
      %4684 = vmatprep.subr.mxu0 0.0
      %4685 = vmatpush1.msra.mxu0 0.0
      %4686 = vmatprep.subr.mxu0 0.0
      %4687 = vmatpush1.msra.mxu0 0.0
      %4688 = vmatprep.subr.mxu0 0.0
      %4689 = vmatpush1.msra.mxu0 0.0
      %4690 = vmatprep.subr.mxu0 %v4652
      %4691 = vmatpush1.msra.mxu0 %v4649
      %4692 = vmatprep.subr.mxu0 0.0
      %4693 = vmatpush2.msra.mxu0 0.0
      %4694 = vmatprep.subr.mxu0 0.0
      %4695 = vmatpush2.msra.mxu0 0.0
      %4696 = vmatprep.subr.mxu0 0.0
      %4697 = vmatpush2.msra.mxu0 0.0
      %4698 = vmatprep.subr.mxu0 0.0
      %4699 = vmatpush2.msra.mxu0 0.0
      %4700 = vmatprep.subr.mxu0 0.0
      %4701 = vmatpush2.msra.mxu0 0.0
      %4702 = vmatprep.subr.mxu0 0.0
      %4703 = vmatpush2.msra.mxu0 0.0
      %4704 = vmatprep.subr.mxu0 0.0
      %4705 = vmatpush2.msra.mxu0 0.0
      %4706 = vmatprep.subr.mxu0 0.0
      %4707 = vmatpush2.msra.mxu0 0.0
      %4708 = vmatprep.subr.mxu0 0.0
      %4709 = vmatpush2.msra.mxu0 0.0
      %4710 = vmatprep.subr.mxu0 0.0
      %4711 = vmatpush2.msra.mxu0 0.0
      %4712 = vmatprep.subr.mxu0 0.0
      %4713 = vmatpush2.msra.mxu0 0.0
      %4714 = vmatprep.subr.mxu0 0.0
      %4715 = vmatpush2.msra.mxu0 0.0
      %4716 = vmatprep.subr.mxu0 0.0
      %4717 = vmatpush2.msra.mxu0 0.0
      %4718 = vmatprep.subr.mxu0 0.0
      %4719 = vmatpush2.msra.mxu0 0.0
      %4720 = vmatprep.subr.mxu0 0.0
      %4721 = vmatpush2.msra.mxu0 0.0
      %4722 = vmatprep.subr.mxu0 0.0
      %4723 = vmatpush2.msra.mxu0 0.0
      %4724 = vmatprep.mubr.f32.mxu0 0.0
      %4725 = vmatmul.mubr.f32.gmra.mxu0 %v4646
      %v4726 = vpop.f32.mrf.mxu0
      %v4727 = vadd.f32 0.0, %v4726
      %v4728 = vpop.f32.mrf.mxu0
      %v4729 = vadd.f32 0.0, %v4728
      %4730 = vdwg.mxu0
      %4731 = vmatprep.subr.mxu0 0.0
      %4732 = vmatpush1.msra.mxu0 0.0
      %4733 = vmatprep.subr.mxu0 0.0
      %4734 = vmatpush1.msra.mxu0 0.0
      %4735 = vmatprep.subr.mxu0 0.0
      %4736 = vmatpush1.msra.mxu0 0.0
      %4737 = vmatprep.subr.mxu0 0.0
      %4738 = vmatpush1.msra.mxu0 0.0
      %4739 = vmatprep.subr.mxu0 0.0
      %4740 = vmatpush1.msra.mxu0 0.0
      %4741 = vmatprep.subr.mxu0 0.0
      %4742 = vmatpush1.msra.mxu0 0.0
      %4743 = vmatprep.subr.mxu0 0.0
      %4744 = vmatpush1.msra.mxu0 0.0
      %4745 = vmatprep.subr.mxu0 0.0
      %4746 = vmatpush1.msra.mxu0 0.0
      %4747 = vmatprep.subr.mxu0 0.0
      %4748 = vmatpush1.msra.mxu0 0.0
      %4749 = vmatprep.subr.mxu0 0.0
      %4750 = vmatpush1.msra.mxu0 0.0
      %4751 = vmatprep.subr.mxu0 0.0
      %4752 = vmatpush1.msra.mxu0 0.0
      %4753 = vmatprep.subr.mxu0 0.0
      %4754 = vmatpush1.msra.mxu0 0.0
      %4755 = vmatprep.subr.mxu0 0.0
      %4756 = vmatpush1.msra.mxu0 0.0
      %4757 = vmatprep.subr.mxu0 0.0
      %4758 = vmatpush1.msra.mxu0 0.0
      %4759 = vmatprep.subr.mxu0 0.0
      %4760 = vmatpush1.msra.mxu0 0.0
      %4761 = vmatprep.subr.mxu0 %v4658
      %4762 = vmatpush1.msra.mxu0 %v4655
      %4763 = vmatprep.subr.mxu0 0.0
      %4764 = vmatpush2.msra.mxu0 0.0
      %4765 = vmatprep.subr.mxu0 0.0
      %4766 = vmatpush2.msra.mxu0 0.0
      %4767 = vmatprep.subr.mxu0 0.0
      %4768 = vmatpush2.msra.mxu0 0.0
      %4769 = vmatprep.subr.mxu0 0.0
      %4770 = vmatpush2.msra.mxu0 0.0
      %4771 = vmatprep.subr.mxu0 0.0
      %4772 = vmatpush2.msra.mxu0 0.0
      %4773 = vmatprep.subr.mxu0 0.0
      %4774 = vmatpush2.msra.mxu0 0.0
      %4775 = vmatprep.subr.mxu0 0.0
      %4776 = vmatpush2.msra.mxu0 0.0
      %4777 = vmatprep.subr.mxu0 0.0
      %4778 = vmatpush2.msra.mxu0 0.0
      %4779 = vmatprep.subr.mxu0 0.0
      %4780 = vmatpush2.msra.mxu0 0.0
      %4781 = vmatprep.subr.mxu0 0.0
      %4782 = vmatpush2.msra.mxu0 0.0
      %4783 = vmatprep.subr.mxu0 0.0
      %4784 = vmatpush2.msra.mxu0 0.0
      %4785 = vmatprep.subr.mxu0 0.0
      %4786 = vmatpush2.msra.mxu0 0.0
      %4787 = vmatprep.subr.mxu0 0.0
      %4788 = vmatpush2.msra.mxu0 0.0
      %4789 = vmatprep.subr.mxu0 0.0
      %4790 = vmatpush2.msra.mxu0 0.0
      %4791 = vmatprep.subr.mxu0 0.0
      %4792 = vmatpush2.msra.mxu0 0.0
      %4793 = vmatprep.subr.mxu0 0.0
      %4794 = vmatpush2.msra.mxu0 0.0
      %4795 = vmatprep.mubr.f32.mxu0 0.0
      %4796 = vmatmul.mubr.f32.gmra.mxu0 %v4646
      %v4797 = vpop.f32.mrf.mxu0
      %v4798 = vadd.f32 0.0, %v4797
      %v4799 = vpop.f32.mrf.mxu0
      %v4800 = vadd.f32 0.0, %v4799
      %4801 = vdwg.mxu0
      %v4802 = vadd.f32 %v4587, %v4727
      %v4803 = vadd.f32 %v4588, %v4729
      %v4804 = vadd.f32 %v4589, %v4798
      %v4805 = vadd.f32 %v4590, %v4800
      %v4806 = vld [vmem:[%s342 + $0x4] sm:$0xff]
      %v4807 = vld [vmem:[%s342 + $0xc] sm:$0xff]
      %v4808 = vld [vmem:[%s342 + $0x14] sm:$0xf]
      %vm4809 = vmand %vm357, %vm360
      %v4810 = vsel %vm4809, 1, 0
      %v4811 = vlaneseq
      %v4812 = vshrl.u32 %v4811, 7
      %v4813 = vsub.s32 0, %v4812
      %v4814 = vrot.slane %v4810, %v4813
      %v4815 = vlaneseq
      %v4816 = vshrl.u32 %v4815, 7
      %v4817 = vsub.s32 1, %v4816
      %v4818 = vrot.slane %v4810, %v4817
      %v4819 = vlaneseq
      %v4820 = vshrl.u32 %v4819, 7
      %v4821 = vsub.s32 2, %v4820
      %v4822 = vrot.slane %v4810, %v4821
      %v4823 = vlaneseq
      %v4824 = vshrl.u32 %v4823, 7
      %v4825 = vsub.s32 3, %v4824
      %v4826 = vrot.slane %v4810, %v4825
      %vm4827 = vcmp.eq.s32.totalorder %v4814, 1
      %vm4828 = vcmp.eq.s32.totalorder %v4818, 1
      %vm4829 = vcmp.eq.s32.totalorder %v4822, 1
      %vm4830 = vcmp.eq.s32.totalorder %v4826, 1
      %v4834 = vcombine.high %v4806, %v4806
      %v4835 = vcombine.high %v4807, %v4807
      %4836 = vrot.lane.b32.xlu0 %v4806, 120
      %v4837 = vpop.permute.xlu0 %4836
      %4838 = vrot.lane.b32.xlu0 %v4834, 120
      %v4839 = vpop.permute.xlu0 %4838
      %4840 = vrot.lane.b32.xlu0 %v4807, 120
      %v4841 = vpop.permute.xlu0 %4840
      %4842 = vrot.lane.b32.xlu0 %v4835, 120
      %v4843 = vpop.permute.xlu0 %4842
      %4844 = vrot.lane.b32.xlu0 %v4808, 120
      %v4845 = vpop.permute.xlu0 %4844
      %v4846 = vsel %vm1018, %v4837, %v4839
      %v4847 = vsel %vm1018, %v4839, %v4841
      %v4848 = vsel %vm1018, %v4841, %v4843
      %v4849 = vsel %vm1018, %v4843, %v4845
      %v4854 = vsel %vm4827, %v4846, 0.0
      %v4855 = vsel %vm4828, %v4847, 0.0
      %v4856 = vsel %vm4829, %v4848, 0.0
      %v4857 = vsel %vm4830, %v4849, 0.0
      %s4858 = scalar_lea.vmem %s5, 84
      %v4859 = vld [vmem:[%s4858] sm:$0xf]
      %v4861 = vsel %vm446, %v4859, 0
      %v4864 = vsel %vm450, %v4854, 0
      %v4867 = vsel %vm450, %v4855, 0
      %v4870 = vsel %vm450, %v4856, 0
      %v4873 = vsel %vm450, %v4857, 0
      %4875 = vmatprep.subr.mxu0 0.0
      %4876 = vmatpush1.msra.mxu0 0.0
      %4877 = vmatprep.subr.mxu0 0.0
      %4878 = vmatpush1.msra.mxu0 0.0
      %4879 = vmatprep.subr.mxu0 0.0
      %4880 = vmatpush1.msra.mxu0 0.0
      %4881 = vmatprep.subr.mxu0 0.0
      %4882 = vmatpush1.msra.mxu0 0.0
      %4883 = vmatprep.subr.mxu0 0.0
      %4884 = vmatpush1.msra.mxu0 0.0
      %4885 = vmatprep.subr.mxu0 0.0
      %4886 = vmatpush1.msra.mxu0 0.0
      %4887 = vmatprep.subr.mxu0 0.0
      %4888 = vmatpush1.msra.mxu0 0.0
      %4889 = vmatprep.subr.mxu0 0.0
      %4890 = vmatpush1.msra.mxu0 0.0
      %4891 = vmatprep.subr.mxu0 0.0
      %4892 = vmatpush1.msra.mxu0 0.0
      %4893 = vmatprep.subr.mxu0 0.0
      %4894 = vmatpush1.msra.mxu0 0.0
      %4895 = vmatprep.subr.mxu0 0.0
      %4896 = vmatpush1.msra.mxu0 0.0
      %4897 = vmatprep.subr.mxu0 0.0
      %4898 = vmatpush1.msra.mxu0 0.0
      %4899 = vmatprep.subr.mxu0 0.0
      %4900 = vmatpush1.msra.mxu0 0.0
      %4901 = vmatprep.subr.mxu0 0.0
      %4902 = vmatpush1.msra.mxu0 0.0
      %4903 = vmatprep.subr.mxu0 0.0
      %4904 = vmatpush1.msra.mxu0 0.0
      %4905 = vmatprep.subr.mxu0 %v4867
      %4906 = vmatpush1.msra.mxu0 %v4864
      %4907 = vmatprep.subr.mxu0 0.0
      %4908 = vmatpush2.msra.mxu0 0.0
      %4909 = vmatprep.subr.mxu0 0.0
      %4910 = vmatpush2.msra.mxu0 0.0
      %4911 = vmatprep.subr.mxu0 0.0
      %4912 = vmatpush2.msra.mxu0 0.0
      %4913 = vmatprep.subr.mxu0 0.0
      %4914 = vmatpush2.msra.mxu0 0.0
      %4915 = vmatprep.subr.mxu0 0.0
      %4916 = vmatpush2.msra.mxu0 0.0
      %4917 = vmatprep.subr.mxu0 0.0
      %4918 = vmatpush2.msra.mxu0 0.0
      %4919 = vmatprep.subr.mxu0 0.0
      %4920 = vmatpush2.msra.mxu0 0.0
      %4921 = vmatprep.subr.mxu0 0.0
      %4922 = vmatpush2.msra.mxu0 0.0
      %4923 = vmatprep.subr.mxu0 0.0
      %4924 = vmatpush2.msra.mxu0 0.0
      %4925 = vmatprep.subr.mxu0 0.0
      %4926 = vmatpush2.msra.mxu0 0.0
      %4927 = vmatprep.subr.mxu0 0.0
      %4928 = vmatpush2.msra.mxu0 0.0
      %4929 = vmatprep.subr.mxu0 0.0
      %4930 = vmatpush2.msra.mxu0 0.0
      %4931 = vmatprep.subr.mxu0 0.0
      %4932 = vmatpush2.msra.mxu0 0.0
      %4933 = vmatprep.subr.mxu0 0.0
      %4934 = vmatpush2.msra.mxu0 0.0
      %4935 = vmatprep.subr.mxu0 0.0
      %4936 = vmatpush2.msra.mxu0 0.0
      %4937 = vmatprep.subr.mxu0 0.0
      %4938 = vmatpush2.msra.mxu0 0.0
      %4939 = vmatprep.mubr.f32.mxu0 0.0
      %4940 = vmatmul.mubr.f32.gmra.mxu0 %v4861
      %v4941 = vpop.f32.mrf.mxu0
      %v4942 = vadd.f32 0.0, %v4941
      %v4943 = vpop.f32.mrf.mxu0
      %v4944 = vadd.f32 0.0, %v4943
      %4945 = vdwg.mxu0
      %4946 = vmatprep.subr.mxu0 0.0
      %4947 = vmatpush1.msra.mxu0 0.0
      %4948 = vmatprep.subr.mxu0 0.0
      %4949 = vmatpush1.msra.mxu0 0.0
      %4950 = vmatprep.subr.mxu0 0.0
      %4951 = vmatpush1.msra.mxu0 0.0
      %4952 = vmatprep.subr.mxu0 0.0
      %4953 = vmatpush1.msra.mxu0 0.0
      %4954 = vmatprep.subr.mxu0 0.0
      %4955 = vmatpush1.msra.mxu0 0.0
      %4956 = vmatprep.subr.mxu0 0.0
      %4957 = vmatpush1.msra.mxu0 0.0
      %4958 = vmatprep.subr.mxu0 0.0
      %4959 = vmatpush1.msra.mxu0 0.0
      %4960 = vmatprep.subr.mxu0 0.0
      %4961 = vmatpush1.msra.mxu0 0.0
      %4962 = vmatprep.subr.mxu0 0.0
      %4963 = vmatpush1.msra.mxu0 0.0
      %4964 = vmatprep.subr.mxu0 0.0
      %4965 = vmatpush1.msra.mxu0 0.0
      %4966 = vmatprep.subr.mxu0 0.0
      %4967 = vmatpush1.msra.mxu0 0.0
      %4968 = vmatprep.subr.mxu0 0.0
      %4969 = vmatpush1.msra.mxu0 0.0
      %4970 = vmatprep.subr.mxu0 0.0
      %4971 = vmatpush1.msra.mxu0 0.0
      %4972 = vmatprep.subr.mxu0 0.0
      %4973 = vmatpush1.msra.mxu0 0.0
      %4974 = vmatprep.subr.mxu0 0.0
      %4975 = vmatpush1.msra.mxu0 0.0
      %4976 = vmatprep.subr.mxu0 %v4873
      %4977 = vmatpush1.msra.mxu0 %v4870
      %4978 = vmatprep.subr.mxu0 0.0
      %4979 = vmatpush2.msra.mxu0 0.0
      %4980 = vmatprep.subr.mxu0 0.0
      %4981 = vmatpush2.msra.mxu0 0.0
      %4982 = vmatprep.subr.mxu0 0.0
      %4983 = vmatpush2.msra.mxu0 0.0
      %4984 = vmatprep.subr.mxu0 0.0
      %4985 = vmatpush2.msra.mxu0 0.0
      %4986 = vmatprep.subr.mxu0 0.0
      %4987 = vmatpush2.msra.mxu0 0.0
      %4988 = vmatprep.subr.mxu0 0.0
      %4989 = vmatpush2.msra.mxu0 0.0
      %4990 = vmatprep.subr.mxu0 0.0
      %4991 = vmatpush2.msra.mxu0 0.0
      %4992 = vmatprep.subr.mxu0 0.0
      %4993 = vmatpush2.msra.mxu0 0.0
      %4994 = vmatprep.subr.mxu0 0.0
      %4995 = vmatpush2.msra.mxu0 0.0
      %4996 = vmatprep.subr.mxu0 0.0
      %4997 = vmatpush2.msra.mxu0 0.0
      %4998 = vmatprep.subr.mxu0 0.0
      %4999 = vmatpush2.msra.mxu0 0.0
      %5000 = vmatprep.subr.mxu0 0.0
      %5001 = vmatpush2.msra.mxu0 0.0
      %5002 = vmatprep.subr.mxu0 0.0
      %5003 = vmatpush2.msra.mxu0 0.0
      %5004 = vmatprep.subr.mxu0 0.0
      %5005 = vmatpush2.msra.mxu0 0.0
      %5006 = vmatprep.subr.mxu0 0.0
      %5007 = vmatpush2.msra.mxu0 0.0
      %5008 = vmatprep.subr.mxu0 0.0
      %5009 = vmatpush2.msra.mxu0 0.0
      %5010 = vmatprep.mubr.f32.mxu0 0.0
      %5011 = vmatmul.mubr.f32.gmra.mxu0 %v4861
      %v5012 = vpop.f32.mrf.mxu0
      %v5013 = vadd.f32 0.0, %v5012
      %v5014 = vpop.f32.mrf.mxu0
      %v5015 = vadd.f32 0.0, %v5014
      %5016 = vdwg.mxu0
      %v5017 = vadd.f32 %v4802, %v4942
      %v5018 = vadd.f32 %v4803, %v4944
      %v5019 = vadd.f32 %v4804, %v5013
      %v5020 = vadd.f32 %v4805, %v5015
      %v5021 = vld [vmem:[%s342 + $0x4] sm:$0xff]
      %v5022 = vld [vmem:[%s342 + $0xc] sm:$0xff]
      %v5023 = vld [vmem:[%s342 + $0x14] sm:$0xf]
      %v5024 = vsel %vm357, 1, 0
      %v5025 = vlaneseq
      %v5026 = vshrl.u32 %v5025, 7
      %v5027 = vsub.s32 0, %v5026
      %v5028 = vrot.slane %v5024, %v5027
      %v5029 = vlaneseq
      %v5030 = vshrl.u32 %v5029, 7
      %v5031 = vsub.s32 1, %v5030
      %v5032 = vrot.slane %v5024, %v5031
      %v5033 = vlaneseq
      %v5034 = vshrl.u32 %v5033, 7
      %v5035 = vsub.s32 2, %v5034
      %v5036 = vrot.slane %v5024, %v5035
      %v5037 = vlaneseq
      %v5038 = vshrl.u32 %v5037, 7
      %v5039 = vsub.s32 3, %v5038
      %v5040 = vrot.slane %v5024, %v5039
      %vm5041 = vcmp.eq.s32.totalorder %v5028, 1
      %vm5042 = vcmp.eq.s32.totalorder %v5032, 1
      %vm5043 = vcmp.eq.s32.totalorder %v5036, 1
      %vm5044 = vcmp.eq.s32.totalorder %v5040, 1
      %v5048 = vcombine.high %v5021, %v5021
      %v5049 = vcombine.high %v5022, %v5022
      %5050 = vrot.lane.b32.xlu0 %v5021, 119
      %v5051 = vpop.permute.xlu0 %5050
      %5052 = vrot.lane.b32.xlu0 %v5048, 119
      %v5053 = vpop.permute.xlu0 %5052
      %5054 = vrot.lane.b32.xlu0 %v5022, 119
      %v5055 = vpop.permute.xlu0 %5054
      %5056 = vrot.lane.b32.xlu0 %v5049, 119
      %v5057 = vpop.permute.xlu0 %5056
      %5058 = vrot.lane.b32.xlu0 %v5023, 119
      %v5059 = vpop.permute.xlu0 %5058
      %v5060 = vsel %vm1233, %v5051, %v5053
      %v5061 = vsel %vm1233, %v5053, %v5055
      %v5062 = vsel %vm1233, %v5055, %v5057
      %v5063 = vsel %vm1233, %v5057, %v5059
      %v5068 = vsel %vm5041, %v5060, 0.0
      %v5069 = vsel %vm5042, %v5061, 0.0
      %v5070 = vsel %vm5043, %v5062, 0.0
      %v5071 = vsel %vm5044, %v5063, 0.0
      %s5072 = scalar_lea.vmem %s5, 88
      %v5073 = vld [vmem:[%s5072] sm:$0xf]
      %v5075 = vsel %vm446, %v5073, 0
      %v5078 = vsel %vm450, %v5068, 0
      %v5081 = vsel %vm450, %v5069, 0
      %v5084 = vsel %vm450, %v5070, 0
      %v5087 = vsel %vm450, %v5071, 0
      %5089 = vmatprep.subr.mxu0 0.0
      %5090 = vmatpush1.msra.mxu0 0.0
      %5091 = vmatprep.subr.mxu0 0.0
      %5092 = vmatpush1.msra.mxu0 0.0
      %5093 = vmatprep.subr.mxu0 0.0
      %5094 = vmatpush1.msra.mxu0 0.0
      %5095 = vmatprep.subr.mxu0 0.0
      %5096 = vmatpush1.msra.mxu0 0.0
      %5097 = vmatprep.subr.mxu0 0.0
      %5098 = vmatpush1.msra.mxu0 0.0
      %5099 = vmatprep.subr.mxu0 0.0
      %5100 = vmatpush1.msra.mxu0 0.0
      %5101 = vmatprep.subr.mxu0 0.0
      %5102 = vmatpush1.msra.mxu0 0.0
      %5103 = vmatprep.subr.mxu0 0.0
      %5104 = vmatpush1.msra.mxu0 0.0
      %5105 = vmatprep.subr.mxu0 0.0
      %5106 = vmatpush1.msra.mxu0 0.0
      %5107 = vmatprep.subr.mxu0 0.0
      %5108 = vmatpush1.msra.mxu0 0.0
      %5109 = vmatprep.subr.mxu0 0.0
      %5110 = vmatpush1.msra.mxu0 0.0
      %5111 = vmatprep.subr.mxu0 0.0
      %5112 = vmatpush1.msra.mxu0 0.0
      %5113 = vmatprep.subr.mxu0 0.0
      %5114 = vmatpush1.msra.mxu0 0.0
      %5115 = vmatprep.subr.mxu0 0.0
      %5116 = vmatpush1.msra.mxu0 0.0
      %5117 = vmatprep.subr.mxu0 0.0
      %5118 = vmatpush1.msra.mxu0 0.0
      %5119 = vmatprep.subr.mxu0 %v5081
      %5120 = vmatpush1.msra.mxu0 %v5078
      %5121 = vmatprep.subr.mxu0 0.0
      %5122 = vmatpush2.msra.mxu0 0.0
      %5123 = vmatprep.subr.mxu0 0.0
      %5124 = vmatpush2.msra.mxu0 0.0
      %5125 = vmatprep.subr.mxu0 0.0
      %5126 = vmatpush2.msra.mxu0 0.0
      %5127 = vmatprep.subr.mxu0 0.0
      %5128 = vmatpush2.msra.mxu0 0.0
      %5129 = vmatprep.subr.mxu0 0.0
      %5130 = vmatpush2.msra.mxu0 0.0
      %5131 = vmatprep.subr.mxu0 0.0
      %5132 = vmatpush2.msra.mxu0 0.0
      %5133 = vmatprep.subr.mxu0 0.0
      %5134 = vmatpush2.msra.mxu0 0.0
      %5135 = vmatprep.subr.mxu0 0.0
      %5136 = vmatpush2.msra.mxu0 0.0
      %5137 = vmatprep.subr.mxu0 0.0
      %5138 = vmatpush2.msra.mxu0 0.0
      %5139 = vmatprep.subr.mxu0 0.0
      %5140 = vmatpush2.msra.mxu0 0.0
      %5141 = vmatprep.subr.mxu0 0.0
      %5142 = vmatpush2.msra.mxu0 0.0
      %5143 = vmatprep.subr.mxu0 0.0
      %5144 = vmatpush2.msra.mxu0 0.0
      %5145 = vmatprep.subr.mxu0 0.0
      %5146 = vmatpush2.msra.mxu0 0.0
      %5147 = vmatprep.subr.mxu0 0.0
      %5148 = vmatpush2.msra.mxu0 0.0
      %5149 = vmatprep.subr.mxu0 0.0
      %5150 = vmatpush2.msra.mxu0 0.0
      %5151 = vmatprep.subr.mxu0 0.0
      %5152 = vmatpush2.msra.mxu0 0.0
      %5153 = vmatprep.mubr.f32.mxu0 0.0
      %5154 = vmatmul.mubr.f32.gmra.mxu0 %v5075
      %v5155 = vpop.f32.mrf.mxu0
      %v5156 = vadd.f32 0.0, %v5155
      %v5157 = vpop.f32.mrf.mxu0
      %v5158 = vadd.f32 0.0, %v5157
      %5159 = vdwg.mxu0
      %5160 = vmatprep.subr.mxu0 0.0
      %5161 = vmatpush1.msra.mxu0 0.0
      %5162 = vmatprep.subr.mxu0 0.0
      %5163 = vmatpush1.msra.mxu0 0.0
      %5164 = vmatprep.subr.mxu0 0.0
      %5165 = vmatpush1.msra.mxu0 0.0
      %5166 = vmatprep.subr.mxu0 0.0
      %5167 = vmatpush1.msra.mxu0 0.0
      %5168 = vmatprep.subr.mxu0 0.0
      %5169 = vmatpush1.msra.mxu0 0.0
      %5170 = vmatprep.subr.mxu0 0.0
      %5171 = vmatpush1.msra.mxu0 0.0
      %5172 = vmatprep.subr.mxu0 0.0
      %5173 = vmatpush1.msra.mxu0 0.0
      %5174 = vmatprep.subr.mxu0 0.0
      %5175 = vmatpush1.msra.mxu0 0.0
      %5176 = vmatprep.subr.mxu0 0.0
      %5177 = vmatpush1.msra.mxu0 0.0
      %5178 = vmatprep.subr.mxu0 0.0
      %5179 = vmatpush1.msra.mxu0 0.0
      %5180 = vmatprep.subr.mxu0 0.0
      %5181 = vmatpush1.msra.mxu0 0.0
      %5182 = vmatprep.subr.mxu0 0.0
      %5183 = vmatpush1.msra.mxu0 0.0
      %5184 = vmatprep.subr.mxu0 0.0
      %5185 = vmatpush1.msra.mxu0 0.0
      %5186 = vmatprep.subr.mxu0 0.0
      %5187 = vmatpush1.msra.mxu0 0.0
      %5188 = vmatprep.subr.mxu0 0.0
      %5189 = vmatpush1.msra.mxu0 0.0
      %5190 = vmatprep.subr.mxu0 %v5087
      %5191 = vmatpush1.msra.mxu0 %v5084
      %5192 = vmatprep.subr.mxu0 0.0
      %5193 = vmatpush2.msra.mxu0 0.0
      %5194 = vmatprep.subr.mxu0 0.0
      %5195 = vmatpush2.msra.mxu0 0.0
      %5196 = vmatprep.subr.mxu0 0.0
      %5197 = vmatpush2.msra.mxu0 0.0
      %5198 = vmatprep.subr.mxu0 0.0
      %5199 = vmatpush2.msra.mxu0 0.0
      %5200 = vmatprep.subr.mxu0 0.0
      %5201 = vmatpush2.msra.mxu0 0.0
      %5202 = vmatprep.subr.mxu0 0.0
      %5203 = vmatpush2.msra.mxu0 0.0
      %5204 = vmatprep.subr.mxu0 0.0
      %5205 = vmatpush2.msra.mxu0 0.0
      %5206 = vmatprep.subr.mxu0 0.0
      %5207 = vmatpush2.msra.mxu0 0.0
      %5208 = vmatprep.subr.mxu0 0.0
      %5209 = vmatpush2.msra.mxu0 0.0
      %5210 = vmatprep.subr.mxu0 0.0
      %5211 = vmatpush2.msra.mxu0 0.0
      %5212 = vmatprep.subr.mxu0 0.0
      %5213 = vmatpush2.msra.mxu0 0.0
      %5214 = vmatprep.subr.mxu0 0.0
      %5215 = vmatpush2.msra.mxu0 0.0
      %5216 = vmatprep.subr.mxu0 0.0
      %5217 = vmatpush2.msra.mxu0 0.0
      %5218 = vmatprep.subr.mxu0 0.0
      %5219 = vmatpush2.msra.mxu0 0.0
      %5220 = vmatprep.subr.mxu0 0.0
      %5221 = vmatpush2.msra.mxu0 0.0
      %5222 = vmatprep.subr.mxu0 0.0
      %5223 = vmatpush2.msra.mxu0 0.0
      %5224 = vmatprep.mubr.f32.mxu0 0.0
      %5225 = vmatmul.mubr.f32.gmra.mxu0 %v5075
      %v5226 = vpop.f32.mrf.mxu0
      %v5227 = vadd.f32 0.0, %v5226
      %v5228 = vpop.f32.mrf.mxu0
      %v5229 = vadd.f32 0.0, %v5228
      %5230 = vdwg.mxu0
      %v5231 = vadd.f32 %v5017, %v5156
      %v5232 = vadd.f32 %v5018, %v5158
      %v5233 = vadd.f32 %v5019, %v5227
      %v5234 = vadd.f32 %v5020, %v5229
      %v5235 = vld [vmem:[%s342 + $0x4] sm:$0xff]
      %v5236 = vld [vmem:[%s342 + $0xc] sm:$0xff]
      %v5237 = vld [vmem:[%s342 + $0x14] sm:$0xf]
      %vm5238 = vmand %vm357, %vm361
      %v5239 = vsel %vm5238, 1, 0
      %v5240 = vlaneseq
      %v5241 = vshrl.u32 %v5240, 7
      %v5242 = vsub.s32 0, %v5241
      %v5243 = vrot.slane %v5239, %v5242
      %v5244 = vlaneseq
      %v5245 = vshrl.u32 %v5244, 7
      %v5246 = vsub.s32 1, %v5245
      %v5247 = vrot.slane %v5239, %v5246
      %v5248 = vlaneseq
      %v5249 = vshrl.u32 %v5248, 7
      %v5250 = vsub.s32 2, %v5249
      %v5251 = vrot.slane %v5239, %v5250
      %v5252 = vlaneseq
      %v5253 = vshrl.u32 %v5252, 7
      %v5254 = vsub.s32 3, %v5253
      %v5255 = vrot.slane %v5239, %v5254
      %vm5256 = vcmp.eq.s32.totalorder %v5243, 1
      %vm5257 = vcmp.eq.s32.totalorder %v5247, 1
      %vm5258 = vcmp.eq.s32.totalorder %v5251, 1
      %vm5259 = vcmp.eq.s32.totalorder %v5255, 1
      %v5263 = vcombine.high %v5235, %v5235
      %v5264 = vcombine.high %v5236, %v5236
      %5265 = vrot.lane.b32.xlu0 %v5235, 118
      %v5266 = vpop.permute.xlu0 %5265
      %5267 = vrot.lane.b32.xlu0 %v5263, 118
      %v5268 = vpop.permute.xlu0 %5267
      %5269 = vrot.lane.b32.xlu0 %v5236, 118
      %v5270 = vpop.permute.xlu0 %5269
      %5271 = vrot.lane.b32.xlu0 %v5264, 118
      %v5272 = vpop.permute.xlu0 %5271
      %5273 = vrot.lane.b32.xlu0 %v5237, 118
      %v5274 = vpop.permute.xlu0 %5273
      %v5275 = vsel %vm1449, %v5266, %v5268
      %v5276 = vsel %vm1449, %v5268, %v5270
      %v5277 = vsel %vm1449, %v5270, %v5272
      %v5278 = vsel %vm1449, %v5272, %v5274
      %v5283 = vsel %vm5256, %v5275, 0.0
      %v5284 = vsel %vm5257, %v5276, 0.0
      %v5285 = vsel %vm5258, %v5277, 0.0
      %v5286 = vsel %vm5259, %v5278, 0.0
      %s5287 = scalar_lea.vmem %s5, 92
      %v5288 = vld [vmem:[%s5287] sm:$0xf]
      %v5290 = vsel %vm446, %v5288, 0
      %v5293 = vsel %vm450, %v5283, 0
      %v5296 = vsel %vm450, %v5284, 0
      %v5299 = vsel %vm450, %v5285, 0
      %v5302 = vsel %vm450, %v5286, 0
      %5304 = vmatprep.subr.mxu0 0.0
      %5305 = vmatpush1.msra.mxu0 0.0
      %5306 = vmatprep.subr.mxu0 0.0
      %5307 = vmatpush1.msra.mxu0 0.0
      %5308 = vmatprep.subr.mxu0 0.0
      %5309 = vmatpush1.msra.mxu0 0.0
      %5310 = vmatprep.subr.mxu0 0.0
      %5311 = vmatpush1.msra.mxu0 0.0
      %5312 = vmatprep.subr.mxu0 0.0
      %5313 = vmatpush1.msra.mxu0 0.0
      %5314 = vmatprep.subr.mxu0 0.0
      %5315 = vmatpush1.msra.mxu0 0.0
      %5316 = vmatprep.subr.mxu0 0.0
      %5317 = vmatpush1.msra.mxu0 0.0
      %5318 = vmatprep.subr.mxu0 0.0
      %5319 = vmatpush1.msra.mxu0 0.0
      %5320 = vmatprep.subr.mxu0 0.0
      %5321 = vmatpush1.msra.mxu0 0.0
      %5322 = vmatprep.subr.mxu0 0.0
      %5323 = vmatpush1.msra.mxu0 0.0
      %5324 = vmatprep.subr.mxu0 0.0
      %5325 = vmatpush1.msra.mxu0 0.0
      %5326 = vmatprep.subr.mxu0 0.0
      %5327 = vmatpush1.msra.mxu0 0.0
      %5328 = vmatprep.subr.mxu0 0.0
      %5329 = vmatpush1.msra.mxu0 0.0
      %5330 = vmatprep.subr.mxu0 0.0
      %5331 = vmatpush1.msra.mxu0 0.0
      %5332 = vmatprep.subr.mxu0 0.0
      %5333 = vmatpush1.msra.mxu0 0.0
      %5334 = vmatprep.subr.mxu0 %v5296
      %5335 = vmatpush1.msra.mxu0 %v5293
      %5336 = vmatprep.subr.mxu0 0.0
      %5337 = vmatpush2.msra.mxu0 0.0
      %5338 = vmatprep.subr.mxu0 0.0
      %5339 = vmatpush2.msra.mxu0 0.0
      %5340 = vmatprep.subr.mxu0 0.0
      %5341 = vmatpush2.msra.mxu0 0.0
      %5342 = vmatprep.subr.mxu0 0.0
      %5343 = vmatpush2.msra.mxu0 0.0
      %5344 = vmatprep.subr.mxu0 0.0
      %5345 = vmatpush2.msra.mxu0 0.0
      %5346 = vmatprep.subr.mxu0 0.0
      %5347 = vmatpush2.msra.mxu0 0.0
      %5348 = vmatprep.subr.mxu0 0.0
      %5349 = vmatpush2.msra.mxu0 0.0
      %5350 = vmatprep.subr.mxu0 0.0
      %5351 = vmatpush2.msra.mxu0 0.0
      %5352 = vmatprep.subr.mxu0 0.0
      %5353 = vmatpush2.msra.mxu0 0.0
      %5354 = vmatprep.subr.mxu0 0.0
      %5355 = vmatpush2.msra.mxu0 0.0
      %5356 = vmatprep.subr.mxu0 0.0
      %5357 = vmatpush2.msra.mxu0 0.0
      %5358 = vmatprep.subr.mxu0 0.0
      %5359 = vmatpush2.msra.mxu0 0.0
      %5360 = vmatprep.subr.mxu0 0.0
      %5361 = vmatpush2.msra.mxu0 0.0
      %5362 = vmatprep.subr.mxu0 0.0
      %5363 = vmatpush2.msra.mxu0 0.0
      %5364 = vmatprep.subr.mxu0 0.0
      %5365 = vmatpush2.msra.mxu0 0.0
      %5366 = vmatprep.subr.mxu0 0.0
      %5367 = vmatpush2.msra.mxu0 0.0
      %5368 = vmatprep.mubr.f32.mxu0 0.0
      %5369 = vmatmul.mubr.f32.gmra.mxu0 %v5290
      %v5370 = vpop.f32.mrf.mxu0
      %v5371 = vadd.f32 0.0, %v5370
      %v5372 = vpop.f32.mrf.mxu0
      %v5373 = vadd.f32 0.0, %v5372
      %5374 = vdwg.mxu0
      %5375 = vmatprep.subr.mxu0 0.0
      %5376 = vmatpush1.msra.mxu0 0.0
      %5377 = vmatprep.subr.mxu0 0.0
      %5378 = vmatpush1.msra.mxu0 0.0
      %5379 = vmatprep.subr.mxu0 0.0
      %5380 = vmatpush1.msra.mxu0 0.0
      %5381 = vmatprep.subr.mxu0 0.0
      %5382 = vmatpush1.msra.mxu0 0.0
      %5383 = vmatprep.subr.mxu0 0.0
      %5384 = vmatpush1.msra.mxu0 0.0
      %5385 = vmatprep.subr.mxu0 0.0
      %5386 = vmatpush1.msra.mxu0 0.0
      %5387 = vmatprep.subr.mxu0 0.0
      %5388 = vmatpush1.msra.mxu0 0.0
      %5389 = vmatprep.subr.mxu0 0.0
      %5390 = vmatpush1.msra.mxu0 0.0
      %5391 = vmatprep.subr.mxu0 0.0
      %5392 = vmatpush1.msra.mxu0 0.0
      %5393 = vmatprep.subr.mxu0 0.0
      %5394 = vmatpush1.msra.mxu0 0.0
      %5395 = vmatprep.subr.mxu0 0.0
      %5396 = vmatpush1.msra.mxu0 0.0
      %5397 = vmatprep.subr.mxu0 0.0
      %5398 = vmatpush1.msra.mxu0 0.0
      %5399 = vmatprep.subr.mxu0 0.0
      %5400 = vmatpush1.msra.mxu0 0.0
      %5401 = vmatprep.subr.mxu0 0.0
      %5402 = vmatpush1.msra.mxu0 0.0
      %5403 = vmatprep.subr.mxu0 0.0
      %5404 = vmatpush1.msra.mxu0 0.0
      %5405 = vmatprep.subr.mxu0 %v5302
      %5406 = vmatpush1.msra.mxu0 %v5299
      %5407 = vmatprep.subr.mxu0 0.0
      %5408 = vmatpush2.msra.mxu0 0.0
      %5409 = vmatprep.subr.mxu0 0.0
      %5410 = vmatpush2.msra.mxu0 0.0
      %5411 = vmatprep.subr.mxu0 0.0
      %5412 = vmatpush2.msra.mxu0 0.0
      %5413 = vmatprep.subr.mxu0 0.0
      %5414 = vmatpush2.msra.mxu0 0.0
      %5415 = vmatprep.subr.mxu0 0.0
      %5416 = vmatpush2.msra.mxu0 0.0
      %5417 = vmatprep.subr.mxu0 0.0
      %5418 = vmatpush2.msra.mxu0 0.0
      %5419 = vmatprep.subr.mxu0 0.0
      %5420 = vmatpush2.msra.mxu0 0.0
      %5421 = vmatprep.subr.mxu0 0.0
      %5422 = vmatpush2.msra.mxu0 0.0
      %5423 = vmatprep.subr.mxu0 0.0
      %5424 = vmatpush2.msra.mxu0 0.0
      %5425 = vmatprep.subr.mxu0 0.0
      %5426 = vmatpush2.msra.mxu0 0.0
      %5427 = vmatprep.subr.mxu0 0.0
      %5428 = vmatpush2.msra.mxu0 0.0
      %5429 = vmatprep.subr.mxu0 0.0
      %5430 = vmatpush2.msra.mxu0 0.0
      %5431 = vmatprep.subr.mxu0 0.0
      %5432 = vmatpush2.msra.mxu0 0.0
      %5433 = vmatprep.subr.mxu0 0.0
      %5434 = vmatpush2.msra.mxu0 0.0
      %5435 = vmatprep.subr.mxu0 0.0
      %5436 = vmatpush2.msra.mxu0 0.0
      %5437 = vmatprep.subr.mxu0 0.0
      %5438 = vmatpush2.msra.mxu0 0.0
      %5439 = vmatprep.mubr.f32.mxu0 0.0
      %5440 = vmatmul.mubr.f32.gmra.mxu0 %v5290
      %v5441 = vpop.f32.mrf.mxu0
      %v5442 = vadd.f32 0.0, %v5441
      %v5443 = vpop.f32.mrf.mxu0
      %v5444 = vadd.f32 0.0, %v5443
      %5445 = vdwg.mxu0
      %v5446 = vadd.f32 %v5231, %v5371
      %v5447 = vadd.f32 %v5232, %v5373
      %v5448 = vadd.f32 %v5233, %v5442
      %v5449 = vadd.f32 %v5234, %v5444
      %v5450 = vld [vmem:[%s342 + $0x4] sm:$0xff]
      %v5451 = vld [vmem:[%s342 + $0xc] sm:$0xff]
      %v5452 = vld [vmem:[%s342 + $0x14] sm:$0xf]
      %vm5453 = vmand %vm357, %vm359
      %vm5454 = vmand %vm5453, %vm360
      %v5455 = vsel %vm5454, 1, 0
      %v5456 = vlaneseq
      %v5457 = vshrl.u32 %v5456, 7
      %v5458 = vsub.s32 0, %v5457
      %v5459 = vrot.slane %v5455, %v5458
      %v5460 = vlaneseq
      %v5461 = vshrl.u32 %v5460, 7
      %v5462 = vsub.s32 1, %v5461
      %v5463 = vrot.slane %v5455, %v5462
      %v5464 = vlaneseq
      %v5465 = vshrl.u32 %v5464, 7
      %v5466 = vsub.s32 2, %v5465
      %v5467 = vrot.slane %v5455, %v5466
      %v5468 = vlaneseq
      %v5469 = vshrl.u32 %v5468, 7
      %v5470 = vsub.s32 3, %v5469
      %v5471 = vrot.slane %v5455, %v5470
      %vm5472 = vcmp.eq.s32.totalorder %v5459, 1
      %vm5473 = vcmp.eq.s32.totalorder %v5463, 1
      %vm5474 = vcmp.eq.s32.totalorder %v5467, 1
      %vm5475 = vcmp.eq.s32.totalorder %v5471, 1
      %v5479 = vcombine.high %v5450, %v5450
      %v5480 = vcombine.high %v5451, %v5451
      %5481 = vrot.lane.b32.xlu0 %v5450, 112
      %v5482 = vpop.permute.xlu0 %5481
      %5483 = vrot.lane.b32.xlu0 %v5479, 112
      %v5484 = vpop.permute.xlu0 %5483
      %5485 = vrot.lane.b32.xlu0 %v5451, 112
      %v5486 = vpop.permute.xlu0 %5485
      %5487 = vrot.lane.b32.xlu0 %v5480, 112
      %v5488 = vpop.permute.xlu0 %5487
      %5489 = vrot.lane.b32.xlu0 %v5452, 112
      %v5490 = vpop.permute.xlu0 %5489
      %v5491 = vsel %vm1666, %v5482, %v5484
      %v5492 = vsel %vm1666, %v5484, %v5486
      %v5493 = vsel %vm1666, %v5486, %v5488
      %v5494 = vsel %vm1666, %v5488, %v5490
      %v5499 = vsel %vm5472, %v5491, 0.0
      %v5500 = vsel %vm5473, %v5492, 0.0
      %v5501 = vsel %vm5474, %v5493, 0.0
      %v5502 = vsel %vm5475, %v5494, 0.0
      %s5503 = scalar_lea.vmem %s5, 96
      %v5504 = vld [vmem:[%s5503] sm:$0xf]
      %v5506 = vsel %vm446, %v5504, 0
      %v5509 = vsel %vm450, %v5499, 0
      %v5512 = vsel %vm450, %v5500, 0
      %v5515 = vsel %vm450, %v5501, 0
      %v5518 = vsel %vm450, %v5502, 0
      %5520 = vmatprep.subr.mxu0 0.0
      %5521 = vmatpush1.msra.mxu0 0.0
      %5522 = vmatprep.subr.mxu0 0.0
      %5523 = vmatpush1.msra.mxu0 0.0
      %5524 = vmatprep.subr.mxu0 0.0
      %5525 = vmatpush1.msra.mxu0 0.0
      %5526 = vmatprep.subr.mxu0 0.0
      %5527 = vmatpush1.msra.mxu0 0.0
      %5528 = vmatprep.subr.mxu0 0.0
      %5529 = vmatpush1.msra.mxu0 0.0
      %5530 = vmatprep.subr.mxu0 0.0
      %5531 = vmatpush1.msra.mxu0 0.0
      %5532 = vmatprep.subr.mxu0 0.0
      %5533 = vmatpush1.msra.mxu0 0.0
      %5534 = vmatprep.subr.mxu0 0.0
      %5535 = vmatpush1.msra.mxu0 0.0
      %5536 = vmatprep.subr.mxu0 0.0
      %5537 = vmatpush1.msra.mxu0 0.0
      %5538 = vmatprep.subr.mxu0 0.0
      %5539 = vmatpush1.msra.mxu0 0.0
      %5540 = vmatprep.subr.mxu0 0.0
      %5541 = vmatpush1.msra.mxu0 0.0
      %5542 = vmatprep.subr.mxu0 0.0
      %5543 = vmatpush1.msra.mxu0 0.0
      %5544 = vmatprep.subr.mxu0 0.0
      %5545 = vmatpush1.msra.mxu0 0.0
      %5546 = vmatprep.subr.mxu0 0.0
      %5547 = vmatpush1.msra.mxu0 0.0
      %5548 = vmatprep.subr.mxu0 0.0
      %5549 = vmatpush1.msra.mxu0 0.0
      %5550 = vmatprep.subr.mxu0 %v5512
      %5551 = vmatpush1.msra.mxu0 %v5509
      %5552 = vmatprep.subr.mxu0 0.0
      %5553 = vmatpush2.msra.mxu0 0.0
      %5554 = vmatprep.subr.mxu0 0.0
      %5555 = vmatpush2.msra.mxu0 0.0
      %5556 = vmatprep.subr.mxu0 0.0
      %5557 = vmatpush2.msra.mxu0 0.0
      %5558 = vmatprep.subr.mxu0 0.0
      %5559 = vmatpush2.msra.mxu0 0.0
      %5560 = vmatprep.subr.mxu0 0.0
      %5561 = vmatpush2.msra.mxu0 0.0
      %5562 = vmatprep.subr.mxu0 0.0
      %5563 = vmatpush2.msra.mxu0 0.0
      %5564 = vmatprep.subr.mxu0 0.0
      %5565 = vmatpush2.msra.mxu0 0.0
      %5566 = vmatprep.subr.mxu0 0.0
      %5567 = vmatpush2.msra.mxu0 0.0
      %5568 = vmatprep.subr.mxu0 0.0
      %5569 = vmatpush2.msra.mxu0 0.0
      %5570 = vmatprep.subr.mxu0 0.0
      %5571 = vmatpush2.msra.mxu0 0.0
      %5572 = vmatprep.subr.mxu0 0.0
      %5573 = vmatpush2.msra.mxu0 0.0
      %5574 = vmatprep.subr.mxu0 0.0
      %5575 = vmatpush2.msra.mxu0 0.0
      %5576 = vmatprep.subr.mxu0 0.0
      %5577 = vmatpush2.msra.mxu0 0.0
      %5578 = vmatprep.subr.mxu0 0.0
      %5579 = vmatpush2.msra.mxu0 0.0
      %5580 = vmatprep.subr.mxu0 0.0
      %5581 = vmatpush2.msra.mxu0 0.0
      %5582 = vmatprep.subr.mxu0 0.0
      %5583 = vmatpush2.msra.mxu0 0.0
      %5584 = vmatprep.mubr.f32.mxu0 0.0
      %5585 = vmatmul.mubr.f32.gmra.mxu0 %v5506
      %v5586 = vpop.f32.mrf.mxu0
      %v5587 = vadd.f32 0.0, %v5586
      %v5588 = vpop.f32.mrf.mxu0
      %v5589 = vadd.f32 0.0, %v5588
      %5590 = vdwg.mxu0
      %5591 = vmatprep.subr.mxu0 0.0
      %5592 = vmatpush1.msra.mxu0 0.0
      %5593 = vmatprep.subr.mxu0 0.0
      %5594 = vmatpush1.msra.mxu0 0.0
      %5595 = vmatprep.subr.mxu0 0.0
      %5596 = vmatpush1.msra.mxu0 0.0
      %5597 = vmatprep.subr.mxu0 0.0
      %5598 = vmatpush1.msra.mxu0 0.0
      %5599 = vmatprep.subr.mxu0 0.0
      %5600 = vmatpush1.msra.mxu0 0.0
      %5601 = vmatprep.subr.mxu0 0.0
      %5602 = vmatpush1.msra.mxu0 0.0
      %5603 = vmatprep.subr.mxu0 0.0
      %5604 = vmatpush1.msra.mxu0 0.0
      %5605 = vmatprep.subr.mxu0 0.0
      %5606 = vmatpush1.msra.mxu0 0.0
      %5607 = vmatprep.subr.mxu0 0.0
      %5608 = vmatpush1.msra.mxu0 0.0
      %5609 = vmatprep.subr.mxu0 0.0
      %5610 = vmatpush1.msra.mxu0 0.0
      %5611 = vmatprep.subr.mxu0 0.0
      %5612 = vmatpush1.msra.mxu0 0.0
      %5613 = vmatprep.subr.mxu0 0.0
      %5614 = vmatpush1.msra.mxu0 0.0
      %5615 = vmatprep.subr.mxu0 0.0
      %5616 = vmatpush1.msra.mxu0 0.0
      %5617 = vmatprep.subr.mxu0 0.0
      %5618 = vmatpush1.msra.mxu0 0.0
      %5619 = vmatprep.subr.mxu0 0.0
      %5620 = vmatpush1.msra.mxu0 0.0
      %5621 = vmatprep.subr.mxu0 %v5518
      %5622 = vmatpush1.msra.mxu0 %v5515
      %5623 = vmatprep.subr.mxu0 0.0
      %5624 = vmatpush2.msra.mxu0 0.0
      %5625 = vmatprep.subr.mxu0 0.0
      %5626 = vmatpush2.msra.mxu0 0.0
      %5627 = vmatprep.subr.mxu0 0.0
      %5628 = vmatpush2.msra.mxu0 0.0
      %5629 = vmatprep.subr.mxu0 0.0
      %5630 = vmatpush2.msra.mxu0 0.0
      %5631 = vmatprep.subr.mxu0 0.0
      %5632 = vmatpush2.msra.mxu0 0.0
      %5633 = vmatprep.subr.mxu0 0.0
      %5634 = vmatpush2.msra.mxu0 0.0
      %5635 = vmatprep.subr.mxu0 0.0
      %5636 = vmatpush2.msra.mxu0 0.0
      %5637 = vmatprep.subr.mxu0 0.0
      %5638 = vmatpush2.msra.mxu0 0.0
      %5639 = vmatprep.subr.mxu0 0.0
      %5640 = vmatpush2.msra.mxu0 0.0
      %5641 = vmatprep.subr.mxu0 0.0
      %5642 = vmatpush2.msra.mxu0 0.0
      %5643 = vmatprep.subr.mxu0 0.0
      %5644 = vmatpush2.msra.mxu0 0.0
      %5645 = vmatprep.subr.mxu0 0.0
      %5646 = vmatpush2.msra.mxu0 0.0
      %5647 = vmatprep.subr.mxu0 0.0
      %5648 = vmatpush2.msra.mxu0 0.0
      %5649 = vmatprep.subr.mxu0 0.0
      %5650 = vmatpush2.msra.mxu0 0.0
      %5651 = vmatprep.subr.mxu0 0.0
      %5652 = vmatpush2.msra.mxu0 0.0
      %5653 = vmatprep.subr.mxu0 0.0
      %5654 = vmatpush2.msra.mxu0 0.0
      %5655 = vmatprep.mubr.f32.mxu0 0.0
      %5656 = vmatmul.mubr.f32.gmra.mxu0 %v5506
      %v5657 = vpop.f32.mrf.mxu0
      %v5658 = vadd.f32 0.0, %v5657
      %v5659 = vpop.f32.mrf.mxu0
      %v5660 = vadd.f32 0.0, %v5659
      %5661 = vdwg.mxu0
      %v5662 = vadd.f32 %v5446, %v5587
      %v5663 = vadd.f32 %v5447, %v5589
      %v5664 = vadd.f32 %v5448, %v5658
      %v5665 = vadd.f32 %v5449, %v5660
      %v5666 = vld [vmem:[%s342 + $0x4] sm:$0xff]
      %v5667 = vld [vmem:[%s342 + $0xc] sm:$0xff]
      %v5668 = vld [vmem:[%s342 + $0x14] sm:$0xf]
      %v5669 = vsel %vm5453, 1, 0
      %v5670 = vlaneseq
      %v5671 = vshrl.u32 %v5670, 7
      %v5672 = vsub.s32 0, %v5671
      %v5673 = vrot.slane %v5669, %v5672
      %v5674 = vlaneseq
      %v5675 = vshrl.u32 %v5674, 7
      %v5676 = vsub.s32 1, %v5675
      %v5677 = vrot.slane %v5669, %v5676
      %v5678 = vlaneseq
      %v5679 = vshrl.u32 %v5678, 7
      %v5680 = vsub.s32 2, %v5679
      %v5681 = vrot.slane %v5669, %v5680
      %v5682 = vlaneseq
      %v5683 = vshrl.u32 %v5682, 7
      %v5684 = vsub.s32 3, %v5683
      %v5685 = vrot.slane %v5669, %v5684
      %vm5686 = vcmp.eq.s32.totalorder %v5673, 1
      %vm5687 = vcmp.eq.s32.totalorder %v5677, 1
      %vm5688 = vcmp.eq.s32.totalorder %v5681, 1
      %vm5689 = vcmp.eq.s32.totalorder %v5685, 1
      %v5693 = vcombine.high %v5666, %v5666
      %v5694 = vcombine.high %v5667, %v5667
      %5695 = vrot.lane.b32.xlu0 %v5666, 111
      %v5696 = vpop.permute.xlu0 %5695
      %5697 = vrot.lane.b32.xlu0 %v5693, 111
      %v5698 = vpop.permute.xlu0 %5697
      %5699 = vrot.lane.b32.xlu0 %v5667, 111
      %v5700 = vpop.permute.xlu0 %5699
      %5701 = vrot.lane.b32.xlu0 %v5694, 111
      %v5702 = vpop.permute.xlu0 %5701
      %5703 = vrot.lane.b32.xlu0 %v5668, 111
      %v5704 = vpop.permute.xlu0 %5703
      %v5705 = vsel %vm1881, %v5696, %v5698
      %v5706 = vsel %vm1881, %v5698, %v5700
      %v5707 = vsel %vm1881, %v5700, %v5702
      %v5708 = vsel %vm1881, %v5702, %v5704
      %v5713 = vsel %vm5686, %v5705, 0.0
      %v5714 = vsel %vm5687, %v5706, 0.0
      %v5715 = vsel %vm5688, %v5707, 0.0
      %v5716 = vsel %vm5689, %v5708, 0.0
      %s5717 = scalar_lea.vmem %s5, 100
      %v5718 = vld [vmem:[%s5717] sm:$0xf]
      %v5720 = vsel %vm446, %v5718, 0
      %v5723 = vsel %vm450, %v5713, 0
      %v5726 = vsel %vm450, %v5714, 0
      %v5729 = vsel %vm450, %v5715, 0
      %v5732 = vsel %vm450, %v5716, 0
      %5734 = vmatprep.subr.mxu0 0.0
      %5735 = vmatpush1.msra.mxu0 0.0
      %5736 = vmatprep.subr.mxu0 0.0
      %5737 = vmatpush1.msra.mxu0 0.0
      %5738 = vmatprep.subr.mxu0 0.0
      %5739 = vmatpush1.msra.mxu0 0.0
      %5740 = vmatprep.subr.mxu0 0.0
      %5741 = vmatpush1.msra.mxu0 0.0
      %5742 = vmatprep.subr.mxu0 0.0
      %5743 = vmatpush1.msra.mxu0 0.0
      %5744 = vmatprep.subr.mxu0 0.0
      %5745 = vmatpush1.msra.mxu0 0.0
      %5746 = vmatprep.subr.mxu0 0.0
      %5747 = vmatpush1.msra.mxu0 0.0
      %5748 = vmatprep.subr.mxu0 0.0
      %5749 = vmatpush1.msra.mxu0 0.0
      %5750 = vmatprep.subr.mxu0 0.0
      %5751 = vmatpush1.msra.mxu0 0.0
      %5752 = vmatprep.subr.mxu0 0.0
      %5753 = vmatpush1.msra.mxu0 0.0
      %5754 = vmatprep.subr.mxu0 0.0
      %5755 = vmatpush1.msra.mxu0 0.0
      %5756 = vmatprep.subr.mxu0 0.0
      %5757 = vmatpush1.msra.mxu0 0.0
      %5758 = vmatprep.subr.mxu0 0.0
      %5759 = vmatpush1.msra.mxu0 0.0
      %5760 = vmatprep.subr.mxu0 0.0
      %5761 = vmatpush1.msra.mxu0 0.0
      %5762 = vmatprep.subr.mxu0 0.0
      %5763 = vmatpush1.msra.mxu0 0.0
      %5764 = vmatprep.subr.mxu0 %v5726
      %5765 = vmatpush1.msra.mxu0 %v5723
      %5766 = vmatprep.subr.mxu0 0.0
      %5767 = vmatpush2.msra.mxu0 0.0
      %5768 = vmatprep.subr.mxu0 0.0
      %5769 = vmatpush2.msra.mxu0 0.0
      %5770 = vmatprep.subr.mxu0 0.0
      %5771 = vmatpush2.msra.mxu0 0.0
      %5772 = vmatprep.subr.mxu0 0.0
      %5773 = vmatpush2.msra.mxu0 0.0
      %5774 = vmatprep.subr.mxu0 0.0
      %5775 = vmatpush2.msra.mxu0 0.0
      %5776 = vmatprep.subr.mxu0 0.0
      %5777 = vmatpush2.msra.mxu0 0.0
      %5778 = vmatprep.subr.mxu0 0.0
      %5779 = vmatpush2.msra.mxu0 0.0
      %5780 = vmatprep.subr.mxu0 0.0
      %5781 = vmatpush2.msra.mxu0 0.0
      %5782 = vmatprep.subr.mxu0 0.0
      %5783 = vmatpush2.msra.mxu0 0.0
      %5784 = vmatprep.subr.mxu0 0.0
      %5785 = vmatpush2.msra.mxu0 0.0
      %5786 = vmatprep.subr.mxu0 0.0
      %5787 = vmatpush2.msra.mxu0 0.0
      %5788 = vmatprep.subr.mxu0 0.0
      %5789 = vmatpush2.msra.mxu0 0.0
      %5790 = vmatprep.subr.mxu0 0.0
      %5791 = vmatpush2.msra.mxu0 0.0
      %5792 = vmatprep.subr.mxu0 0.0
      %5793 = vmatpush2.msra.mxu0 0.0
      %5794 = vmatprep.subr.mxu0 0.0
      %5795 = vmatpush2.msra.mxu0 0.0
      %5796 = vmatprep.subr.mxu0 0.0
      %5797 = vmatpush2.msra.mxu0 0.0
      %5798 = vmatprep.mubr.f32.mxu0 0.0
      %5799 = vmatmul.mubr.f32.gmra.mxu0 %v5720
      %v5800 = vpop.f32.mrf.mxu0
      %v5801 = vadd.f32 0.0, %v5800
      %v5802 = vpop.f32.mrf.mxu0
      %v5803 = vadd.f32 0.0, %v5802
      %5804 = vdwg.mxu0
      %5805 = vmatprep.subr.mxu0 0.0
      %5806 = vmatpush1.msra.mxu0 0.0
      %5807 = vmatprep.subr.mxu0 0.0
      %5808 = vmatpush1.msra.mxu0 0.0
      %5809 = vmatprep.subr.mxu0 0.0
      %5810 = vmatpush1.msra.mxu0 0.0
      %5811 = vmatprep.subr.mxu0 0.0
      %5812 = vmatpush1.msra.mxu0 0.0
      %5813 = vmatprep.subr.mxu0 0.0
      %5814 = vmatpush1.msra.mxu0 0.0
      %5815 = vmatprep.subr.mxu0 0.0
      %5816 = vmatpush1.msra.mxu0 0.0
      %5817 = vmatprep.subr.mxu0 0.0
      %5818 = vmatpush1.msra.mxu0 0.0
      %5819 = vmatprep.subr.mxu0 0.0
      %5820 = vmatpush1.msra.mxu0 0.0
      %5821 = vmatprep.subr.mxu0 0.0
      %5822 = vmatpush1.msra.mxu0 0.0
      %5823 = vmatprep.subr.mxu0 0.0
      %5824 = vmatpush1.msra.mxu0 0.0
      %5825 = vmatprep.subr.mxu0 0.0
      %5826 = vmatpush1.msra.mxu0 0.0
      %5827 = vmatprep.subr.mxu0 0.0
      %5828 = vmatpush1.msra.mxu0 0.0
      %5829 = vmatprep.subr.mxu0 0.0
      %5830 = vmatpush1.msra.mxu0 0.0
      %5831 = vmatprep.subr.mxu0 0.0
      %5832 = vmatpush1.msra.mxu0 0.0
      %5833 = vmatprep.subr.mxu0 0.0
      %5834 = vmatpush1.msra.mxu0 0.0
      %5835 = vmatprep.subr.mxu0 %v5732
      %5836 = vmatpush1.msra.mxu0 %v5729
      %5837 = vmatprep.subr.mxu0 0.0
      %5838 = vmatpush2.msra.mxu0 0.0
      %5839 = vmatprep.subr.mxu0 0.0
      %5840 = vmatpush2.msra.mxu0 0.0
      %5841 = vmatprep.subr.mxu0 0.0
      %5842 = vmatpush2.msra.mxu0 0.0
      %5843 = vmatprep.subr.mxu0 0.0
      %5844 = vmatpush2.msra.mxu0 0.0
      %5845 = vmatprep.subr.mxu0 0.0
      %5846 = vmatpush2.msra.mxu0 0.0
      %5847 = vmatprep.subr.mxu0 0.0
      %5848 = vmatpush2.msra.mxu0 0.0
      %5849 = vmatprep.subr.mxu0 0.0
      %5850 = vmatpush2.msra.mxu0 0.0
      %5851 = vmatprep.subr.mxu0 0.0
      %5852 = vmatpush2.msra.mxu0 0.0
      %5853 = vmatprep.subr.mxu0 0.0
      %5854 = vmatpush2.msra.mxu0 0.0
      %5855 = vmatprep.subr.mxu0 0.0
      %5856 = vmatpush2.msra.mxu0 0.0
      %5857 = vmatprep.subr.mxu0 0.0
      %5858 = vmatpush2.msra.mxu0 0.0
      %5859 = vmatprep.subr.mxu0 0.0
      %5860 = vmatpush2.msra.mxu0 0.0
      %5861 = vmatprep.subr.mxu0 0.0
      %5862 = vmatpush2.msra.mxu0 0.0
      %5863 = vmatprep.subr.mxu0 0.0
      %5864 = vmatpush2.msra.mxu0 0.0
      %5865 = vmatprep.subr.mxu0 0.0
      %5866 = vmatpush2.msra.mxu0 0.0
      %5867 = vmatprep.subr.mxu0 0.0
      %5868 = vmatpush2.msra.mxu0 0.0
      %5869 = vmatprep.mubr.f32.mxu0 0.0
      %5870 = vmatmul.mubr.f32.gmra.mxu0 %v5720
      %v5871 = vpop.f32.mrf.mxu0
      %v5872 = vadd.f32 0.0, %v5871
      %v5873 = vpop.f32.mrf.mxu0
      %v5874 = vadd.f32 0.0, %v5873
      %5875 = vdwg.mxu0
      %v5876 = vadd.f32 %v5662, %v5801
      %v5877 = vadd.f32 %v5663, %v5803
      %v5878 = vadd.f32 %v5664, %v5872
      %v5879 = vadd.f32 %v5665, %v5874
      %v5880 = vld [vmem:[%s342 + $0x4] sm:$0xff]
      %v5881 = vld [vmem:[%s342 + $0xc] sm:$0xff]
      %v5882 = vld [vmem:[%s342 + $0x14] sm:$0xf]
      %vm5883 = vmand %vm5453, %vm361
      %v5884 = vsel %vm5883, 1, 0
      %v5885 = vlaneseq
      %v5886 = vshrl.u32 %v5885, 7
      %v5887 = vsub.s32 0, %v5886
      %v5888 = vrot.slane %v5884, %v5887
      %v5889 = vlaneseq
      %v5890 = vshrl.u32 %v5889, 7
      %v5891 = vsub.s32 1, %v5890
      %v5892 = vrot.slane %v5884, %v5891
      %v5893 = vlaneseq
      %v5894 = vshrl.u32 %v5893, 7
      %v5895 = vsub.s32 2, %v5894
      %v5896 = vrot.slane %v5884, %v5895
      %v5897 = vlaneseq
      %v5898 = vshrl.u32 %v5897, 7
      %v5899 = vsub.s32 3, %v5898
      %v5900 = vrot.slane %v5884, %v5899
      %vm5901 = vcmp.eq.s32.totalorder %v5888, 1
      %vm5902 = vcmp.eq.s32.totalorder %v5892, 1
      %vm5903 = vcmp.eq.s32.totalorder %v5896, 1
      %vm5904 = vcmp.eq.s32.totalorder %v5900, 1
      %v5908 = vcombine.high %v5880, %v5880
      %v5909 = vcombine.high %v5881, %v5881
      %5910 = vrot.lane.b32.xlu0 %v5880, 110
      %v5911 = vpop.permute.xlu0 %5910
      %5912 = vrot.lane.b32.xlu0 %v5908, 110
      %v5913 = vpop.permute.xlu0 %5912
      %5914 = vrot.lane.b32.xlu0 %v5881, 110
      %v5915 = vpop.permute.xlu0 %5914
      %5916 = vrot.lane.b32.xlu0 %v5909, 110
      %v5917 = vpop.permute.xlu0 %5916
      %5918 = vrot.lane.b32.xlu0 %v5882, 110
      %v5919 = vpop.permute.xlu0 %5918
      %v5920 = vsel %vm2097, %v5911, %v5913
      %v5921 = vsel %vm2097, %v5913, %v5915
      %v5922 = vsel %vm2097, %v5915, %v5917
      %v5923 = vsel %vm2097, %v5917, %v5919
      %v5928 = vsel %vm5901, %v5920, 0.0
      %v5929 = vsel %vm5902, %v5921, 0.0
      %v5930 = vsel %vm5903, %v5922, 0.0
      %v5931 = vsel %vm5904, %v5923, 0.0
      %s5932 = scalar_lea.vmem %s5, 104
      %v5933 = vld [vmem:[%s5932] sm:$0xf]
      %v5935 = vsel %vm446, %v5933, 0
      %v5938 = vsel %vm450, %v5928, 0
      %v5941 = vsel %vm450, %v5929, 0
      %v5944 = vsel %vm450, %v5930, 0
      %v5947 = vsel %vm450, %v5931, 0
      %5949 = vmatprep.subr.mxu0 0.0
      %5950 = vmatpush1.msra.mxu0 0.0
      %5951 = vmatprep.subr.mxu0 0.0
      %5952 = vmatpush1.msra.mxu0 0.0
      %5953 = vmatprep.subr.mxu0 0.0
      %5954 = vmatpush1.msra.mxu0 0.0
      %5955 = vmatprep.subr.mxu0 0.0
      %5956 = vmatpush1.msra.mxu0 0.0
      %5957 = vmatprep.subr.mxu0 0.0
      %5958 = vmatpush1.msra.mxu0 0.0
      %5959 = vmatprep.subr.mxu0 0.0
      %5960 = vmatpush1.msra.mxu0 0.0
      %5961 = vmatprep.subr.mxu0 0.0
      %5962 = vmatpush1.msra.mxu0 0.0
      %5963 = vmatprep.subr.mxu0 0.0
      %5964 = vmatpush1.msra.mxu0 0.0
      %5965 = vmatprep.subr.mxu0 0.0
      %5966 = vmatpush1.msra.mxu0 0.0
      %5967 = vmatprep.subr.mxu0 0.0
      %5968 = vmatpush1.msra.mxu0 0.0
      %5969 = vmatprep.subr.mxu0 0.0
      %5970 = vmatpush1.msra.mxu0 0.0
      %5971 = vmatprep.subr.mxu0 0.0
      %5972 = vmatpush1.msra.mxu0 0.0
      %5973 = vmatprep.subr.mxu0 0.0
      %5974 = vmatpush1.msra.mxu0 0.0
      %5975 = vmatprep.subr.mxu0 0.0
      %5976 = vmatpush1.msra.mxu0 0.0
      %5977 = vmatprep.subr.mxu0 0.0
      %5978 = vmatpush1.msra.mxu0 0.0
      %5979 = vmatprep.subr.mxu0 %v5941
      %5980 = vmatpush1.msra.mxu0 %v5938
      %5981 = vmatprep.subr.mxu0 0.0
      %5982 = vmatpush2.msra.mxu0 0.0
      %5983 = vmatprep.subr.mxu0 0.0
      %5984 = vmatpush2.msra.mxu0 0.0
      %5985 = vmatprep.subr.mxu0 0.0
      %5986 = vmatpush2.msra.mxu0 0.0
      %5987 = vmatprep.subr.mxu0 0.0
      %5988 = vmatpush2.msra.mxu0 0.0
      %5989 = vmatprep.subr.mxu0 0.0
      %5990 = vmatpush2.msra.mxu0 0.0
      %5991 = vmatprep.subr.mxu0 0.0
      %5992 = vmatpush2.msra.mxu0 0.0
      %5993 = vmatprep.subr.mxu0 0.0
      %5994 = vmatpush2.msra.mxu0 0.0
      %5995 = vmatprep.subr.mxu0 0.0
      %5996 = vmatpush2.msra.mxu0 0.0
      %5997 = vmatprep.subr.mxu0 0.0
      %5998 = vmatpush2.msra.mxu0 0.0
      %5999 = vmatprep.subr.mxu0 0.0
      %6000 = vmatpush2.msra.mxu0 0.0
      %6001 = vmatprep.subr.mxu0 0.0
      %6002 = vmatpush2.msra.mxu0 0.0
      %6003 = vmatprep.subr.mxu0 0.0
      %6004 = vmatpush2.msra.mxu0 0.0
      %6005 = vmatprep.subr.mxu0 0.0
      %6006 = vmatpush2.msra.mxu0 0.0
      %6007 = vmatprep.subr.mxu0 0.0
      %6008 = vmatpush2.msra.mxu0 0.0
      %6009 = vmatprep.subr.mxu0 0.0
      %6010 = vmatpush2.msra.mxu0 0.0
      %6011 = vmatprep.subr.mxu0 0.0
      %6012 = vmatpush2.msra.mxu0 0.0
      %6013 = vmatprep.mubr.f32.mxu0 0.0
      %6014 = vmatmul.mubr.f32.gmra.mxu0 %v5935
      %v6015 = vpop.f32.mrf.mxu0
      %v6016 = vadd.f32 0.0, %v6015
      %v6017 = vpop.f32.mrf.mxu0
      %v6018 = vadd.f32 0.0, %v6017
      %6019 = vdwg.mxu0
      %6020 = vmatprep.subr.mxu0 0.0
      %6021 = vmatpush1.msra.mxu0 0.0
      %6022 = vmatprep.subr.mxu0 0.0
      %6023 = vmatpush1.msra.mxu0 0.0
      %6024 = vmatprep.subr.mxu0 0.0
      %6025 = vmatpush1.msra.mxu0 0.0
      %6026 = vmatprep.subr.mxu0 0.0
      %6027 = vmatpush1.msra.mxu0 0.0
      %6028 = vmatprep.subr.mxu0 0.0
      %6029 = vmatpush1.msra.mxu0 0.0
      %6030 = vmatprep.subr.mxu0 0.0
      %6031 = vmatpush1.msra.mxu0 0.0
      %6032 = vmatprep.subr.mxu0 0.0
      %6033 = vmatpush1.msra.mxu0 0.0
      %6034 = vmatprep.subr.mxu0 0.0
      %6035 = vmatpush1.msra.mxu0 0.0
      %6036 = vmatprep.subr.mxu0 0.0
      %6037 = vmatpush1.msra.mxu0 0.0
      %6038 = vmatprep.subr.mxu0 0.0
      %6039 = vmatpush1.msra.mxu0 0.0
      %6040 = vmatprep.subr.mxu0 0.0
      %6041 = vmatpush1.msra.mxu0 0.0
      %6042 = vmatprep.subr.mxu0 0.0
      %6043 = vmatpush1.msra.mxu0 0.0
      %6044 = vmatprep.subr.mxu0 0.0
      %6045 = vmatpush1.msra.mxu0 0.0
      %6046 = vmatprep.subr.mxu0 0.0
      %6047 = vmatpush1.msra.mxu0 0.0
      %6048 = vmatprep.subr.mxu0 0.0
      %6049 = vmatpush1.msra.mxu0 0.0
      %6050 = vmatprep.subr.mxu0 %v5947
      %6051 = vmatpush1.msra.mxu0 %v5944
      %6052 = vmatprep.subr.mxu0 0.0
      %6053 = vmatpush2.msra.mxu0 0.0
      %6054 = vmatprep.subr.mxu0 0.0
      %6055 = vmatpush2.msra.mxu0 0.0
      %6056 = vmatprep.subr.mxu0 0.0
      %6057 = vmatpush2.msra.mxu0 0.0
      %6058 = vmatprep.subr.mxu0 0.0
      %6059 = vmatpush2.msra.mxu0 0.0
      %6060 = vmatprep.subr.mxu0 0.0
      %6061 = vmatpush2.msra.mxu0 0.0
      %6062 = vmatprep.subr.mxu0 0.0
      %6063 = vmatpush2.msra.mxu0 0.0
      %6064 = vmatprep.subr.mxu0 0.0
      %6065 = vmatpush2.msra.mxu0 0.0
      %6066 = vmatprep.subr.mxu0 0.0
      %6067 = vmatpush2.msra.mxu0 0.0
      %6068 = vmatprep.subr.mxu0 0.0
      %6069 = vmatpush2.msra.mxu0 0.0
      %6070 = vmatprep.subr.mxu0 0.0
      %6071 = vmatpush2.msra.mxu0 0.0
      %6072 = vmatprep.subr.mxu0 0.0
      %6073 = vmatpush2.msra.mxu0 0.0
      %6074 = vmatprep.subr.mxu0 0.0
      %6075 = vmatpush2.msra.mxu0 0.0
      %6076 = vmatprep.subr.mxu0 0.0
      %6077 = vmatpush2.msra.mxu0 0.0
      %6078 = vmatprep.subr.mxu0 0.0
      %6079 = vmatpush2.msra.mxu0 0.0
      %6080 = vmatprep.subr.mxu0 0.0
      %6081 = vmatpush2.msra.mxu0 0.0
      %6082 = vmatprep.subr.mxu0 0.0
      %6083 = vmatpush2.msra.mxu0 0.0
      %6084 = vmatprep.mubr.f32.mxu0 0.0
      %6085 = vmatmul.mubr.f32.gmra.mxu0 %v5935
      %v6086 = vpop.f32.mrf.mxu0
      %v6087 = vadd.f32 0.0, %v6086
      %v6088 = vpop.f32.mrf.mxu0
      %v6089 = vadd.f32 0.0, %v6088
      %6090 = vdwg.mxu0
      %v6091 = vadd.f32 %v5876, %v6016
      %v6092 = vadd.f32 %v5877, %v6018
      %v6093 = vadd.f32 %v5878, %v6087
      %v6094 = vadd.f32 %v5879, %v6089
      %v6095 = vld [vmem:[%s6] sm:$0xf]
      %6097 = vset.pattern.permute.xlu0 0
      %6098 = vperm.xlu0 %6097, %v6095
      %v6099 = vpop.permute.xlu0 %6098
      %v6101 = vadd.f32 %v6091, %v6099
      %v6102 = vadd.f32 %v6092, %v6099
      %v6103 = vadd.f32 %v6093, %v6099
      %v6104 = vadd.f32 %v6094, %v6099
      %v6105 = vsel %vm450, %v6101, 0.0
      %v6106 = vsel %vm450, %v6102, 0.0
      %v6107 = vadd.f32 %v6105, %v6106
      %v6108 = vsel %vm450, %v6103, 0.0
      %v6109 = vadd.f32 %v6107, %v6108
      %v6110 = vsel %vm450, %v6104, 0.0
      %v6111 = vadd.f32 %v6109, %v6110
      %6112 = vadd.xlane.f32.xlu0 %v6111
      %v6113 = vpop.xlane.xlu0 %6112
      %v6114 = vrcp.pop 512.0
      %v6115 = vmul.f32 %v6113, %v6114
      %v6116 = vsub.f32 %v6101, %v6115
      %v6117 = vsub.f32 %v6102, %v6115
      %v6118 = vsub.f32 %v6103, %v6115
      %v6119 = vsub.f32 %v6104, %v6115
      %v6120 = vmul.f32 %v6116, %v6116
      %v6121 = vmul.f32 %v6117, %v6117
      %v6122 = vmul.f32 %v6118, %v6118
      %v6123 = vmul.f32 %v6119, %v6119
      %v6124 = vsel %vm450, %v6120, 0.0
      %v6125 = vsel %vm450, %v6121, 0.0
      %v6126 = vadd.f32 %v6124, %v6125
      %v6127 = vsel %vm450, %v6122, 0.0
      %v6128 = vadd.f32 %v6126, %v6127
      %v6129 = vsel %vm450, %v6123, 0.0
      %v6130 = vadd.f32 %v6128, %v6129
      %6131 = vadd.xlane.f32.xlu0 %v6130
      %v6132 = vpop.xlane.xlu0 %6131
      %v6133 = vmul.f32 %v6132, %v6114
      %v6134 = vld [vmem:[%s7] sm:$0xf]
      %v6135 = vadd.f32 %v6133, 1e-05
      %v6136 = vrsqrt.pop %v6135
      %v6137 = vmul.f32 %v6116, %v6136
      %v6138 = vmul.f32 %v6117, %v6136
      %v6139 = vmul.f32 %v6118, %v6136
      %v6140 = vmul.f32 %v6119, %v6136
      %6142 = vset.pattern.permute.xlu0 0
      %6143 = vperm.xlu0 %6142, %v6134
      %v6144 = vpop.permute.xlu0 %6143
      %v6146 = vmul.f32 %v6144, %v6137
      %v6147 = vmul.f32 %v6144, %v6138
      %v6148 = vmul.f32 %v6144, %v6139
      %v6149 = vmul.f32 %v6144, %v6140
      %v6150 = vld [vmem:[%s8] sm:$0xf]
      %6152 = vset.pattern.permute.xlu0 0
      %6153 = vperm.xlu0 %6152, %v6150
      %v6154 = vpop.permute.xlu0 %6153
      %v6156 = vadd.f32 %v6146, %v6154
      %v6157 = vadd.f32 %v6147, %v6154
      %v6158 = vadd.f32 %v6148, %v6154
      %v6159 = vadd.f32 %v6149, %v6154
      %vm6160 = vcmp.ge.f32.partialorder %v6156, 0.0
      %vm6161 = vcmp.ge.f32.partialorder %v6157, 0.0
      %vm6162 = vcmp.ge.f32.partialorder %v6158, 0.0
      %vm6163 = vcmp.ge.f32.partialorder %v6159, 0.0
      %v6164 = vmul.f32 %v6156, 0.01
      %v6165 = vmul.f32 %v6157, 0.01
      %v6166 = vmul.f32 %v6158, 0.01
      %v6167 = vmul.f32 %v6159, 0.01
      %v6168 = vsel %vm6160, %v6156, %v6164
      %v6169 = vsel %vm6161, %v6157, %v6165
      %v6170 = vsel %vm6162, %v6158, %v6166
      %v6171 = vsel %vm6163, %v6159, %v6167
      %6172 = vst [vmem:[%s352] sm:$0xf] %v6168
      %6173 = vst [vmem:[%s352 + $0x8] sm:$0xf] %v6169
      %6174 = vst [vmem:[%s352 + $0x10] sm:$0xf] %v6170
      %6175 = vst [vmem:[%s352 + $0x18] sm:$0xf] %v6171
      %v6176 = vld [vmem:[%s347] sm:$0xff]
      %v6177 = vld [vmem:[%s347 + $0x8] sm:$0xff]
      %v6180 = vcombine.low %v6176, %v6176
      %v6181 = vcombine.low %v6177, %v6177
      %6184 = vst [vmem:[%s352] sm:$0xf0] %v6180
      %6185 = vst [vmem:[%s352 + $0x8] sm:$0xf0] %v6176
      %6186 = vst [vmem:[%s352 + $0x10] sm:$0xf0] %v6181
      %6187 = vst [vmem:[%s352 + $0x18] sm:$0xf0] %v6177
      %p6188 = scmp.lt.s32.totalorder %s20, 1
      %s6189 = scalar_select %p6188, %s20, 1
      %s6190 = smul.addr %s6189, 4
      %s6191 = smul.addr %s6190, 8
      %s6192 = scalar_lea.vmem %s9, %s6191
      // Predicated region
      $region57: #{up_convolutional_block_forward.3} parent=55 // pred_check
        %p6193 = pneg %p237
      $region58: #{up_convolutional_block_forward.3} parent=55 // pred_check_branch
        %6195 = sbr.rel (%p6193) target = $region60
      $region59: #{up_convolutional_block_forward.3} parent=55 // pred_region
        _
      $region60: #{up_convolutional_block_forward.3} parent=55 // pred_fallthru
        _
    $region56: #{up_convolutional_block_forward.3} parent=5 // pred_fallthru
      _
    %p6196 = scmp.le.s32.totalorder 2, %s15
    // Predicated region
    $region61: #{up_convolutional_block_forward.3} parent=5 // pred_check
      %p6197 = pneg %p6196
    $region62: #{up_convolutional_block_forward.3} parent=5 // pred_check_branch
      %6199 = sbr.rel (%p6197) target = $region64
    $region63: #{up_convolutional_block_forward.3} parent=5 // pred_region
      %s6200 = ssub.s32 %s15, 2
      // Predicated region
      $region65: #{up_convolutional_block_forward.3} parent=63 // pred_check
        %p6201 = pneg %p243
      $region66: #{up_convolutional_block_forward.3} parent=63 // pred_check_branch
        %6203 = sbr.rel (%p6201) target = $region68
      $region67: #{up_convolutional_block_forward.3} parent=63 // pred_region
        %p6204 = scmp.lt.s32.totalorder %s21, 1
        %s6205 = scalar_select %p6204, %s21, 1
        %s6206 = smul.addr %s6205, 4
        %s6207 = smul.addr %s6206, 8
        %s6208 = scalar_lea.vmem %s9, %s6207
      $region68: #{up_convolutional_block_forward.3} parent=63 // pred_fallthru
        _
    $region64: #{up_convolutional_block_forward.3} parent=5 // pred_fallthru
      _
  $region6: #{up_convolutional_block_forward.3} parent=0 // loop_footer
    %s19 = sadd.s32 1, %s15
  $region7: #{up_convolutional_block_forward.3} parent=0 // loop_footer_branch
    %14 = sbr.rel target = $region3
  $region8: #{up_convolutional_block_forward.3} parent=0 // loop_exit
    _

</llo_original>
